<compile_context>
chip_gen: v7x
topology: tpu7x:2x2x1
jax: 0.10.0
libtpu: 0.0.40
codegen_flags: <defaults>
</compile_context>

<pallas_src>
import jax
import jax.numpy as jnp
from jax.experimental import pallas as pl
from jax.experimental.pallas import tpu as pltpu


_VMEM_LIMIT = 48 * 1024 * 1024
# runtime switches flipped by the self-check if a kernel fails to lower;
# the jnp / im2col fallback keeps the forward pass correct in that case.
_PALLAS_OK = {"conv3x3": True, "matmul": True}


def _pick_tile(dim, candidates):
    for c in candidates:
        if dim % c == 0:
            return c
    return None


# ----------------------------------------------------------------------------
# Kernel 1: fused 3x3 conv (in-kernel tap gather) + bias epilogue
# ----------------------------------------------------------------------------
def _conv3x3_kernel(x_ref, w_ref, b_ref, o_ref):
    # x_ref: (1, H+2, W+2, tk) bf16  spatially padded input slab
    # w_ref: (9, tk, tn)       bf16  taps laid out as (di*3+dj, cin, cout)
    # b_ref: (1, tn)           f32
    # o_ref: (1, H, W, tn)     f32   resident across the Cin grid axis (k)
    H, W, tn = o_ref.shape[1], o_ref.shape[2], o_ref.shape[3]
    tk = x_ref.shape[3]
    kc = pl.program_id(2)

    @pl.when(kc == 0)
    def _():
        o_ref[...] = jnp.zeros_like(o_ref)

    acc = jnp.zeros((H * W, tn), jnp.float32)
    for di in range(3):
        for dj in range(3):
            a = x_ref[0, pl.ds(di, H), pl.ds(dj, W), :].reshape(H * W, tk)
            acc = acc + jnp.dot(a, w_ref[di * 3 + dj],
                                preferred_element_type=jnp.float32)
    o_ref[...] += acc.reshape(1, H, W, tn)

    @pl.when(kc == pl.num_programs(2) - 1)
    def _():
        o_ref[...] += b_ref[...].reshape(1, 1, 1, tn)


# ----------------------------------------------------------------------------
# Kernel 2: fused matmul + bias (1x1 conv, ConvTranspose2d, im2col fallback)
# ----------------------------------------------------------------------------
def _matmul_bias_kernel(a_ref, b_ref, bias_ref, o_ref):
    k = pl.program_id(2)

    @pl.when(k == 0)
    def _():
        o_ref[...] = jnp.zeros_like(o_ref)

    o_ref[...] += jnp.dot(a_ref[...], b_ref[...],
                          preferred_element_type=jnp.float32)

    @pl.when(k == pl.num_programs(2) - 1)
    def _():
        o_ref[...] += bias_ref[...]


def matmul_bias(a, b, bias, use_pallas=True):
    """a:(M,K) @ b:(K,Nc) + bias -> (M,Nc) f32; bf16 MXU inputs, f32 accum."""
    M, K = a.shape
    Nc = b.shape[1]
    # tiny / ragged / single-output-channel problems: plain jnp is faster than
    # a 128-lane-padded pallas_call (per the perf review).
    if ((not use_pallas) or (not _PALLAS_OK["matmul"]) or M < 128
            or M % 128 != 0 or Nc < 64 or K % 8 != 0):
        return a @ b + bias[None, :]

    tm = _pick_tile(M, (256, 512, 128))      # prefer 2 M-blocks (v7x megacore)
    tn = _pick_tile(Nc, (512, 256, 128)) or Nc
    tk = _pick_tile(K, (512, 256, 128)) or K

    a16 = a.astype(jnp.bfloat16)
    b16 = b.astype(jnp.bfloat16)
    bias2 = bias.reshape(1, Nc).astype(jnp.float32)

    return pl.pallas_call(
        _matmul_bias_kernel,
        out_shape=jax.ShapeDtypeStruct((M, Nc), jnp.float32),
        grid_spec=pltpu.PrefetchScalarGridSpec(
            num_scalar_prefetch=0,
            grid=(M // tm, Nc // tn, K // tk),
            in_specs=[
                pl.BlockSpec((tm, tk), lambda i, j, k: (i, k)),
                pl.BlockSpec((tk, tn), lambda i, j, k: (k, j)),
                pl.BlockSpec((1, tn), lambda i, j, k: (0, j)),
            ],
            out_specs=pl.BlockSpec((tm, tn), lambda i, j, k: (i, j)),
        ),
        compiler_params=pltpu.CompilerParams(
            dimension_semantics=("parallel", "parallel", "arbitrary"),
            vmem_limit_bytes=_VMEM_LIMIT,
        ),
        cost_estimate=pl.CostEstimate(
            flops=2 * M * Nc * K, transcendentals=0,
            bytes_accessed=M * K * 2 + K * Nc * 2 + M * Nc * 4),
    )(a16, b16, bias2)


# ----------------------------------------------------------------------------
# Conv wrappers (NHWC)
# ----------------------------------------------------------------------------
def conv3x3(x, w, b, use_pallas=True):
    """3x3 conv, padding=1, NHWC.  w: (Cout, Cin, 3, 3) torch layout."""
    N, H, W, Cin = x.shape
    Cout = w.shape[0]
    w9 = jnp.transpose(w, (2, 3, 1, 0)).reshape(9, Cin, Cout)  # (tap, cin, cout)

    fused = (use_pallas and _PALLAS_OK["conv3x3"]
             and H * W >= 64 and W % 8 == 0 and Cin % 8 == 0)
    if not fused:
        # im2col fallback: tiny spatial levels, the 3-channel stem, reference.
        xp = jnp.pad(x, ((0, 0), (1, 1), (1, 1), (0, 0)))
        cols = [xp[:, di:di + H, dj:dj + W, :]
                for di in range(3) for dj in range(3)]
        a = jnp.concatenate(cols, axis=-1).reshape(N * H * W, 9 * Cin)
        y = matmul_bias(a, w9.reshape(9 * Cin, Cout), b, use_pallas=use_pallas)
        return y.reshape(N, H, W, Cout)

    tk = _pick_tile(Cin, (512, 256, 128)) or Cin
    tn = _pick_tile(Cout, (512, 256, 128)) or Cout

    # keep the double-buffered working set within the VMEM budget (v7x: 64 MiB
    # physical).  NOTE: the whole H x W plane lives in VMEM per block; for very
    # large images an additional spatial grid axis would be needed.
    def est(tk_, tn_):
        return (2 * (H + 2) * (W + 2) * tk_ * 2 + 2 * 9 * tk_ * tn_ * 2
                + 2 * H * W * tn_ * 4)
    while est(tk, tn) > _VMEM_LIMIT * 3 // 4 and (tk > 128 or tn > 128):
        if tk >= tn and tk > 128:
            tk //= 2
        elif tn > 128:
            tn //= 2
        else:
            break

    xp = jnp.pad(x.astype(jnp.bfloat16), ((0, 0), (1, 1), (1, 1), (0, 0)))
    w9 = w9.astype(jnp.bfloat16)
    bias = b.reshape(1, Cout).astype(jnp.float32)

    return pl.pallas_call(
        _conv3x3_kernel,
        out_shape=jax.ShapeDtypeStruct((N, H, W, Cout), jnp.float32),
        grid_spec=pltpu.PrefetchScalarGridSpec(
            num_scalar_prefetch=0,
            grid=(N, Cout // tn, Cin // tk),
            in_specs=[
                pl.BlockSpec((1, H + 2, W + 2, tk), lambda n, j, k: (n, 0, 0, k)),
                pl.BlockSpec((9, tk, tn), lambda n, j, k: (0, k, j)),
                pl.BlockSpec((1, tn), lambda n, j, k: (0, j)),
            ],
            out_specs=pl.BlockSpec((1, H, W, tn), lambda n, j, k: (n, 0, 0, j)),
        ),
        compiler_params=pltpu.CompilerParams(
            dimension_semantics=("parallel", "parallel", "arbitrary"),
            vmem_limit_bytes=_VMEM_LIMIT,
        ),
        cost_estimate=pl.CostEstimate(
            flops=2 * N * H * W * 9 * Cin * Cout,
            transcendentals=0,
            bytes_accessed=xp.size * 2 + w9.size * 2 + N * H * W * Cout * 4),
    )(xp, w9, bias)


def conv1x1(x, w, b, use_pallas=True):
    # w: (Cout, Cin, 1, 1)
    N, H, W, Cin = x.shape
    Cout = w.shape[0]
    a = x.reshape(N * H * W, Cin)
    y = matmul_bias(a, w.reshape(Cout, Cin).T, b, use_pallas=use_pallas)
    return y.reshape(N, H, W, Cout)


def conv_transpose2x2(x, w, b, use_pallas=True):
    # torch ConvTranspose2d(Cin, Cout, 2, stride=2); w: (Cin, Cout, 2, 2)
    N, H, W, Cin = x.shape
    Cout = w.shape[1]
    a = x.reshape(N * H * W, Cin)
    wt = jnp.transpose(w, (0, 2, 3, 1)).reshape(Cin, 4 * Cout)  # (cin,(di,dj,co))
    y = matmul_bias(a, wt, jnp.tile(b, 4), use_pallas=use_pallas)
    y = y.reshape(N, H, W, 2, 2, Cout)
    y = jnp.transpose(y, (0, 1, 3, 2, 4, 5)).reshape(N, 2 * H, 2 * W, Cout)
    return y


# ----------------------------------------------------------------------------
# jnp glue: BatchNorm(training batch stats)+ReLU, MaxPool2d(2)  (NHWC)
# ----------------------------------------------------------------------------
def bn_relu(x, gamma, beta, eps=1e-5):
    mean = x.mean(axis=(0, 1, 2), keepdims=True)
    var = x.var(axis=(0, 1, 2), keepdims=True)            # biased, like torch BN
    y = (x - mean) * jax.lax.rsqrt(var + eps)
    y = y * gamma[None, None, None, :] + beta[None, None, None, :]
    return jnp.maximum(y, 0.0)


def maxpool2(x):
    N, H, W, C = x.shape
    return x.reshape(N, H // 2, 2, W // 2, 2, C).max(axis=(2, 4))


# ----------------------------------------------------------------------------
# Parameter init (deterministic, synthetic)
# ----------------------------------------------------------------------------
def _conv_w(key, co, ci, kh, kw):
    fan_in = ci * kh * kw
    return jax.random.normal(key, (co, ci, kh, kw), jnp.float32) / jnp.sqrt(fan_in)


def init_double_conv(key, cin, cout):
    k1, k2, k3, k4 = jax.random.split(key, 4)
    return {
        "w1": _conv_w(k1, cout, cin, 3, 3),
        "b1": 0.01 * jax.random.normal(k2, (cout,), jnp.float32),
        "g1": jnp.ones((cout,), jnp.float32),
        "be1": jnp.zeros((cout,), jnp.float32),
        "w2": _conv_w(k3, cout, cout, 3, 3),
        "b2": 0.01 * jax.random.normal(k4, (cout,), jnp.float32),
        "g2": jnp.ones((cout,), jnp.float32),
        "be2": jnp.zeros((cout,), jnp.float32),
    }


def init_up(key, cin, cout):
    k1, k2 = jax.random.split(key)
    w = jax.random.normal(k1, (cin, cout, 2, 2), jnp.float32) / jnp.sqrt(cin * 4)
    b = 0.01 * jax.random.normal(k2, (cout,), jnp.float32)
    return {"w": w, "b": b}


def init_unet(key, in_ch=3, out_ch=1):
    keys = jax.random.split(key, 16)
    p = {}
    p["conv1"] = init_double_conv(keys[0], in_ch, 64)
    p["conv2"] = init_double_conv(keys[1], 64, 128)
    p["conv3"] = init_double_conv(keys[2], 128, 256)
    p["conv4"] = init_double_conv(keys[3], 256, 512)
    p["conv5"] = init_double_conv(keys[4], 512, 1024)
    p["up6"] = init_up(keys[5], 1024, 512)
    p["conv6"] = init_double_conv(keys[6], 1024, 512)
    p["up7"] = init_up(keys[7], 512, 256)
    p["conv7"] = init_double_conv(keys[8], 512, 256)
    p["up8"] = init_up(keys[9], 256, 128)
    p["conv8"] = init_double_conv(keys[10], 256, 128)
    p["up9"] = init_up(keys[11], 128, 64)
    p["conv9"] = init_double_conv(keys[12], 128, 64)
    p["conv10_w"] = _conv_w(keys[13], out_ch, 64, 1, 1)
    p["conv10_b"] = 0.01 * jax.random.normal(keys[14], (out_ch,), jnp.float32)
    return p


# ----------------------------------------------------------------------------
# Forward pass (mirrors torch Unet.forward); NHWC internally, NCHW外部 API
# ----------------------------------------------------------------------------
def double_conv(p, x):
    x = bn_relu(conv3x3(x, p["w1"], p["b1"]), p["g1"], p["be1"])
    x = bn_relu(conv3x3(x, p["w2"], p["b2"]), p["g2"], p["be2"])
    return x


def unet_forward(params, x_nchw):
    x = jnp.transpose(x_nchw, (0, 2, 3, 1))   # NHWC: channels on the lane axis

    c1 = double_conv(params["conv1"], x)
    p1 = maxpool2(c1)
    c2 = double_conv(params["conv2"], p1)
    p2 = maxpool2(c2)
    c3 = double_conv(params["conv3"], p2)
    p3 = maxpool2(c3)
    c4 = double_conv(params["conv4"], p3)
    p4 = maxpool2(c4)
    c5 = double_conv(params["conv5"], p4)

    up_6 = conv_transpose2x2(c5, params["up6"]["w"], params["up6"]["b"])
    merge6 = jnp.concatenate([up_6, c4], axis=-1)
    c6 = double_conv(params["conv6"], merge6)

    up_7 = conv_transpose2x2(c6, params["up7"]["w"], params["up7"]["b"])
    merge7 = jnp.concatenate([up_7, c3], axis=-1)
    c7 = double_conv(params["conv7"], merge7)

    up_8 = conv_transpose2x2(c7, params["up8"]["w"], params["up8"]["b"])
    merge8 = jnp.concatenate([up_8, c2], axis=-1)
    c8 = double_conv(params["conv8"], merge8)

    up_9 = conv_transpose2x2(c8, params["up9"]["w"], params["up9"]["b"])
    merge9 = jnp.concatenate([up_9, c1], axis=-1)
    c9 = double_conv(params["conv9"], merge9)

    c10 = conv1x1(c9, params["conv10_w"], params["conv10_b"])  # Cout=1 -> jnp
    out = jax.nn.sigmoid(c10)
    return jnp.transpose(out, (0, 3, 1, 2))   # back to NCHW


# ----------------------------------------------------------------------------
# Kernel self-check (bf16-level tolerance); disables a kernel + falls back to
# the jnp path if it fails to lower on this backend.
# ----------------------------------------------------------------------------
def _self_check():
    k1, k2, k3, k4 = jax.random.split(jax.random.PRNGKey(42), 4)

    def rel(a, b):
        return float(jnp.max(jnp.abs(a - b)) / (jnp.max(jnp.abs(b)) + 1e-6))

    x = jax.random.normal(k1, (2, 16, 16, 128), jnp.float32)
    w = jax.random.normal(k2, (256, 128, 3, 3), jnp.float32) / jnp.sqrt(9.0 * 128.0)
    b = jax.random.normal(k3, (256,), jnp.float32)
    try:
        got = jax.block_until_ready(conv3x3(x, w, b, use_pallas=True))
        ref = conv3x3(x, w, b, use_pallas=False)
        assert rel(got, ref) < 5e-2
    except Exception:
        _PALLAS_OK["conv3x3"] = False   # fall back to im2col + matmul kernel

    a = jax.random.normal(k4, (256, 512), jnp.float32)
    wt = jax.random.normal(k1, (512, 256), jnp.float32) / jnp.sqrt(512.0)
    bias = jax.random.normal(k2, (256,), jnp.float32)
    try:
        got = jax.block_until_ready(matmul_bias(a, wt, bias, use_pallas=True))
        ref = matmul_bias(a, wt, bias, use_pallas=False)
        assert rel(got, ref) < 5e-2
    except Exception:
        _PALLAS_OK["matmul"] = False    # fall back to jnp matmul


# ----------------------------------------------------------------------------
if __name__ == "__main__":
    _self_check()

    key = jax.random.PRNGKey(0)
    pkey, xkey = jax.random.split(key)
    params = init_unet(pkey, in_ch=3, out_ch=1)

    # spatial 16 survives the 4 maxpools (16 -> 8 -> 4 -> 2 -> 1)
    x = jax.random.normal(xkey, (2, 3, 16, 16), jnp.float32)

    out = jax.block_until_ready(jax.jit(unet_forward)(params, x))

    assert out.shape == (2, 1, 16, 16), out.shape
    assert bool(jnp.all(jnp.isfinite(out)))
    assert bool(jnp.all((out >= 0.0) & (out <= 1.0)))
    print("KERNEL_OK")
</pallas_src>

<mosaic_0001>
module attributes {stable_mosaic.version = 11 : i64} {
  func.func @_conv3x3_kernel(%arg0: i32, %arg1: i32, %arg2: i32, %arg3: memref<1x18x18x128xbf16, #tpu.memory_space<vmem>>, %arg4: memref<9x128x256xbf16, #tpu.memory_space<vmem>>, %arg5: memref<1x256xf32, #tpu.memory_space<vmem>>, %arg6: memref<1x16x16x256xf32, #tpu.memory_space<vmem>>) attributes {dimension_semantics = [#tpu.dimension_semantics<parallel>, #tpu.dimension_semantics<parallel>, #tpu.dimension_semantics<arbitrary>], iteration_bounds = array<i64: 2, 1, 1>, scalar_prefetch = 0 : i64, scratch_operands = 0 : i64, tpu.core_type = #tpu.core_type<tc>, window_params = [{transform_indices = @transform_0, window_bounds = array<i64: 1, 18, 18, 128>}, {transform_indices = @transform_1, window_bounds = array<i64: 9, 128, 256>}, {transform_indices = @transform_2, window_bounds = array<i64: 1, 256>}, {transform_indices = @transform_3, window_bounds = array<i64: 1, 16, 16, 256>}]} {
    %c0_i32 = arith.constant 0 : i32
    %0 = arith.cmpi eq, %arg2, %c0_i32 : i32
    %1 = arith.extui %0 : i1 to i32
    %c0_i32_0 = arith.constant 0 : i32
    %2 = arith.cmpi ne, %1, %c0_i32_0 : i32
    scf.if %2 {
      %cst_74 = arith.constant 0.000000e+00 : f32
      %74 = vector.broadcast %cst_74 : f32 to vector<1x16x16x256xf32>
      %c0_75 = arith.constant 0 : index
      %c0_76 = arith.constant 0 : index
      %c0_77 = arith.constant 0 : index
      %c0_78 = arith.constant 0 : index
      %75 = vector.load %arg6[%c0_75, %c0_76, %c0_77, %c0_78] : memref<1x16x16x256xf32, #tpu.memory_space<vmem>>, vector<1x16x16x256xf32>
      tpu.vector_store %arg6[%c0_75, %c0_76, %c0_77, %c0_78], %74 {strides = array<i32>} : memref<1x16x16x256xf32, #tpu.memory_space<vmem>>, vector<1x16x16x256xf32>,
    } else {
    }
    %cst = arith.constant 0.000000e+00 : f32
    %3 = vector.broadcast %cst : f32 to vector<256x256xf32>
    %c0 = arith.constant 0 : index
    %c0_1 = arith.constant 0 : index
    %c0_2 = arith.constant 0 : index
    %c0_3 = arith.constant 0 : index
    %4 = vector.load %arg3[%c0, %c0_1, %c0_2, %c0_3] : memref<1x18x18x128xbf16, #tpu.memory_space<vmem>>, vector<1x16x16x128xbf16>
    %5 = vector.shape_cast %4 : vector<1x16x16x128xbf16> to vector<16x16x128xbf16>
    %6 = vector.shape_cast %5 : vector<16x16x128xbf16> to vector<256x128xbf16>
    %c0_4 = arith.constant 0 : index
    %c0_5 = arith.constant 0 : index
    %c0_6 = arith.constant 0 : index
    %7 = vector.load %arg4[%c0_4, %c0_5, %c0_6] : memref<9x128x256xbf16, #tpu.memory_space<vmem>>, vector<1x128x256xbf16>
    %8 = vector.shape_cast %7 : vector<1x128x256xbf16> to vector<128x256xbf16>
    %cst_7 = arith.constant dense<0.000000e+00> : vector<256x256xf32>
    %9 = tpu.matmul %6, %8, %cst_7 {dimension_numbers = #tpu.dot_dimension_numbers<[1], [0], [0], [1], [0, 0, 1, 1], [], []>} : vector<256x128xbf16>, vector<128x256xbf16>, vector<256x256xf32> -> vector<256x256xf32>
    %10 = arith.addf %3, %9 : vector<256x256xf32>
    %c0_8 = arith.constant 0 : index
    %c0_9 = arith.constant 0 : index
    %c1 = arith.constant 1 : index
    %c0_10 = arith.constant 0 : index
    %11 = vector.load %arg3[%c0_8, %c0_9, %c1, %c0_10] : memref<1x18x18x128xbf16, #tpu.memory_space<vmem>>, vector<1x16x16x128xbf16>
    %12 = vector.shape_cast %11 : vector<1x16x16x128xbf16> to vector<16x16x128xbf16>
    %13 = vector.shape_cast %12 : vector<16x16x128xbf16> to vector<256x128xbf16>
    %c1_11 = arith.constant 1 : index
    %c0_12 = arith.constant 0 : index
    %c0_13 = arith.constant 0 : index
    %14 = vector.load %arg4[%c1_11, %c0_12, %c0_13] : memref<9x128x256xbf16, #tpu.memory_space<vmem>>, vector<1x128x256xbf16>
    %15 = vector.shape_cast %14 : vector<1x128x256xbf16> to vector<128x256xbf16>
    %cst_14 = arith.constant dense<0.000000e+00> : vector<256x256xf32>
    %16 = tpu.matmul %13, %15, %cst_14 {dimension_numbers = #tpu.dot_dimension_numbers<[1], [0], [0], [1], [0, 0, 1, 1], [], []>} : vector<256x128xbf16>, vector<128x256xbf16>, vector<256x256xf32> -> vector<256x256xf32>
    %17 = arith.addf %10, %16 : vector<256x256xf32>
    %c0_15 = arith.constant 0 : index
    %c0_16 = arith.constant 0 : index
    %c2 = arith.constant 2 : index
    %c0_17 = arith.constant 0 : index
    %18 = vector.load %arg3[%c0_15, %c0_16, %c2, %c0_17] : memref<1x18x18x128xbf16, #tpu.memory_space<vmem>>, vector<1x16x16x128xbf16>
    %19 = vector.shape_cast %18 : vector<1x16x16x128xbf16> to vector<16x16x128xbf16>
    %20 = vector.shape_cast %19 : vector<16x16x128xbf16> to vector<256x128xbf16>
    %c2_18 = arith.constant 2 : index
    %c0_19 = arith.constant 0 : index
    %c0_20 = arith.constant 0 : index
    %21 = vector.load %arg4[%c2_18, %c0_19, %c0_20] : memref<9x128x256xbf16, #tpu.memory_space<vmem>>, vector<1x128x256xbf16>
    %22 = vector.shape_cast %21 : vector<1x128x256xbf16> to vector<128x256xbf16>
    %cst_21 = arith.constant dense<0.000000e+00> : vector<256x256xf32>
    %23 = tpu.matmul %20, %22, %cst_21 {dimension_numbers = #tpu.dot_dimension_numbers<[1], [0], [0], [1], [0, 0, 1, 1], [], []>} : vector<256x128xbf16>, vector<128x256xbf16>, vector<256x256xf32> -> vector<256x256xf32>
    %24 = arith.addf %17, %23 : vector<256x256xf32>
    %c0_22 = arith.constant 0 : index
    %c1_23 = arith.constant 1 : index
    %c0_24 = arith.constant 0 : index
    %c0_25 = arith.constant 0 : index
    %25 = vector.load %arg3[%c0_22, %c1_23, %c0_24, %c0_25] : memref<1x18x18x128xbf16, #tpu.memory_space<vmem>>, vector<1x16x16x128xbf16>
    %26 = vector.shape_cast %25 : vector<1x16x16x128xbf16> to vector<16x16x128xbf16>
    %27 = vector.shape_cast %26 : vector<16x16x128xbf16> to vector<256x128xbf16>
    %c3 = arith.constant 3 : index
    %c0_26 = arith.constant 0 : index
    %c0_27 = arith.constant 0 : index
    %28 = vector.load %arg4[%c3, %c0_26, %c0_27] : memref<9x128x256xbf16, #tpu.memory_space<vmem>>, vector<1x128x256xbf16>
    %29 = vector.shape_cast %28 : vector<1x128x256xbf16> to vector<128x256xbf16>
    %cst_28 = arith.constant dense<0.000000e+00> : vector<256x256xf32>
    %30 = tpu.matmul %27, %29, %cst_28 {dimension_numbers = #tpu.dot_dimension_numbers<[1], [0], [0], [1], [0, 0, 1, 1], [], []>} : vector<256x128xbf16>, vector<128x256xbf16>, vector<256x256xf32> -> vector<256x256xf32>
    %31 = arith.addf %24, %30 : vector<256x256xf32>
    %c0_29 = arith.constant 0 : index
    %c1_30 = arith.constant 1 : index
    %c1_31 = arith.constant 1 : index
    %c0_32 = arith.constant 0 : index
    %32 = vector.load %arg3[%c0_29, %c1_30, %c1_31, %c0_32] : memref<1x18x18x128xbf16, #tpu.memory_space<vmem>>, vector<1x16x16x128xbf16>
    %33 = vector.shape_cast %32 : vector<1x16x16x128xbf16> to vector<16x16x128xbf16>
    %34 = vector.shape_cast %33 : vector<16x16x128xbf16> to vector<256x128xbf16>
    %c4 = arith.constant 4 : index
    %c0_33 = arith.constant 0 : index
    %c0_34 = arith.constant 0 : index
    %35 = vector.load %arg4[%c4, %c0_33, %c0_34] : memref<9x128x256xbf16, #tpu.memory_space<vmem>>, vector<1x128x256xbf16>
    %36 = vector.shape_cast %35 : vector<1x128x256xbf16> to vector<128x256xbf16>
    %cst_35 = arith.constant dense<0.000000e+00> : vector<256x256xf32>
    %37 = tpu.matmul %34, %36, %cst_35 {dimension_numbers = #tpu.dot_dimension_numbers<[1], [0], [0], [1], [0, 0, 1, 1], [], []>} : vector<256x128xbf16>, vector<128x256xbf16>, vector<256x256xf32> -> vector<256x256xf32>
    %38 = arith.addf %31, %37 : vector<256x256xf32>
    %c0_36 = arith.constant 0 : index
    %c1_37 = arith.constant 1 : index
    %c2_38 = arith.constant 2 : index
    %c0_39 = arith.constant 0 : index
    %39 = vector.load %arg3[%c0_36, %c1_37, %c2_38, %c0_39] : memref<1x18x18x128xbf16, #tpu.memory_space<vmem>>, vector<1x16x16x128xbf16>
    %40 = vector.shape_cast %39 : vector<1x16x16x128xbf16> to vector<16x16x128xbf16>
    %41 = vector.shape_cast %40 : vector<16x16x128xbf16> to vector<256x128xbf16>
    %c5 = arith.constant 5 : index
    %c0_40 = arith.constant 0 : index
    %c0_41 = arith.constant 0 : index
    %42 = vector.load %arg4[%c5, %c0_40, %c0_41] : memref<9x128x256xbf16, #tpu.memory_space<vmem>>, vector<1x128x256xbf16>
    %43 = vector.shape_cast %42 : vector<1x128x256xbf16> to vector<128x256xbf16>
    %cst_42 = arith.constant dense<0.000000e+00> : vector<256x256xf32>
    %44 = tpu.matmul %41, %43, %cst_42 {dimension_numbers = #tpu.dot_dimension_numbers<[1], [0], [0], [1], [0, 0, 1, 1], [], []>} : vector<256x128xbf16>, vector<128x256xbf16>, vector<256x256xf32> -> vector<256x256xf32>
    %45 = arith.addf %38, %44 : vector<256x256xf32>
    %c0_43 = arith.constant 0 : index
    %c2_44 = arith.constant 2 : index
    %c0_45 = arith.constant 0 : index
    %c0_46 = arith.constant 0 : index
    %46 = vector.load %arg3[%c0_43, %c2_44, %c0_45, %c0_46] : memref<1x18x18x128xbf16, #tpu.memory_space<vmem>>, vector<1x16x16x128xbf16>
    %47 = vector.shape_cast %46 : vector<1x16x16x128xbf16> to vector<16x16x128xbf16>
    %48 = vector.shape_cast %47 : vector<16x16x128xbf16> to vector<256x128xbf16>
    %c6 = arith.constant 6 : index
    %c0_47 = arith.constant 0 : index
    %c0_48 = arith.constant 0 : index
    %49 = vector.load %arg4[%c6, %c0_47, %c0_48] : memref<9x128x256xbf16, #tpu.memory_space<vmem>>, vector<1x128x256xbf16>
    %50 = vector.shape_cast %49 : vector<1x128x256xbf16> to vector<128x256xbf16>
    %cst_49 = arith.constant dense<0.000000e+00> : vector<256x256xf32>
    %51 = tpu.matmul %48, %50, %cst_49 {dimension_numbers = #tpu.dot_dimension_numbers<[1], [0], [0], [1], [0, 0, 1, 1], [], []>} : vector<256x128xbf16>, vector<128x256xbf16>, vector<256x256xf32> -> vector<256x256xf32>
    %52 = arith.addf %45, %51 : vector<256x256xf32>
    %c0_50 = arith.constant 0 : index
    %c2_51 = arith.constant 2 : index
    %c1_52 = arith.constant 1 : index
    %c0_53 = arith.constant 0 : index
    %53 = vector.load %arg3[%c0_50, %c2_51, %c1_52, %c0_53] : memref<1x18x18x128xbf16, #tpu.memory_space<vmem>>, vector<1x16x16x128xbf16>
    %54 = vector.shape_cast %53 : vector<1x16x16x128xbf16> to vector<16x16x128xbf16>
    %55 = vector.shape_cast %54 : vector<16x16x128xbf16> to vector<256x128xbf16>
    %c7 = arith.constant 7 : index
    %c0_54 = arith.constant 0 : index
    %c0_55 = arith.constant 0 : index
    %56 = vector.load %arg4[%c7, %c0_54, %c0_55] : memref<9x128x256xbf16, #tpu.memory_space<vmem>>, vector<1x128x256xbf16>
    %57 = vector.shape_cast %56 : vector<1x128x256xbf16> to vector<128x256xbf16>
    %cst_56 = arith.constant dense<0.000000e+00> : vector<256x256xf32>
    %58 = tpu.matmul %55, %57, %cst_56 {dimension_numbers = #tpu.dot_dimension_numbers<[1], [0], [0], [1], [0, 0, 1, 1], [], []>} : vector<256x128xbf16>, vector<128x256xbf16>, vector<256x256xf32> -> vector<256x256xf32>
    %59 = arith.addf %52, %58 : vector<256x256xf32>
    %c0_57 = arith.constant 0 : index
    %c2_58 = arith.constant 2 : index
    %c2_59 = arith.constant 2 : index
    %c0_60 = arith.constant 0 : index
    %60 = vector.load %arg3[%c0_57, %c2_58, %c2_59, %c0_60] : memref<1x18x18x128xbf16, #tpu.memory_space<vmem>>, vector<1x16x16x128xbf16>
    %61 = vector.shape_cast %60 : vector<1x16x16x128xbf16> to vector<16x16x128xbf16>
    %62 = vector.shape_cast %61 : vector<16x16x128xbf16> to vector<256x128xbf16>
    %c8 = arith.constant 8 : index
    %c0_61 = arith.constant 0 : index
    %c0_62 = arith.constant 0 : index
    %63 = vector.load %arg4[%c8, %c0_61, %c0_62] : memref<9x128x256xbf16, #tpu.memory_space<vmem>>, vector<1x128x256xbf16>
    %64 = vector.shape_cast %63 : vector<1x128x256xbf16> to vector<128x256xbf16>
    %cst_63 = arith.constant dense<0.000000e+00> : vector<256x256xf32>
    %65 = tpu.matmul %62, %64, %cst_63 {dimension_numbers = #tpu.dot_dimension_numbers<[1], [0], [0], [1], [0, 0, 1, 1], [], []>} : vector<256x128xbf16>, vector<128x256xbf16>, vector<256x256xf32> -> vector<256x256xf32>
    %66 = arith.addf %59, %65 : vector<256x256xf32>
    %c0_64 = arith.constant 0 : index
    %c0_65 = arith.constant 0 : index
    %c0_66 = arith.constant 0 : index
    %c0_67 = arith.constant 0 : index
    %67 = vector.load %arg6[%c0_64, %c0_65, %c0_66, %c0_67] : memref<1x16x16x256xf32, #tpu.memory_space<vmem>>, vector<1x16x16x256xf32>
    %68 = vector.shape_cast %66 : vector<256x256xf32> to vector<1x16x16x256xf32>
    %69 = arith.addf %67, %68 : vector<1x16x16x256xf32>
    %c0_68 = arith.constant 0 : index
    %c0_69 = arith.constant 0 : index
    %c0_70 = arith.constant 0 : index
    %c0_71 = arith.constant 0 : index
    %70 = vector.load %arg6[%c0_68, %c0_69, %c0_70, %c0_71] : memref<1x16x16x256xf32, #tpu.memory_space<vmem>>, vector<1x16x16x256xf32>
    tpu.vector_store %arg6[%c0_68, %c0_69, %c0_70, %c0_71], %69 {strides = array<i32>} : memref<1x16x16x256xf32, #tpu.memory_space<vmem>>, vector<1x16x16x256xf32>,
    %c0_i32_72 = arith.constant 0 : i32
    %71 = arith.cmpi eq, %arg2, %c0_i32_72 : i32
    %72 = arith.extui %71 : i1 to i32
    %c0_i32_73 = arith.constant 0 : i32
    %73 = arith.cmpi ne, %72, %c0_i32_73 : i32
    scf.if %73 {
      %c0_74 = arith.constant 0 : index
      %c0_75 = arith.constant 0 : index
      %c0_76 = arith.constant 0 : index
      %c0_77 = arith.constant 0 : index
      %74 = vector.load %arg6[%c0_74, %c0_75, %c0_76, %c0_77] : memref<1x16x16x256xf32, #tpu.memory_space<vmem>>, vector<1x16x16x256xf32>
      %c0_78 = arith.constant 0 : index
      %c0_79 = arith.constant 0 : index
      %75 = vector.load %arg5[%c0_78, %c0_79] : memref<1x256xf32, #tpu.memory_space<vmem>>, vector<1x256xf32>
      %76 = vector.shape_cast %75 : vector<1x256xf32> to vector<1x1x1x256xf32>
      %77 = vector.broadcast %76 : vector<1x1x1x256xf32> to vector<1x16x16x256xf32>
      %78 = arith.addf %74, %77 : vector<1x16x16x256xf32>
      %c0_80 = arith.constant 0 : index
      %c0_81 = arith.constant 0 : index
      %c0_82 = arith.constant 0 : index
      %c0_83 = arith.constant 0 : index
      %79 = vector.load %arg6[%c0_80, %c0_81, %c0_82, %c0_83] : memref<1x16x16x256xf32, #tpu.memory_space<vmem>>, vector<1x16x16x256xf32>
      tpu.vector_store %arg6[%c0_80, %c0_81, %c0_82, %c0_83], %78 {strides = array<i32>} : memref<1x16x16x256xf32, #tpu.memory_space<vmem>>, vector<1x16x16x256xf32>,
    } else {
    }
    return
  }
  func.func @transform_0(%arg0: i32, %arg1: i32, %arg2: i32) -> (i32, i32, i32, i32) {
    %c0_i32 = arith.constant 0 : i32
    %c0_i32_0 = arith.constant 0 : i32
    %c0_i32_1 = arith.constant 0 : i32
    return %arg0, %c0_i32, %c0_i32_0, %arg2 : i32, i32, i32, i32
  }
  func.func @transform_1(%arg0: i32, %arg1: i32, %arg2: i32) -> (i32, i32, i32) {
    %c0_i32 = arith.constant 0 : i32
    %c0_i32_0 = arith.constant 0 : i32
    return %c0_i32, %arg2, %arg1 : i32, i32, i32
  }
  func.func @transform_2(%arg0: i32, %arg1: i32, %arg2: i32) -> (i32, i32) {
    %c0_i32 = arith.constant 0 : i32
    %c0_i32_0 = arith.constant 0 : i32
    return %c0_i32, %arg1 : i32, i32
  }
  func.func @transform_3(%arg0: i32, %arg1: i32, %arg2: i32) -> (i32, i32, i32, i32) {
    %c0_i32 = arith.constant 0 : i32
    %c0_i32_0 = arith.constant 0 : i32
    %c0_i32_1 = arith.constant 0 : i32
    return %arg0, %c0_i32, %c0_i32_0, %arg1 : i32, i32, i32, i32
  }
}

module attributes {stable_mosaic.version = 11 : i64} {
  func.func @_matmul_bias_kernel(%arg0: i32, %arg1: i32, %arg2: i32, %arg3: memref<256x512xbf16, #tpu.memory_space<vmem>>, %arg4: memref<512x256xbf16, #tpu.memory_space<vmem>>, %arg5: memref<1x256xf32, #tpu.memory_space<vmem>>, %arg6: memref<256x256xf32, #tpu.memory_space<vmem>>) attributes {dimension_semantics = [#tpu.dimension_semantics<parallel>, #tpu.dimension_semantics<parallel>, #tpu.dimension_semantics<arbitrary>], iteration_bounds = array<i64: 1, 1, 1>, scalar_prefetch = 0 : i64, scratch_operands = 0 : i64, tpu.core_type = #tpu.core_type<tc>, window_params = [{transform_indices = @transform_0, window_bounds = array<i64: 256, 512>}, {transform_indices = @transform_1, window_bounds = array<i64: 512, 256>}, {transform_indices = @transform_2, window_bounds = array<i64: 1, 256>}, {transform_indices = @transform_3, window_bounds = array<i64: 256, 256>}]} {
    %c0_i32 = arith.constant 0 : i32
    %0 = arith.cmpi eq, %arg2, %c0_i32 : i32
    %1 = arith.extui %0 : i1 to i32
    %c0_i32_0 = arith.constant 0 : i32
    %2 = arith.cmpi ne, %1, %c0_i32_0 : i32
    scf.if %2 {
      %cst_10 = arith.constant 0.000000e+00 : f32
      %12 = vector.broadcast %cst_10 : f32 to vector<256x256xf32>
      %c0_11 = arith.constant 0 : index
      %c0_12 = arith.constant 0 : index
      %13 = vector.load %arg6[%c0_11, %c0_12] : memref<256x256xf32, #tpu.memory_space<vmem>>, vector<256x256xf32>
      tpu.vector_store %arg6[%c0_11, %c0_12], %12 {strides = array<i32>} : memref<256x256xf32, #tpu.memory_space<vmem>>, vector<256x256xf32>,
    } else {
    }
    %c0 = arith.constant 0 : index
    %c0_1 = arith.constant 0 : index
    %3 = vector.load %arg6[%c0, %c0_1] : memref<256x256xf32, #tpu.memory_space<vmem>>, vector<256x256xf32>
    %c0_2 = arith.constant 0 : index
    %c0_3 = arith.constant 0 : index
    %4 = vector.load %arg3[%c0_2, %c0_3] : memref<256x512xbf16, #tpu.memory_space<vmem>>, vector<256x512xbf16>
    %c0_4 = arith.constant 0 : index
    %c0_5 = arith.constant 0 : index
    %5 = vector.load %arg4[%c0_4, %c0_5] : memref<512x256xbf16, #tpu.memory_space<vmem>>, vector<512x256xbf16>
    %cst = arith.constant dense<0.000000e+00> : vector<256x256xf32>
    %6 = tpu.matmul %4, %5, %cst {dimension_numbers = #tpu.dot_dimension_numbers<[1], [0], [0], [1], [0, 0, 1, 1], [], []>} : vector<256x512xbf16>, vector<512x256xbf16>, vector<256x256xf32> -> vector<256x256xf32>
    %7 = arith.addf %3, %6 : vector<256x256xf32>
    %c0_6 = arith.constant 0 : index
    %c0_7 = arith.constant 0 : index
    %8 = vector.load %arg6[%c0_6, %c0_7] : memref<256x256xf32, #tpu.memory_space<vmem>>, vector<256x256xf32>
    tpu.vector_store %arg6[%c0_6, %c0_7], %7 {strides = array<i32>} : memref<256x256xf32, #tpu.memory_space<vmem>>, vector<256x256xf32>,
    %c0_i32_8 = arith.constant 0 : i32
    %9 = arith.cmpi eq, %arg2, %c0_i32_8 : i32
    %10 = arith.extui %9 : i1 to i32
    %c0_i32_9 = arith.constant 0 : i32
    %11 = arith.cmpi ne, %10, %c0_i32_9 : i32
    scf.if %11 {
      %c0_10 = arith.constant 0 : index
      %c0_11 = arith.constant 0 : index
      %12 = vector.load %arg6[%c0_10, %c0_11] : memref<256x256xf32, #tpu.memory_space<vmem>>, vector<256x256xf32>
      %c0_12 = arith.constant 0 : index
      %c0_13 = arith.constant 0 : index
      %13 = vector.load %arg5[%c0_12, %c0_13] : memref<1x256xf32, #tpu.memory_space<vmem>>, vector<1x256xf32>
      %14 = vector.broadcast %13 : vector<1x256xf32> to vector<256x256xf32>
      %15 = arith.addf %12, %14 : vector<256x256xf32>
      %c0_14 = arith.constant 0 : index
      %c0_15 = arith.constant 0 : index
      %16 = vector.load %arg6[%c0_14, %c0_15] : memref<256x256xf32, #tpu.memory_space<vmem>>, vector<256x256xf32>
      tpu.vector_store %arg6[%c0_14, %c0_15], %15 {strides = array<i32>} : memref<256x256xf32, #tpu.memory_space<vmem>>, vector<256x256xf32>,
    } else {
    }
    return
  }
  func.func @transform_0(%arg0: i32, %arg1: i32, %arg2: i32) -> (i32, i32) {
    %c0_i32 = arith.constant 0 : i32
    return %arg0, %arg2 : i32, i32
  }
  func.func @transform_1(%arg0: i32, %arg1: i32, %arg2: i32) -> (i32, i32) {
    %c0_i32 = arith.constant 0 : i32
    return %arg2, %arg1 : i32, i32
  }
  func.func @transform_2(%arg0: i32, %arg1: i32, %arg2: i32) -> (i32, i32) {
    %c0_i32 = arith.constant 0 : i32
    %c0_i32_0 = arith.constant 0 : i32
    return %c0_i32, %arg1 : i32, i32
  }
  func.func @transform_3(%arg0: i32, %arg1: i32, %arg2: i32) -> (i32, i32) {
    %c0_i32 = arith.constant 0 : i32
    return %arg0, %arg1 : i32, i32
  }
}

</mosaic_0001>

<llo_original>
// kernel: tpu_custom_call.1
$region0: #{tpu_custom_call.1}
  #allocation0 [shape = 'u32[]', space=smem, size = 0x4, offset = 0x4, fixed_abs, tag = 'smem constant byte address 0x4 - core index']
  #allocation1 [shape = 'u32[144,128]{1,0:T(1,128)}', space=vmem, size = 0x12000, scoped, tag = 'internal scratch']
  %s0 = inlined_call_operand.vmem [shape: bf16[2,18,18,128], index: 0, kind: input, shape index: {}]
  %s1 = inlined_call_operand.hbm [shape: bf16[9,128,256], index: 1, kind: input, shape index: {}]
  %s2 = inlined_call_operand.vmem [shape: f32[1,256], index: 2, kind: input, shape index: {}]
  %s3 = inlined_call_operand.hbm [shape: f32[2,16,16,256], index: 3, kind: output, shape index: {}]
  %s4 = sld [smem:[#allocation0]]
  $region57: #{tpu_custom_call.1} parent=0
    _
  %s6 = ssub.s32 1, %s4
  %s7 = scalar_select 0, %s6, %s4
  $region1: #{tpu_custom_call.1} parent=0
    #allocation2 [shape = 'u8[589824]{0}', space=vmem, size = 0x90000, scoped, tag = 'input window, operand 1, single buffered']
    #allocation3 [shape = 's32[2]{0}', space=sflag, size = 0x8, scoped, tag = 'scoped memory for tpu_custom_call.1']
    #allocation4 [shape = 's32[2]{0}', space=sflag, size = 0x8, scoped, tag = 'scoped memory for tpu_custom_call.1']
    #allocation5 [shape = 'u8[524288]{0}', space=vmem, size = 0x80000, scoped, tag = 'output window, operand 0']
    %8 = vsyncpa [#allocation3], 0
    %9 = vsyncpa [#allocation4], 0
    %s10 = scalar_lea.sflag [#allocation4], 1
    %11 = vsyncpa %s10, 0
    loop: start=0, step=1, limit=4
    $region2: #{tpu_custom_call.1} parent=1 // loop_pre_header
      _
    $region3: #{tpu_custom_call.1} parent=1 // loop_header
      %s13 = sphi 0, %s17
      %p14 = scmp.ge.s32.totalorder %s13, 4
      %s20 = sphi 0, %s39
      %s21 = sphi 0, %s35
      %s22 = sphi 0, %s31
      %s23 = sphi 0, %s20
      %s24 = sphi 0, %s21
      %s25 = sphi 0, %s22
      %s26 = sphi 0, %s23
      %s27 = sphi 0, %s24
      %s28 = sphi 0, %s25
      %s44 = sphi 0, %s46
      %s47 = sphi 0, %s44
      %s48 = sphi 0, %s47
      %s64 = sphi 0, %s48
      %s72 = sphi 0, %s74
      %s75 = sphi 0, %s72
      %s76 = sphi 0, %s75
      %s92 = sphi 0, %s76
      %s98 = sphi 0, %s100
      %s101 = sphi 0, %s98
      %s102 = sphi 0, %s101
      %s118 = sphi 0, %s102
      %s126 = sphi 0, %s128
      %s129 = sphi 0, %s126
      %s130 = sphi 0, %s129
      %s146 = sphi 0, %s130
    $region4: #{tpu_custom_call.1} parent=1 // loop_header_branch
      %16 = sbr.rel (%p14) target = $region8
    $region5: #{tpu_custom_call.1} parent=1 // loop_body
      %s18 = ssub.s32 %s13, 1
      %s19 = ssub.s32 %s13, 2
      %s29 = sadd.s32 1, %s22
      %p30 = scmp.ge.s32.totalorder %s29, 1
      %s31 = scalar_select %p30, 0, %s29
      %s32 = sadd.s32 1, %s21
      %s33 = scalar_select %p30, %s32, %s21
      %p34 = scmp.ge.s32.totalorder %s33, 1
      %s35 = scalar_select %p34, 0, %s33
      %s36 = sadd.s32 1, %s20
      %s37 = scalar_select %p34, %s36, %s20
      %p38 = scmp.ge.s32.totalorder %s37, 2
      %s39 = scalar_select %p38, 0, %s37
      %s40 = ssub.s32 %s20, %s39
      %s41 = ssub.s32 %s22, %s31
      %s42 = sor.u32 %s40, %s41
      %p43 = scmp.eq.s32.totalorder %s42, 0
      %s45 = sadd.s32 %s44, 1
      %s46 = scalar_select %p43, %s44, %s45
      %p49 = pneg %p43
      %p50 = scmp.eq.s32.totalorder %s13, 1
      %p51 = por %p49, %p50
      %p52 = scmp.ne.s32.totalorder %s44, %s47
      %p53 = scmp.eq.s32.totalorder %s13, 0
      %p54 = por %p52, %p53
      %p55 = scmp.ne.s32.totalorder %s44, %s47
      %p56 = scmp.eq.s32.totalorder %s18, 1
      %p57 = por %p55, %p56
      %p58 = scmp.ne.s32.totalorder %s47, %s48
      %p59 = scmp.eq.s32.totalorder %s18, 0
      %p60 = por %p58, %p59
      %p61 = scmp.ne.s32.totalorder %s47, %s48
      %p62 = scmp.eq.s32.totalorder %s19, 1
      %p63 = por %p61, %p62
      %p65 = scmp.ne.s32.totalorder %s48, %s64
      %p66 = scmp.eq.s32.totalorder %s19, 0
      %p67 = por %p65, %p66
      %s68 = ssub.s32 %s22, %s31
      %s69 = ssub.s32 %s21, %s35
      %s70 = sor.u32 %s68, %s69
      %p71 = scmp.eq.s32.totalorder %s70, 0
      %s73 = sadd.s32 %s72, 1
      %s74 = scalar_select %p71, %s72, %s73
      %p77 = pneg %p71
      %p78 = scmp.eq.s32.totalorder %s13, 1
      %p79 = por %p77, %p78
      %p80 = scmp.ne.s32.totalorder %s72, %s75
      %p81 = scmp.eq.s32.totalorder %s13, 0
      %p82 = por %p80, %p81
      %p83 = scmp.ne.s32.totalorder %s72, %s75
      %p84 = scmp.eq.s32.totalorder %s18, 1
      %p85 = por %p83, %p84
      %p86 = scmp.ne.s32.totalorder %s75, %s76
      %p87 = scmp.eq.s32.totalorder %s18, 0
      %p88 = por %p86, %p87
      %p89 = scmp.ne.s32.totalorder %s75, %s76
      %p90 = scmp.eq.s32.totalorder %s19, 1
      %p91 = por %p89, %p90
      %p93 = scmp.ne.s32.totalorder %s76, %s92
      %p94 = scmp.eq.s32.totalorder %s19, 0
      %p95 = por %p93, %p94
      %s96 = ssub.s32 %s21, %s35
      %p97 = scmp.eq.s32.totalorder %s96, 0
      %s99 = sadd.s32 %s98, 1
      %s100 = scalar_select %p97, %s98, %s99
      %p103 = pneg %p97
      %p104 = scmp.eq.s32.totalorder %s13, 1
      %p105 = por %p103, %p104
      %p106 = scmp.ne.s32.totalorder %s98, %s101
      %p107 = scmp.eq.s32.totalorder %s13, 0
      %p108 = por %p106, %p107
      %p109 = scmp.ne.s32.totalorder %s98, %s101
      %p110 = scmp.eq.s32.totalorder %s18, 1
      %p111 = por %p109, %p110
      %p112 = scmp.ne.s32.totalorder %s101, %s102
      %p113 = scmp.eq.s32.totalorder %s18, 0
      %p114 = por %p112, %p113
      %p115 = scmp.ne.s32.totalorder %s101, %s102
      %p116 = scmp.eq.s32.totalorder %s19, 1
      %p117 = por %p115, %p116
      %p119 = scmp.ne.s32.totalorder %s102, %s118
      %p120 = scmp.eq.s32.totalorder %s19, 0
      %p121 = por %p119, %p120
      %s122 = ssub.s32 %s20, %s39
      %s123 = ssub.s32 %s21, %s35
      %s124 = sor.u32 %s122, %s123
      %p125 = scmp.eq.s32.totalorder %s124, 0
      %s127 = sadd.s32 %s126, 1
      %s128 = scalar_select %p125, %s126, %s127
      %p131 = pneg %p125
      %p132 = scmp.eq.s32.totalorder %s13, 1
      %p133 = por %p131, %p132
      %p134 = scmp.ne.s32.totalorder %s126, %s129
      %p135 = scmp.eq.s32.totalorder %s13, 0
      %p136 = por %p134, %p135
      %p137 = scmp.ne.s32.totalorder %s126, %s129
      %p138 = scmp.eq.s32.totalorder %s18, 1
      %p139 = por %p137, %p138
      %p140 = scmp.ne.s32.totalorder %s129, %s130
      %p141 = scmp.eq.s32.totalorder %s18, 0
      %p142 = por %p140, %p141
      %p143 = scmp.ne.s32.totalorder %s129, %s130
      %p144 = scmp.eq.s32.totalorder %s19, 1
      %p145 = por %p143, %p144
      %p147 = scmp.ne.s32.totalorder %s130, %s146
      %p148 = scmp.eq.s32.totalorder %s19, 0
      %p149 = por %p147, %p148
      %p150 = scmp.le.s32.totalorder 1, %s13
      %p151 = scmp.lt.s32.totalorder %s13, 3
      %p152 = pnand %p150, %p151
      %p153 = pneg %p152
      // Predicated region
      $region9: #{tpu_custom_call.1} parent=5 // pred_check
        _
      $region10: #{tpu_custom_call.1} parent=5 // pred_check_branch
        %155 = sbr.rel (%p152) target = $region12
      $region11: #{tpu_custom_call.1} parent=5 // pred_region
        %s156 = ssub.s32 %s13, 1
        // Predicated region
        $region13: #{tpu_custom_call.1} parent=11 // pred_check
          %p157 = pneg %p88
        $region14: #{tpu_custom_call.1} parent=11 // pred_check_branch
          %159 = sbr.rel (%p157) target = $region16
        $region15: #{tpu_custom_call.1} parent=11 // pred_region
          %s160 = smul.u32 16, %s25
          %s161 = smul.u32 2, %s24
          %s163 = ssub.s32 18432, 18432
          %164 = vsyncadd [#allocation3], %s163
          %s165 = smul.addr %s160, 2
          %s166 = sadd.s32 %s161, %s165
          %s167 = smul.addr %s166, 64
          %s168 = scalar_lea.hbm %s1, %s167
          %s169 = sshll.u32 [#allocation2], 4
          %s170 = int_to_ptr.vmem [resolvable:$true] %s169
          %175 = dma.hbm_to_vmem [thread:$0]  %s168, 18432, %s170, [#allocation3], 128, 128, 8
        $region16: #{tpu_custom_call.1} parent=11 // pred_fallthru
          _
        // Predicated region
        $region17: #{tpu_custom_call.1} parent=11 // pred_check
          %p176 = pneg %p114
        $region18: #{tpu_custom_call.1} parent=11 // pred_check_branch
          %178 = sbr.rel (%p176) target = $region20
        $region19: #{tpu_custom_call.1} parent=11 // pred_region
          %s179 = smul.u32 2, %s24
          %p180 = scmp.lt.s32.totalorder %s179, 1
          %s181 = scalar_select %p180, %s179, 1
          %s182 = scalar_lea.vmem %s2, %s181
          %s183 = smul.u32 2, %s24
        $region20: #{tpu_custom_call.1} parent=11 // pred_fallthru
          _
      $region12: #{tpu_custom_call.1} parent=5 // pred_fallthru
        _
      %p184 = scmp.lt.s32.totalorder %s13, 2
      // Predicated region
      $region21: #{tpu_custom_call.1} parent=5 // pred_check
        %p185 = pneg %p184
      $region22: #{tpu_custom_call.1} parent=5 // pred_check_branch
        %187 = sbr.rel (%p185) target = $region24
      $region23: #{tpu_custom_call.1} parent=5 // pred_region
        // Predicated region
        $region25: #{tpu_custom_call.1} parent=23 // pred_check
          %p188 = pneg %p54
        $region26: #{tpu_custom_call.1} parent=23 // pred_check_branch
          %190 = sbr.rel (%p188) target = $region28
        $region27: #{tpu_custom_call.1} parent=23 // pred_region
          %p191 = scmp.lt.s32.totalorder %s20, 1
          %s192 = scalar_select %p191, %s20, 1
          %p193 = scmp.lt.s32.totalorder %s22, 0
          %s194 = scalar_select %p193, %s22, 0
          %s195 = smul.addr %s192, 54
          %s196 = sadd.s32 %s194, %s195
          %s197 = smul.addr %s196, 4
          %s198 = scalar_lea.vmem %s0, %s197
        $region28: #{tpu_custom_call.1} parent=23 // pred_fallthru
          _
      $region24: #{tpu_custom_call.1} parent=5 // pred_fallthru
        _
      %p199 = scmp.le.s32.totalorder 1, %s13
      %p200 = scmp.lt.s32.totalorder %s13, 3
      %p201 = pnand %p199, %p200
      %p202 = pneg %p201
      // Predicated region
      $region29: #{tpu_custom_call.1} parent=5 // pred_check
        _
      $region30: #{tpu_custom_call.1} parent=5 // pred_check_branch
        %204 = sbr.rel (%p201) target = $region32
      $region31: #{tpu_custom_call.1} parent=5 // pred_region
        %s205 = ssub.s32 %s13, 1
        // Predicated region
        $region33: #{tpu_custom_call.1} parent=31 // pred_check
          %p206 = pneg %p88
        $region34: #{tpu_custom_call.1} parent=31 // pred_check_branch
          %208 = sbr.rel (%p206) target = $region36
        $region35: #{tpu_custom_call.1} parent=31 // pred_region
          %209 = dma.done [#allocation3], 18432
        $region36: #{tpu_custom_call.1} parent=31 // pred_fallthru
          _
        %p210 = scmp.lt.s32.totalorder %s23, 1
        %s211 = scalar_select %p210, %s23, 1
        %p212 = scmp.lt.s32.totalorder %s25, 0
        %s213 = scalar_select %p212, %s25, 0
        %s214 = smul.addr %s211, 54
        %s215 = sadd.s32 %s213, %s214
        %s216 = smul.addr %s215, 4
        %s217 = scalar_lea.vmem %s0, %s216
        %p218 = pneg %p60
        %p219 = pneg %p57
        %p220 = pneg %p88
        %p221 = pneg %p85
        %s222 = smul.u32 2, %s24
        %p223 = scmp.lt.s32.totalorder %s222, 1
        %s224 = scalar_select %p223, %s222, 1
        %s225 = scalar_lea.vmem %s2, %s224
        %p226 = pneg %p114
        %p227 = pneg %p111
        %p228 = pneg %p142
        %p229 = pneg %p139
        %s230 = sand.u32 %s129, 1
        %s231 = scalar_lea.sflag [#allocation4], %s230
        %s232 = sand.u32 %s129, 1
        %s233 = smul.addr %s232, 512
        %s234 = scalar_lea.vmem [#allocation5], %s233
        %p235 = scmp.lt.s32.totalorder %s23, 1
        %s236 = scalar_select %p235, %s23, 1
        %p237 = scmp.lt.s32.totalorder %s25, 0
        %s238 = scalar_select %p237, %s25, 0
        %s239 = smul.addr %s236, 54
        %s240 = sadd.s32 %s238, %s239
        %s241 = smul.addr %s240, 4
        %s242 = scalar_lea.vmem %s0, %s241
        %s243 = smul.u32 16, %s25
        %s244 = smul.u32 2, %s24
        %s245 = smul.u32 2, %s24
        %p246 = scmp.lt.s32.totalorder %s245, 1
        %s247 = scalar_select %p246, %s245, 1
        %s248 = scalar_lea.vmem %s2, %s247
        %s249 = smul.u32 2, %s24
        %s250 = smul.u32 2, %s24
        %p252 = scmp.eq.s32.totalorder %s25, 0
        // Predicated region
        $region37: #{tpu_custom_call.1} parent=31 // pred_check
          %p253 = pneg %p252
        $region38: #{tpu_custom_call.1} parent=31 // pred_check_branch
          %255 = sbr.rel (%p253) target = $region40
        $region39: #{tpu_custom_call.1} parent=31 // pred_region
          %256 = vst [vmem:[%s234] sm:$0xff] 0.0
          %257 = vst [vmem:[%s234 + $0x8] sm:$0xff] 0.0
          %258 = vst [vmem:[%s234 + $0x10] sm:$0xff] 0.0
          %259 = vst [vmem:[%s234 + $0x18] sm:$0xff] 0.0
          %260 = vst [vmem:[%s234 + $0x20] sm:$0xff] 0.0
          %261 = vst [vmem:[%s234 + $0x28] sm:$0xff] 0.0
          %262 = vst [vmem:[%s234 + $0x30] sm:$0xff] 0.0
          %263 = vst [vmem:[%s234 + $0x38] sm:$0xff] 0.0
          %264 = vst [vmem:[%s234 + $0x40] sm:$0xff] 0.0
          %265 = vst [vmem:[%s234 + $0x48] sm:$0xff] 0.0
          %266 = vst [vmem:[%s234 + $0x50] sm:$0xff] 0.0
          %267 = vst [vmem:[%s234 + $0x58] sm:$0xff] 0.0
          %268 = vst [vmem:[%s234 + $0x60] sm:$0xff] 0.0
          %269 = vst [vmem:[%s234 + $0x68] sm:$0xff] 0.0
          %270 = vst [vmem:[%s234 + $0x70] sm:$0xff] 0.0
          %271 = vst [vmem:[%s234 + $0x78] sm:$0xff] 0.0
          %272 = vst [vmem:[%s234 + $0x80] sm:$0xff] 0.0
          %273 = vst [vmem:[%s234 + $0x88] sm:$0xff] 0.0
          %274 = vst [vmem:[%s234 + $0x90] sm:$0xff] 0.0
          %275 = vst [vmem:[%s234 + $0x98] sm:$0xff] 0.0
          %276 = vst [vmem:[%s234 + $0xa0] sm:$0xff] 0.0
          %277 = vst [vmem:[%s234 + $0xa8] sm:$0xff] 0.0
          %278 = vst [vmem:[%s234 + $0xb0] sm:$0xff] 0.0
          %279 = vst [vmem:[%s234 + $0xb8] sm:$0xff] 0.0
          %280 = vst [vmem:[%s234 + $0xc0] sm:$0xff] 0.0
          %281 = vst [vmem:[%s234 + $0xc8] sm:$0xff] 0.0
          %282 = vst [vmem:[%s234 + $0xd0] sm:$0xff] 0.0
          %283 = vst [vmem:[%s234 + $0xd8] sm:$0xff] 0.0
          %284 = vst [vmem:[%s234 + $0xe0] sm:$0xff] 0.0
          %285 = vst [vmem:[%s234 + $0xe8] sm:$0xff] 0.0
          %286 = vst [vmem:[%s234 + $0xf0] sm:$0xff] 0.0
          %287 = vst [vmem:[%s234 + $0xf8] sm:$0xff] 0.0
          %288 = vst [vmem:[%s234 + $0x100] sm:$0xff] 0.0
          %289 = vst [vmem:[%s234 + $0x108] sm:$0xff] 0.0
          %290 = vst [vmem:[%s234 + $0x110] sm:$0xff] 0.0
          %291 = vst [vmem:[%s234 + $0x118] sm:$0xff] 0.0
          %292 = vst [vmem:[%s234 + $0x120] sm:$0xff] 0.0
          %293 = vst [vmem:[%s234 + $0x128] sm:$0xff] 0.0
          %294 = vst [vmem:[%s234 + $0x130] sm:$0xff] 0.0
          %295 = vst [vmem:[%s234 + $0x138] sm:$0xff] 0.0
          %296 = vst [vmem:[%s234 + $0x140] sm:$0xff] 0.0
          %297 = vst [vmem:[%s234 + $0x148] sm:$0xff] 0.0
          %298 = vst [vmem:[%s234 + $0x150] sm:$0xff] 0.0
          %299 = vst [vmem:[%s234 + $0x158] sm:$0xff] 0.0
          %300 = vst [vmem:[%s234 + $0x160] sm:$0xff] 0.0
          %301 = vst [vmem:[%s234 + $0x168] sm:$0xff] 0.0
          %302 = vst [vmem:[%s234 + $0x170] sm:$0xff] 0.0
          %303 = vst [vmem:[%s234 + $0x178] sm:$0xff] 0.0
          %304 = vst [vmem:[%s234 + $0x180] sm:$0xff] 0.0
          %305 = vst [vmem:[%s234 + $0x188] sm:$0xff] 0.0
          %306 = vst [vmem:[%s234 + $0x190] sm:$0xff] 0.0
          %307 = vst [vmem:[%s234 + $0x198] sm:$0xff] 0.0
          %308 = vst [vmem:[%s234 + $0x1a0] sm:$0xff] 0.0
          %309 = vst [vmem:[%s234 + $0x1a8] sm:$0xff] 0.0
          %310 = vst [vmem:[%s234 + $0x1b0] sm:$0xff] 0.0
          %311 = vst [vmem:[%s234 + $0x1b8] sm:$0xff] 0.0
          %312 = vst [vmem:[%s234 + $0x1c0] sm:$0xff] 0.0
          %313 = vst [vmem:[%s234 + $0x1c8] sm:$0xff] 0.0
          %314 = vst [vmem:[%s234 + $0x1d0] sm:$0xff] 0.0
          %315 = vst [vmem:[%s234 + $0x1d8] sm:$0xff] 0.0
          %316 = vst [vmem:[%s234 + $0x1e0] sm:$0xff] 0.0
          %317 = vst [vmem:[%s234 + $0x1e8] sm:$0xff] 0.0
          %318 = vst [vmem:[%s234 + $0x1f0] sm:$0xff] 0.0
          %319 = vst [vmem:[%s234 + $0x1f8] sm:$0xff] 0.0
        $region40: #{tpu_custom_call.1} parent=31 // pred_fallthru
          _
        %v320 = vld [vmem:[%s242] sm:$0xf]
        %v321 = vld [vmem:[%s242 + $0x4] sm:$0xf]
        %v322 = vld [vmem:[%s242 + $0xc] sm:$0xf]
        %v323 = vld [vmem:[%s242 + $0x10] sm:$0xf]
        %v324 = vld [vmem:[%s242 + $0x18] sm:$0xf]
        %v325 = vld [vmem:[%s242 + $0x1c] sm:$0xf]
        %v326 = vld [vmem:[%s242 + $0x24] sm:$0xf]
        %v327 = vld [vmem:[%s242 + $0x28] sm:$0xf]
        %v328 = vld [vmem:[%s242 + $0x30] sm:$0xf]
        %v329 = vld [vmem:[%s242 + $0x34] sm:$0xf]
        %v330 = vld [vmem:[%s242 + $0x3c] sm:$0xf]
        %v331 = vld [vmem:[%s242 + $0x40] sm:$0xf]
        %v332 = vld [vmem:[%s242 + $0x48] sm:$0xf]
        %v333 = vld [vmem:[%s242 + $0x4c] sm:$0xf]
        %v334 = vld [vmem:[%s242 + $0x54] sm:$0xf]
        %v335 = vld [vmem:[%s242 + $0x58] sm:$0xf]
        %v336 = vld [vmem:[%s242 + $0x60] sm:$0xf]
        %v337 = vld [vmem:[%s242 + $0x64] sm:$0xf]
        %v338 = vld [vmem:[%s242 + $0x6c] sm:$0xf]
        %v339 = vld [vmem:[%s242 + $0x70] sm:$0xf]
        %v340 = vld [vmem:[%s242 + $0x78] sm:$0xf]
        %v341 = vld [vmem:[%s242 + $0x7c] sm:$0xf]
        %v342 = vld [vmem:[%s242 + $0x84] sm:$0xf]
        %v343 = vld [vmem:[%s242 + $0x88] sm:$0xf]
        %v344 = vld [vmem:[%s242 + $0x90] sm:$0xf]
        %v345 = vld [vmem:[%s242 + $0x94] sm:$0xf]
        %v346 = vld [vmem:[%s242 + $0x9c] sm:$0xf]
        %v347 = vld [vmem:[%s242 + $0xa0] sm:$0xf]
        %v348 = vld [vmem:[%s242 + $0xa8] sm:$0xf]
        %v349 = vld [vmem:[%s242 + $0xac] sm:$0xf]
        %v350 = vld [vmem:[%s242 + $0xb4] sm:$0xf]
        %v351 = vld [vmem:[%s242 + $0xb8] sm:$0xf]
        %v352 = vld [vmem:[#allocation2] sm:$0xff]
        %v353 = vld [vmem:[#allocation2 + $0x8] sm:$0xff]
        %v354 = vld [vmem:[#allocation2 + $0x10] sm:$0xff]
        %v355 = vld [vmem:[#allocation2 + $0x18] sm:$0xff]
        %v356 = vld [vmem:[#allocation2 + $0x20] sm:$0xff]
        %v357 = vld [vmem:[#allocation2 + $0x28] sm:$0xff]
        %v358 = vld [vmem:[#allocation2 + $0x30] sm:$0xff]
        %v359 = vld [vmem:[#allocation2 + $0x38] sm:$0xff]
        %v360 = vld [vmem:[#allocation2 + $0x40] sm:$0xff]
        %v361 = vld [vmem:[#allocation2 + $0x48] sm:$0xff]
        %v362 = vld [vmem:[#allocation2 + $0x50] sm:$0xff]
        %v363 = vld [vmem:[#allocation2 + $0x58] sm:$0xff]
        %v364 = vld [vmem:[#allocation2 + $0x60] sm:$0xff]
        %v365 = vld [vmem:[#allocation2 + $0x68] sm:$0xff]
        %v366 = vld [vmem:[#allocation2 + $0x70] sm:$0xff]
        %v367 = vld [vmem:[#allocation2 + $0x78] sm:$0xff]
        %v368 = vld [vmem:[%s242 + $0x8] sm:$0x1]
        %v369 = vld [vmem:[%s242 + $0x14] sm:$0x1]
        %v370 = vld [vmem:[%s242 + $0x20] sm:$0x1]
        %v371 = vld [vmem:[%s242 + $0x2c] sm:$0x1]
        %v372 = vld [vmem:[%s242 + $0x38] sm:$0x1]
        %v373 = vld [vmem:[%s242 + $0x44] sm:$0x1]
        %v374 = vld [vmem:[%s242 + $0x50] sm:$0x1]
        %v375 = vld [vmem:[%s242 + $0x5c] sm:$0x1]
        %v376 = vld [vmem:[%s242 + $0x68] sm:$0x1]
        %v377 = vld [vmem:[%s242 + $0x74] sm:$0x1]
        %v378 = vld [vmem:[%s242 + $0x80] sm:$0x1]
        %v379 = vld [vmem:[%s242 + $0x8c] sm:$0x1]
        %v380 = vld [vmem:[%s242 + $0x98] sm:$0x1]
        %v381 = vld [vmem:[%s242 + $0xa4] sm:$0x1]
        %v382 = vld [vmem:[%s242 + $0xb0] sm:$0x1]
        %v383 = vld [vmem:[%s242 + $0xbc] sm:$0x1]
        %vm384 = vsmask.f32 3328
        %vm385 = vsmask.f32 7440
        %vm386 = vmor %vm384, %vm385
        %v388 = vshrl.u32 %v320, 16
        %v390 = vrot.slane %v388, 4
        %v391 = vshll.u32 %v320, 16
        %v393 = vrot.slane %v391, 5
        %v394 = vor.u32 %v390, %v393
        %v395 = vrot.slane %v394, 4
        %v397 = vshll.u32 %v321, 16
        %v399 = vrot.slane %v397, 5
        %v400 = vsel %vm386, %v395, %v399
        %v401 = vshrl.u32 %v321, 16
        %v403 = vrot.slane %v401, 4
        %v404 = vor.u32 %v403, %v399
        %v405 = vrot.slane %v404, 4
        %v407 = vshll.u32 %v368, 16
        %v409 = vrot.slane %v407, 5
        %v410 = vsel %vm386, %v405, %v409
        %v412 = vshrl.u32 %v322, 16
        %v414 = vrot.slane %v412, 4
        %v415 = vshll.u32 %v322, 16
        %v417 = vrot.slane %v415, 5
        %v418 = vor.u32 %v414, %v417
        %v419 = vrot.slane %v418, 4
        %v421 = vshll.u32 %v323, 16
        %v423 = vrot.slane %v421, 5
        %v424 = vsel %vm386, %v419, %v423
        %v425 = vshrl.u32 %v323, 16
        %v427 = vrot.slane %v425, 4
        %v428 = vor.u32 %v427, %v423
        %v429 = vrot.slane %v428, 4
        %v431 = vshll.u32 %v369, 16
        %v433 = vrot.slane %v431, 5
        %v434 = vsel %vm386, %v429, %v433
        %v436 = vshrl.u32 %v324, 16
        %v438 = vrot.slane %v436, 4
        %v439 = vshll.u32 %v324, 16
        %v441 = vrot.slane %v439, 5
        %v442 = vor.u32 %v438, %v441
        %v443 = vrot.slane %v442, 4
        %v445 = vshll.u32 %v325, 16
        %v447 = vrot.slane %v445, 5
        %v448 = vsel %vm386, %v443, %v447
        %v449 = vshrl.u32 %v325, 16
        %v451 = vrot.slane %v449, 4
        %v452 = vor.u32 %v451, %v447
        %v453 = vrot.slane %v452, 4
        %v455 = vshll.u32 %v370, 16
        %v457 = vrot.slane %v455, 5
        %v458 = vsel %vm386, %v453, %v457
        %v460 = vshrl.u32 %v326, 16
        %v462 = vrot.slane %v460, 4
        %v463 = vshll.u32 %v326, 16
        %v465 = vrot.slane %v463, 5
        %v466 = vor.u32 %v462, %v465
        %v467 = vrot.slane %v466, 4
        %v469 = vshll.u32 %v327, 16
        %v471 = vrot.slane %v469, 5
        %v472 = vsel %vm386, %v467, %v471
        %v473 = vshrl.u32 %v327, 16
        %v475 = vrot.slane %v473, 4
        %v476 = vor.u32 %v475, %v471
        %v477 = vrot.slane %v476, 4
        %v479 = vshll.u32 %v371, 16
        %v481 = vrot.slane %v479, 5
        %v482 = vsel %vm386, %v477, %v481
        %v484 = vshrl.u32 %v328, 16
        %v486 = vrot.slane %v484, 4
        %v487 = vshll.u32 %v328, 16
        %v489 = vrot.slane %v487, 5
        %v490 = vor.u32 %v486, %v489
        %v491 = vrot.slane %v490, 4
        %v493 = vshll.u32 %v329, 16
        %v495 = vrot.slane %v493, 5
        %v496 = vsel %vm386, %v491, %v495
        %v497 = vshrl.u32 %v329, 16
        %v499 = vrot.slane %v497, 4
        %v500 = vor.u32 %v499, %v495
        %v501 = vrot.slane %v500, 4
        %v503 = vshll.u32 %v372, 16
        %v505 = vrot.slane %v503, 5
        %v506 = vsel %vm386, %v501, %v505
        %v508 = vshrl.u32 %v330, 16
        %v510 = vrot.slane %v508, 4
        %v511 = vshll.u32 %v330, 16
        %v513 = vrot.slane %v511, 5
        %v514 = vor.u32 %v510, %v513
        %v515 = vrot.slane %v514, 4
        %v517 = vshll.u32 %v331, 16
        %v519 = vrot.slane %v517, 5
        %v520 = vsel %vm386, %v515, %v519
        %v521 = vshrl.u32 %v331, 16
        %v523 = vrot.slane %v521, 4
        %v524 = vor.u32 %v523, %v519
        %v525 = vrot.slane %v524, 4
        %v527 = vshll.u32 %v373, 16
        %v529 = vrot.slane %v527, 5
        %v530 = vsel %vm386, %v525, %v529
        %v532 = vshrl.u32 %v332, 16
        %v534 = vrot.slane %v532, 4
        %v535 = vshll.u32 %v332, 16
        %v537 = vrot.slane %v535, 5
        %v538 = vor.u32 %v534, %v537
        %v539 = vrot.slane %v538, 4
        %v541 = vshll.u32 %v333, 16
        %v543 = vrot.slane %v541, 5
        %v544 = vsel %vm386, %v539, %v543
        %v545 = vshrl.u32 %v333, 16
        %v547 = vrot.slane %v545, 4
        %v548 = vor.u32 %v547, %v543
        %v549 = vrot.slane %v548, 4
        %v551 = vshll.u32 %v374, 16
        %v553 = vrot.slane %v551, 5
        %v554 = vsel %vm386, %v549, %v553
        %v556 = vshrl.u32 %v334, 16
        %v558 = vrot.slane %v556, 4
        %v559 = vshll.u32 %v334, 16
        %v561 = vrot.slane %v559, 5
        %v562 = vor.u32 %v558, %v561
        %v563 = vrot.slane %v562, 4
        %v565 = vshll.u32 %v335, 16
        %v567 = vrot.slane %v565, 5
        %v568 = vsel %vm386, %v563, %v567
        %v569 = vshrl.u32 %v335, 16
        %v571 = vrot.slane %v569, 4
        %v572 = vor.u32 %v571, %v567
        %v573 = vrot.slane %v572, 4
        %v575 = vshll.u32 %v375, 16
        %v577 = vrot.slane %v575, 5
        %v578 = vsel %vm386, %v573, %v577
        %v580 = vshrl.u32 %v336, 16
        %v582 = vrot.slane %v580, 4
        %v583 = vshll.u32 %v336, 16
        %v585 = vrot.slane %v583, 5
        %v586 = vor.u32 %v582, %v585
        %v587 = vrot.slane %v586, 4
        %v589 = vshll.u32 %v337, 16
        %v591 = vrot.slane %v589, 5
        %v592 = vsel %vm386, %v587, %v591
        %v593 = vshrl.u32 %v337, 16
        %v595 = vrot.slane %v593, 4
        %v596 = vor.u32 %v595, %v591
        %v597 = vrot.slane %v596, 4
        %v599 = vshll.u32 %v376, 16
        %v601 = vrot.slane %v599, 5
        %v602 = vsel %vm386, %v597, %v601
        %v604 = vshrl.u32 %v338, 16
        %v606 = vrot.slane %v604, 4
        %v607 = vshll.u32 %v338, 16
        %v609 = vrot.slane %v607, 5
        %v610 = vor.u32 %v606, %v609
        %v611 = vrot.slane %v610, 4
        %v613 = vshll.u32 %v339, 16
        %v615 = vrot.slane %v613, 5
        %v616 = vsel %vm386, %v611, %v615
        %v617 = vshrl.u32 %v339, 16
        %v619 = vrot.slane %v617, 4
        %v620 = vor.u32 %v619, %v615
        %v621 = vrot.slane %v620, 4
        %v623 = vshll.u32 %v377, 16
        %v625 = vrot.slane %v623, 5
        %v626 = vsel %vm386, %v621, %v625
        %v628 = vshrl.u32 %v340, 16
        %v630 = vrot.slane %v628, 4
        %v631 = vshll.u32 %v340, 16
        %v633 = vrot.slane %v631, 5
        %v634 = vor.u32 %v630, %v633
        %v635 = vrot.slane %v634, 4
        %v637 = vshll.u32 %v341, 16
        %v639 = vrot.slane %v637, 5
        %v640 = vsel %vm386, %v635, %v639
        %v641 = vshrl.u32 %v341, 16
        %v643 = vrot.slane %v641, 4
        %v644 = vor.u32 %v643, %v639
        %v645 = vrot.slane %v644, 4
        %v647 = vshll.u32 %v378, 16
        %v649 = vrot.slane %v647, 5
        %v650 = vsel %vm386, %v645, %v649
        %v652 = vshrl.u32 %v342, 16
        %v654 = vrot.slane %v652, 4
        %v655 = vshll.u32 %v342, 16
        %v657 = vrot.slane %v655, 5
        %v658 = vor.u32 %v654, %v657
        %v659 = vrot.slane %v658, 4
        %v661 = vshll.u32 %v343, 16
        %v663 = vrot.slane %v661, 5
        %v664 = vsel %vm386, %v659, %v663
        %v665 = vshrl.u32 %v343, 16
        %v667 = vrot.slane %v665, 4
        %v668 = vor.u32 %v667, %v663
        %v669 = vrot.slane %v668, 4
        %v671 = vshll.u32 %v379, 16
        %v673 = vrot.slane %v671, 5
        %v674 = vsel %vm386, %v669, %v673
        %v676 = vshrl.u32 %v344, 16
        %v678 = vrot.slane %v676, 4
        %v679 = vshll.u32 %v344, 16
        %v681 = vrot.slane %v679, 5
        %v682 = vor.u32 %v678, %v681
        %v683 = vrot.slane %v682, 4
        %v685 = vshll.u32 %v345, 16
        %v687 = vrot.slane %v685, 5
        %v688 = vsel %vm386, %v683, %v687
        %v689 = vshrl.u32 %v345, 16
        %v691 = vrot.slane %v689, 4
        %v692 = vor.u32 %v691, %v687
        %v693 = vrot.slane %v692, 4
        %v695 = vshll.u32 %v380, 16
        %v697 = vrot.slane %v695, 5
        %v698 = vsel %vm386, %v693, %v697
        %v700 = vshrl.u32 %v346, 16
        %v702 = vrot.slane %v700, 4
        %v703 = vshll.u32 %v346, 16
        %v705 = vrot.slane %v703, 5
        %v706 = vor.u32 %v702, %v705
        %v707 = vrot.slane %v706, 4
        %v709 = vshll.u32 %v347, 16
        %v711 = vrot.slane %v709, 5
        %v712 = vsel %vm386, %v707, %v711
        %v713 = vshrl.u32 %v347, 16
        %v715 = vrot.slane %v713, 4
        %v716 = vor.u32 %v715, %v711
        %v717 = vrot.slane %v716, 4
        %v719 = vshll.u32 %v381, 16
        %v721 = vrot.slane %v719, 5
        %v722 = vsel %vm386, %v717, %v721
        %v724 = vshrl.u32 %v348, 16
        %v726 = vrot.slane %v724, 4
        %v727 = vshll.u32 %v348, 16
        %v729 = vrot.slane %v727, 5
        %v730 = vor.u32 %v726, %v729
        %v731 = vrot.slane %v730, 4
        %v733 = vshll.u32 %v349, 16
        %v735 = vrot.slane %v733, 5
        %v736 = vsel %vm386, %v731, %v735
        %v737 = vshrl.u32 %v349, 16
        %v739 = vrot.slane %v737, 4
        %v740 = vor.u32 %v739, %v735
        %v741 = vrot.slane %v740, 4
        %v743 = vshll.u32 %v382, 16
        %v745 = vrot.slane %v743, 5
        %v746 = vsel %vm386, %v741, %v745
        %v748 = vshrl.u32 %v350, 16
        %v750 = vrot.slane %v748, 4
        %v751 = vshll.u32 %v350, 16
        %v753 = vrot.slane %v751, 5
        %v754 = vor.u32 %v750, %v753
        %v755 = vrot.slane %v754, 4
        %v757 = vshll.u32 %v351, 16
        %v759 = vrot.slane %v757, 5
        %v760 = vsel %vm386, %v755, %v759
        %v761 = vshrl.u32 %v351, 16
        %v763 = vrot.slane %v761, 4
        %v764 = vor.u32 %v763, %v759
        %v765 = vrot.slane %v764, 4
        %v767 = vshll.u32 %v383, 16
        %v769 = vrot.slane %v767, 5
        %v770 = vsel %vm386, %v765, %v769
        %s771 = scalar_lea.vmem [#allocation2], 128
        %v772 = vld [vmem:[%s771] sm:$0xff]
        %v773 = vld [vmem:[%s771 + $0x8] sm:$0xff]
        %v774 = vld [vmem:[%s771 + $0x10] sm:$0xff]
        %v775 = vld [vmem:[%s771 + $0x18] sm:$0xff]
        %v776 = vld [vmem:[%s771 + $0x20] sm:$0xff]
        %v777 = vld [vmem:[%s771 + $0x28] sm:$0xff]
        %v778 = vld [vmem:[%s771 + $0x30] sm:$0xff]
        %v779 = vld [vmem:[%s771 + $0x38] sm:$0xff]
        %v780 = vld [vmem:[%s771 + $0x40] sm:$0xff]
        %v781 = vld [vmem:[%s771 + $0x48] sm:$0xff]
        %v782 = vld [vmem:[%s771 + $0x50] sm:$0xff]
        %v783 = vld [vmem:[%s771 + $0x58] sm:$0xff]
        %v784 = vld [vmem:[%s771 + $0x60] sm:$0xff]
        %v785 = vld [vmem:[%s771 + $0x68] sm:$0xff]
        %v786 = vld [vmem:[%s771 + $0x70] sm:$0xff]
        %v787 = vld [vmem:[%s771 + $0x78] sm:$0xff]
        %v788 = vunpack.c.l.b16 %v400
        %v789 = vunpack.c.l.b16 %v410
        %v790 = vunpack.c.l.b16 %v424
        %v791 = vunpack.c.l.b16 %v434
        %v792 = vunpack.c.l.b16 %v448
        %v793 = vunpack.c.l.b16 %v458
        %v794 = vunpack.c.l.b16 %v472
        %v795 = vunpack.c.l.b16 %v482
        %v796 = vunpack.c.l.b16 %v496
        %v797 = vunpack.c.l.b16 %v506
        %v798 = vunpack.c.l.b16 %v520
        %v799 = vunpack.c.l.b16 %v530
        %v800 = vunpack.c.l.b16 %v544
        %v801 = vunpack.c.l.b16 %v554
        %v802 = vunpack.c.l.b16 %v568
        %v803 = vunpack.c.l.b16 %v578
        %v804 = vunpack.c.l.b16 %v592
        %v805 = vunpack.c.l.b16 %v602
        %v806 = vunpack.c.l.b16 %v616
        %v807 = vunpack.c.l.b16 %v626
        %v808 = vunpack.c.l.b16 %v640
        %v809 = vunpack.c.l.b16 %v650
        %v810 = vunpack.c.l.b16 %v664
        %v811 = vunpack.c.l.b16 %v674
        %v812 = vunpack.c.l.b16 %v688
        %v813 = vunpack.c.l.b16 %v698
        %v814 = vunpack.c.l.b16 %v712
        %v815 = vunpack.c.l.b16 %v722
        %v816 = vunpack.c.l.b16 %v736
        %v817 = vunpack.c.l.b16 %v746
        %v818 = vunpack.c.l.b16 %v760
        %v819 = vunpack.c.l.b16 %v770
        %v820 = vpack.c.b16 %v789, %v788
        %v821 = vpack.c.b16 %v791, %v790
        %v822 = vpack.c.b16 %v793, %v792
        %v823 = vpack.c.b16 %v795, %v794
        %v824 = vpack.c.b16 %v797, %v796
        %v825 = vpack.c.b16 %v799, %v798
        %v826 = vpack.c.b16 %v801, %v800
        %v827 = vpack.c.b16 %v803, %v802
        %v828 = vpack.c.b16 %v805, %v804
        %v829 = vpack.c.b16 %v807, %v806
        %v830 = vpack.c.b16 %v809, %v808
        %v831 = vpack.c.b16 %v811, %v810
        %v832 = vpack.c.b16 %v813, %v812
        %v833 = vpack.c.b16 %v815, %v814
        %v834 = vpack.c.b16 %v817, %v816
        %v835 = vpack.c.b16 %v819, %v818
        %v868 = vunpack.c.l.b16 %v772
        %v869 = vunpack.c.h.b16 %v772
        %v870 = vunpack.c.l.b16 %v773
        %v871 = vunpack.c.h.b16 %v773
        %v872 = vunpack.c.l.b16 %v774
        %v873 = vunpack.c.h.b16 %v774
        %v874 = vunpack.c.l.b16 %v775
        %v875 = vunpack.c.h.b16 %v775
        %v876 = vunpack.c.l.b16 %v776
        %v877 = vunpack.c.h.b16 %v776
        %v878 = vunpack.c.l.b16 %v777
        %v879 = vunpack.c.h.b16 %v777
        %v880 = vunpack.c.l.b16 %v778
        %v881 = vunpack.c.h.b16 %v778
        %v882 = vunpack.c.l.b16 %v779
        %v883 = vunpack.c.h.b16 %v779
        %v884 = vunpack.c.l.b16 %v780
        %v885 = vunpack.c.h.b16 %v780
        %v886 = vunpack.c.l.b16 %v781
        %v887 = vunpack.c.h.b16 %v781
        %v888 = vunpack.c.l.b16 %v782
        %v889 = vunpack.c.h.b16 %v782
        %v890 = vunpack.c.l.b16 %v783
        %v891 = vunpack.c.h.b16 %v783
        %v892 = vunpack.c.l.b16 %v784
        %v893 = vunpack.c.h.b16 %v784
        %v894 = vunpack.c.l.b16 %v785
        %v895 = vunpack.c.h.b16 %v785
        %v896 = vunpack.c.l.b16 %v786
        %v897 = vunpack.c.h.b16 %v786
        %v898 = vunpack.c.l.b16 %v787
        %v899 = vunpack.c.h.b16 %v787
        %v900 = vpack.c.b16 %v870, %v868
        %v901 = vpack.c.b16 %v871, %v869
        %v902 = vpack.c.b16 %v874, %v872
        %v903 = vpack.c.b16 %v875, %v873
        %v904 = vpack.c.b16 %v878, %v876
        %v905 = vpack.c.b16 %v879, %v877
        %v906 = vpack.c.b16 %v882, %v880
        %v907 = vpack.c.b16 %v883, %v881
        %v908 = vpack.c.b16 %v886, %v884
        %v909 = vpack.c.b16 %v887, %v885
        %v910 = vpack.c.b16 %v890, %v888
        %v911 = vpack.c.b16 %v891, %v889
        %v912 = vpack.c.b16 %v894, %v892
        %v913 = vpack.c.b16 %v895, %v893
        %v914 = vpack.c.b16 %v898, %v896
        %v915 = vpack.c.b16 %v899, %v897
        %932 = vmatprep.subr.bf16.mxu0 %v901
        %933 = vmatpush1.bf16.msra.mxu0 %v900
        %934 = vmatprep.subr.bf16.mxu0 %v903
        %935 = vmatpush1.bf16.msra.mxu0 %v902
        %936 = vmatprep.subr.bf16.mxu0 %v905
        %937 = vmatpush1.bf16.msra.mxu0 %v904
        %938 = vmatprep.subr.bf16.mxu0 %v907
        %939 = vmatpush1.bf16.msra.mxu0 %v906
        %940 = vmatprep.subr.bf16.mxu0 %v909
        %941 = vmatpush1.bf16.msra.mxu0 %v908
        %942 = vmatprep.subr.bf16.mxu0 %v911
        %943 = vmatpush1.bf16.msra.mxu0 %v910
        %944 = vmatprep.subr.bf16.mxu0 %v913
        %945 = vmatpush1.bf16.msra.mxu0 %v912
        %946 = vmatprep.subr.bf16.mxu0 %v915
        %947 = vmatpush1.bf16.msra.mxu0 %v914
        %948 = vmatprep.subr.bf16.mxu0 0
        %949 = vmatpush1.bf16.msra.mxu0 0
        %950 = vmatprep.subr.bf16.mxu0 0
        %951 = vmatpush1.bf16.msra.mxu0 0
        %952 = vmatprep.subr.bf16.mxu0 0
        %953 = vmatpush1.bf16.msra.mxu0 0
        %954 = vmatprep.subr.bf16.mxu0 0
        %955 = vmatpush1.bf16.msra.mxu0 0
        %956 = vmatprep.subr.bf16.mxu0 0
        %957 = vmatpush1.bf16.msra.mxu0 0
        %958 = vmatprep.subr.bf16.mxu0 0
        %959 = vmatpush1.bf16.msra.mxu0 0
        %960 = vmatprep.subr.bf16.mxu0 0
        %961 = vmatpush1.bf16.msra.mxu0 0
        %962 = vmatprep.subr.bf16.mxu0 0
        %963 = vmatpush1.bf16.msra.mxu0 0
        %964 = vmatprep.mubr.bf16.mxu0 0
        %965 = vmatmul.mubr.bf16.gmra.mrb[0].mxu0 %v820
        %v966 = vpop.f32.mrb[0].mxu0
        %v967 = vadd.f32 0.0, %v966
        %v968 = vpop.f32.mrb[0].mxu0
        %v969 = vadd.f32 0.0, %v968
        %v970 = vpop.f32.mrb[0].mxu0
        %v971 = vadd.f32 0.0, %v970
        %v972 = vpop.f32.mrb[0].mxu0
        %v973 = vadd.f32 0.0, %v972
        %974 = vmatprep.mubr.bf16.mxu0 0
        %975 = vmatmul.mubr.bf16.gmra.mrb[0].mxu0 %v821
        %v976 = vpop.f32.mrb[0].mxu0
        %v977 = vadd.f32 0.0, %v976
        %v978 = vpop.f32.mrb[0].mxu0
        %v979 = vadd.f32 0.0, %v978
        %v980 = vpop.f32.mrb[0].mxu0
        %v981 = vadd.f32 0.0, %v980
        %v982 = vpop.f32.mrb[0].mxu0
        %v983 = vadd.f32 0.0, %v982
        %984 = vmatprep.mubr.bf16.mxu0 0
        %985 = vmatmul.mubr.bf16.gmra.mrb[0].mxu0 %v822
        %v986 = vpop.f32.mrb[0].mxu0
        %v987 = vadd.f32 0.0, %v986
        %v988 = vpop.f32.mrb[0].mxu0
        %v989 = vadd.f32 0.0, %v988
        %v990 = vpop.f32.mrb[0].mxu0
        %v991 = vadd.f32 0.0, %v990
        %v992 = vpop.f32.mrb[0].mxu0
        %v993 = vadd.f32 0.0, %v992
        %994 = vmatprep.mubr.bf16.mxu0 0
        %995 = vmatmul.mubr.bf16.gmra.mrb[0].mxu0 %v823
        %v996 = vpop.f32.mrb[0].mxu0
        %v997 = vadd.f32 0.0, %v996
        %v998 = vpop.f32.mrb[0].mxu0
        %v999 = vadd.f32 0.0, %v998
        %v1000 = vpop.f32.mrb[0].mxu0
        %v1001 = vadd.f32 0.0, %v1000
        %v1002 = vpop.f32.mrb[0].mxu0
        %v1003 = vadd.f32 0.0, %v1002
        %1004 = vmatprep.mubr.bf16.mxu0 0
        %1005 = vmatmul.mubr.bf16.gmra.mrb[0].mxu0 %v824
        %v1006 = vpop.f32.mrb[0].mxu0
        %v1007 = vadd.f32 0.0, %v1006
        %v1008 = vpop.f32.mrb[0].mxu0
        %v1009 = vadd.f32 0.0, %v1008
        %v1010 = vpop.f32.mrb[0].mxu0
        %v1011 = vadd.f32 0.0, %v1010
        %v1012 = vpop.f32.mrb[0].mxu0
        %v1013 = vadd.f32 0.0, %v1012
        %1014 = vmatprep.mubr.bf16.mxu0 0
        %1015 = vmatmul.mubr.bf16.gmra.mrb[0].mxu0 %v825
        %v1016 = vpop.f32.mrb[0].mxu0
        %v1017 = vadd.f32 0.0, %v1016
        %v1018 = vpop.f32.mrb[0].mxu0
        %v1019 = vadd.f32 0.0, %v1018
        %v1020 = vpop.f32.mrb[0].mxu0
        %v1021 = vadd.f32 0.0, %v1020
        %v1022 = vpop.f32.mrb[0].mxu0
        %v1023 = vadd.f32 0.0, %v1022
        %1024 = vmatprep.mubr.bf16.mxu0 0
        %1025 = vmatmul.mubr.bf16.gmra.mrb[0].mxu0 %v826
        %v1026 = vpop.f32.mrb[0].mxu0
        %v1027 = vadd.f32 0.0, %v1026
        %v1028 = vpop.f32.mrb[0].mxu0
        %v1029 = vadd.f32 0.0, %v1028
        %v1030 = vpop.f32.mrb[0].mxu0
        %v1031 = vadd.f32 0.0, %v1030
        %v1032 = vpop.f32.mrb[0].mxu0
        %v1033 = vadd.f32 0.0, %v1032
        %1034 = vmatprep.mubr.bf16.mxu0 0
        %1035 = vmatmul.mubr.bf16.gmra.mrb[0].mxu0 %v827
        %v1036 = vpop.f32.mrb[0].mxu0
        %v1037 = vadd.f32 0.0, %v1036
        %v1038 = vpop.f32.mrb[0].mxu0
        %v1039 = vadd.f32 0.0, %v1038
        %v1040 = vpop.f32.mrb[0].mxu0
        %v1041 = vadd.f32 0.0, %v1040
        %v1042 = vpop.f32.mrb[0].mxu0
        %v1043 = vadd.f32 0.0, %v1042
        %1044 = vmatprep.mubr.bf16.mxu0 0
        %1045 = vmatmul.mubr.bf16.gmra.mrb[0].mxu0 %v828
        %v1046 = vpop.f32.mrb[0].mxu0
        %v1047 = vadd.f32 0.0, %v1046
        %v1048 = vpop.f32.mrb[0].mxu0
        %v1049 = vadd.f32 0.0, %v1048
        %v1050 = vpop.f32.mrb[0].mxu0
        %v1051 = vadd.f32 0.0, %v1050
        %v1052 = vpop.f32.mrb[0].mxu0
        %v1053 = vadd.f32 0.0, %v1052
        %1054 = vmatprep.mubr.bf16.mxu0 0
        %1055 = vmatmul.mubr.bf16.gmra.mrb[0].mxu0 %v829
        %v1056 = vpop.f32.mrb[0].mxu0
        %v1057 = vadd.f32 0.0, %v1056
        %v1058 = vpop.f32.mrb[0].mxu0
        %v1059 = vadd.f32 0.0, %v1058
        %v1060 = vpop.f32.mrb[0].mxu0
        %v1061 = vadd.f32 0.0, %v1060
        %v1062 = vpop.f32.mrb[0].mxu0
        %v1063 = vadd.f32 0.0, %v1062
        %1064 = vmatprep.mubr.bf16.mxu0 0
        %1065 = vmatmul.mubr.bf16.gmra.mrb[0].mxu0 %v830
        %v1066 = vpop.f32.mrb[0].mxu0
        %v1067 = vadd.f32 0.0, %v1066
        %v1068 = vpop.f32.mrb[0].mxu0
        %v1069 = vadd.f32 0.0, %v1068
        %v1070 = vpop.f32.mrb[0].mxu0
        %v1071 = vadd.f32 0.0, %v1070
        %v1072 = vpop.f32.mrb[0].mxu0
        %v1073 = vadd.f32 0.0, %v1072
        %1074 = vmatprep.mubr.bf16.mxu0 0
        %1075 = vmatmul.mubr.bf16.gmra.mrb[0].mxu0 %v831
        %v1076 = vpop.f32.mrb[0].mxu0
        %v1077 = vadd.f32 0.0, %v1076
        %v1078 = vpop.f32.mrb[0].mxu0
        %v1079 = vadd.f32 0.0, %v1078
        %v1080 = vpop.f32.mrb[0].mxu0
        %v1081 = vadd.f32 0.0, %v1080
        %v1082 = vpop.f32.mrb[0].mxu0
        %v1083 = vadd.f32 0.0, %v1082
        %1084 = vmatprep.mubr.bf16.mxu0 0
        %1085 = vmatmul.mubr.bf16.gmra.mrb[0].mxu0 %v832
        %v1086 = vpop.f32.mrb[0].mxu0
        %v1087 = vadd.f32 0.0, %v1086
        %v1088 = vpop.f32.mrb[0].mxu0
        %v1089 = vadd.f32 0.0, %v1088
        %v1090 = vpop.f32.mrb[0].mxu0
        %v1091 = vadd.f32 0.0, %v1090
        %v1092 = vpop.f32.mrb[0].mxu0
        %v1093 = vadd.f32 0.0, %v1092
        %1094 = vmatprep.mubr.bf16.mxu0 0
        %1095 = vmatmul.mubr.bf16.gmra.mrb[0].mxu0 %v833
        %v1096 = vpop.f32.mrb[0].mxu0
        %v1097 = vadd.f32 0.0, %v1096
        %v1098 = vpop.f32.mrb[0].mxu0
        %v1099 = vadd.f32 0.0, %v1098
        %v1100 = vpop.f32.mrb[0].mxu0
        %v1101 = vadd.f32 0.0, %v1100
        %v1102 = vpop.f32.mrb[0].mxu0
        %v1103 = vadd.f32 0.0, %v1102
        %1104 = vmatprep.mubr.bf16.mxu0 0
        %1105 = vmatmul.mubr.bf16.gmra.mrb[0].mxu0 %v834
        %v1106 = vpop.f32.mrb[0].mxu0
        %v1107 = vadd.f32 0.0, %v1106
        %v1108 = vpop.f32.mrb[0].mxu0
        %v1109 = vadd.f32 0.0, %v1108
        %v1110 = vpop.f32.mrb[0].mxu0
        %v1111 = vadd.f32 0.0, %v1110
        %v1112 = vpop.f32.mrb[0].mxu0
        %v1113 = vadd.f32 0.0, %v1112
        %1114 = vmatprep.mubr.bf16.mxu0 0
        %1115 = vmatmul.mubr.bf16.gmra.mrb[0].mxu0 %v835
        %v1116 = vpop.f32.mrb[0].mxu0
        %v1117 = vadd.f32 0.0, %v1116
        %v1118 = vpop.f32.mrb[0].mxu0
        %v1119 = vadd.f32 0.0, %v1118
        %v1120 = vpop.f32.mrb[0].mxu0
        %v1121 = vadd.f32 0.0, %v1120
        %v1122 = vpop.f32.mrb[0].mxu0
        %v1123 = vadd.f32 0.0, %v1122
        %1124 = vdwg.mxu0
        %v1157 = vunpack.c.l.b16 %v320
        %v1158 = vunpack.c.l.b16 %v321
        %v1159 = vunpack.c.l.b16 %v322
        %v1160 = vunpack.c.l.b16 %v323
        %v1161 = vunpack.c.l.b16 %v324
        %v1162 = vunpack.c.l.b16 %v325
        %v1163 = vunpack.c.l.b16 %v326
        %v1164 = vunpack.c.l.b16 %v327
        %v1165 = vunpack.c.l.b16 %v328
        %v1166 = vunpack.c.l.b16 %v329
        %v1167 = vunpack.c.l.b16 %v330
        %v1168 = vunpack.c.l.b16 %v331
        %v1169 = vunpack.c.l.b16 %v332
        %v1170 = vunpack.c.l.b16 %v333
        %v1171 = vunpack.c.l.b16 %v334
        %v1172 = vunpack.c.l.b16 %v335
        %v1173 = vunpack.c.l.b16 %v336
        %v1174 = vunpack.c.l.b16 %v337
        %v1175 = vunpack.c.l.b16 %v338
        %v1176 = vunpack.c.l.b16 %v339
        %v1177 = vunpack.c.l.b16 %v340
        %v1178 = vunpack.c.l.b16 %v341
        %v1179 = vunpack.c.l.b16 %v342
        %v1180 = vunpack.c.l.b16 %v343
        %v1181 = vunpack.c.l.b16 %v344
        %v1182 = vunpack.c.l.b16 %v345
        %v1183 = vunpack.c.l.b16 %v346
        %v1184 = vunpack.c.l.b16 %v347
        %v1185 = vunpack.c.l.b16 %v348
        %v1186 = vunpack.c.l.b16 %v349
        %v1187 = vunpack.c.l.b16 %v350
        %v1188 = vunpack.c.l.b16 %v351
        %v1189 = vpack.c.b16 %v1158, %v1157
        %v1190 = vpack.c.b16 %v1160, %v1159
        %v1191 = vpack.c.b16 %v1162, %v1161
        %v1192 = vpack.c.b16 %v1164, %v1163
        %v1193 = vpack.c.b16 %v1166, %v1165
        %v1194 = vpack.c.b16 %v1168, %v1167
        %v1195 = vpack.c.b16 %v1170, %v1169
        %v1196 = vpack.c.b16 %v1172, %v1171
        %v1197 = vpack.c.b16 %v1174, %v1173
        %v1198 = vpack.c.b16 %v1176, %v1175
        %v1199 = vpack.c.b16 %v1178, %v1177
        %v1200 = vpack.c.b16 %v1180, %v1179
        %v1201 = vpack.c.b16 %v1182, %v1181
        %v1202 = vpack.c.b16 %v1184, %v1183
        %v1203 = vpack.c.b16 %v1186, %v1185
        %v1204 = vpack.c.b16 %v1188, %v1187
        %v1237 = vunpack.c.l.b16 %v352
        %v1238 = vunpack.c.h.b16 %v352
        %v1239 = vunpack.c.l.b16 %v353
        %v1240 = vunpack.c.h.b16 %v353
        %v1241 = vunpack.c.l.b16 %v354
        %v1242 = vunpack.c.h.b16 %v354
        %v1243 = vunpack.c.l.b16 %v355
        %v1244 = vunpack.c.h.b16 %v355
        %v1245 = vunpack.c.l.b16 %v356
        %v1246 = vunpack.c.h.b16 %v356
        %v1247 = vunpack.c.l.b16 %v357
        %v1248 = vunpack.c.h.b16 %v357
        %v1249 = vunpack.c.l.b16 %v358
        %v1250 = vunpack.c.h.b16 %v358
        %v1251 = vunpack.c.l.b16 %v359
        %v1252 = vunpack.c.h.b16 %v359
        %v1253 = vunpack.c.l.b16 %v360
        %v1254 = vunpack.c.h.b16 %v360
        %v1255 = vunpack.c.l.b16 %v361
        %v1256 = vunpack.c.h.b16 %v361
        %v1257 = vunpack.c.l.b16 %v362
        %v1258 = vunpack.c.h.b16 %v362
        %v1259 = vunpack.c.l.b16 %v363
        %v1260 = vunpack.c.h.b16 %v363
        %v1261 = vunpack.c.l.b16 %v364
        %v1262 = vunpack.c.h.b16 %v364
        %v1263 = vunpack.c.l.b16 %v365
        %v1264 = vunpack.c.h.b16 %v365
        %v1265 = vunpack.c.l.b16 %v366
        %v1266 = vunpack.c.h.b16 %v366
        %v1267 = vunpack.c.l.b16 %v367
        %v1268 = vunpack.c.h.b16 %v367
        %v1269 = vpack.c.b16 %v1239, %v1237
        %v1270 = vpack.c.b16 %v1240, %v1238
        %v1271 = vpack.c.b16 %v1243, %v1241
        %v1272 = vpack.c.b16 %v1244, %v1242
        %v1273 = vpack.c.b16 %v1247, %v1245
        %v1274 = vpack.c.b16 %v1248, %v1246
        %v1275 = vpack.c.b16 %v1251, %v1249
        %v1276 = vpack.c.b16 %v1252, %v1250
        %v1277 = vpack.c.b16 %v1255, %v1253
        %v1278 = vpack.c.b16 %v1256, %v1254
        %v1279 = vpack.c.b16 %v1259, %v1257
        %v1280 = vpack.c.b16 %v1260, %v1258
        %v1281 = vpack.c.b16 %v1263, %v1261
        %v1282 = vpack.c.b16 %v1264, %v1262
        %v1283 = vpack.c.b16 %v1267, %v1265
        %v1284 = vpack.c.b16 %v1268, %v1266
        %1301 = vmatprep.subr.bf16.mxu0 %v1270
        %1302 = vmatpush1.bf16.msra.mxu0 %v1269
        %1303 = vmatprep.subr.bf16.mxu0 %v1272
        %1304 = vmatpush1.bf16.msra.mxu0 %v1271
        %1305 = vmatprep.subr.bf16.mxu0 %v1274
        %1306 = vmatpush1.bf16.msra.mxu0 %v1273
        %1307 = vmatprep.subr.bf16.mxu0 %v1276
        %1308 = vmatpush1.bf16.msra.mxu0 %v1275
        %1309 = vmatprep.subr.bf16.mxu0 %v1278
        %1310 = vmatpush1.bf16.msra.mxu0 %v1277
        %1311 = vmatprep.subr.bf16.mxu0 %v1280
        %1312 = vmatpush1.bf16.msra.mxu0 %v1279
        %1313 = vmatprep.subr.bf16.mxu0 %v1282
        %1314 = vmatpush1.bf16.msra.mxu0 %v1281
        %1315 = vmatprep.subr.bf16.mxu0 %v1284
        %1316 = vmatpush1.bf16.msra.mxu0 %v1283
        %1317 = vmatprep.subr.bf16.mxu0 0
        %1318 = vmatpush1.bf16.msra.mxu0 0
        %1319 = vmatprep.subr.bf16.mxu0 0
        %1320 = vmatpush1.bf16.msra.mxu0 0
        %1321 = vmatprep.subr.bf16.mxu0 0
        %1322 = vmatpush1.bf16.msra.mxu0 0
        %1323 = vmatprep.subr.bf16.mxu0 0
        %1324 = vmatpush1.bf16.msra.mxu0 0
        %1325 = vmatprep.subr.bf16.mxu0 0
        %1326 = vmatpush1.bf16.msra.mxu0 0
        %1327 = vmatprep.subr.bf16.mxu0 0
        %1328 = vmatpush1.bf16.msra.mxu0 0
        %1329 = vmatprep.subr.bf16.mxu0 0
        %1330 = vmatpush1.bf16.msra.mxu0 0
        %1331 = vmatprep.subr.bf16.mxu0 0
        %1332 = vmatpush1.bf16.msra.mxu0 0
        %1333 = vmatprep.mubr.bf16.mxu0 0
        %1334 = vmatmul.mubr.bf16.gmra.mrb[0].mxu0 %v1189
        %v1335 = vpop.f32.mrb[0].mxu0
        %v1336 = vadd.f32 %v967, %v1335
        %v1337 = vpop.f32.mrb[0].mxu0
        %v1338 = vadd.f32 %v969, %v1337
        %v1339 = vpop.f32.mrb[0].mxu0
        %v1340 = vadd.f32 %v971, %v1339
        %v1341 = vpop.f32.mrb[0].mxu0
        %v1342 = vadd.f32 %v973, %v1341
        %1343 = vmatprep.mubr.bf16.mxu0 0
        %1344 = vmatmul.mubr.bf16.gmra.mrb[0].mxu0 %v1190
        %v1345 = vpop.f32.mrb[0].mxu0
        %v1346 = vadd.f32 %v977, %v1345
        %v1347 = vpop.f32.mrb[0].mxu0
        %v1348 = vadd.f32 %v979, %v1347
        %v1349 = vpop.f32.mrb[0].mxu0
        %v1350 = vadd.f32 %v981, %v1349
        %v1351 = vpop.f32.mrb[0].mxu0
        %v1352 = vadd.f32 %v983, %v1351
        %1353 = vmatprep.mubr.bf16.mxu0 0
        %1354 = vmatmul.mubr.bf16.gmra.mrb[0].mxu0 %v1191
        %v1355 = vpop.f32.mrb[0].mxu0
        %v1356 = vadd.f32 %v987, %v1355
        %v1357 = vpop.f32.mrb[0].mxu0
        %v1358 = vadd.f32 %v989, %v1357
        %v1359 = vpop.f32.mrb[0].mxu0
        %v1360 = vadd.f32 %v991, %v1359
        %v1361 = vpop.f32.mrb[0].mxu0
        %v1362 = vadd.f32 %v993, %v1361
        %1363 = vmatprep.mubr.bf16.mxu0 0
        %1364 = vmatmul.mubr.bf16.gmra.mrb[0].mxu0 %v1192
        %v1365 = vpop.f32.mrb[0].mxu0
        %v1366 = vadd.f32 %v997, %v1365
        %v1367 = vpop.f32.mrb[0].mxu0
        %v1368 = vadd.f32 %v999, %v1367
        %v1369 = vpop.f32.mrb[0].mxu0
        %v1370 = vadd.f32 %v1001, %v1369
        %v1371 = vpop.f32.mrb[0].mxu0
        %v1372 = vadd.f32 %v1003, %v1371
        %1373 = vmatprep.mubr.bf16.mxu0 0
        %1374 = vmatmul.mubr.bf16.gmra.mrb[0].mxu0 %v1193
        %v1375 = vpop.f32.mrb[0].mxu0
        %v1376 = vadd.f32 %v1007, %v1375
        %v1377 = vpop.f32.mrb[0].mxu0
        %v1378 = vadd.f32 %v1009, %v1377
        %v1379 = vpop.f32.mrb[0].mxu0
        %v1380 = vadd.f32 %v1011, %v1379
        %v1381 = vpop.f32.mrb[0].mxu0
        %v1382 = vadd.f32 %v1013, %v1381
        %1383 = vmatprep.mubr.bf16.mxu0 0
        %1384 = vmatmul.mubr.bf16.gmra.mrb[0].mxu0 %v1194
        %v1385 = vpop.f32.mrb[0].mxu0
        %v1386 = vadd.f32 %v1017, %v1385
        %v1387 = vpop.f32.mrb[0].mxu0
        %v1388 = vadd.f32 %v1019, %v1387
        %v1389 = vpop.f32.mrb[0].mxu0
        %v1390 = vadd.f32 %v1021, %v1389
        %v1391 = vpop.f32.mrb[0].mxu0
        %v1392 = vadd.f32 %v1023, %v1391
        %1393 = vmatprep.mubr.bf16.mxu0 0
        %1394 = vmatmul.mubr.bf16.gmra.mrb[0].mxu0 %v1195
        %v1395 = vpop.f32.mrb[0].mxu0
        %v1396 = vadd.f32 %v1027, %v1395
        %v1397 = vpop.f32.mrb[0].mxu0
        %v1398 = vadd.f32 %v1029, %v1397
        %v1399 = vpop.f32.mrb[0].mxu0
        %v1400 = vadd.f32 %v1031, %v1399
        %v1401 = vpop.f32.mrb[0].mxu0
        %v1402 = vadd.f32 %v1033, %v1401
        %1403 = vmatprep.mubr.bf16.mxu0 0
        %1404 = vmatmul.mubr.bf16.gmra.mrb[0].mxu0 %v1196
        %v1405 = vpop.f32.mrb[0].mxu0
        %v1406 = vadd.f32 %v1037, %v1405
        %v1407 = vpop.f32.mrb[0].mxu0
        %v1408 = vadd.f32 %v1039, %v1407
        %v1409 = vpop.f32.mrb[0].mxu0
        %v1410 = vadd.f32 %v1041, %v1409
        %v1411 = vpop.f32.mrb[0].mxu0
        %v1412 = vadd.f32 %v1043, %v1411
        %1413 = vmatprep.mubr.bf16.mxu0 0
        %1414 = vmatmul.mubr.bf16.gmra.mrb[0].mxu0 %v1197
        %v1415 = vpop.f32.mrb[0].mxu0
        %v1416 = vadd.f32 %v1047, %v1415
        %v1417 = vpop.f32.mrb[0].mxu0
        %v1418 = vadd.f32 %v1049, %v1417
        %v1419 = vpop.f32.mrb[0].mxu0
        %v1420 = vadd.f32 %v1051, %v1419
        %v1421 = vpop.f32.mrb[0].mxu0
        %v1422 = vadd.f32 %v1053, %v1421
        %1423 = vmatprep.mubr.bf16.mxu0 0
        %1424 = vmatmul.mubr.bf16.gmra.mrb[0].mxu0 %v1198
        %v1425 = vpop.f32.mrb[0].mxu0
        %v1426 = vadd.f32 %v1057, %v1425
        %v1427 = vpop.f32.mrb[0].mxu0
        %v1428 = vadd.f32 %v1059, %v1427
        %v1429 = vpop.f32.mrb[0].mxu0
        %v1430 = vadd.f32 %v1061, %v1429
        %v1431 = vpop.f32.mrb[0].mxu0
        %v1432 = vadd.f32 %v1063, %v1431
        %1433 = vmatprep.mubr.bf16.mxu0 0
        %1434 = vmatmul.mubr.bf16.gmra.mrb[0].mxu0 %v1199
        %v1435 = vpop.f32.mrb[0].mxu0
        %v1436 = vadd.f32 %v1067, %v1435
        %v1437 = vpop.f32.mrb[0].mxu0
        %v1438 = vadd.f32 %v1069, %v1437
        %v1439 = vpop.f32.mrb[0].mxu0
        %v1440 = vadd.f32 %v1071, %v1439
        %v1441 = vpop.f32.mrb[0].mxu0
        %v1442 = vadd.f32 %v1073, %v1441
        %1443 = vmatprep.mubr.bf16.mxu0 0
        %1444 = vmatmul.mubr.bf16.gmra.mrb[0].mxu0 %v1200
        %v1445 = vpop.f32.mrb[0].mxu0
        %v1446 = vadd.f32 %v1077, %v1445
        %v1447 = vpop.f32.mrb[0].mxu0
        %v1448 = vadd.f32 %v1079, %v1447
        %v1449 = vpop.f32.mrb[0].mxu0
        %v1450 = vadd.f32 %v1081, %v1449
        %v1451 = vpop.f32.mrb[0].mxu0
        %v1452 = vadd.f32 %v1083, %v1451
        %1453 = vmatprep.mubr.bf16.mxu0 0
        %1454 = vmatmul.mubr.bf16.gmra.mrb[0].mxu0 %v1201
        %v1455 = vpop.f32.mrb[0].mxu0
        %v1456 = vadd.f32 %v1087, %v1455
        %v1457 = vpop.f32.mrb[0].mxu0
        %v1458 = vadd.f32 %v1089, %v1457
        %v1459 = vpop.f32.mrb[0].mxu0
        %v1460 = vadd.f32 %v1091, %v1459
        %v1461 = vpop.f32.mrb[0].mxu0
        %v1462 = vadd.f32 %v1093, %v1461
        %1463 = vmatprep.mubr.bf16.mxu0 0
        %1464 = vmatmul.mubr.bf16.gmra.mrb[0].mxu0 %v1202
        %v1465 = vpop.f32.mrb[0].mxu0
        %v1466 = vadd.f32 %v1097, %v1465
        %v1467 = vpop.f32.mrb[0].mxu0
        %v1468 = vadd.f32 %v1099, %v1467
        %v1469 = vpop.f32.mrb[0].mxu0
        %v1470 = vadd.f32 %v1101, %v1469
        %v1471 = vpop.f32.mrb[0].mxu0
        %v1472 = vadd.f32 %v1103, %v1471
        %1473 = vmatprep.mubr.bf16.mxu0 0
        %1474 = vmatmul.mubr.bf16.gmra.mrb[0].mxu0 %v1203
        %v1475 = vpop.f32.mrb[0].mxu0
        %v1476 = vadd.f32 %v1107, %v1475
        %v1477 = vpop.f32.mrb[0].mxu0
        %v1478 = vadd.f32 %v1109, %v1477
        %v1479 = vpop.f32.mrb[0].mxu0
        %v1480 = vadd.f32 %v1111, %v1479
        %v1481 = vpop.f32.mrb[0].mxu0
        %v1482 = vadd.f32 %v1113, %v1481
        %1483 = vmatprep.mubr.bf16.mxu0 0
        %1484 = vmatmul.mubr.bf16.gmra.mrb[0].mxu0 %v1204
        %v1485 = vpop.f32.mrb[0].mxu0
        %v1486 = vadd.f32 %v1117, %v1485
        %v1487 = vpop.f32.mrb[0].mxu0
        %v1488 = vadd.f32 %v1119, %v1487
        %v1489 = vpop.f32.mrb[0].mxu0
        %v1490 = vadd.f32 %v1121, %v1489
        %v1491 = vpop.f32.mrb[0].mxu0
        %v1492 = vadd.f32 %v1123, %v1491
        %1493 = vdwg.mxu0
        %v1494 = vld [vmem:[%s242] sm:$0xe]
        %v1495 = vld [vmem:[%s242 + $0xc] sm:$0xe]
        %v1496 = vld [vmem:[%s242 + $0x18] sm:$0xe]
        %v1497 = vld [vmem:[%s242 + $0x24] sm:$0xe]
        %v1498 = vld [vmem:[%s242 + $0x30] sm:$0xe]
        %v1499 = vld [vmem:[%s242 + $0x3c] sm:$0xe]
        %v1500 = vld [vmem:[%s242 + $0x48] sm:$0xe]
        %v1501 = vld [vmem:[%s242 + $0x54] sm:$0xe]
        %v1502 = vld [vmem:[%s242 + $0x60] sm:$0xe]
        %v1503 = vld [vmem:[%s242 + $0x6c] sm:$0xe]
        %v1504 = vld [vmem:[%s242 + $0x78] sm:$0xe]
        %v1505 = vld [vmem:[%s242 + $0x84] sm:$0xe]
        %v1506 = vld [vmem:[%s242 + $0x90] sm:$0xe]
        %v1507 = vld [vmem:[%s242 + $0x9c] sm:$0xe]
        %v1508 = vld [vmem:[%s242 + $0xa8] sm:$0xe]
        %v1509 = vld [vmem:[%s242 + $0xb4] sm:$0xe]
        %vm1542 = vcmask 1042432
        %vm1543 = vcmask 1046532
        %vm1544 = vmor %vm1542, %vm1543
        %v1545 = vrot.slane %v1494, 5
        %v1546 = vrot.slane %v1545, 4
        %v1547 = vrot.slane %v321, 5
        %v1548 = vsel %vm1544, %v1546, %v1547
        %v1549 = vrot.slane %v1547, 4
        %v1550 = vrot.slane %v368, 5
        %v1551 = vsel %vm1544, %v1549, %v1550
        %v1552 = vrot.slane %v1495, 5
        %v1553 = vrot.slane %v1552, 4
        %v1554 = vrot.slane %v323, 5
        %v1555 = vsel %vm1544, %v1553, %v1554
        %v1556 = vrot.slane %v1554, 4
        %v1557 = vrot.slane %v369, 5
        %v1558 = vsel %vm1544, %v1556, %v1557
        %v1559 = vrot.slane %v1496, 5
        %v1560 = vrot.slane %v1559, 4
        %v1561 = vrot.slane %v325, 5
        %v1562 = vsel %vm1544, %v1560, %v1561
        %v1563 = vrot.slane %v1561, 4
        %v1564 = vrot.slane %v370, 5
        %v1565 = vsel %vm1544, %v1563, %v1564
        %v1566 = vrot.slane %v1497, 5
        %v1567 = vrot.slane %v1566, 4
        %v1568 = vrot.slane %v327, 5
        %v1569 = vsel %vm1544, %v1567, %v1568
        %v1570 = vrot.slane %v1568, 4
        %v1571 = vrot.slane %v371, 5
        %v1572 = vsel %vm1544, %v1570, %v1571
        %v1573 = vrot.slane %v1498, 5
        %v1574 = vrot.slane %v1573, 4
        %v1575 = vrot.slane %v329, 5
        %v1576 = vsel %vm1544, %v1574, %v1575
        %v1577 = vrot.slane %v1575, 4
        %v1578 = vrot.slane %v372, 5
        %v1579 = vsel %vm1544, %v1577, %v1578
        %v1580 = vrot.slane %v1499, 5
        %v1581 = vrot.slane %v1580, 4
        %v1582 = vrot.slane %v331, 5
        %v1583 = vsel %vm1544, %v1581, %v1582
        %v1584 = vrot.slane %v1582, 4
        %v1585 = vrot.slane %v373, 5
        %v1586 = vsel %vm1544, %v1584, %v1585
        %v1587 = vrot.slane %v1500, 5
        %v1588 = vrot.slane %v1587, 4
        %v1589 = vrot.slane %v333, 5
        %v1590 = vsel %vm1544, %v1588, %v1589
        %v1591 = vrot.slane %v1589, 4
        %v1592 = vrot.slane %v374, 5
        %v1593 = vsel %vm1544, %v1591, %v1592
        %v1594 = vrot.slane %v1501, 5
        %v1595 = vrot.slane %v1594, 4
        %v1596 = vrot.slane %v335, 5
        %v1597 = vsel %vm1544, %v1595, %v1596
        %v1598 = vrot.slane %v1596, 4
        %v1599 = vrot.slane %v375, 5
        %v1600 = vsel %vm1544, %v1598, %v1599
        %v1601 = vrot.slane %v1502, 5
        %v1602 = vrot.slane %v1601, 4
        %v1603 = vrot.slane %v337, 5
        %v1604 = vsel %vm1544, %v1602, %v1603
        %v1605 = vrot.slane %v1603, 4
        %v1606 = vrot.slane %v376, 5
        %v1607 = vsel %vm1544, %v1605, %v1606
        %v1608 = vrot.slane %v1503, 5
        %v1609 = vrot.slane %v1608, 4
        %v1610 = vrot.slane %v339, 5
        %v1611 = vsel %vm1544, %v1609, %v1610
        %v1612 = vrot.slane %v1610, 4
        %v1613 = vrot.slane %v377, 5
        %v1614 = vsel %vm1544, %v1612, %v1613
        %v1615 = vrot.slane %v1504, 5
        %v1616 = vrot.slane %v1615, 4
        %v1617 = vrot.slane %v341, 5
        %v1618 = vsel %vm1544, %v1616, %v1617
        %v1619 = vrot.slane %v1617, 4
        %v1620 = vrot.slane %v378, 5
        %v1621 = vsel %vm1544, %v1619, %v1620
        %v1622 = vrot.slane %v1505, 5
        %v1623 = vrot.slane %v1622, 4
        %v1624 = vrot.slane %v343, 5
        %v1625 = vsel %vm1544, %v1623, %v1624
        %v1626 = vrot.slane %v1624, 4
        %v1627 = vrot.slane %v379, 5
        %v1628 = vsel %vm1544, %v1626, %v1627
        %v1629 = vrot.slane %v1506, 5
        %v1630 = vrot.slane %v1629, 4
        %v1631 = vrot.slane %v345, 5
        %v1632 = vsel %vm1544, %v1630, %v1631
        %v1633 = vrot.slane %v1631, 4
        %v1634 = vrot.slane %v380, 5
        %v1635 = vsel %vm1544, %v1633, %v1634
        %v1636 = vrot.slane %v1507, 5
        %v1637 = vrot.slane %v1636, 4
        %v1638 = vrot.slane %v347, 5
        %v1639 = vsel %vm1544, %v1637, %v1638
        %v1640 = vrot.slane %v1638, 4
        %v1641 = vrot.slane %v381, 5
        %v1642 = vsel %vm1544, %v1640, %v1641
        %v1643 = vrot.slane %v1508, 5
        %v1644 = vrot.slane %v1643, 4
        %v1645 = vrot.slane %v349, 5
        %v1646 = vsel %vm1544, %v1644, %v1645
        %v1647 = vrot.slane %v1645, 4
        %v1648 = vrot.slane %v382, 5
        %v1649 = vsel %vm1544, %v1647, %v1648
        %v1650 = vrot.slane %v1509, 5
        %v1651 = vrot.slane %v1650, 4
        %v1652 = vrot.slane %v351, 5
        %v1653 = vsel %vm1544, %v1651, %v1652
        %v1654 = vrot.slane %v1652, 4
        %v1655 = vrot.slane %v383, 5
        %v1656 = vsel %vm1544, %v1654, %v1655
        %s1657 = scalar_lea.vmem [#allocation2], 256
        %v1658 = vld [vmem:[%s1657] sm:$0xff]
        %v1659 = vld [vmem:[%s1657 + $0x8] sm:$0xff]
        %v1660 = vld [vmem:[%s1657 + $0x10] sm:$0xff]
        %v1661 = vld [vmem:[%s1657 + $0x18] sm:$0xff]
        %v1662 = vld [vmem:[%s1657 + $0x20] sm:$0xff]
        %v1663 = vld [vmem:[%s1657 + $0x28] sm:$0xff]
        %v1664 = vld [vmem:[%s1657 + $0x30] sm:$0xff]
        %v1665 = vld [vmem:[%s1657 + $0x38] sm:$0xff]
        %v1666 = vld [vmem:[%s1657 + $0x40] sm:$0xff]
        %v1667 = vld [vmem:[%s1657 + $0x48] sm:$0xff]
        %v1668 = vld [vmem:[%s1657 + $0x50] sm:$0xff]
        %v1669 = vld [vmem:[%s1657 + $0x58] sm:$0xff]
        %v1670 = vld [vmem:[%s1657 + $0x60] sm:$0xff]
        %v1671 = vld [vmem:[%s1657 + $0x68] sm:$0xff]
        %v1672 = vld [vmem:[%s1657 + $0x70] sm:$0xff]
        %v1673 = vld [vmem:[%s1657 + $0x78] sm:$0xff]
        %v1674 = vunpack.c.l.b16 %v1548
        %v1675 = vunpack.c.l.b16 %v1551
        %v1676 = vunpack.c.l.b16 %v1555
        %v1677 = vunpack.c.l.b16 %v1558
        %v1678 = vunpack.c.l.b16 %v1562
        %v1679 = vunpack.c.l.b16 %v1565
        %v1680 = vunpack.c.l.b16 %v1569
        %v1681 = vunpack.c.l.b16 %v1572
        %v1682 = vunpack.c.l.b16 %v1576
        %v1683 = vunpack.c.l.b16 %v1579
        %v1684 = vunpack.c.l.b16 %v1583
        %v1685 = vunpack.c.l.b16 %v1586
        %v1686 = vunpack.c.l.b16 %v1590
        %v1687 = vunpack.c.l.b16 %v1593
        %v1688 = vunpack.c.l.b16 %v1597
        %v1689 = vunpack.c.l.b16 %v1600
        %v1690 = vunpack.c.l.b16 %v1604
        %v1691 = vunpack.c.l.b16 %v1607
        %v1692 = vunpack.c.l.b16 %v1611
        %v1693 = vunpack.c.l.b16 %v1614
        %v1694 = vunpack.c.l.b16 %v1618
        %v1695 = vunpack.c.l.b16 %v1621
        %v1696 = vunpack.c.l.b16 %v1625
        %v1697 = vunpack.c.l.b16 %v1628
        %v1698 = vunpack.c.l.b16 %v1632
        %v1699 = vunpack.c.l.b16 %v1635
        %v1700 = vunpack.c.l.b16 %v1639
        %v1701 = vunpack.c.l.b16 %v1642
        %v1702 = vunpack.c.l.b16 %v1646
        %v1703 = vunpack.c.l.b16 %v1649
        %v1704 = vunpack.c.l.b16 %v1653
        %v1705 = vunpack.c.l.b16 %v1656
        %v1706 = vpack.c.b16 %v1675, %v1674
        %v1707 = vpack.c.b16 %v1677, %v1676
        %v1708 = vpack.c.b16 %v1679, %v1678
        %v1709 = vpack.c.b16 %v1681, %v1680
        %v1710 = vpack.c.b16 %v1683, %v1682
        %v1711 = vpack.c.b16 %v1685, %v1684
        %v1712 = vpack.c.b16 %v1687, %v1686
        %v1713 = vpack.c.b16 %v1689, %v1688
        %v1714 = vpack.c.b16 %v1691, %v1690
        %v1715 = vpack.c.b16 %v1693, %v1692
        %v1716 = vpack.c.b16 %v1695, %v1694
        %v1717 = vpack.c.b16 %v1697, %v1696
        %v1718 = vpack.c.b16 %v1699, %v1698
        %v1719 = vpack.c.b16 %v1701, %v1700
        %v1720 = vpack.c.b16 %v1703, %v1702
        %v1721 = vpack.c.b16 %v1705, %v1704
        %v1754 = vunpack.c.l.b16 %v1658
        %v1755 = vunpack.c.h.b16 %v1658
        %v1756 = vunpack.c.l.b16 %v1659
        %v1757 = vunpack.c.h.b16 %v1659
        %v1758 = vunpack.c.l.b16 %v1660
        %v1759 = vunpack.c.h.b16 %v1660
        %v1760 = vunpack.c.l.b16 %v1661
        %v1761 = vunpack.c.h.b16 %v1661
        %v1762 = vunpack.c.l.b16 %v1662
        %v1763 = vunpack.c.h.b16 %v1662
        %v1764 = vunpack.c.l.b16 %v1663
        %v1765 = vunpack.c.h.b16 %v1663
        %v1766 = vunpack.c.l.b16 %v1664
        %v1767 = vunpack.c.h.b16 %v1664
        %v1768 = vunpack.c.l.b16 %v1665
        %v1769 = vunpack.c.h.b16 %v1665
        %v1770 = vunpack.c.l.b16 %v1666
        %v1771 = vunpack.c.h.b16 %v1666
        %v1772 = vunpack.c.l.b16 %v1667
        %v1773 = vunpack.c.h.b16 %v1667
        %v1774 = vunpack.c.l.b16 %v1668
        %v1775 = vunpack.c.h.b16 %v1668
        %v1776 = vunpack.c.l.b16 %v1669
        %v1777 = vunpack.c.h.b16 %v1669
        %v1778 = vunpack.c.l.b16 %v1670
        %v1779 = vunpack.c.h.b16 %v1670
        %v1780 = vunpack.c.l.b16 %v1671
        %v1781 = vunpack.c.h.b16 %v1671
        %v1782 = vunpack.c.l.b16 %v1672
        %v1783 = vunpack.c.h.b16 %v1672
        %v1784 = vunpack.c.l.b16 %v1673
        %v1785 = vunpack.c.h.b16 %v1673
        %v1786 = vpack.c.b16 %v1756, %v1754
        %v1787 = vpack.c.b16 %v1757, %v1755
        %v1788 = vpack.c.b16 %v1760, %v1758
        %v1789 = vpack.c.b16 %v1761, %v1759
        %v1790 = vpack.c.b16 %v1764, %v1762
        %v1791 = vpack.c.b16 %v1765, %v1763
        %v1792 = vpack.c.b16 %v1768, %v1766
        %v1793 = vpack.c.b16 %v1769, %v1767
        %v1794 = vpack.c.b16 %v1772, %v1770
        %v1795 = vpack.c.b16 %v1773, %v1771
        %v1796 = vpack.c.b16 %v1776, %v1774
        %v1797 = vpack.c.b16 %v1777, %v1775
        %v1798 = vpack.c.b16 %v1780, %v1778
        %v1799 = vpack.c.b16 %v1781, %v1779
        %v1800 = vpack.c.b16 %v1784, %v1782
        %v1801 = vpack.c.b16 %v1785, %v1783
        %1818 = vmatprep.subr.bf16.mxu0 %v1787
        %1819 = vmatpush1.bf16.msra.mxu0 %v1786
        %1820 = vmatprep.subr.bf16.mxu0 %v1789
        %1821 = vmatpush1.bf16.msra.mxu0 %v1788
        %1822 = vmatprep.subr.bf16.mxu0 %v1791
        %1823 = vmatpush1.bf16.msra.mxu0 %v1790
        %1824 = vmatprep.subr.bf16.mxu0 %v1793
        %1825 = vmatpush1.bf16.msra.mxu0 %v1792
        %1826 = vmatprep.subr.bf16.mxu0 %v1795
        %1827 = vmatpush1.bf16.msra.mxu0 %v1794
        %1828 = vmatprep.subr.bf16.mxu0 %v1797
        %1829 = vmatpush1.bf16.msra.mxu0 %v1796
        %1830 = vmatprep.subr.bf16.mxu0 %v1799
        %1831 = vmatpush1.bf16.msra.mxu0 %v1798
        %1832 = vmatprep.subr.bf16.mxu0 %v1801
        %1833 = vmatpush1.bf16.msra.mxu0 %v1800
        %1834 = vmatprep.subr.bf16.mxu0 0
        %1835 = vmatpush1.bf16.msra.mxu0 0
        %1836 = vmatprep.subr.bf16.mxu0 0
        %1837 = vmatpush1.bf16.msra.mxu0 0
        %1838 = vmatprep.subr.bf16.mxu0 0
        %1839 = vmatpush1.bf16.msra.mxu0 0
        %1840 = vmatprep.subr.bf16.mxu0 0
        %1841 = vmatpush1.bf16.msra.mxu0 0
        %1842 = vmatprep.subr.bf16.mxu0 0
        %1843 = vmatpush1.bf16.msra.mxu0 0
        %1844 = vmatprep.subr.bf16.mxu0 0
        %1845 = vmatpush1.bf16.msra.mxu0 0
        %1846 = vmatprep.subr.bf16.mxu0 0
        %1847 = vmatpush1.bf16.msra.mxu0 0
        %1848 = vmatprep.subr.bf16.mxu0 0
        %1849 = vmatpush1.bf16.msra.mxu0 0
        %1850 = vmatprep.mubr.bf16.mxu0 0
        %1851 = vmatmul.mubr.bf16.gmra.mrb[0].mxu0 %v1706
        %v1852 = vpop.f32.mrb[0].mxu0
        %v1853 = vadd.f32 0.0, %v1852
        %v1854 = vpop.f32.mrb[0].mxu0
        %v1855 = vadd.f32 0.0, %v1854
        %v1856 = vpop.f32.mrb[0].mxu0
        %v1857 = vadd.f32 0.0, %v1856
        %v1858 = vpop.f32.mrb[0].mxu0
        %v1859 = vadd.f32 0.0, %v1858
        %1860 = vmatprep.mubr.bf16.mxu0 0
        %1861 = vmatmul.mubr.bf16.gmra.mrb[0].mxu0 %v1707
        %v1862 = vpop.f32.mrb[0].mxu0
        %v1863 = vadd.f32 0.0, %v1862
        %v1864 = vpop.f32.mrb[0].mxu0
        %v1865 = vadd.f32 0.0, %v1864
        %v1866 = vpop.f32.mrb[0].mxu0
        %v1867 = vadd.f32 0.0, %v1866
        %v1868 = vpop.f32.mrb[0].mxu0
        %v1869 = vadd.f32 0.0, %v1868
        %1870 = vmatprep.mubr.bf16.mxu0 0
        %1871 = vmatmul.mubr.bf16.gmra.mrb[0].mxu0 %v1708
        %v1872 = vpop.f32.mrb[0].mxu0
        %v1873 = vadd.f32 0.0, %v1872
        %v1874 = vpop.f32.mrb[0].mxu0
        %v1875 = vadd.f32 0.0, %v1874
        %v1876 = vpop.f32.mrb[0].mxu0
        %v1877 = vadd.f32 0.0, %v1876
        %v1878 = vpop.f32.mrb[0].mxu0
        %v1879 = vadd.f32 0.0, %v1878
        %1880 = vmatprep.mubr.bf16.mxu0 0
        %1881 = vmatmul.mubr.bf16.gmra.mrb[0].mxu0 %v1709
        %v1882 = vpop.f32.mrb[0].mxu0
        %v1883 = vadd.f32 0.0, %v1882
        %v1884 = vpop.f32.mrb[0].mxu0
        %v1885 = vadd.f32 0.0, %v1884
        %v1886 = vpop.f32.mrb[0].mxu0
        %v1887 = vadd.f32 0.0, %v1886
        %v1888 = vpop.f32.mrb[0].mxu0
        %v1889 = vadd.f32 0.0, %v1888
        %1890 = vmatprep.mubr.bf16.mxu0 0
        %1891 = vmatmul.mubr.bf16.gmra.mrb[0].mxu0 %v1710
        %v1892 = vpop.f32.mrb[0].mxu0
        %v1893 = vadd.f32 0.0, %v1892
        %v1894 = vpop.f32.mrb[0].mxu0
        %v1895 = vadd.f32 0.0, %v1894
        %v1896 = vpop.f32.mrb[0].mxu0
        %v1897 = vadd.f32 0.0, %v1896
        %v1898 = vpop.f32.mrb[0].mxu0
        %v1899 = vadd.f32 0.0, %v1898
        %1900 = vmatprep.mubr.bf16.mxu0 0
        %1901 = vmatmul.mubr.bf16.gmra.mrb[0].mxu0 %v1711
        %v1902 = vpop.f32.mrb[0].mxu0
        %v1903 = vadd.f32 0.0, %v1902
        %v1904 = vpop.f32.mrb[0].mxu0
        %v1905 = vadd.f32 0.0, %v1904
        %v1906 = vpop.f32.mrb[0].mxu0
        %v1907 = vadd.f32 0.0, %v1906
        %v1908 = vpop.f32.mrb[0].mxu0
        %v1909 = vadd.f32 0.0, %v1908
        %1910 = vmatprep.mubr.bf16.mxu0 0
        %1911 = vmatmul.mubr.bf16.gmra.mrb[0].mxu0 %v1712
        %v1912 = vpop.f32.mrb[0].mxu0
        %v1913 = vadd.f32 0.0, %v1912
        %v1914 = vpop.f32.mrb[0].mxu0
        %v1915 = vadd.f32 0.0, %v1914
        %v1916 = vpop.f32.mrb[0].mxu0
        %v1917 = vadd.f32 0.0, %v1916
        %v1918 = vpop.f32.mrb[0].mxu0
        %v1919 = vadd.f32 0.0, %v1918
        %1920 = vmatprep.mubr.bf16.mxu0 0
        %1921 = vmatmul.mubr.bf16.gmra.mrb[0].mxu0 %v1713
        %v1922 = vpop.f32.mrb[0].mxu0
        %v1923 = vadd.f32 0.0, %v1922
        %v1924 = vpop.f32.mrb[0].mxu0
        %v1925 = vadd.f32 0.0, %v1924
        %v1926 = vpop.f32.mrb[0].mxu0
        %v1927 = vadd.f32 0.0, %v1926
        %v1928 = vpop.f32.mrb[0].mxu0
        %v1929 = vadd.f32 0.0, %v1928
        %1930 = vmatprep.mubr.bf16.mxu0 0
        %1931 = vmatmul.mubr.bf16.gmra.mrb[0].mxu0 %v1714
        %v1932 = vpop.f32.mrb[0].mxu0
        %v1933 = vadd.f32 0.0, %v1932
        %v1934 = vpop.f32.mrb[0].mxu0
        %v1935 = vadd.f32 0.0, %v1934
        %v1936 = vpop.f32.mrb[0].mxu0
        %v1937 = vadd.f32 0.0, %v1936
        %v1938 = vpop.f32.mrb[0].mxu0
        %v1939 = vadd.f32 0.0, %v1938
        %1940 = vmatprep.mubr.bf16.mxu0 0
        %1941 = vmatmul.mubr.bf16.gmra.mrb[0].mxu0 %v1715
        %v1942 = vpop.f32.mrb[0].mxu0
        %v1943 = vadd.f32 0.0, %v1942
        %v1944 = vpop.f32.mrb[0].mxu0
        %v1945 = vadd.f32 0.0, %v1944
        %v1946 = vpop.f32.mrb[0].mxu0
        %v1947 = vadd.f32 0.0, %v1946
        %v1948 = vpop.f32.mrb[0].mxu0
        %v1949 = vadd.f32 0.0, %v1948
        %1950 = vmatprep.mubr.bf16.mxu0 0
        %1951 = vmatmul.mubr.bf16.gmra.mrb[0].mxu0 %v1716
        %v1952 = vpop.f32.mrb[0].mxu0
        %v1953 = vadd.f32 0.0, %v1952
        %v1954 = vpop.f32.mrb[0].mxu0
        %v1955 = vadd.f32 0.0, %v1954
        %v1956 = vpop.f32.mrb[0].mxu0
        %v1957 = vadd.f32 0.0, %v1956
        %v1958 = vpop.f32.mrb[0].mxu0
        %v1959 = vadd.f32 0.0, %v1958
        %1960 = vmatprep.mubr.bf16.mxu0 0
        %1961 = vmatmul.mubr.bf16.gmra.mrb[0].mxu0 %v1717
        %v1962 = vpop.f32.mrb[0].mxu0
        %v1963 = vadd.f32 0.0, %v1962
        %v1964 = vpop.f32.mrb[0].mxu0
        %v1965 = vadd.f32 0.0, %v1964
        %v1966 = vpop.f32.mrb[0].mxu0
        %v1967 = vadd.f32 0.0, %v1966
        %v1968 = vpop.f32.mrb[0].mxu0
        %v1969 = vadd.f32 0.0, %v1968
        %1970 = vmatprep.mubr.bf16.mxu0 0
        %1971 = vmatmul.mubr.bf16.gmra.mrb[0].mxu0 %v1718
        %v1972 = vpop.f32.mrb[0].mxu0
        %v1973 = vadd.f32 0.0, %v1972
        %v1974 = vpop.f32.mrb[0].mxu0
        %v1975 = vadd.f32 0.0, %v1974
        %v1976 = vpop.f32.mrb[0].mxu0
        %v1977 = vadd.f32 0.0, %v1976
        %v1978 = vpop.f32.mrb[0].mxu0
        %v1979 = vadd.f32 0.0, %v1978
        %1980 = vmatprep.mubr.bf16.mxu0 0
        %1981 = vmatmul.mubr.bf16.gmra.mrb[0].mxu0 %v1719
        %v1982 = vpop.f32.mrb[0].mxu0
        %v1983 = vadd.f32 0.0, %v1982
        %v1984 = vpop.f32.mrb[0].mxu0
        %v1985 = vadd.f32 0.0, %v1984
        %v1986 = vpop.f32.mrb[0].mxu0
        %v1987 = vadd.f32 0.0, %v1986
        %v1988 = vpop.f32.mrb[0].mxu0
        %v1989 = vadd.f32 0.0, %v1988
        %1990 = vmatprep.mubr.bf16.mxu0 0
        %1991 = vmatmul.mubr.bf16.gmra.mrb[0].mxu0 %v1720
        %v1992 = vpop.f32.mrb[0].mxu0
        %v1993 = vadd.f32 0.0, %v1992
        %v1994 = vpop.f32.mrb[0].mxu0
        %v1995 = vadd.f32 0.0, %v1994
        %v1996 = vpop.f32.mrb[0].mxu0
        %v1997 = vadd.f32 0.0, %v1996
        %v1998 = vpop.f32.mrb[0].mxu0
        %v1999 = vadd.f32 0.0, %v1998
        %2000 = vmatprep.mubr.bf16.mxu0 0
        %2001 = vmatmul.mubr.bf16.gmra.mrb[0].mxu0 %v1721
        %v2002 = vpop.f32.mrb[0].mxu0
        %v2003 = vadd.f32 0.0, %v2002
        %v2004 = vpop.f32.mrb[0].mxu0
        %v2005 = vadd.f32 0.0, %v2004
        %v2006 = vpop.f32.mrb[0].mxu0
        %v2007 = vadd.f32 0.0, %v2006
        %v2008 = vpop.f32.mrb[0].mxu0
        %v2009 = vadd.f32 0.0, %v2008
        %2010 = vdwg.mxu0
        %v2011 = vadd.f32 %v1336, %v1853
        %v2012 = vadd.f32 %v1338, %v1855
        %v2013 = vadd.f32 %v1340, %v1857
        %v2014 = vadd.f32 %v1342, %v1859
        %v2015 = vadd.f32 %v1346, %v1863
        %v2016 = vadd.f32 %v1348, %v1865
        %v2017 = vadd.f32 %v1350, %v1867
        %v2018 = vadd.f32 %v1352, %v1869
        %v2019 = vadd.f32 %v1356, %v1873
        %v2020 = vadd.f32 %v1358, %v1875
        %v2021 = vadd.f32 %v1360, %v1877
        %v2022 = vadd.f32 %v1362, %v1879
        %v2023 = vadd.f32 %v1366, %v1883
        %v2024 = vadd.f32 %v1368, %v1885
        %v2025 = vadd.f32 %v1370, %v1887
        %v2026 = vadd.f32 %v1372, %v1889
        %v2027 = vadd.f32 %v1376, %v1893
        %v2028 = vadd.f32 %v1378, %v1895
        %v2029 = vadd.f32 %v1380, %v1897
        %v2030 = vadd.f32 %v1382, %v1899
        %v2031 = vadd.f32 %v1386, %v1903
        %v2032 = vadd.f32 %v1388, %v1905
        %v2033 = vadd.f32 %v1390, %v1907
        %v2034 = vadd.f32 %v1392, %v1909
        %v2035 = vadd.f32 %v1396, %v1913
        %v2036 = vadd.f32 %v1398, %v1915
        %v2037 = vadd.f32 %v1400, %v1917
        %v2038 = vadd.f32 %v1402, %v1919
        %v2039 = vadd.f32 %v1406, %v1923
        %v2040 = vadd.f32 %v1408, %v1925
        %v2041 = vadd.f32 %v1410, %v1927
        %v2042 = vadd.f32 %v1412, %v1929
        %v2043 = vadd.f32 %v1416, %v1933
        %v2044 = vadd.f32 %v1418, %v1935
        %v2045 = vadd.f32 %v1420, %v1937
        %v2046 = vadd.f32 %v1422, %v1939
        %v2047 = vadd.f32 %v1426, %v1943
        %v2048 = vadd.f32 %v1428, %v1945
        %v2049 = vadd.f32 %v1430, %v1947
        %v2050 = vadd.f32 %v1432, %v1949
        %v2051 = vadd.f32 %v1436, %v1953
        %v2052 = vadd.f32 %v1438, %v1955
        %v2053 = vadd.f32 %v1440, %v1957
        %v2054 = vadd.f32 %v1442, %v1959
        %v2055 = vadd.f32 %v1446, %v1963
        %v2056 = vadd.f32 %v1448, %v1965
        %v2057 = vadd.f32 %v1450, %v1967
        %v2058 = vadd.f32 %v1452, %v1969
        %v2059 = vadd.f32 %v1456, %v1973
        %v2060 = vadd.f32 %v1458, %v1975
        %v2061 = vadd.f32 %v1460, %v1977
        %v2062 = vadd.f32 %v1462, %v1979
        %v2063 = vadd.f32 %v1466, %v1983
        %v2064 = vadd.f32 %v1468, %v1985
        %v2065 = vadd.f32 %v1470, %v1987
        %v2066 = vadd.f32 %v1472, %v1989
        %v2067 = vadd.f32 %v1476, %v1993
        %v2068 = vadd.f32 %v1478, %v1995
        %v2069 = vadd.f32 %v1480, %v1997
        %v2070 = vadd.f32 %v1482, %v1999
        %v2071 = vadd.f32 %v1486, %v2003
        %v2072 = vadd.f32 %v1488, %v2005
        %v2073 = vadd.f32 %v1490, %v2007
        %v2074 = vadd.f32 %v1492, %v2009
        %s2075 = scalar_lea.vmem %s242, 12
        %v2076 = vld [vmem:[%s2075] sm:$0xf]
        %v2077 = vld [vmem:[%s2075 + $0x4] sm:$0xf]
        %v2078 = vld [vmem:[%s2075 + $0xc] sm:$0xf]
        %v2079 = vld [vmem:[%s2075 + $0x10] sm:$0xf]
        %v2080 = vld [vmem:[%s2075 + $0x18] sm:$0xf]
        %v2081 = vld [vmem:[%s2075 + $0x1c] sm:$0xf]
        %v2082 = vld [vmem:[%s2075 + $0x24] sm:$0xf]
        %v2083 = vld [vmem:[%s2075 + $0x28] sm:$0xf]
        %v2084 = vld [vmem:[%s2075 + $0x30] sm:$0xf]
        %v2085 = vld [vmem:[%s2075 + $0x34] sm:$0xf]
        %v2086 = vld [vmem:[%s2075 + $0x3c] sm:$0xf]
        %v2087 = vld [vmem:[%s2075 + $0x40] sm:$0xf]
        %v2088 = vld [vmem:[%s2075 + $0x48] sm:$0xf]
        %v2089 = vld [vmem:[%s2075 + $0x4c] sm:$0xf]
        %v2090 = vld [vmem:[%s2075 + $0x54] sm:$0xf]
        %v2091 = vld [vmem:[%s2075 + $0x58] sm:$0xf]
        %v2092 = vld [vmem:[%s2075 + $0x60] sm:$0xf]
        %v2093 = vld [vmem:[%s2075 + $0x64] sm:$0xf]
        %v2094 = vld [vmem:[%s2075 + $0x6c] sm:$0xf]
        %v2095 = vld [vmem:[%s2075 + $0x70] sm:$0xf]
        %v2096 = vld [vmem:[%s2075 + $0x78] sm:$0xf]
        %v2097 = vld [vmem:[%s2075 + $0x7c] sm:$0xf]
        %v2098 = vld [vmem:[%s2075 + $0x84] sm:$0xf]
        %v2099 = vld [vmem:[%s2075 + $0x88] sm:$0xf]
        %v2100 = vld [vmem:[%s2075 + $0x90] sm:$0xf]
        %v2101 = vld [vmem:[%s2075 + $0x94] sm:$0xf]
        %v2102 = vld [vmem:[%s2075 + $0x9c] sm:$0xf]
        %v2103 = vld [vmem:[%s2075 + $0xa0] sm:$0xf]
        %v2104 = vld [vmem:[%s2075 + $0xa8] sm:$0xf]
        %v2105 = vld [vmem:[%s2075 + $0xac] sm:$0xf]
        %v2106 = vld [vmem:[%s2075 + $0xb4] sm:$0xf]
        %v2107 = vld [vmem:[%s2075 + $0xb8] sm:$0xf]
        %s2108 = scalar_lea.vmem [#allocation2], 384
        %v2109 = vld [vmem:[%s2108] sm:$0xff]
        %v2110 = vld [vmem:[%s2108 + $0x8] sm:$0xff]
        %v2111 = vld [vmem:[%s2108 + $0x10] sm:$0xff]
        %v2112 = vld [vmem:[%s2108 + $0x18] sm:$0xff]
        %v2113 = vld [vmem:[%s2108 + $0x20] sm:$0xff]
        %v2114 = vld [vmem:[%s2108 + $0x28] sm:$0xff]
        %v2115 = vld [vmem:[%s2108 + $0x30] sm:$0xff]
        %v2116 = vld [vmem:[%s2108 + $0x38] sm:$0xff]
        %v2117 = vld [vmem:[%s2108 + $0x40] sm:$0xff]
        %v2118 = vld [vmem:[%s2108 + $0x48] sm:$0xff]
        %v2119 = vld [vmem:[%s2108 + $0x50] sm:$0xff]
        %v2120 = vld [vmem:[%s2108 + $0x58] sm:$0xff]
        %v2121 = vld [vmem:[%s2108 + $0x60] sm:$0xff]
        %v2122 = vld [vmem:[%s2108 + $0x68] sm:$0xff]
        %v2123 = vld [vmem:[%s2108 + $0x70] sm:$0xff]
        %v2124 = vld [vmem:[%s2108 + $0x78] sm:$0xff]
        %v2157 = vunpack.c.l.b16 %v2076
        %v2158 = vunpack.c.l.b16 %v2077
        %v2159 = vunpack.c.l.b16 %v2078
        %v2160 = vunpack.c.l.b16 %v2079
        %v2161 = vunpack.c.l.b16 %v2080
        %v2162 = vunpack.c.l.b16 %v2081
        %v2163 = vunpack.c.l.b16 %v2082
        %v2164 = vunpack.c.l.b16 %v2083
        %v2165 = vunpack.c.l.b16 %v2084
        %v2166 = vunpack.c.l.b16 %v2085
        %v2167 = vunpack.c.l.b16 %v2086
        %v2168 = vunpack.c.l.b16 %v2087
        %v2169 = vunpack.c.l.b16 %v2088
        %v2170 = vunpack.c.l.b16 %v2089
        %v2171 = vunpack.c.l.b16 %v2090
        %v2172 = vunpack.c.l.b16 %v2091
        %v2173 = vunpack.c.l.b16 %v2092
        %v2174 = vunpack.c.l.b16 %v2093
        %v2175 = vunpack.c.l.b16 %v2094
        %v2176 = vunpack.c.l.b16 %v2095
        %v2177 = vunpack.c.l.b16 %v2096
        %v2178 = vunpack.c.l.b16 %v2097
        %v2179 = vunpack.c.l.b16 %v2098
        %v2180 = vunpack.c.l.b16 %v2099
        %v2181 = vunpack.c.l.b16 %v2100
        %v2182 = vunpack.c.l.b16 %v2101
        %v2183 = vunpack.c.l.b16 %v2102
        %v2184 = vunpack.c.l.b16 %v2103
        %v2185 = vunpack.c.l.b16 %v2104
        %v2186 = vunpack.c.l.b16 %v2105
        %v2187 = vunpack.c.l.b16 %v2106
        %v2188 = vunpack.c.l.b16 %v2107
        %v2189 = vpack.c.b16 %v2158, %v2157
        %v2190 = vpack.c.b16 %v2160, %v2159
        %v2191 = vpack.c.b16 %v2162, %v2161
        %v2192 = vpack.c.b16 %v2164, %v2163
        %v2193 = vpack.c.b16 %v2166, %v2165
        %v2194 = vpack.c.b16 %v2168, %v2167
        %v2195 = vpack.c.b16 %v2170, %v2169
        %v2196 = vpack.c.b16 %v2172, %v2171
        %v2197 = vpack.c.b16 %v2174, %v2173
        %v2198 = vpack.c.b16 %v2176, %v2175
        %v2199 = vpack.c.b16 %v2178, %v2177
        %v2200 = vpack.c.b16 %v2180, %v2179
        %v2201 = vpack.c.b16 %v2182, %v2181
        %v2202 = vpack.c.b16 %v2184, %v2183
        %v2203 = vpack.c.b16 %v2186, %v2185
        %v2204 = vpack.c.b16 %v2188, %v2187
        %v2237 = vunpack.c.l.b16 %v2109
        %v2238 = vunpack.c.h.b16 %v2109
        %v2239 = vunpack.c.l.b16 %v2110
        %v2240 = vunpack.c.h.b16 %v2110
        %v2241 = vunpack.c.l.b16 %v2111
        %v2242 = vunpack.c.h.b16 %v2111
        %v2243 = vunpack.c.l.b16 %v2112
        %v2244 = vunpack.c.h.b16 %v2112
        %v2245 = vunpack.c.l.b16 %v2113
        %v2246 = vunpack.c.h.b16 %v2113
        %v2247 = vunpack.c.l.b16 %v2114
        %v2248 = vunpack.c.h.b16 %v2114
        %v2249 = vunpack.c.l.b16 %v2115
        %v2250 = vunpack.c.h.b16 %v2115
        %v2251 = vunpack.c.l.b16 %v2116
        %v2252 = vunpack.c.h.b16 %v2116
        %v2253 = vunpack.c.l.b16 %v2117
        %v2254 = vunpack.c.h.b16 %v2117
        %v2255 = vunpack.c.l.b16 %v2118
        %v2256 = vunpack.c.h.b16 %v2118
        %v2257 = vunpack.c.l.b16 %v2119
        %v2258 = vunpack.c.h.b16 %v2119
        %v2259 = vunpack.c.l.b16 %v2120
        %v2260 = vunpack.c.h.b16 %v2120
        %v2261 = vunpack.c.l.b16 %v2121
        %v2262 = vunpack.c.h.b16 %v2121
        %v2263 = vunpack.c.l.b16 %v2122
        %v2264 = vunpack.c.h.b16 %v2122
        %v2265 = vunpack.c.l.b16 %v2123
        %v2266 = vunpack.c.h.b16 %v2123
        %v2267 = vunpack.c.l.b16 %v2124
        %v2268 = vunpack.c.h.b16 %v2124
        %v2269 = vpack.c.b16 %v2239, %v2237
        %v2270 = vpack.c.b16 %v2240, %v2238
        %v2271 = vpack.c.b16 %v2243, %v2241
        %v2272 = vpack.c.b16 %v2244, %v2242
        %v2273 = vpack.c.b16 %v2247, %v2245
        %v2274 = vpack.c.b16 %v2248, %v2246
        %v2275 = vpack.c.b16 %v2251, %v2249
        %v2276 = vpack.c.b16 %v2252, %v2250
        %v2277 = vpack.c.b16 %v2255, %v2253
        %v2278 = vpack.c.b16 %v2256, %v2254
        %v2279 = vpack.c.b16 %v2259, %v2257
        %v2280 = vpack.c.b16 %v2260, %v2258
        %v2281 = vpack.c.b16 %v2263, %v2261
        %v2282 = vpack.c.b16 %v2264, %v2262
        %v2283 = vpack.c.b16 %v2267, %v2265
        %v2284 = vpack.c.b16 %v2268, %v2266
        %2301 = vmatprep.subr.bf16.mxu0 %v2270
        %2302 = vmatpush1.bf16.msra.mxu0 %v2269
        %2303 = vmatprep.subr.bf16.mxu0 %v2272
        %2304 = vmatpush1.bf16.msra.mxu0 %v2271
        %2305 = vmatprep.subr.bf16.mxu0 %v2274
        %2306 = vmatpush1.bf16.msra.mxu0 %v2273
        %2307 = vmatprep.subr.bf16.mxu0 %v2276
        %2308 = vmatpush1.bf16.msra.mxu0 %v2275
        %2309 = vmatprep.subr.bf16.mxu0 %v2278
        %2310 = vmatpush1.bf16.msra.mxu0 %v2277
        %2311 = vmatprep.subr.bf16.mxu0 %v2280
        %2312 = vmatpush1.bf16.msra.mxu0 %v2279
        %2313 = vmatprep.subr.bf16.mxu0 %v2282
        %2314 = vmatpush1.bf16.msra.mxu0 %v2281
        %2315 = vmatprep.subr.bf16.mxu0 %v2284
        %2316 = vmatpush1.bf16.msra.mxu0 %v2283
        %2317 = vmatprep.subr.bf16.mxu0 0
        %2318 = vmatpush1.bf16.msra.mxu0 0
        %2319 = vmatprep.subr.bf16.mxu0 0
        %2320 = vmatpush1.bf16.msra.mxu0 0
        %2321 = vmatprep.subr.bf16.mxu0 0
        %2322 = vmatpush1.bf16.msra.mxu0 0
        %2323 = vmatprep.subr.bf16.mxu0 0
        %2324 = vmatpush1.bf16.msra.mxu0 0
        %2325 = vmatprep.subr.bf16.mxu0 0
        %2326 = vmatpush1.bf16.msra.mxu0 0
        %2327 = vmatprep.subr.bf16.mxu0 0
        %2328 = vmatpush1.bf16.msra.mxu0 0
        %2329 = vmatprep.subr.bf16.mxu0 0
        %2330 = vmatpush1.bf16.msra.mxu0 0
        %2331 = vmatprep.subr.bf16.mxu0 0
        %2332 = vmatpush1.bf16.msra.mxu0 0
        %2333 = vmatprep.mubr.bf16.mxu0 0
        %2334 = vmatmul.mubr.bf16.gmra.mrb[0].mxu0 %v2189
        %v2335 = vpop.f32.mrb[0].mxu0
        %v2336 = vadd.f32 0.0, %v2335
        %v2337 = vpop.f32.mrb[0].mxu0
        %v2338 = vadd.f32 0.0, %v2337
        %v2339 = vpop.f32.mrb[0].mxu0
        %v2340 = vadd.f32 0.0, %v2339
        %v2341 = vpop.f32.mrb[0].mxu0
        %v2342 = vadd.f32 0.0, %v2341
        %2343 = vmatprep.mubr.bf16.mxu0 0
        %2344 = vmatmul.mubr.bf16.gmra.mrb[0].mxu0 %v2190
        %v2345 = vpop.f32.mrb[0].mxu0
        %v2346 = vadd.f32 0.0, %v2345
        %v2347 = vpop.f32.mrb[0].mxu0
        %v2348 = vadd.f32 0.0, %v2347
        %v2349 = vpop.f32.mrb[0].mxu0
        %v2350 = vadd.f32 0.0, %v2349
        %v2351 = vpop.f32.mrb[0].mxu0
        %v2352 = vadd.f32 0.0, %v2351
        %2353 = vmatprep.mubr.bf16.mxu0 0
        %2354 = vmatmul.mubr.bf16.gmra.mrb[0].mxu0 %v2191
        %v2355 = vpop.f32.mrb[0].mxu0
        %v2356 = vadd.f32 0.0, %v2355
        %v2357 = vpop.f32.mrb[0].mxu0
        %v2358 = vadd.f32 0.0, %v2357
        %v2359 = vpop.f32.mrb[0].mxu0
        %v2360 = vadd.f32 0.0, %v2359
        %v2361 = vpop.f32.mrb[0].mxu0
        %v2362 = vadd.f32 0.0, %v2361
        %2363 = vmatprep.mubr.bf16.mxu0 0
        %2364 = vmatmul.mubr.bf16.gmra.mrb[0].mxu0 %v2192
        %v2365 = vpop.f32.mrb[0].mxu0
        %v2366 = vadd.f32 0.0, %v2365
        %v2367 = vpop.f32.mrb[0].mxu0
        %v2368 = vadd.f32 0.0, %v2367
        %v2369 = vpop.f32.mrb[0].mxu0
        %v2370 = vadd.f32 0.0, %v2369
        %v2371 = vpop.f32.mrb[0].mxu0
        %v2372 = vadd.f32 0.0, %v2371
        %2373 = vmatprep.mubr.bf16.mxu0 0
        %2374 = vmatmul.mubr.bf16.gmra.mrb[0].mxu0 %v2193
        %v2375 = vpop.f32.mrb[0].mxu0
        %v2376 = vadd.f32 0.0, %v2375
        %v2377 = vpop.f32.mrb[0].mxu0
        %v2378 = vadd.f32 0.0, %v2377
        %v2379 = vpop.f32.mrb[0].mxu0
        %v2380 = vadd.f32 0.0, %v2379
        %v2381 = vpop.f32.mrb[0].mxu0
        %v2382 = vadd.f32 0.0, %v2381
        %2383 = vmatprep.mubr.bf16.mxu0 0
        %2384 = vmatmul.mubr.bf16.gmra.mrb[0].mxu0 %v2194
        %v2385 = vpop.f32.mrb[0].mxu0
        %v2386 = vadd.f32 0.0, %v2385
        %v2387 = vpop.f32.mrb[0].mxu0
        %v2388 = vadd.f32 0.0, %v2387
        %v2389 = vpop.f32.mrb[0].mxu0
        %v2390 = vadd.f32 0.0, %v2389
        %v2391 = vpop.f32.mrb[0].mxu0
        %v2392 = vadd.f32 0.0, %v2391
        %2393 = vmatprep.mubr.bf16.mxu0 0
        %2394 = vmatmul.mubr.bf16.gmra.mrb[0].mxu0 %v2195
        %v2395 = vpop.f32.mrb[0].mxu0
        %v2396 = vadd.f32 0.0, %v2395
        %v2397 = vpop.f32.mrb[0].mxu0
        %v2398 = vadd.f32 0.0, %v2397
        %v2399 = vpop.f32.mrb[0].mxu0
        %v2400 = vadd.f32 0.0, %v2399
        %v2401 = vpop.f32.mrb[0].mxu0
        %v2402 = vadd.f32 0.0, %v2401
        %2403 = vmatprep.mubr.bf16.mxu0 0
        %2404 = vmatmul.mubr.bf16.gmra.mrb[0].mxu0 %v2196
        %v2405 = vpop.f32.mrb[0].mxu0
        %v2406 = vadd.f32 0.0, %v2405
        %v2407 = vpop.f32.mrb[0].mxu0
        %v2408 = vadd.f32 0.0, %v2407
        %v2409 = vpop.f32.mrb[0].mxu0
        %v2410 = vadd.f32 0.0, %v2409
        %v2411 = vpop.f32.mrb[0].mxu0
        %v2412 = vadd.f32 0.0, %v2411
        %2413 = vmatprep.mubr.bf16.mxu0 0
        %2414 = vmatmul.mubr.bf16.gmra.mrb[0].mxu0 %v2197
        %v2415 = vpop.f32.mrb[0].mxu0
        %v2416 = vadd.f32 0.0, %v2415
        %v2417 = vpop.f32.mrb[0].mxu0
        %v2418 = vadd.f32 0.0, %v2417
        %v2419 = vpop.f32.mrb[0].mxu0
        %v2420 = vadd.f32 0.0, %v2419
        %v2421 = vpop.f32.mrb[0].mxu0
        %v2422 = vadd.f32 0.0, %v2421
        %2423 = vmatprep.mubr.bf16.mxu0 0
        %2424 = vmatmul.mubr.bf16.gmra.mrb[0].mxu0 %v2198
        %v2425 = vpop.f32.mrb[0].mxu0
        %v2426 = vadd.f32 0.0, %v2425
        %v2427 = vpop.f32.mrb[0].mxu0
        %v2428 = vadd.f32 0.0, %v2427
        %v2429 = vpop.f32.mrb[0].mxu0
        %v2430 = vadd.f32 0.0, %v2429
        %v2431 = vpop.f32.mrb[0].mxu0
        %v2432 = vadd.f32 0.0, %v2431
        %2433 = vmatprep.mubr.bf16.mxu0 0
        %2434 = vmatmul.mubr.bf16.gmra.mrb[0].mxu0 %v2199
        %v2435 = vpop.f32.mrb[0].mxu0
        %v2436 = vadd.f32 0.0, %v2435
        %v2437 = vpop.f32.mrb[0].mxu0
        %v2438 = vadd.f32 0.0, %v2437
        %v2439 = vpop.f32.mrb[0].mxu0
        %v2440 = vadd.f32 0.0, %v2439
        %v2441 = vpop.f32.mrb[0].mxu0
        %v2442 = vadd.f32 0.0, %v2441
        %2443 = vmatprep.mubr.bf16.mxu0 0
        %2444 = vmatmul.mubr.bf16.gmra.mrb[0].mxu0 %v2200
        %v2445 = vpop.f32.mrb[0].mxu0
        %v2446 = vadd.f32 0.0, %v2445
        %v2447 = vpop.f32.mrb[0].mxu0
        %v2448 = vadd.f32 0.0, %v2447
        %v2449 = vpop.f32.mrb[0].mxu0
        %v2450 = vadd.f32 0.0, %v2449
        %v2451 = vpop.f32.mrb[0].mxu0
        %v2452 = vadd.f32 0.0, %v2451
        %2453 = vmatprep.mubr.bf16.mxu0 0
        %2454 = vmatmul.mubr.bf16.gmra.mrb[0].mxu0 %v2201
        %v2455 = vpop.f32.mrb[0].mxu0
        %v2456 = vadd.f32 0.0, %v2455
        %v2457 = vpop.f32.mrb[0].mxu0
        %v2458 = vadd.f32 0.0, %v2457
        %v2459 = vpop.f32.mrb[0].mxu0
        %v2460 = vadd.f32 0.0, %v2459
        %v2461 = vpop.f32.mrb[0].mxu0
        %v2462 = vadd.f32 0.0, %v2461
        %2463 = vmatprep.mubr.bf16.mxu0 0
        %2464 = vmatmul.mubr.bf16.gmra.mrb[0].mxu0 %v2202
        %v2465 = vpop.f32.mrb[0].mxu0
        %v2466 = vadd.f32 0.0, %v2465
        %v2467 = vpop.f32.mrb[0].mxu0
        %v2468 = vadd.f32 0.0, %v2467
        %v2469 = vpop.f32.mrb[0].mxu0
        %v2470 = vadd.f32 0.0, %v2469
        %v2471 = vpop.f32.mrb[0].mxu0
        %v2472 = vadd.f32 0.0, %v2471
        %2473 = vmatprep.mubr.bf16.mxu0 0
        %2474 = vmatmul.mubr.bf16.gmra.mrb[0].mxu0 %v2203
        %v2475 = vpop.f32.mrb[0].mxu0
        %v2476 = vadd.f32 0.0, %v2475
        %v2477 = vpop.f32.mrb[0].mxu0
        %v2478 = vadd.f32 0.0, %v2477
        %v2479 = vpop.f32.mrb[0].mxu0
        %v2480 = vadd.f32 0.0, %v2479
        %v2481 = vpop.f32.mrb[0].mxu0
        %v2482 = vadd.f32 0.0, %v2481
        %2483 = vmatprep.mubr.bf16.mxu0 0
        %2484 = vmatmul.mubr.bf16.gmra.mrb[0].mxu0 %v2204
        %v2485 = vpop.f32.mrb[0].mxu0
        %v2486 = vadd.f32 0.0, %v2485
        %v2487 = vpop.f32.mrb[0].mxu0
        %v2488 = vadd.f32 0.0, %v2487
        %v2489 = vpop.f32.mrb[0].mxu0
        %v2490 = vadd.f32 0.0, %v2489
        %v2491 = vpop.f32.mrb[0].mxu0
        %v2492 = vadd.f32 0.0, %v2491
        %2493 = vdwg.mxu0
        %v2494 = vadd.f32 %v2011, %v2336
        %v2495 = vadd.f32 %v2012, %v2338
        %v2496 = vadd.f32 %v2013, %v2340
        %v2497 = vadd.f32 %v2014, %v2342
        %v2498 = vadd.f32 %v2015, %v2346
        %v2499 = vadd.f32 %v2016, %v2348
        %v2500 = vadd.f32 %v2017, %v2350
        %v2501 = vadd.f32 %v2018, %v2352
        %v2502 = vadd.f32 %v2019, %v2356
        %v2503 = vadd.f32 %v2020, %v2358
        %v2504 = vadd.f32 %v2021, %v2360
        %v2505 = vadd.f32 %v2022, %v2362
        %v2506 = vadd.f32 %v2023, %v2366
        %v2507 = vadd.f32 %v2024, %v2368
        %v2508 = vadd.f32 %v2025, %v2370
        %v2509 = vadd.f32 %v2026, %v2372
        %v2510 = vadd.f32 %v2027, %v2376
        %v2511 = vadd.f32 %v2028, %v2378
        %v2512 = vadd.f32 %v2029, %v2380
        %v2513 = vadd.f32 %v2030, %v2382
        %v2514 = vadd.f32 %v2031, %v2386
        %v2515 = vadd.f32 %v2032, %v2388
        %v2516 = vadd.f32 %v2033, %v2390
        %v2517 = vadd.f32 %v2034, %v2392
        %v2518 = vadd.f32 %v2035, %v2396
        %v2519 = vadd.f32 %v2036, %v2398
        %v2520 = vadd.f32 %v2037, %v2400
        %v2521 = vadd.f32 %v2038, %v2402
        %v2522 = vadd.f32 %v2039, %v2406
        %v2523 = vadd.f32 %v2040, %v2408
        %v2524 = vadd.f32 %v2041, %v2410
        %v2525 = vadd.f32 %v2042, %v2412
        %v2526 = vadd.f32 %v2043, %v2416
        %v2527 = vadd.f32 %v2044, %v2418
        %v2528 = vadd.f32 %v2045, %v2420
        %v2529 = vadd.f32 %v2046, %v2422
        %v2530 = vadd.f32 %v2047, %v2426
        %v2531 = vadd.f32 %v2048, %v2428
        %v2532 = vadd.f32 %v2049, %v2430
        %v2533 = vadd.f32 %v2050, %v2432
        %v2534 = vadd.f32 %v2051, %v2436
        %v2535 = vadd.f32 %v2052, %v2438
        %v2536 = vadd.f32 %v2053, %v2440
        %v2537 = vadd.f32 %v2054, %v2442
        %v2538 = vadd.f32 %v2055, %v2446
        %v2539 = vadd.f32 %v2056, %v2448
        %v2540 = vadd.f32 %v2057, %v2450
        %v2541 = vadd.f32 %v2058, %v2452
        %v2542 = vadd.f32 %v2059, %v2456
        %v2543 = vadd.f32 %v2060, %v2458
        %v2544 = vadd.f32 %v2061, %v2460
        %v2545 = vadd.f32 %v2062, %v2462
        %v2546 = vadd.f32 %v2063, %v2466
        %v2547 = vadd.f32 %v2064, %v2468
        %v2548 = vadd.f32 %v2065, %v2470
        %v2549 = vadd.f32 %v2066, %v2472
        %v2550 = vadd.f32 %v2067, %v2476
        %v2551 = vadd.f32 %v2068, %v2478
        %v2552 = vadd.f32 %v2069, %v2480
        %v2553 = vadd.f32 %v2070, %v2482
        %v2554 = vadd.f32 %v2071, %v2486
        %v2555 = vadd.f32 %v2072, %v2488
        %v2556 = vadd.f32 %v2073, %v2490
        %v2557 = vadd.f32 %v2074, %v2492
        %v2558 = vld [vmem:[%s2075] sm:$0xf]
        %v2559 = vld [vmem:[%s2075 + $0x4] sm:$0xf]
        %v2560 = vld [vmem:[%s2075 + $0x8] sm:$0x1]
        %v2561 = vld [vmem:[%s2075 + $0xc] sm:$0xf]
        %v2562 = vld [vmem:[%s2075 + $0x10] sm:$0xf]
        %v2563 = vld [vmem:[%s2075 + $0x14] sm:$0x1]
        %v2564 = vld [vmem:[%s2075 + $0x18] sm:$0xf]
        %v2565 = vld [vmem:[%s2075 + $0x1c] sm:$0xf]
        %v2566 = vld [vmem:[%s2075 + $0x20] sm:$0x1]
        %v2567 = vld [vmem:[%s2075 + $0x24] sm:$0xf]
        %v2568 = vld [vmem:[%s2075 + $0x28] sm:$0xf]
        %v2569 = vld [vmem:[%s2075 + $0x2c] sm:$0x1]
        %v2570 = vld [vmem:[%s2075 + $0x30] sm:$0xf]
        %v2571 = vld [vmem:[%s2075 + $0x34] sm:$0xf]
        %v2572 = vld [vmem:[%s2075 + $0x38] sm:$0x1]
        %v2573 = vld [vmem:[%s2075 + $0x3c] sm:$0xf]
        %v2574 = vld [vmem:[%s2075 + $0x40] sm:$0xf]
        %v2575 = vld [vmem:[%s2075 + $0x44] sm:$0x1]
        %v2576 = vld [vmem:[%s2075 + $0x48] sm:$0xf]
        %v2577 = vld [vmem:[%s2075 + $0x4c] sm:$0xf]
        %v2578 = vld [vmem:[%s2075 + $0x50] sm:$0x1]
        %v2579 = vld [vmem:[%s2075 + $0x54] sm:$0xf]
        %v2580 = vld [vmem:[%s2075 + $0x58] sm:$0xf]
        %v2581 = vld [vmem:[%s2075 + $0x5c] sm:$0x1]
        %v2582 = vld [vmem:[%s2075 + $0x60] sm:$0xf]
        %v2583 = vld [vmem:[%s2075 + $0x64] sm:$0xf]
        %v2584 = vld [vmem:[%s2075 + $0x68] sm:$0x1]
        %v2585 = vld [vmem:[%s2075 + $0x6c] sm:$0xf]
        %v2586 = vld [vmem:[%s2075 + $0x70] sm:$0xf]
        %v2587 = vld [vmem:[%s2075 + $0x74] sm:$0x1]
        %v2588 = vld [vmem:[%s2075 + $0x78] sm:$0xf]
        %v2589 = vld [vmem:[%s2075 + $0x7c] sm:$0xf]
        %v2590 = vld [vmem:[%s2075 + $0x80] sm:$0x1]
        %v2591 = vld [vmem:[%s2075 + $0x84] sm:$0xf]
        %v2592 = vld [vmem:[%s2075 + $0x88] sm:$0xf]
        %v2593 = vld [vmem:[%s2075 + $0x8c] sm:$0x1]
        %v2594 = vld [vmem:[%s2075 + $0x90] sm:$0xf]
        %v2595 = vld [vmem:[%s2075 + $0x94] sm:$0xf]
        %v2596 = vld [vmem:[%s2075 + $0x98] sm:$0x1]
        %v2597 = vld [vmem:[%s2075 + $0x9c] sm:$0xf]
        %v2598 = vld [vmem:[%s2075 + $0xa0] sm:$0xf]
        %v2599 = vld [vmem:[%s2075 + $0xa4] sm:$0x1]
        %v2600 = vld [vmem:[%s2075 + $0xa8] sm:$0xf]
        %v2601 = vld [vmem:[%s2075 + $0xac] sm:$0xf]
        %v2602 = vld [vmem:[%s2075 + $0xb0] sm:$0x1]
        %v2603 = vld [vmem:[%s2075 + $0xb4] sm:$0xf]
        %v2604 = vld [vmem:[%s2075 + $0xb8] sm:$0xf]
        %v2605 = vld [vmem:[%s2075 + $0xbc] sm:$0x1]
        %v2607 = vshrl.u32 %v2558, 16
        %v2609 = vrot.slane %v2607, 4
        %v2610 = vshll.u32 %v2558, 16
        %v2612 = vrot.slane %v2610, 5
        %v2613 = vor.u32 %v2609, %v2612
        %v2614 = vrot.slane %v2613, 4
        %v2616 = vshll.u32 %v2559, 16
        %v2618 = vrot.slane %v2616, 5
        %v2619 = vsel %vm386, %v2614, %v2618
        %v2620 = vshrl.u32 %v2559, 16
        %v2622 = vrot.slane %v2620, 4
        %v2623 = vor.u32 %v2622, %v2618
        %v2624 = vrot.slane %v2623, 4
        %v2626 = vshll.u32 %v2560, 16
        %v2628 = vrot.slane %v2626, 5
        %v2629 = vsel %vm386, %v2624, %v2628
        %v2631 = vshrl.u32 %v2561, 16
        %v2633 = vrot.slane %v2631, 4
        %v2634 = vshll.u32 %v2561, 16
        %v2636 = vrot.slane %v2634, 5
        %v2637 = vor.u32 %v2633, %v2636
        %v2638 = vrot.slane %v2637, 4
        %v2640 = vshll.u32 %v2562, 16
        %v2642 = vrot.slane %v2640, 5
        %v2643 = vsel %vm386, %v2638, %v2642
        %v2644 = vshrl.u32 %v2562, 16
        %v2646 = vrot.slane %v2644, 4
        %v2647 = vor.u32 %v2646, %v2642
        %v2648 = vrot.slane %v2647, 4
        %v2650 = vshll.u32 %v2563, 16
        %v2652 = vrot.slane %v2650, 5
        %v2653 = vsel %vm386, %v2648, %v2652
        %v2655 = vshrl.u32 %v2564, 16
        %v2657 = vrot.slane %v2655, 4
        %v2658 = vshll.u32 %v2564, 16
        %v2660 = vrot.slane %v2658, 5
        %v2661 = vor.u32 %v2657, %v2660
        %v2662 = vrot.slane %v2661, 4
        %v2664 = vshll.u32 %v2565, 16
        %v2666 = vrot.slane %v2664, 5
        %v2667 = vsel %vm386, %v2662, %v2666
        %v2668 = vshrl.u32 %v2565, 16
        %v2670 = vrot.slane %v2668, 4
        %v2671 = vor.u32 %v2670, %v2666
        %v2672 = vrot.slane %v2671, 4
        %v2674 = vshll.u32 %v2566, 16
        %v2676 = vrot.slane %v2674, 5
        %v2677 = vsel %vm386, %v2672, %v2676
        %v2679 = vshrl.u32 %v2567, 16
        %v2681 = vrot.slane %v2679, 4
        %v2682 = vshll.u32 %v2567, 16
        %v2684 = vrot.slane %v2682, 5
        %v2685 = vor.u32 %v2681, %v2684
        %v2686 = vrot.slane %v2685, 4
        %v2688 = vshll.u32 %v2568, 16
        %v2690 = vrot.slane %v2688, 5
        %v2691 = vsel %vm386, %v2686, %v2690
        %v2692 = vshrl.u32 %v2568, 16
        %v2694 = vrot.slane %v2692, 4
        %v2695 = vor.u32 %v2694, %v2690
        %v2696 = vrot.slane %v2695, 4
        %v2698 = vshll.u32 %v2569, 16
        %v2700 = vrot.slane %v2698, 5
        %v2701 = vsel %vm386, %v2696, %v2700
        %v2703 = vshrl.u32 %v2570, 16
        %v2705 = vrot.slane %v2703, 4
        %v2706 = vshll.u32 %v2570, 16
        %v2708 = vrot.slane %v2706, 5
        %v2709 = vor.u32 %v2705, %v2708
        %v2710 = vrot.slane %v2709, 4
        %v2712 = vshll.u32 %v2571, 16
        %v2714 = vrot.slane %v2712, 5
        %v2715 = vsel %vm386, %v2710, %v2714
        %v2716 = vshrl.u32 %v2571, 16
        %v2718 = vrot.slane %v2716, 4
        %v2719 = vor.u32 %v2718, %v2714
        %v2720 = vrot.slane %v2719, 4
        %v2722 = vshll.u32 %v2572, 16
        %v2724 = vrot.slane %v2722, 5
        %v2725 = vsel %vm386, %v2720, %v2724
        %v2727 = vshrl.u32 %v2573, 16
        %v2729 = vrot.slane %v2727, 4
        %v2730 = vshll.u32 %v2573, 16
        %v2732 = vrot.slane %v2730, 5
        %v2733 = vor.u32 %v2729, %v2732
        %v2734 = vrot.slane %v2733, 4
        %v2736 = vshll.u32 %v2574, 16
        %v2738 = vrot.slane %v2736, 5
        %v2739 = vsel %vm386, %v2734, %v2738
        %v2740 = vshrl.u32 %v2574, 16
        %v2742 = vrot.slane %v2740, 4
        %v2743 = vor.u32 %v2742, %v2738
        %v2744 = vrot.slane %v2743, 4
        %v2746 = vshll.u32 %v2575, 16
        %v2748 = vrot.slane %v2746, 5
        %v2749 = vsel %vm386, %v2744, %v2748
        %v2751 = vshrl.u32 %v2576, 16
        %v2753 = vrot.slane %v2751, 4
        %v2754 = vshll.u32 %v2576, 16
        %v2756 = vrot.slane %v2754, 5
        %v2757 = vor.u32 %v2753, %v2756
        %v2758 = vrot.slane %v2757, 4
        %v2760 = vshll.u32 %v2577, 16
        %v2762 = vrot.slane %v2760, 5
        %v2763 = vsel %vm386, %v2758, %v2762
        %v2764 = vshrl.u32 %v2577, 16
        %v2766 = vrot.slane %v2764, 4
        %v2767 = vor.u32 %v2766, %v2762
        %v2768 = vrot.slane %v2767, 4
        %v2770 = vshll.u32 %v2578, 16
        %v2772 = vrot.slane %v2770, 5
        %v2773 = vsel %vm386, %v2768, %v2772
        %v2775 = vshrl.u32 %v2579, 16
        %v2777 = vrot.slane %v2775, 4
        %v2778 = vshll.u32 %v2579, 16
        %v2780 = vrot.slane %v2778, 5
        %v2781 = vor.u32 %v2777, %v2780
        %v2782 = vrot.slane %v2781, 4
        %v2784 = vshll.u32 %v2580, 16
        %v2786 = vrot.slane %v2784, 5
        %v2787 = vsel %vm386, %v2782, %v2786
        %v2788 = vshrl.u32 %v2580, 16
        %v2790 = vrot.slane %v2788, 4
        %v2791 = vor.u32 %v2790, %v2786
        %v2792 = vrot.slane %v2791, 4
        %v2794 = vshll.u32 %v2581, 16
        %v2796 = vrot.slane %v2794, 5
        %v2797 = vsel %vm386, %v2792, %v2796
        %v2799 = vshrl.u32 %v2582, 16
        %v2801 = vrot.slane %v2799, 4
        %v2802 = vshll.u32 %v2582, 16
        %v2804 = vrot.slane %v2802, 5
        %v2805 = vor.u32 %v2801, %v2804
        %v2806 = vrot.slane %v2805, 4
        %v2808 = vshll.u32 %v2583, 16
        %v2810 = vrot.slane %v2808, 5
        %v2811 = vsel %vm386, %v2806, %v2810
        %v2812 = vshrl.u32 %v2583, 16
        %v2814 = vrot.slane %v2812, 4
        %v2815 = vor.u32 %v2814, %v2810
        %v2816 = vrot.slane %v2815, 4
        %v2818 = vshll.u32 %v2584, 16
        %v2820 = vrot.slane %v2818, 5
        %v2821 = vsel %vm386, %v2816, %v2820
        %v2823 = vshrl.u32 %v2585, 16
        %v2825 = vrot.slane %v2823, 4
        %v2826 = vshll.u32 %v2585, 16
        %v2828 = vrot.slane %v2826, 5
        %v2829 = vor.u32 %v2825, %v2828
        %v2830 = vrot.slane %v2829, 4
        %v2832 = vshll.u32 %v2586, 16
        %v2834 = vrot.slane %v2832, 5
        %v2835 = vsel %vm386, %v2830, %v2834
        %v2836 = vshrl.u32 %v2586, 16
        %v2838 = vrot.slane %v2836, 4
        %v2839 = vor.u32 %v2838, %v2834
        %v2840 = vrot.slane %v2839, 4
        %v2842 = vshll.u32 %v2587, 16
        %v2844 = vrot.slane %v2842, 5
        %v2845 = vsel %vm386, %v2840, %v2844
        %v2847 = vshrl.u32 %v2588, 16
        %v2849 = vrot.slane %v2847, 4
        %v2850 = vshll.u32 %v2588, 16
        %v2852 = vrot.slane %v2850, 5
        %v2853 = vor.u32 %v2849, %v2852
        %v2854 = vrot.slane %v2853, 4
        %v2856 = vshll.u32 %v2589, 16
        %v2858 = vrot.slane %v2856, 5
        %v2859 = vsel %vm386, %v2854, %v2858
        %v2860 = vshrl.u32 %v2589, 16
        %v2862 = vrot.slane %v2860, 4
        %v2863 = vor.u32 %v2862, %v2858
        %v2864 = vrot.slane %v2863, 4
        %v2866 = vshll.u32 %v2590, 16
        %v2868 = vrot.slane %v2866, 5
        %v2869 = vsel %vm386, %v2864, %v2868
        %v2871 = vshrl.u32 %v2591, 16
        %v2873 = vrot.slane %v2871, 4
        %v2874 = vshll.u32 %v2591, 16
        %v2876 = vrot.slane %v2874, 5
        %v2877 = vor.u32 %v2873, %v2876
        %v2878 = vrot.slane %v2877, 4
        %v2880 = vshll.u32 %v2592, 16
        %v2882 = vrot.slane %v2880, 5
        %v2883 = vsel %vm386, %v2878, %v2882
        %v2884 = vshrl.u32 %v2592, 16
        %v2886 = vrot.slane %v2884, 4
        %v2887 = vor.u32 %v2886, %v2882
        %v2888 = vrot.slane %v2887, 4
        %v2890 = vshll.u32 %v2593, 16
        %v2892 = vrot.slane %v2890, 5
        %v2893 = vsel %vm386, %v2888, %v2892
        %v2895 = vshrl.u32 %v2594, 16
        %v2897 = vrot.slane %v2895, 4
        %v2898 = vshll.u32 %v2594, 16
        %v2900 = vrot.slane %v2898, 5
        %v2901 = vor.u32 %v2897, %v2900
        %v2902 = vrot.slane %v2901, 4
        %v2904 = vshll.u32 %v2595, 16
        %v2906 = vrot.slane %v2904, 5
        %v2907 = vsel %vm386, %v2902, %v2906
        %v2908 = vshrl.u32 %v2595, 16
        %v2910 = vrot.slane %v2908, 4
        %v2911 = vor.u32 %v2910, %v2906
        %v2912 = vrot.slane %v2911, 4
        %v2914 = vshll.u32 %v2596, 16
        %v2916 = vrot.slane %v2914, 5
        %v2917 = vsel %vm386, %v2912, %v2916
        %v2919 = vshrl.u32 %v2597, 16
        %v2921 = vrot.slane %v2919, 4
        %v2922 = vshll.u32 %v2597, 16
        %v2924 = vrot.slane %v2922, 5
        %v2925 = vor.u32 %v2921, %v2924
        %v2926 = vrot.slane %v2925, 4
        %v2928 = vshll.u32 %v2598, 16
        %v2930 = vrot.slane %v2928, 5
        %v2931 = vsel %vm386, %v2926, %v2930
        %v2932 = vshrl.u32 %v2598, 16
        %v2934 = vrot.slane %v2932, 4
        %v2935 = vor.u32 %v2934, %v2930
        %v2936 = vrot.slane %v2935, 4
        %v2938 = vshll.u32 %v2599, 16
        %v2940 = vrot.slane %v2938, 5
        %v2941 = vsel %vm386, %v2936, %v2940
        %v2943 = vshrl.u32 %v2600, 16
        %v2945 = vrot.slane %v2943, 4
        %v2946 = vshll.u32 %v2600, 16
        %v2948 = vrot.slane %v2946, 5
        %v2949 = vor.u32 %v2945, %v2948
        %v2950 = vrot.slane %v2949, 4
        %v2952 = vshll.u32 %v2601, 16
        %v2954 = vrot.slane %v2952, 5
        %v2955 = vsel %vm386, %v2950, %v2954
        %v2956 = vshrl.u32 %v2601, 16
        %v2958 = vrot.slane %v2956, 4
        %v2959 = vor.u32 %v2958, %v2954
        %v2960 = vrot.slane %v2959, 4
        %v2962 = vshll.u32 %v2602, 16
        %v2964 = vrot.slane %v2962, 5
        %v2965 = vsel %vm386, %v2960, %v2964
        %v2967 = vshrl.u32 %v2603, 16
        %v2969 = vrot.slane %v2967, 4
        %v2970 = vshll.u32 %v2603, 16
        %v2972 = vrot.slane %v2970, 5
        %v2973 = vor.u32 %v2969, %v2972
        %v2974 = vrot.slane %v2973, 4
        %v2976 = vshll.u32 %v2604, 16
        %v2978 = vrot.slane %v2976, 5
        %v2979 = vsel %vm386, %v2974, %v2978
        %v2980 = vshrl.u32 %v2604, 16
        %v2982 = vrot.slane %v2980, 4
        %v2983 = vor.u32 %v2982, %v2978
        %v2984 = vrot.slane %v2983, 4
        %v2986 = vshll.u32 %v2605, 16
        %v2988 = vrot.slane %v2986, 5
        %v2989 = vsel %vm386, %v2984, %v2988
        %s2990 = scalar_lea.vmem [#allocation2], 512
        %v2991 = vld [vmem:[%s2990] sm:$0xff]
        %v2992 = vld [vmem:[%s2990 + $0x8] sm:$0xff]
        %v2993 = vld [vmem:[%s2990 + $0x10] sm:$0xff]
        %v2994 = vld [vmem:[%s2990 + $0x18] sm:$0xff]
        %v2995 = vld [vmem:[%s2990 + $0x20] sm:$0xff]
        %v2996 = vld [vmem:[%s2990 + $0x28] sm:$0xff]
        %v2997 = vld [vmem:[%s2990 + $0x30] sm:$0xff]
        %v2998 = vld [vmem:[%s2990 + $0x38] sm:$0xff]
        %v2999 = vld [vmem:[%s2990 + $0x40] sm:$0xff]
        %v3000 = vld [vmem:[%s2990 + $0x48] sm:$0xff]
        %v3001 = vld [vmem:[%s2990 + $0x50] sm:$0xff]
        %v3002 = vld [vmem:[%s2990 + $0x58] sm:$0xff]
        %v3003 = vld [vmem:[%s2990 + $0x60] sm:$0xff]
        %v3004 = vld [vmem:[%s2990 + $0x68] sm:$0xff]
        %v3005 = vld [vmem:[%s2990 + $0x70] sm:$0xff]
        %v3006 = vld [vmem:[%s2990 + $0x78] sm:$0xff]
        %v3007 = vunpack.c.l.b16 %v2619
        %v3008 = vunpack.c.l.b16 %v2629
        %v3009 = vunpack.c.l.b16 %v2643
        %v3010 = vunpack.c.l.b16 %v2653
        %v3011 = vunpack.c.l.b16 %v2667
        %v3012 = vunpack.c.l.b16 %v2677
        %v3013 = vunpack.c.l.b16 %v2691
        %v3014 = vunpack.c.l.b16 %v2701
        %v3015 = vunpack.c.l.b16 %v2715
        %v3016 = vunpack.c.l.b16 %v2725
        %v3017 = vunpack.c.l.b16 %v2739
        %v3018 = vunpack.c.l.b16 %v2749
        %v3019 = vunpack.c.l.b16 %v2763
        %v3020 = vunpack.c.l.b16 %v2773
        %v3021 = vunpack.c.l.b16 %v2787
        %v3022 = vunpack.c.l.b16 %v2797
        %v3023 = vunpack.c.l.b16 %v2811
        %v3024 = vunpack.c.l.b16 %v2821
        %v3025 = vunpack.c.l.b16 %v2835
        %v3026 = vunpack.c.l.b16 %v2845
        %v3027 = vunpack.c.l.b16 %v2859
        %v3028 = vunpack.c.l.b16 %v2869
        %v3029 = vunpack.c.l.b16 %v2883
        %v3030 = vunpack.c.l.b16 %v2893
        %v3031 = vunpack.c.l.b16 %v2907
        %v3032 = vunpack.c.l.b16 %v2917
        %v3033 = vunpack.c.l.b16 %v2931
        %v3034 = vunpack.c.l.b16 %v2941
        %v3035 = vunpack.c.l.b16 %v2955
        %v3036 = vunpack.c.l.b16 %v2965
        %v3037 = vunpack.c.l.b16 %v2979
        %v3038 = vunpack.c.l.b16 %v2989
        %v3039 = vpack.c.b16 %v3008, %v3007
        %v3040 = vpack.c.b16 %v3010, %v3009
        %v3041 = vpack.c.b16 %v3012, %v3011
        %v3042 = vpack.c.b16 %v3014, %v3013
        %v3043 = vpack.c.b16 %v3016, %v3015
        %v3044 = vpack.c.b16 %v3018, %v3017
        %v3045 = vpack.c.b16 %v3020, %v3019
        %v3046 = vpack.c.b16 %v3022, %v3021
        %v3047 = vpack.c.b16 %v3024, %v3023
        %v3048 = vpack.c.b16 %v3026, %v3025
        %v3049 = vpack.c.b16 %v3028, %v3027
        %v3050 = vpack.c.b16 %v3030, %v3029
        %v3051 = vpack.c.b16 %v3032, %v3031
        %v3052 = vpack.c.b16 %v3034, %v3033
        %v3053 = vpack.c.b16 %v3036, %v3035
        %v3054 = vpack.c.b16 %v3038, %v3037
        %v3087 = vunpack.c.l.b16 %v2991
        %v3088 = vunpack.c.h.b16 %v2991
        %v3089 = vunpack.c.l.b16 %v2992
        %v3090 = vunpack.c.h.b16 %v2992
        %v3091 = vunpack.c.l.b16 %v2993
        %v3092 = vunpack.c.h.b16 %v2993
        %v3093 = vunpack.c.l.b16 %v2994
        %v3094 = vunpack.c.h.b16 %v2994
        %v3095 = vunpack.c.l.b16 %v2995
        %v3096 = vunpack.c.h.b16 %v2995
        %v3097 = vunpack.c.l.b16 %v2996
        %v3098 = vunpack.c.h.b16 %v2996
        %v3099 = vunpack.c.l.b16 %v2997
        %v3100 = vunpack.c.h.b16 %v2997
        %v3101 = vunpack.c.l.b16 %v2998
        %v3102 = vunpack.c.h.b16 %v2998
        %v3103 = vunpack.c.l.b16 %v2999
        %v3104 = vunpack.c.h.b16 %v2999
        %v3105 = vunpack.c.l.b16 %v3000
        %v3106 = vunpack.c.h.b16 %v3000
        %v3107 = vunpack.c.l.b16 %v3001
        %v3108 = vunpack.c.h.b16 %v3001
        %v3109 = vunpack.c.l.b16 %v3002
        %v3110 = vunpack.c.h.b16 %v3002
        %v3111 = vunpack.c.l.b16 %v3003
        %v3112 = vunpack.c.h.b16 %v3003
        %v3113 = vunpack.c.l.b16 %v3004
        %v3114 = vunpack.c.h.b16 %v3004
        %v3115 = vunpack.c.l.b16 %v3005
        %v3116 = vunpack.c.h.b16 %v3005
        %v3117 = vunpack.c.l.b16 %v3006
        %v3118 = vunpack.c.h.b16 %v3006
        %v3119 = vpack.c.b16 %v3089, %v3087
        %v3120 = vpack.c.b16 %v3090, %v3088
        %v3121 = vpack.c.b16 %v3093, %v3091
        %v3122 = vpack.c.b16 %v3094, %v3092
        %v3123 = vpack.c.b16 %v3097, %v3095
        %v3124 = vpack.c.b16 %v3098, %v3096
        %v3125 = vpack.c.b16 %v3101, %v3099
        %v3126 = vpack.c.b16 %v3102, %v3100
        %v3127 = vpack.c.b16 %v3105, %v3103
        %v3128 = vpack.c.b16 %v3106, %v3104
        %v3129 = vpack.c.b16 %v3109, %v3107
        %v3130 = vpack.c.b16 %v3110, %v3108
        %v3131 = vpack.c.b16 %v3113, %v3111
        %v3132 = vpack.c.b16 %v3114, %v3112
        %v3133 = vpack.c.b16 %v3117, %v3115
        %v3134 = vpack.c.b16 %v3118, %v3116
        %3151 = vmatprep.subr.bf16.mxu0 %v3120
        %3152 = vmatpush1.bf16.msra.mxu0 %v3119
        %3153 = vmatprep.subr.bf16.mxu0 %v3122
        %3154 = vmatpush1.bf16.msra.mxu0 %v3121
        %3155 = vmatprep.subr.bf16.mxu0 %v3124
        %3156 = vmatpush1.bf16.msra.mxu0 %v3123
        %3157 = vmatprep.subr.bf16.mxu0 %v3126
        %3158 = vmatpush1.bf16.msra.mxu0 %v3125
        %3159 = vmatprep.subr.bf16.mxu0 %v3128
        %3160 = vmatpush1.bf16.msra.mxu0 %v3127
        %3161 = vmatprep.subr.bf16.mxu0 %v3130
        %3162 = vmatpush1.bf16.msra.mxu0 %v3129
        %3163 = vmatprep.subr.bf16.mxu0 %v3132
        %3164 = vmatpush1.bf16.msra.mxu0 %v3131
        %3165 = vmatprep.subr.bf16.mxu0 %v3134
        %3166 = vmatpush1.bf16.msra.mxu0 %v3133
        %3167 = vmatprep.subr.bf16.mxu0 0
        %3168 = vmatpush1.bf16.msra.mxu0 0
        %3169 = vmatprep.subr.bf16.mxu0 0
        %3170 = vmatpush1.bf16.msra.mxu0 0
        %3171 = vmatprep.subr.bf16.mxu0 0
        %3172 = vmatpush1.bf16.msra.mxu0 0
        %3173 = vmatprep.subr.bf16.mxu0 0
        %3174 = vmatpush1.bf16.msra.mxu0 0
        %3175 = vmatprep.subr.bf16.mxu0 0
        %3176 = vmatpush1.bf16.msra.mxu0 0
        %3177 = vmatprep.subr.bf16.mxu0 0
        %3178 = vmatpush1.bf16.msra.mxu0 0
        %3179 = vmatprep.subr.bf16.mxu0 0
        %3180 = vmatpush1.bf16.msra.mxu0 0
        %3181 = vmatprep.subr.bf16.mxu0 0
        %3182 = vmatpush1.bf16.msra.mxu0 0
        %3183 = vmatprep.mubr.bf16.mxu0 0
        %3184 = vmatmul.mubr.bf16.gmra.mrb[0].mxu0 %v3039
        %v3185 = vpop.f32.mrb[0].mxu0
        %v3186 = vadd.f32 0.0, %v3185
        %v3187 = vpop.f32.mrb[0].mxu0
        %v3188 = vadd.f32 0.0, %v3187
        %v3189 = vpop.f32.mrb[0].mxu0
        %v3190 = vadd.f32 0.0, %v3189
        %v3191 = vpop.f32.mrb[0].mxu0
        %v3192 = vadd.f32 0.0, %v3191
        %3193 = vmatprep.mubr.bf16.mxu0 0
        %3194 = vmatmul.mubr.bf16.gmra.mrb[0].mxu0 %v3040
        %v3195 = vpop.f32.mrb[0].mxu0
        %v3196 = vadd.f32 0.0, %v3195
        %v3197 = vpop.f32.mrb[0].mxu0
        %v3198 = vadd.f32 0.0, %v3197
        %v3199 = vpop.f32.mrb[0].mxu0
        %v3200 = vadd.f32 0.0, %v3199
        %v3201 = vpop.f32.mrb[0].mxu0
        %v3202 = vadd.f32 0.0, %v3201
        %3203 = vmatprep.mubr.bf16.mxu0 0
        %3204 = vmatmul.mubr.bf16.gmra.mrb[0].mxu0 %v3041
        %v3205 = vpop.f32.mrb[0].mxu0
        %v3206 = vadd.f32 0.0, %v3205
        %v3207 = vpop.f32.mrb[0].mxu0
        %v3208 = vadd.f32 0.0, %v3207
        %v3209 = vpop.f32.mrb[0].mxu0
        %v3210 = vadd.f32 0.0, %v3209
        %v3211 = vpop.f32.mrb[0].mxu0
        %v3212 = vadd.f32 0.0, %v3211
        %3213 = vmatprep.mubr.bf16.mxu0 0
        %3214 = vmatmul.mubr.bf16.gmra.mrb[0].mxu0 %v3042
        %v3215 = vpop.f32.mrb[0].mxu0
        %v3216 = vadd.f32 0.0, %v3215
        %v3217 = vpop.f32.mrb[0].mxu0
        %v3218 = vadd.f32 0.0, %v3217
        %v3219 = vpop.f32.mrb[0].mxu0
        %v3220 = vadd.f32 0.0, %v3219
        %v3221 = vpop.f32.mrb[0].mxu0
        %v3222 = vadd.f32 0.0, %v3221
        %3223 = vmatprep.mubr.bf16.mxu0 0
        %3224 = vmatmul.mubr.bf16.gmra.mrb[0].mxu0 %v3043
        %v3225 = vpop.f32.mrb[0].mxu0
        %v3226 = vadd.f32 0.0, %v3225
        %v3227 = vpop.f32.mrb[0].mxu0
        %v3228 = vadd.f32 0.0, %v3227
        %v3229 = vpop.f32.mrb[0].mxu0
        %v3230 = vadd.f32 0.0, %v3229
        %v3231 = vpop.f32.mrb[0].mxu0
        %v3232 = vadd.f32 0.0, %v3231
        %3233 = vmatprep.mubr.bf16.mxu0 0
        %3234 = vmatmul.mubr.bf16.gmra.mrb[0].mxu0 %v3044
        %v3235 = vpop.f32.mrb[0].mxu0
        %v3236 = vadd.f32 0.0, %v3235
        %v3237 = vpop.f32.mrb[0].mxu0
        %v3238 = vadd.f32 0.0, %v3237
        %v3239 = vpop.f32.mrb[0].mxu0
        %v3240 = vadd.f32 0.0, %v3239
        %v3241 = vpop.f32.mrb[0].mxu0
        %v3242 = vadd.f32 0.0, %v3241
        %3243 = vmatprep.mubr.bf16.mxu0 0
        %3244 = vmatmul.mubr.bf16.gmra.mrb[0].mxu0 %v3045
        %v3245 = vpop.f32.mrb[0].mxu0
        %v3246 = vadd.f32 0.0, %v3245
        %v3247 = vpop.f32.mrb[0].mxu0
        %v3248 = vadd.f32 0.0, %v3247
        %v3249 = vpop.f32.mrb[0].mxu0
        %v3250 = vadd.f32 0.0, %v3249
        %v3251 = vpop.f32.mrb[0].mxu0
        %v3252 = vadd.f32 0.0, %v3251
        %3253 = vmatprep.mubr.bf16.mxu0 0
        %3254 = vmatmul.mubr.bf16.gmra.mrb[0].mxu0 %v3046
        %v3255 = vpop.f32.mrb[0].mxu0
        %v3256 = vadd.f32 0.0, %v3255
        %v3257 = vpop.f32.mrb[0].mxu0
        %v3258 = vadd.f32 0.0, %v3257
        %v3259 = vpop.f32.mrb[0].mxu0
        %v3260 = vadd.f32 0.0, %v3259
        %v3261 = vpop.f32.mrb[0].mxu0
        %v3262 = vadd.f32 0.0, %v3261
        %3263 = vmatprep.mubr.bf16.mxu0 0
        %3264 = vmatmul.mubr.bf16.gmra.mrb[0].mxu0 %v3047
        %v3265 = vpop.f32.mrb[0].mxu0
        %v3266 = vadd.f32 0.0, %v3265
        %v3267 = vpop.f32.mrb[0].mxu0
        %v3268 = vadd.f32 0.0, %v3267
        %v3269 = vpop.f32.mrb[0].mxu0
        %v3270 = vadd.f32 0.0, %v3269
        %v3271 = vpop.f32.mrb[0].mxu0
        %v3272 = vadd.f32 0.0, %v3271
        %3273 = vmatprep.mubr.bf16.mxu0 0
        %3274 = vmatmul.mubr.bf16.gmra.mrb[0].mxu0 %v3048
        %v3275 = vpop.f32.mrb[0].mxu0
        %v3276 = vadd.f32 0.0, %v3275
        %v3277 = vpop.f32.mrb[0].mxu0
        %v3278 = vadd.f32 0.0, %v3277
        %v3279 = vpop.f32.mrb[0].mxu0
        %v3280 = vadd.f32 0.0, %v3279
        %v3281 = vpop.f32.mrb[0].mxu0
        %v3282 = vadd.f32 0.0, %v3281
        %3283 = vmatprep.mubr.bf16.mxu0 0
        %3284 = vmatmul.mubr.bf16.gmra.mrb[0].mxu0 %v3049
        %v3285 = vpop.f32.mrb[0].mxu0
        %v3286 = vadd.f32 0.0, %v3285
        %v3287 = vpop.f32.mrb[0].mxu0
        %v3288 = vadd.f32 0.0, %v3287
        %v3289 = vpop.f32.mrb[0].mxu0
        %v3290 = vadd.f32 0.0, %v3289
        %v3291 = vpop.f32.mrb[0].mxu0
        %v3292 = vadd.f32 0.0, %v3291
        %3293 = vmatprep.mubr.bf16.mxu0 0
        %3294 = vmatmul.mubr.bf16.gmra.mrb[0].mxu0 %v3050
        %v3295 = vpop.f32.mrb[0].mxu0
        %v3296 = vadd.f32 0.0, %v3295
        %v3297 = vpop.f32.mrb[0].mxu0
        %v3298 = vadd.f32 0.0, %v3297
        %v3299 = vpop.f32.mrb[0].mxu0
        %v3300 = vadd.f32 0.0, %v3299
        %v3301 = vpop.f32.mrb[0].mxu0
        %v3302 = vadd.f32 0.0, %v3301
        %3303 = vmatprep.mubr.bf16.mxu0 0
        %3304 = vmatmul.mubr.bf16.gmra.mrb[0].mxu0 %v3051
        %v3305 = vpop.f32.mrb[0].mxu0
        %v3306 = vadd.f32 0.0, %v3305
        %v3307 = vpop.f32.mrb[0].mxu0
        %v3308 = vadd.f32 0.0, %v3307
        %v3309 = vpop.f32.mrb[0].mxu0
        %v3310 = vadd.f32 0.0, %v3309
        %v3311 = vpop.f32.mrb[0].mxu0
        %v3312 = vadd.f32 0.0, %v3311
        %3313 = vmatprep.mubr.bf16.mxu0 0
        %3314 = vmatmul.mubr.bf16.gmra.mrb[0].mxu0 %v3052
        %v3315 = vpop.f32.mrb[0].mxu0
        %v3316 = vadd.f32 0.0, %v3315
        %v3317 = vpop.f32.mrb[0].mxu0
        %v3318 = vadd.f32 0.0, %v3317
        %v3319 = vpop.f32.mrb[0].mxu0
        %v3320 = vadd.f32 0.0, %v3319
        %v3321 = vpop.f32.mrb[0].mxu0
        %v3322 = vadd.f32 0.0, %v3321
        %3323 = vmatprep.mubr.bf16.mxu0 0
        %3324 = vmatmul.mubr.bf16.gmra.mrb[0].mxu0 %v3053
        %v3325 = vpop.f32.mrb[0].mxu0
        %v3326 = vadd.f32 0.0, %v3325
        %v3327 = vpop.f32.mrb[0].mxu0
        %v3328 = vadd.f32 0.0, %v3327
        %v3329 = vpop.f32.mrb[0].mxu0
        %v3330 = vadd.f32 0.0, %v3329
        %v3331 = vpop.f32.mrb[0].mxu0
        %v3332 = vadd.f32 0.0, %v3331
        %3333 = vmatprep.mubr.bf16.mxu0 0
        %3334 = vmatmul.mubr.bf16.gmra.mrb[0].mxu0 %v3054
        %v3335 = vpop.f32.mrb[0].mxu0
        %v3336 = vadd.f32 0.0, %v3335
        %v3337 = vpop.f32.mrb[0].mxu0
        %v3338 = vadd.f32 0.0, %v3337
        %v3339 = vpop.f32.mrb[0].mxu0
        %v3340 = vadd.f32 0.0, %v3339
        %v3341 = vpop.f32.mrb[0].mxu0
        %v3342 = vadd.f32 0.0, %v3341
        %3343 = vdwg.mxu0
        %v3344 = vadd.f32 %v2494, %v3186
        %v3345 = vadd.f32 %v2495, %v3188
        %v3346 = vadd.f32 %v2496, %v3190
        %v3347 = vadd.f32 %v2497, %v3192
        %v3348 = vadd.f32 %v2498, %v3196
        %v3349 = vadd.f32 %v2499, %v3198
        %v3350 = vadd.f32 %v2500, %v3200
        %v3351 = vadd.f32 %v2501, %v3202
        %v3352 = vadd.f32 %v2502, %v3206
        %v3353 = vadd.f32 %v2503, %v3208
        %v3354 = vadd.f32 %v2504, %v3210
        %v3355 = vadd.f32 %v2505, %v3212
        %v3356 = vadd.f32 %v2506, %v3216
        %v3357 = vadd.f32 %v2507, %v3218
        %v3358 = vadd.f32 %v2508, %v3220
        %v3359 = vadd.f32 %v2509, %v3222
        %v3360 = vadd.f32 %v2510, %v3226
        %v3361 = vadd.f32 %v2511, %v3228
        %v3362 = vadd.f32 %v2512, %v3230
        %v3363 = vadd.f32 %v2513, %v3232
        %v3364 = vadd.f32 %v2514, %v3236
        %v3365 = vadd.f32 %v2515, %v3238
        %v3366 = vadd.f32 %v2516, %v3240
        %v3367 = vadd.f32 %v2517, %v3242
        %v3368 = vadd.f32 %v2518, %v3246
        %v3369 = vadd.f32 %v2519, %v3248
        %v3370 = vadd.f32 %v2520, %v3250
        %v3371 = vadd.f32 %v2521, %v3252
        %v3372 = vadd.f32 %v2522, %v3256
        %v3373 = vadd.f32 %v2523, %v3258
        %v3374 = vadd.f32 %v2524, %v3260
        %v3375 = vadd.f32 %v2525, %v3262
        %v3376 = vadd.f32 %v2526, %v3266
        %v3377 = vadd.f32 %v2527, %v3268
        %v3378 = vadd.f32 %v2528, %v3270
        %v3379 = vadd.f32 %v2529, %v3272
        %v3380 = vadd.f32 %v2530, %v3276
        %v3381 = vadd.f32 %v2531, %v3278
        %v3382 = vadd.f32 %v2532, %v3280
        %v3383 = vadd.f32 %v2533, %v3282
        %v3384 = vadd.f32 %v2534, %v3286
        %v3385 = vadd.f32 %v2535, %v3288
        %v3386 = vadd.f32 %v2536, %v3290
        %v3387 = vadd.f32 %v2537, %v3292
        %v3388 = vadd.f32 %v2538, %v3296
        %v3389 = vadd.f32 %v2539, %v3298
        %v3390 = vadd.f32 %v2540, %v3300
        %v3391 = vadd.f32 %v2541, %v3302
        %v3392 = vadd.f32 %v2542, %v3306
        %v3393 = vadd.f32 %v2543, %v3308
        %v3394 = vadd.f32 %v2544, %v3310
        %v3395 = vadd.f32 %v2545, %v3312
        %v3396 = vadd.f32 %v2546, %v3316
        %v3397 = vadd.f32 %v2547, %v3318
        %v3398 = vadd.f32 %v2548, %v3320
        %v3399 = vadd.f32 %v2549, %v3322
        %v3400 = vadd.f32 %v2550, %v3326
        %v3401 = vadd.f32 %v2551, %v3328
        %v3402 = vadd.f32 %v2552, %v3330
        %v3403 = vadd.f32 %v2553, %v3332
        %v3404 = vadd.f32 %v2554, %v3336
        %v3405 = vadd.f32 %v2555, %v3338
        %v3406 = vadd.f32 %v2556, %v3340
        %v3407 = vadd.f32 %v2557, %v3342
        %v3408 = vld [vmem:[%s2075] sm:$0xe]
        %v3409 = vld [vmem:[%s2075 + $0xc] sm:$0xe]
        %v3410 = vld [vmem:[%s2075 + $0x18] sm:$0xe]
        %v3411 = vld [vmem:[%s2075 + $0x24] sm:$0xe]
        %v3412 = vld [vmem:[%s2075 + $0x30] sm:$0xe]
        %v3413 = vld [vmem:[%s2075 + $0x3c] sm:$0xe]
        %v3414 = vld [vmem:[%s2075 + $0x48] sm:$0xe]
        %v3415 = vld [vmem:[%s2075 + $0x54] sm:$0xe]
        %v3416 = vld [vmem:[%s2075 + $0x60] sm:$0xe]
        %v3417 = vld [vmem:[%s2075 + $0x6c] sm:$0xe]
        %v3418 = vld [vmem:[%s2075 + $0x78] sm:$0xe]
        %v3419 = vld [vmem:[%s2075 + $0x84] sm:$0xe]
        %v3420 = vld [vmem:[%s2075 + $0x90] sm:$0xe]
        %v3421 = vld [vmem:[%s2075 + $0x9c] sm:$0xe]
        %v3422 = vld [vmem:[%s2075 + $0xa8] sm:$0xe]
        %v3423 = vld [vmem:[%s2075 + $0xb4] sm:$0xe]
        %v3472 = vrot.slane %v3408, 5
        %v3473 = vrot.slane %v3472, 4
        %v3474 = vrot.slane %v2559, 5
        %v3475 = vsel %vm1544, %v3473, %v3474
        %v3476 = vrot.slane %v3474, 4
        %v3477 = vrot.slane %v2560, 5
        %v3478 = vsel %vm1544, %v3476, %v3477
        %v3479 = vrot.slane %v3409, 5
        %v3480 = vrot.slane %v3479, 4
        %v3481 = vrot.slane %v2562, 5
        %v3482 = vsel %vm1544, %v3480, %v3481
        %v3483 = vrot.slane %v3481, 4
        %v3484 = vrot.slane %v2563, 5
        %v3485 = vsel %vm1544, %v3483, %v3484
        %v3486 = vrot.slane %v3410, 5
        %v3487 = vrot.slane %v3486, 4
        %v3488 = vrot.slane %v2565, 5
        %v3489 = vsel %vm1544, %v3487, %v3488
        %v3490 = vrot.slane %v3488, 4
        %v3491 = vrot.slane %v2566, 5
        %v3492 = vsel %vm1544, %v3490, %v3491
        %v3493 = vrot.slane %v3411, 5
        %v3494 = vrot.slane %v3493, 4
        %v3495 = vrot.slane %v2568, 5
        %v3496 = vsel %vm1544, %v3494, %v3495
        %v3497 = vrot.slane %v3495, 4
        %v3498 = vrot.slane %v2569, 5
        %v3499 = vsel %vm1544, %v3497, %v3498
        %v3500 = vrot.slane %v3412, 5
        %v3501 = vrot.slane %v3500, 4
        %v3502 = vrot.slane %v2571, 5
        %v3503 = vsel %vm1544, %v3501, %v3502
        %v3504 = vrot.slane %v3502, 4
        %v3505 = vrot.slane %v2572, 5
        %v3506 = vsel %vm1544, %v3504, %v3505
        %v3507 = vrot.slane %v3413, 5
        %v3508 = vrot.slane %v3507, 4
        %v3509 = vrot.slane %v2574, 5
        %v3510 = vsel %vm1544, %v3508, %v3509
        %v3511 = vrot.slane %v3509, 4
        %v3512 = vrot.slane %v2575, 5
        %v3513 = vsel %vm1544, %v3511, %v3512
        %v3514 = vrot.slane %v3414, 5
        %v3515 = vrot.slane %v3514, 4
        %v3516 = vrot.slane %v2577, 5
        %v3517 = vsel %vm1544, %v3515, %v3516
        %v3518 = vrot.slane %v3516, 4
        %v3519 = vrot.slane %v2578, 5
        %v3520 = vsel %vm1544, %v3518, %v3519
        %v3521 = vrot.slane %v3415, 5
        %v3522 = vrot.slane %v3521, 4
        %v3523 = vrot.slane %v2580, 5
        %v3524 = vsel %vm1544, %v3522, %v3523
        %v3525 = vrot.slane %v3523, 4
        %v3526 = vrot.slane %v2581, 5
        %v3527 = vsel %vm1544, %v3525, %v3526
        %v3528 = vrot.slane %v3416, 5
        %v3529 = vrot.slane %v3528, 4
        %v3530 = vrot.slane %v2583, 5
        %v3531 = vsel %vm1544, %v3529, %v3530
        %v3532 = vrot.slane %v3530, 4
        %v3533 = vrot.slane %v2584, 5
        %v3534 = vsel %vm1544, %v3532, %v3533
        %v3535 = vrot.slane %v3417, 5
        %v3536 = vrot.slane %v3535, 4
        %v3537 = vrot.slane %v2586, 5
        %v3538 = vsel %vm1544, %v3536, %v3537
        %v3539 = vrot.slane %v3537, 4
        %v3540 = vrot.slane %v2587, 5
        %v3541 = vsel %vm1544, %v3539, %v3540
        %v3542 = vrot.slane %v3418, 5
        %v3543 = vrot.slane %v3542, 4
        %v3544 = vrot.slane %v2589, 5
        %v3545 = vsel %vm1544, %v3543, %v3544
        %v3546 = vrot.slane %v3544, 4
        %v3547 = vrot.slane %v2590, 5
        %v3548 = vsel %vm1544, %v3546, %v3547
        %v3549 = vrot.slane %v3419, 5
        %v3550 = vrot.slane %v3549, 4
        %v3551 = vrot.slane %v2592, 5
        %v3552 = vsel %vm1544, %v3550, %v3551
        %v3553 = vrot.slane %v3551, 4
        %v3554 = vrot.slane %v2593, 5
        %v3555 = vsel %vm1544, %v3553, %v3554
        %v3556 = vrot.slane %v3420, 5
        %v3557 = vrot.slane %v3556, 4
        %v3558 = vrot.slane %v2595, 5
        %v3559 = vsel %vm1544, %v3557, %v3558
        %v3560 = vrot.slane %v3558, 4
        %v3561 = vrot.slane %v2596, 5
        %v3562 = vsel %vm1544, %v3560, %v3561
        %v3563 = vrot.slane %v3421, 5
        %v3564 = vrot.slane %v3563, 4
        %v3565 = vrot.slane %v2598, 5
        %v3566 = vsel %vm1544, %v3564, %v3565
        %v3567 = vrot.slane %v3565, 4
        %v3568 = vrot.slane %v2599, 5
        %v3569 = vsel %vm1544, %v3567, %v3568
        %v3570 = vrot.slane %v3422, 5
        %v3571 = vrot.slane %v3570, 4
        %v3572 = vrot.slane %v2601, 5
        %v3573 = vsel %vm1544, %v3571, %v3572
        %v3574 = vrot.slane %v3572, 4
        %v3575 = vrot.slane %v2602, 5
        %v3576 = vsel %vm1544, %v3574, %v3575
        %v3577 = vrot.slane %v3423, 5
        %v3578 = vrot.slane %v3577, 4
        %v3579 = vrot.slane %v2604, 5
        %v3580 = vsel %vm1544, %v3578, %v3579
        %v3581 = vrot.slane %v3579, 4
        %v3582 = vrot.slane %v2605, 5
        %v3583 = vsel %vm1544, %v3581, %v3582
        %s3584 = scalar_lea.vmem [#allocation2], 640
        %v3585 = vld [vmem:[%s3584] sm:$0xff]
        %v3586 = vld [vmem:[%s3584 + $0x8] sm:$0xff]
        %v3587 = vld [vmem:[%s3584 + $0x10] sm:$0xff]
        %v3588 = vld [vmem:[%s3584 + $0x18] sm:$0xff]
        %v3589 = vld [vmem:[%s3584 + $0x20] sm:$0xff]
        %v3590 = vld [vmem:[%s3584 + $0x28] sm:$0xff]
        %v3591 = vld [vmem:[%s3584 + $0x30] sm:$0xff]
        %v3592 = vld [vmem:[%s3584 + $0x38] sm:$0xff]
        %v3593 = vld [vmem:[%s3584 + $0x40] sm:$0xff]
        %v3594 = vld [vmem:[%s3584 + $0x48] sm:$0xff]
        %v3595 = vld [vmem:[%s3584 + $0x50] sm:$0xff]
        %v3596 = vld [vmem:[%s3584 + $0x58] sm:$0xff]
        %v3597 = vld [vmem:[%s3584 + $0x60] sm:$0xff]
        %v3598 = vld [vmem:[%s3584 + $0x68] sm:$0xff]
        %v3599 = vld [vmem:[%s3584 + $0x70] sm:$0xff]
        %v3600 = vld [vmem:[%s3584 + $0x78] sm:$0xff]
        %v3601 = vunpack.c.l.b16 %v3475
        %v3602 = vunpack.c.l.b16 %v3478
        %v3603 = vunpack.c.l.b16 %v3482
        %v3604 = vunpack.c.l.b16 %v3485
        %v3605 = vunpack.c.l.b16 %v3489
        %v3606 = vunpack.c.l.b16 %v3492
        %v3607 = vunpack.c.l.b16 %v3496
        %v3608 = vunpack.c.l.b16 %v3499
        %v3609 = vunpack.c.l.b16 %v3503
        %v3610 = vunpack.c.l.b16 %v3506
        %v3611 = vunpack.c.l.b16 %v3510
        %v3612 = vunpack.c.l.b16 %v3513
        %v3613 = vunpack.c.l.b16 %v3517
        %v3614 = vunpack.c.l.b16 %v3520
        %v3615 = vunpack.c.l.b16 %v3524
        %v3616 = vunpack.c.l.b16 %v3527
        %v3617 = vunpack.c.l.b16 %v3531
        %v3618 = vunpack.c.l.b16 %v3534
        %v3619 = vunpack.c.l.b16 %v3538
        %v3620 = vunpack.c.l.b16 %v3541
        %v3621 = vunpack.c.l.b16 %v3545
        %v3622 = vunpack.c.l.b16 %v3548
        %v3623 = vunpack.c.l.b16 %v3552
        %v3624 = vunpack.c.l.b16 %v3555
        %v3625 = vunpack.c.l.b16 %v3559
        %v3626 = vunpack.c.l.b16 %v3562
        %v3627 = vunpack.c.l.b16 %v3566
        %v3628 = vunpack.c.l.b16 %v3569
        %v3629 = vunpack.c.l.b16 %v3573
        %v3630 = vunpack.c.l.b16 %v3576
        %v3631 = vunpack.c.l.b16 %v3580
        %v3632 = vunpack.c.l.b16 %v3583
        %v3633 = vpack.c.b16 %v3602, %v3601
        %v3634 = vpack.c.b16 %v3604, %v3603
        %v3635 = vpack.c.b16 %v3606, %v3605
        %v3636 = vpack.c.b16 %v3608, %v3607
        %v3637 = vpack.c.b16 %v3610, %v3609
        %v3638 = vpack.c.b16 %v3612, %v3611
        %v3639 = vpack.c.b16 %v3614, %v3613
        %v3640 = vpack.c.b16 %v3616, %v3615
        %v3641 = vpack.c.b16 %v3618, %v3617
        %v3642 = vpack.c.b16 %v3620, %v3619
        %v3643 = vpack.c.b16 %v3622, %v3621
        %v3644 = vpack.c.b16 %v3624, %v3623
        %v3645 = vpack.c.b16 %v3626, %v3625
        %v3646 = vpack.c.b16 %v3628, %v3627
        %v3647 = vpack.c.b16 %v3630, %v3629
        %v3648 = vpack.c.b16 %v3632, %v3631
        %v3681 = vunpack.c.l.b16 %v3585
        %v3682 = vunpack.c.h.b16 %v3585
        %v3683 = vunpack.c.l.b16 %v3586
        %v3684 = vunpack.c.h.b16 %v3586
        %v3685 = vunpack.c.l.b16 %v3587
        %v3686 = vunpack.c.h.b16 %v3587
        %v3687 = vunpack.c.l.b16 %v3588
        %v3688 = vunpack.c.h.b16 %v3588
        %v3689 = vunpack.c.l.b16 %v3589
        %v3690 = vunpack.c.h.b16 %v3589
        %v3691 = vunpack.c.l.b16 %v3590
        %v3692 = vunpack.c.h.b16 %v3590
        %v3693 = vunpack.c.l.b16 %v3591
        %v3694 = vunpack.c.h.b16 %v3591
        %v3695 = vunpack.c.l.b16 %v3592
        %v3696 = vunpack.c.h.b16 %v3592
        %v3697 = vunpack.c.l.b16 %v3593
        %v3698 = vunpack.c.h.b16 %v3593
        %v3699 = vunpack.c.l.b16 %v3594
        %v3700 = vunpack.c.h.b16 %v3594
        %v3701 = vunpack.c.l.b16 %v3595
        %v3702 = vunpack.c.h.b16 %v3595
        %v3703 = vunpack.c.l.b16 %v3596
        %v3704 = vunpack.c.h.b16 %v3596
        %v3705 = vunpack.c.l.b16 %v3597
        %v3706 = vunpack.c.h.b16 %v3597
        %v3707 = vunpack.c.l.b16 %v3598
        %v3708 = vunpack.c.h.b16 %v3598
        %v3709 = vunpack.c.l.b16 %v3599
        %v3710 = vunpack.c.h.b16 %v3599
        %v3711 = vunpack.c.l.b16 %v3600
        %v3712 = vunpack.c.h.b16 %v3600
        %v3713 = vpack.c.b16 %v3683, %v3681
        %v3714 = vpack.c.b16 %v3684, %v3682
        %v3715 = vpack.c.b16 %v3687, %v3685
        %v3716 = vpack.c.b16 %v3688, %v3686
        %v3717 = vpack.c.b16 %v3691, %v3689
        %v3718 = vpack.c.b16 %v3692, %v3690
        %v3719 = vpack.c.b16 %v3695, %v3693
        %v3720 = vpack.c.b16 %v3696, %v3694
        %v3721 = vpack.c.b16 %v3699, %v3697
        %v3722 = vpack.c.b16 %v3700, %v3698
        %v3723 = vpack.c.b16 %v3703, %v3701
        %v3724 = vpack.c.b16 %v3704, %v3702
        %v3725 = vpack.c.b16 %v3707, %v3705
        %v3726 = vpack.c.b16 %v3708, %v3706
        %v3727 = vpack.c.b16 %v3711, %v3709
        %v3728 = vpack.c.b16 %v3712, %v3710
        %3745 = vmatprep.subr.bf16.mxu0 %v3714
        %3746 = vmatpush1.bf16.msra.mxu0 %v3713
        %3747 = vmatprep.subr.bf16.mxu0 %v3716
        %3748 = vmatpush1.bf16.msra.mxu0 %v3715
        %3749 = vmatprep.subr.bf16.mxu0 %v3718
        %3750 = vmatpush1.bf16.msra.mxu0 %v3717
        %3751 = vmatprep.subr.bf16.mxu0 %v3720
        %3752 = vmatpush1.bf16.msra.mxu0 %v3719
        %3753 = vmatprep.subr.bf16.mxu0 %v3722
        %3754 = vmatpush1.bf16.msra.mxu0 %v3721
        %3755 = vmatprep.subr.bf16.mxu0 %v3724
        %3756 = vmatpush1.bf16.msra.mxu0 %v3723
        %3757 = vmatprep.subr.bf16.mxu0 %v3726
        %3758 = vmatpush1.bf16.msra.mxu0 %v3725
        %3759 = vmatprep.subr.bf16.mxu0 %v3728
        %3760 = vmatpush1.bf16.msra.mxu0 %v3727
        %3761 = vmatprep.subr.bf16.mxu0 0
        %3762 = vmatpush1.bf16.msra.mxu0 0
        %3763 = vmatprep.subr.bf16.mxu0 0
        %3764 = vmatpush1.bf16.msra.mxu0 0
        %3765 = vmatprep.subr.bf16.mxu0 0
        %3766 = vmatpush1.bf16.msra.mxu0 0
        %3767 = vmatprep.subr.bf16.mxu0 0
        %3768 = vmatpush1.bf16.msra.mxu0 0
        %3769 = vmatprep.subr.bf16.mxu0 0
        %3770 = vmatpush1.bf16.msra.mxu0 0
        %3771 = vmatprep.subr.bf16.mxu0 0
        %3772 = vmatpush1.bf16.msra.mxu0 0
        %3773 = vmatprep.subr.bf16.mxu0 0
        %3774 = vmatpush1.bf16.msra.mxu0 0
        %3775 = vmatprep.subr.bf16.mxu0 0
        %3776 = vmatpush1.bf16.msra.mxu0 0
        %3777 = vmatprep.mubr.bf16.mxu0 0
        %3778 = vmatmul.mubr.bf16.gmra.mrb[0].mxu0 %v3633
        %v3779 = vpop.f32.mrb[0].mxu0
        %v3780 = vadd.f32 0.0, %v3779
        %v3781 = vpop.f32.mrb[0].mxu0
        %v3782 = vadd.f32 0.0, %v3781
        %v3783 = vpop.f32.mrb[0].mxu0
        %v3784 = vadd.f32 0.0, %v3783
        %v3785 = vpop.f32.mrb[0].mxu0
        %v3786 = vadd.f32 0.0, %v3785
        %3787 = vmatprep.mubr.bf16.mxu0 0
        %3788 = vmatmul.mubr.bf16.gmra.mrb[0].mxu0 %v3634
        %v3789 = vpop.f32.mrb[0].mxu0
        %v3790 = vadd.f32 0.0, %v3789
        %v3791 = vpop.f32.mrb[0].mxu0
        %v3792 = vadd.f32 0.0, %v3791
        %v3793 = vpop.f32.mrb[0].mxu0
        %v3794 = vadd.f32 0.0, %v3793
        %v3795 = vpop.f32.mrb[0].mxu0
        %v3796 = vadd.f32 0.0, %v3795
        %3797 = vmatprep.mubr.bf16.mxu0 0
        %3798 = vmatmul.mubr.bf16.gmra.mrb[0].mxu0 %v3635
        %v3799 = vpop.f32.mrb[0].mxu0
        %v3800 = vadd.f32 0.0, %v3799
        %v3801 = vpop.f32.mrb[0].mxu0
        %v3802 = vadd.f32 0.0, %v3801
        %v3803 = vpop.f32.mrb[0].mxu0
        %v3804 = vadd.f32 0.0, %v3803
        %v3805 = vpop.f32.mrb[0].mxu0
        %v3806 = vadd.f32 0.0, %v3805
        %3807 = vmatprep.mubr.bf16.mxu0 0
        %3808 = vmatmul.mubr.bf16.gmra.mrb[0].mxu0 %v3636
        %v3809 = vpop.f32.mrb[0].mxu0
        %v3810 = vadd.f32 0.0, %v3809
        %v3811 = vpop.f32.mrb[0].mxu0
        %v3812 = vadd.f32 0.0, %v3811
        %v3813 = vpop.f32.mrb[0].mxu0
        %v3814 = vadd.f32 0.0, %v3813
        %v3815 = vpop.f32.mrb[0].mxu0
        %v3816 = vadd.f32 0.0, %v3815
        %3817 = vmatprep.mubr.bf16.mxu0 0
        %3818 = vmatmul.mubr.bf16.gmra.mrb[0].mxu0 %v3637
        %v3819 = vpop.f32.mrb[0].mxu0
        %v3820 = vadd.f32 0.0, %v3819
        %v3821 = vpop.f32.mrb[0].mxu0
        %v3822 = vadd.f32 0.0, %v3821
        %v3823 = vpop.f32.mrb[0].mxu0
        %v3824 = vadd.f32 0.0, %v3823
        %v3825 = vpop.f32.mrb[0].mxu0
        %v3826 = vadd.f32 0.0, %v3825
        %3827 = vmatprep.mubr.bf16.mxu0 0
        %3828 = vmatmul.mubr.bf16.gmra.mrb[0].mxu0 %v3638
        %v3829 = vpop.f32.mrb[0].mxu0
        %v3830 = vadd.f32 0.0, %v3829
        %v3831 = vpop.f32.mrb[0].mxu0
        %v3832 = vadd.f32 0.0, %v3831
        %v3833 = vpop.f32.mrb[0].mxu0
        %v3834 = vadd.f32 0.0, %v3833
        %v3835 = vpop.f32.mrb[0].mxu0
        %v3836 = vadd.f32 0.0, %v3835
        %3837 = vmatprep.mubr.bf16.mxu0 0
        %3838 = vmatmul.mubr.bf16.gmra.mrb[0].mxu0 %v3639
        %v3839 = vpop.f32.mrb[0].mxu0
        %v3840 = vadd.f32 0.0, %v3839
        %v3841 = vpop.f32.mrb[0].mxu0
        %v3842 = vadd.f32 0.0, %v3841
        %v3843 = vpop.f32.mrb[0].mxu0
        %v3844 = vadd.f32 0.0, %v3843
        %v3845 = vpop.f32.mrb[0].mxu0
        %v3846 = vadd.f32 0.0, %v3845
        %3847 = vmatprep.mubr.bf16.mxu0 0
        %3848 = vmatmul.mubr.bf16.gmra.mrb[0].mxu0 %v3640
        %v3849 = vpop.f32.mrb[0].mxu0
        %v3850 = vadd.f32 0.0, %v3849
        %v3851 = vpop.f32.mrb[0].mxu0
        %v3852 = vadd.f32 0.0, %v3851
        %v3853 = vpop.f32.mrb[0].mxu0
        %v3854 = vadd.f32 0.0, %v3853
        %v3855 = vpop.f32.mrb[0].mxu0
        %v3856 = vadd.f32 0.0, %v3855
        %3857 = vmatprep.mubr.bf16.mxu0 0
        %3858 = vmatmul.mubr.bf16.gmra.mrb[0].mxu0 %v3641
        %v3859 = vpop.f32.mrb[0].mxu0
        %v3860 = vadd.f32 0.0, %v3859
        %v3861 = vpop.f32.mrb[0].mxu0
        %v3862 = vadd.f32 0.0, %v3861
        %v3863 = vpop.f32.mrb[0].mxu0
        %v3864 = vadd.f32 0.0, %v3863
        %v3865 = vpop.f32.mrb[0].mxu0
        %v3866 = vadd.f32 0.0, %v3865
        %3867 = vmatprep.mubr.bf16.mxu0 0
        %3868 = vmatmul.mubr.bf16.gmra.mrb[0].mxu0 %v3642
        %v3869 = vpop.f32.mrb[0].mxu0
        %v3870 = vadd.f32 0.0, %v3869
        %v3871 = vpop.f32.mrb[0].mxu0
        %v3872 = vadd.f32 0.0, %v3871
        %v3873 = vpop.f32.mrb[0].mxu0
        %v3874 = vadd.f32 0.0, %v3873
        %v3875 = vpop.f32.mrb[0].mxu0
        %v3876 = vadd.f32 0.0, %v3875
        %3877 = vmatprep.mubr.bf16.mxu0 0
        %3878 = vmatmul.mubr.bf16.gmra.mrb[0].mxu0 %v3643
        %v3879 = vpop.f32.mrb[0].mxu0
        %v3880 = vadd.f32 0.0, %v3879
        %v3881 = vpop.f32.mrb[0].mxu0
        %v3882 = vadd.f32 0.0, %v3881
        %v3883 = vpop.f32.mrb[0].mxu0
        %v3884 = vadd.f32 0.0, %v3883
        %v3885 = vpop.f32.mrb[0].mxu0
        %v3886 = vadd.f32 0.0, %v3885
        %3887 = vmatprep.mubr.bf16.mxu0 0
        %3888 = vmatmul.mubr.bf16.gmra.mrb[0].mxu0 %v3644
        %v3889 = vpop.f32.mrb[0].mxu0
        %v3890 = vadd.f32 0.0, %v3889
        %v3891 = vpop.f32.mrb[0].mxu0
        %v3892 = vadd.f32 0.0, %v3891
        %v3893 = vpop.f32.mrb[0].mxu0
        %v3894 = vadd.f32 0.0, %v3893
        %v3895 = vpop.f32.mrb[0].mxu0
        %v3896 = vadd.f32 0.0, %v3895
        %3897 = vmatprep.mubr.bf16.mxu0 0
        %3898 = vmatmul.mubr.bf16.gmra.mrb[0].mxu0 %v3645
        %v3899 = vpop.f32.mrb[0].mxu0
        %v3900 = vadd.f32 0.0, %v3899
        %v3901 = vpop.f32.mrb[0].mxu0
        %v3902 = vadd.f32 0.0, %v3901
        %v3903 = vpop.f32.mrb[0].mxu0
        %v3904 = vadd.f32 0.0, %v3903
        %v3905 = vpop.f32.mrb[0].mxu0
        %v3906 = vadd.f32 0.0, %v3905
        %3907 = vmatprep.mubr.bf16.mxu0 0
        %3908 = vmatmul.mubr.bf16.gmra.mrb[0].mxu0 %v3646
        %v3909 = vpop.f32.mrb[0].mxu0
        %v3910 = vadd.f32 0.0, %v3909
        %v3911 = vpop.f32.mrb[0].mxu0
        %v3912 = vadd.f32 0.0, %v3911
        %v3913 = vpop.f32.mrb[0].mxu0
        %v3914 = vadd.f32 0.0, %v3913
        %v3915 = vpop.f32.mrb[0].mxu0
        %v3916 = vadd.f32 0.0, %v3915
        %3917 = vmatprep.mubr.bf16.mxu0 0
        %3918 = vmatmul.mubr.bf16.gmra.mrb[0].mxu0 %v3647
        %v3919 = vpop.f32.mrb[0].mxu0
        %v3920 = vadd.f32 0.0, %v3919
        %v3921 = vpop.f32.mrb[0].mxu0
        %v3922 = vadd.f32 0.0, %v3921
        %v3923 = vpop.f32.mrb[0].mxu0
        %v3924 = vadd.f32 0.0, %v3923
        %v3925 = vpop.f32.mrb[0].mxu0
        %v3926 = vadd.f32 0.0, %v3925
        %3927 = vmatprep.mubr.bf16.mxu0 0
        %3928 = vmatmul.mubr.bf16.gmra.mrb[0].mxu0 %v3648
        %v3929 = vpop.f32.mrb[0].mxu0
        %v3930 = vadd.f32 0.0, %v3929
        %v3931 = vpop.f32.mrb[0].mxu0
        %v3932 = vadd.f32 0.0, %v3931
        %v3933 = vpop.f32.mrb[0].mxu0
        %v3934 = vadd.f32 0.0, %v3933
        %v3935 = vpop.f32.mrb[0].mxu0
        %v3936 = vadd.f32 0.0, %v3935
        %3937 = vdwg.mxu0
        %v3938 = vadd.f32 %v3344, %v3780
        %v3939 = vadd.f32 %v3345, %v3782
        %v3940 = vadd.f32 %v3346, %v3784
        %v3941 = vadd.f32 %v3347, %v3786
        %v3942 = vadd.f32 %v3348, %v3790
        %v3943 = vadd.f32 %v3349, %v3792
        %v3944 = vadd.f32 %v3350, %v3794
        %v3945 = vadd.f32 %v3351, %v3796
        %v3946 = vadd.f32 %v3352, %v3800
        %v3947 = vadd.f32 %v3353, %v3802
        %v3948 = vadd.f32 %v3354, %v3804
        %v3949 = vadd.f32 %v3355, %v3806
        %v3950 = vadd.f32 %v3356, %v3810
        %v3951 = vadd.f32 %v3357, %v3812
        %v3952 = vadd.f32 %v3358, %v3814
        %v3953 = vadd.f32 %v3359, %v3816
        %v3954 = vadd.f32 %v3360, %v3820
        %v3955 = vadd.f32 %v3361, %v3822
        %v3956 = vadd.f32 %v3362, %v3824
        %v3957 = vadd.f32 %v3363, %v3826
        %v3958 = vadd.f32 %v3364, %v3830
        %v3959 = vadd.f32 %v3365, %v3832
        %v3960 = vadd.f32 %v3366, %v3834
        %v3961 = vadd.f32 %v3367, %v3836
        %v3962 = vadd.f32 %v3368, %v3840
        %v3963 = vadd.f32 %v3369, %v3842
        %v3964 = vadd.f32 %v3370, %v3844
        %v3965 = vadd.f32 %v3371, %v3846
        %v3966 = vadd.f32 %v3372, %v3850
        %v3967 = vadd.f32 %v3373, %v3852
        %v3968 = vadd.f32 %v3374, %v3854
        %v3969 = vadd.f32 %v3375, %v3856
        %v3970 = vadd.f32 %v3376, %v3860
        %v3971 = vadd.f32 %v3377, %v3862
        %v3972 = vadd.f32 %v3378, %v3864
        %v3973 = vadd.f32 %v3379, %v3866
        %v3974 = vadd.f32 %v3380, %v3870
        %v3975 = vadd.f32 %v3381, %v3872
        %v3976 = vadd.f32 %v3382, %v3874
        %v3977 = vadd.f32 %v3383, %v3876
        %v3978 = vadd.f32 %v3384, %v3880
        %v3979 = vadd.f32 %v3385, %v3882
        %v3980 = vadd.f32 %v3386, %v3884
        %v3981 = vadd.f32 %v3387, %v3886
        %v3982 = vadd.f32 %v3388, %v3890
        %v3983 = vadd.f32 %v3389, %v3892
        %v3984 = vadd.f32 %v3390, %v3894
        %v3985 = vadd.f32 %v3391, %v3896
        %v3986 = vadd.f32 %v3392, %v3900
        %v3987 = vadd.f32 %v3393, %v3902
        %v3988 = vadd.f32 %v3394, %v3904
        %v3989 = vadd.f32 %v3395, %v3906
        %v3990 = vadd.f32 %v3396, %v3910
        %v3991 = vadd.f32 %v3397, %v3912
        %v3992 = vadd.f32 %v3398, %v3914
        %v3993 = vadd.f32 %v3399, %v3916
        %v3994 = vadd.f32 %v3400, %v3920
        %v3995 = vadd.f32 %v3401, %v3922
        %v3996 = vadd.f32 %v3402, %v3924
        %v3997 = vadd.f32 %v3403, %v3926
        %v3998 = vadd.f32 %v3404, %v3930
        %v3999 = vadd.f32 %v3405, %v3932
        %v4000 = vadd.f32 %v3406, %v3934
        %v4001 = vadd.f32 %v3407, %v3936
        %s4002 = scalar_lea.vmem %s242, 24
        %v4003 = vld [vmem:[%s4002] sm:$0xf]
        %v4004 = vld [vmem:[%s4002 + $0x4] sm:$0xf]
        %v4005 = vld [vmem:[%s4002 + $0xc] sm:$0xf]
        %v4006 = vld [vmem:[%s4002 + $0x10] sm:$0xf]
        %v4007 = vld [vmem:[%s4002 + $0x18] sm:$0xf]
        %v4008 = vld [vmem:[%s4002 + $0x1c] sm:$0xf]
        %v4009 = vld [vmem:[%s4002 + $0x24] sm:$0xf]
        %v4010 = vld [vmem:[%s4002 + $0x28] sm:$0xf]
        %v4011 = vld [vmem:[%s4002 + $0x30] sm:$0xf]
        %v4012 = vld [vmem:[%s4002 + $0x34] sm:$0xf]
        %v4013 = vld [vmem:[%s4002 + $0x3c] sm:$0xf]
        %v4014 = vld [vmem:[%s4002 + $0x40] sm:$0xf]
        %v4015 = vld [vmem:[%s4002 + $0x48] sm:$0xf]
        %v4016 = vld [vmem:[%s4002 + $0x4c] sm:$0xf]
        %v4017 = vld [vmem:[%s4002 + $0x54] sm:$0xf]
        %v4018 = vld [vmem:[%s4002 + $0x58] sm:$0xf]
        %v4019 = vld [vmem:[%s4002 + $0x60] sm:$0xf]
        %v4020 = vld [vmem:[%s4002 + $0x64] sm:$0xf]
        %v4021 = vld [vmem:[%s4002 + $0x6c] sm:$0xf]
        %v4022 = vld [vmem:[%s4002 + $0x70] sm:$0xf]
        %v4023 = vld [vmem:[%s4002 + $0x78] sm:$0xf]
        %v4024 = vld [vmem:[%s4002 + $0x7c] sm:$0xf]
        %v4025 = vld [vmem:[%s4002 + $0x84] sm:$0xf]
        %v4026 = vld [vmem:[%s4002 + $0x88] sm:$0xf]
        %v4027 = vld [vmem:[%s4002 + $0x90] sm:$0xf]
        %v4028 = vld [vmem:[%s4002 + $0x94] sm:$0xf]
        %v4029 = vld [vmem:[%s4002 + $0x9c] sm:$0xf]
        %v4030 = vld [vmem:[%s4002 + $0xa0] sm:$0xf]
        %v4031 = vld [vmem:[%s4002 + $0xa8] sm:$0xf]
        %v4032 = vld [vmem:[%s4002 + $0xac] sm:$0xf]
        %v4033 = vld [vmem:[%s4002 + $0xb4] sm:$0xf]
        %v4034 = vld [vmem:[%s4002 + $0xb8] sm:$0xf]
        %s4035 = scalar_lea.vmem [#allocation2], 768
        %v4036 = vld [vmem:[%s4035] sm:$0xff]
        %v4037 = vld [vmem:[%s4035 + $0x8] sm:$0xff]
        %v4038 = vld [vmem:[%s4035 + $0x10] sm:$0xff]
        %v4039 = vld [vmem:[%s4035 + $0x18] sm:$0xff]
        %v4040 = vld [vmem:[%s4035 + $0x20] sm:$0xff]
        %v4041 = vld [vmem:[%s4035 + $0x28] sm:$0xff]
        %v4042 = vld [vmem:[%s4035 + $0x30] sm:$0xff]
        %v4043 = vld [vmem:[%s4035 + $0x38] sm:$0xff]
        %v4044 = vld [vmem:[%s4035 + $0x40] sm:$0xff]
        %v4045 = vld [vmem:[%s4035 + $0x48] sm:$0xff]
        %v4046 = vld [vmem:[%s4035 + $0x50] sm:$0xff]
        %v4047 = vld [vmem:[%s4035 + $0x58] sm:$0xff]
        %v4048 = vld [vmem:[%s4035 + $0x60] sm:$0xff]
        %v4049 = vld [vmem:[%s4035 + $0x68] sm:$0xff]
        %v4050 = vld [vmem:[%s4035 + $0x70] sm:$0xff]
        %v4051 = vld [vmem:[%s4035 + $0x78] sm:$0xff]
        %v4084 = vunpack.c.l.b16 %v4003
        %v4085 = vunpack.c.l.b16 %v4004
        %v4086 = vunpack.c.l.b16 %v4005
        %v4087 = vunpack.c.l.b16 %v4006
        %v4088 = vunpack.c.l.b16 %v4007
        %v4089 = vunpack.c.l.b16 %v4008
        %v4090 = vunpack.c.l.b16 %v4009
        %v4091 = vunpack.c.l.b16 %v4010
        %v4092 = vunpack.c.l.b16 %v4011
        %v4093 = vunpack.c.l.b16 %v4012
        %v4094 = vunpack.c.l.b16 %v4013
        %v4095 = vunpack.c.l.b16 %v4014
        %v4096 = vunpack.c.l.b16 %v4015
        %v4097 = vunpack.c.l.b16 %v4016
        %v4098 = vunpack.c.l.b16 %v4017
        %v4099 = vunpack.c.l.b16 %v4018
        %v4100 = vunpack.c.l.b16 %v4019
        %v4101 = vunpack.c.l.b16 %v4020
        %v4102 = vunpack.c.l.b16 %v4021
        %v4103 = vunpack.c.l.b16 %v4022
        %v4104 = vunpack.c.l.b16 %v4023
        %v4105 = vunpack.c.l.b16 %v4024
        %v4106 = vunpack.c.l.b16 %v4025
        %v4107 = vunpack.c.l.b16 %v4026
        %v4108 = vunpack.c.l.b16 %v4027
        %v4109 = vunpack.c.l.b16 %v4028
        %v4110 = vunpack.c.l.b16 %v4029
        %v4111 = vunpack.c.l.b16 %v4030
        %v4112 = vunpack.c.l.b16 %v4031
        %v4113 = vunpack.c.l.b16 %v4032
        %v4114 = vunpack.c.l.b16 %v4033
        %v4115 = vunpack.c.l.b16 %v4034
        %v4116 = vpack.c.b16 %v4085, %v4084
        %v4117 = vpack.c.b16 %v4087, %v4086
        %v4118 = vpack.c.b16 %v4089, %v4088
        %v4119 = vpack.c.b16 %v4091, %v4090
        %v4120 = vpack.c.b16 %v4093, %v4092
        %v4121 = vpack.c.b16 %v4095, %v4094
        %v4122 = vpack.c.b16 %v4097, %v4096
        %v4123 = vpack.c.b16 %v4099, %v4098
        %v4124 = vpack.c.b16 %v4101, %v4100
        %v4125 = vpack.c.b16 %v4103, %v4102
        %v4126 = vpack.c.b16 %v4105, %v4104
        %v4127 = vpack.c.b16 %v4107, %v4106
        %v4128 = vpack.c.b16 %v4109, %v4108
        %v4129 = vpack.c.b16 %v4111, %v4110
        %v4130 = vpack.c.b16 %v4113, %v4112
        %v4131 = vpack.c.b16 %v4115, %v4114
        %v4164 = vunpack.c.l.b16 %v4036
        %v4165 = vunpack.c.h.b16 %v4036
        %v4166 = vunpack.c.l.b16 %v4037
        %v4167 = vunpack.c.h.b16 %v4037
        %v4168 = vunpack.c.l.b16 %v4038
        %v4169 = vunpack.c.h.b16 %v4038
        %v4170 = vunpack.c.l.b16 %v4039
        %v4171 = vunpack.c.h.b16 %v4039
        %v4172 = vunpack.c.l.b16 %v4040
        %v4173 = vunpack.c.h.b16 %v4040
        %v4174 = vunpack.c.l.b16 %v4041
        %v4175 = vunpack.c.h.b16 %v4041
        %v4176 = vunpack.c.l.b16 %v4042
        %v4177 = vunpack.c.h.b16 %v4042
        %v4178 = vunpack.c.l.b16 %v4043
        %v4179 = vunpack.c.h.b16 %v4043
        %v4180 = vunpack.c.l.b16 %v4044
        %v4181 = vunpack.c.h.b16 %v4044
        %v4182 = vunpack.c.l.b16 %v4045
        %v4183 = vunpack.c.h.b16 %v4045
        %v4184 = vunpack.c.l.b16 %v4046
        %v4185 = vunpack.c.h.b16 %v4046
        %v4186 = vunpack.c.l.b16 %v4047
        %v4187 = vunpack.c.h.b16 %v4047
        %v4188 = vunpack.c.l.b16 %v4048
        %v4189 = vunpack.c.h.b16 %v4048
        %v4190 = vunpack.c.l.b16 %v4049
        %v4191 = vunpack.c.h.b16 %v4049
        %v4192 = vunpack.c.l.b16 %v4050
        %v4193 = vunpack.c.h.b16 %v4050
        %v4194 = vunpack.c.l.b16 %v4051
        %v4195 = vunpack.c.h.b16 %v4051
        %v4196 = vpack.c.b16 %v4166, %v4164
        %v4197 = vpack.c.b16 %v4167, %v4165
        %v4198 = vpack.c.b16 %v4170, %v4168
        %v4199 = vpack.c.b16 %v4171, %v4169
        %v4200 = vpack.c.b16 %v4174, %v4172
        %v4201 = vpack.c.b16 %v4175, %v4173
        %v4202 = vpack.c.b16 %v4178, %v4176
        %v4203 = vpack.c.b16 %v4179, %v4177
        %v4204 = vpack.c.b16 %v4182, %v4180
        %v4205 = vpack.c.b16 %v4183, %v4181
        %v4206 = vpack.c.b16 %v4186, %v4184
        %v4207 = vpack.c.b16 %v4187, %v4185
        %v4208 = vpack.c.b16 %v4190, %v4188
        %v4209 = vpack.c.b16 %v4191, %v4189
        %v4210 = vpack.c.b16 %v4194, %v4192
        %v4211 = vpack.c.b16 %v4195, %v4193
        %4228 = vmatprep.subr.bf16.mxu0 %v4197
        %4229 = vmatpush1.bf16.msra.mxu0 %v4196
        %4230 = vmatprep.subr.bf16.mxu0 %v4199
        %4231 = vmatpush1.bf16.msra.mxu0 %v4198
        %4232 = vmatprep.subr.bf16.mxu0 %v4201
        %4233 = vmatpush1.bf16.msra.mxu0 %v4200
        %4234 = vmatprep.subr.bf16.mxu0 %v4203
        %4235 = vmatpush1.bf16.msra.mxu0 %v4202
        %4236 = vmatprep.subr.bf16.mxu0 %v4205
        %4237 = vmatpush1.bf16.msra.mxu0 %v4204
        %4238 = vmatprep.subr.bf16.mxu0 %v4207
        %4239 = vmatpush1.bf16.msra.mxu0 %v4206
        %4240 = vmatprep.subr.bf16.mxu0 %v4209
        %4241 = vmatpush1.bf16.msra.mxu0 %v4208
        %4242 = vmatprep.subr.bf16.mxu0 %v4211
        %4243 = vmatpush1.bf16.msra.mxu0 %v4210
        %4244 = vmatprep.subr.bf16.mxu0 0
        %4245 = vmatpush1.bf16.msra.mxu0 0
        %4246 = vmatprep.subr.bf16.mxu0 0
        %4247 = vmatpush1.bf16.msra.mxu0 0
        %4248 = vmatprep.subr.bf16.mxu0 0
        %4249 = vmatpush1.bf16.msra.mxu0 0
        %4250 = vmatprep.subr.bf16.mxu0 0
        %4251 = vmatpush1.bf16.msra.mxu0 0
        %4252 = vmatprep.subr.bf16.mxu0 0
        %4253 = vmatpush1.bf16.msra.mxu0 0
        %4254 = vmatprep.subr.bf16.mxu0 0
        %4255 = vmatpush1.bf16.msra.mxu0 0
        %4256 = vmatprep.subr.bf16.mxu0 0
        %4257 = vmatpush1.bf16.msra.mxu0 0
        %4258 = vmatprep.subr.bf16.mxu0 0
        %4259 = vmatpush1.bf16.msra.mxu0 0
        %4260 = vmatprep.mubr.bf16.mxu0 0
        %4261 = vmatmul.mubr.bf16.gmra.mrb[0].mxu0 %v4116
        %v4262 = vpop.f32.mrb[0].mxu0
        %v4263 = vadd.f32 0.0, %v4262
        %v4264 = vpop.f32.mrb[0].mxu0
        %v4265 = vadd.f32 0.0, %v4264
        %v4266 = vpop.f32.mrb[0].mxu0
        %v4267 = vadd.f32 0.0, %v4266
        %v4268 = vpop.f32.mrb[0].mxu0
        %v4269 = vadd.f32 0.0, %v4268
        %4270 = vmatprep.mubr.bf16.mxu0 0
        %4271 = vmatmul.mubr.bf16.gmra.mrb[0].mxu0 %v4117
        %v4272 = vpop.f32.mrb[0].mxu0
        %v4273 = vadd.f32 0.0, %v4272
        %v4274 = vpop.f32.mrb[0].mxu0
        %v4275 = vadd.f32 0.0, %v4274
        %v4276 = vpop.f32.mrb[0].mxu0
        %v4277 = vadd.f32 0.0, %v4276
        %v4278 = vpop.f32.mrb[0].mxu0
        %v4279 = vadd.f32 0.0, %v4278
        %4280 = vmatprep.mubr.bf16.mxu0 0
        %4281 = vmatmul.mubr.bf16.gmra.mrb[0].mxu0 %v4118
        %v4282 = vpop.f32.mrb[0].mxu0
        %v4283 = vadd.f32 0.0, %v4282
        %v4284 = vpop.f32.mrb[0].mxu0
        %v4285 = vadd.f32 0.0, %v4284
        %v4286 = vpop.f32.mrb[0].mxu0
        %v4287 = vadd.f32 0.0, %v4286
        %v4288 = vpop.f32.mrb[0].mxu0
        %v4289 = vadd.f32 0.0, %v4288
        %4290 = vmatprep.mubr.bf16.mxu0 0
        %4291 = vmatmul.mubr.bf16.gmra.mrb[0].mxu0 %v4119
        %v4292 = vpop.f32.mrb[0].mxu0
        %v4293 = vadd.f32 0.0, %v4292
        %v4294 = vpop.f32.mrb[0].mxu0
        %v4295 = vadd.f32 0.0, %v4294
        %v4296 = vpop.f32.mrb[0].mxu0
        %v4297 = vadd.f32 0.0, %v4296
        %v4298 = vpop.f32.mrb[0].mxu0
        %v4299 = vadd.f32 0.0, %v4298
        %4300 = vmatprep.mubr.bf16.mxu0 0
        %4301 = vmatmul.mubr.bf16.gmra.mrb[0].mxu0 %v4120
        %v4302 = vpop.f32.mrb[0].mxu0
        %v4303 = vadd.f32 0.0, %v4302
        %v4304 = vpop.f32.mrb[0].mxu0
        %v4305 = vadd.f32 0.0, %v4304
        %v4306 = vpop.f32.mrb[0].mxu0
        %v4307 = vadd.f32 0.0, %v4306
        %v4308 = vpop.f32.mrb[0].mxu0
        %v4309 = vadd.f32 0.0, %v4308
        %4310 = vmatprep.mubr.bf16.mxu0 0
        %4311 = vmatmul.mubr.bf16.gmra.mrb[0].mxu0 %v4121
        %v4312 = vpop.f32.mrb[0].mxu0
        %v4313 = vadd.f32 0.0, %v4312
        %v4314 = vpop.f32.mrb[0].mxu0
        %v4315 = vadd.f32 0.0, %v4314
        %v4316 = vpop.f32.mrb[0].mxu0
        %v4317 = vadd.f32 0.0, %v4316
        %v4318 = vpop.f32.mrb[0].mxu0
        %v4319 = vadd.f32 0.0, %v4318
        %4320 = vmatprep.mubr.bf16.mxu0 0
        %4321 = vmatmul.mubr.bf16.gmra.mrb[0].mxu0 %v4122
        %v4322 = vpop.f32.mrb[0].mxu0
        %v4323 = vadd.f32 0.0, %v4322
        %v4324 = vpop.f32.mrb[0].mxu0
        %v4325 = vadd.f32 0.0, %v4324
        %v4326 = vpop.f32.mrb[0].mxu0
        %v4327 = vadd.f32 0.0, %v4326
        %v4328 = vpop.f32.mrb[0].mxu0
        %v4329 = vadd.f32 0.0, %v4328
        %4330 = vmatprep.mubr.bf16.mxu0 0
        %4331 = vmatmul.mubr.bf16.gmra.mrb[0].mxu0 %v4123
        %v4332 = vpop.f32.mrb[0].mxu0
        %v4333 = vadd.f32 0.0, %v4332
        %v4334 = vpop.f32.mrb[0].mxu0
        %v4335 = vadd.f32 0.0, %v4334
        %v4336 = vpop.f32.mrb[0].mxu0
        %v4337 = vadd.f32 0.0, %v4336
        %v4338 = vpop.f32.mrb[0].mxu0
        %v4339 = vadd.f32 0.0, %v4338
        %4340 = vmatprep.mubr.bf16.mxu0 0
        %4341 = vmatmul.mubr.bf16.gmra.mrb[0].mxu0 %v4124
        %v4342 = vpop.f32.mrb[0].mxu0
        %v4343 = vadd.f32 0.0, %v4342
        %v4344 = vpop.f32.mrb[0].mxu0
        %v4345 = vadd.f32 0.0, %v4344
        %v4346 = vpop.f32.mrb[0].mxu0
        %v4347 = vadd.f32 0.0, %v4346
        %v4348 = vpop.f32.mrb[0].mxu0
        %v4349 = vadd.f32 0.0, %v4348
        %4350 = vmatprep.mubr.bf16.mxu0 0
        %4351 = vmatmul.mubr.bf16.gmra.mrb[0].mxu0 %v4125
        %v4352 = vpop.f32.mrb[0].mxu0
        %v4353 = vadd.f32 0.0, %v4352
        %v4354 = vpop.f32.mrb[0].mxu0
        %v4355 = vadd.f32 0.0, %v4354
        %v4356 = vpop.f32.mrb[0].mxu0
        %v4357 = vadd.f32 0.0, %v4356
        %v4358 = vpop.f32.mrb[0].mxu0
        %v4359 = vadd.f32 0.0, %v4358
        %4360 = vmatprep.mubr.bf16.mxu0 0
        %4361 = vmatmul.mubr.bf16.gmra.mrb[0].mxu0 %v4126
        %v4362 = vpop.f32.mrb[0].mxu0
        %v4363 = vadd.f32 0.0, %v4362
        %v4364 = vpop.f32.mrb[0].mxu0
        %v4365 = vadd.f32 0.0, %v4364
        %v4366 = vpop.f32.mrb[0].mxu0
        %v4367 = vadd.f32 0.0, %v4366
        %v4368 = vpop.f32.mrb[0].mxu0
        %v4369 = vadd.f32 0.0, %v4368
        %4370 = vmatprep.mubr.bf16.mxu0 0
        %4371 = vmatmul.mubr.bf16.gmra.mrb[0].mxu0 %v4127
        %v4372 = vpop.f32.mrb[0].mxu0
        %v4373 = vadd.f32 0.0, %v4372
        %v4374 = vpop.f32.mrb[0].mxu0
        %v4375 = vadd.f32 0.0, %v4374
        %v4376 = vpop.f32.mrb[0].mxu0
        %v4377 = vadd.f32 0.0, %v4376
        %v4378 = vpop.f32.mrb[0].mxu0
        %v4379 = vadd.f32 0.0, %v4378
        %4380 = vmatprep.mubr.bf16.mxu0 0
        %4381 = vmatmul.mubr.bf16.gmra.mrb[0].mxu0 %v4128
        %v4382 = vpop.f32.mrb[0].mxu0
        %v4383 = vadd.f32 0.0, %v4382
        %v4384 = vpop.f32.mrb[0].mxu0
        %v4385 = vadd.f32 0.0, %v4384
        %v4386 = vpop.f32.mrb[0].mxu0
        %v4387 = vadd.f32 0.0, %v4386
        %v4388 = vpop.f32.mrb[0].mxu0
        %v4389 = vadd.f32 0.0, %v4388
        %4390 = vmatprep.mubr.bf16.mxu0 0
        %4391 = vmatmul.mubr.bf16.gmra.mrb[0].mxu0 %v4129
        %v4392 = vpop.f32.mrb[0].mxu0
        %v4393 = vadd.f32 0.0, %v4392
        %v4394 = vpop.f32.mrb[0].mxu0
        %v4395 = vadd.f32 0.0, %v4394
        %v4396 = vpop.f32.mrb[0].mxu0
        %v4397 = vadd.f32 0.0, %v4396
        %v4398 = vpop.f32.mrb[0].mxu0
        %v4399 = vadd.f32 0.0, %v4398
        %4400 = vmatprep.mubr.bf16.mxu0 0
        %4401 = vmatmul.mubr.bf16.gmra.mrb[0].mxu0 %v4130
        %v4402 = vpop.f32.mrb[0].mxu0
        %v4403 = vadd.f32 0.0, %v4402
        %v4404 = vpop.f32.mrb[0].mxu0
        %v4405 = vadd.f32 0.0, %v4404
        %v4406 = vpop.f32.mrb[0].mxu0
        %v4407 = vadd.f32 0.0, %v4406
        %v4408 = vpop.f32.mrb[0].mxu0
        %v4409 = vadd.f32 0.0, %v4408
        %4410 = vmatprep.mubr.bf16.mxu0 0
        %4411 = vmatmul.mubr.bf16.gmra.mrb[0].mxu0 %v4131
        %v4412 = vpop.f32.mrb[0].mxu0
        %v4413 = vadd.f32 0.0, %v4412
        %v4414 = vpop.f32.mrb[0].mxu0
        %v4415 = vadd.f32 0.0, %v4414
        %v4416 = vpop.f32.mrb[0].mxu0
        %v4417 = vadd.f32 0.0, %v4416
        %v4418 = vpop.f32.mrb[0].mxu0
        %v4419 = vadd.f32 0.0, %v4418
        %4420 = vdwg.mxu0
        %v4421 = vadd.f32 %v3938, %v4263
        %v4422 = vadd.f32 %v3939, %v4265
        %v4423 = vadd.f32 %v3940, %v4267
        %v4424 = vadd.f32 %v3941, %v4269
        %v4425 = vadd.f32 %v3942, %v4273
        %v4426 = vadd.f32 %v3943, %v4275
        %v4427 = vadd.f32 %v3944, %v4277
        %v4428 = vadd.f32 %v3945, %v4279
        %v4429 = vadd.f32 %v3946, %v4283
        %v4430 = vadd.f32 %v3947, %v4285
        %v4431 = vadd.f32 %v3948, %v4287
        %v4432 = vadd.f32 %v3949, %v4289
        %v4433 = vadd.f32 %v3950, %v4293
        %v4434 = vadd.f32 %v3951, %v4295
        %v4435 = vadd.f32 %v3952, %v4297
        %v4436 = vadd.f32 %v3953, %v4299
        %v4437 = vadd.f32 %v3954, %v4303
        %v4438 = vadd.f32 %v3955, %v4305
        %v4439 = vadd.f32 %v3956, %v4307
        %v4440 = vadd.f32 %v3957, %v4309
        %v4441 = vadd.f32 %v3958, %v4313
        %v4442 = vadd.f32 %v3959, %v4315
        %v4443 = vadd.f32 %v3960, %v4317
        %v4444 = vadd.f32 %v3961, %v4319
        %v4445 = vadd.f32 %v3962, %v4323
        %v4446 = vadd.f32 %v3963, %v4325
        %v4447 = vadd.f32 %v3964, %v4327
        %v4448 = vadd.f32 %v3965, %v4329
        %v4449 = vadd.f32 %v3966, %v4333
        %v4450 = vadd.f32 %v3967, %v4335
        %v4451 = vadd.f32 %v3968, %v4337
        %v4452 = vadd.f32 %v3969, %v4339
        %v4453 = vadd.f32 %v3970, %v4343
        %v4454 = vadd.f32 %v3971, %v4345
        %v4455 = vadd.f32 %v3972, %v4347
        %v4456 = vadd.f32 %v3973, %v4349
        %v4457 = vadd.f32 %v3974, %v4353
        %v4458 = vadd.f32 %v3975, %v4355
        %v4459 = vadd.f32 %v3976, %v4357
        %v4460 = vadd.f32 %v3977, %v4359
        %v4461 = vadd.f32 %v3978, %v4363
        %v4462 = vadd.f32 %v3979, %v4365
        %v4463 = vadd.f32 %v3980, %v4367
        %v4464 = vadd.f32 %v3981, %v4369
        %v4465 = vadd.f32 %v3982, %v4373
        %v4466 = vadd.f32 %v3983, %v4375
        %v4467 = vadd.f32 %v3984, %v4377
        %v4468 = vadd.f32 %v3985, %v4379
        %v4469 = vadd.f32 %v3986, %v4383
        %v4470 = vadd.f32 %v3987, %v4385
        %v4471 = vadd.f32 %v3988, %v4387
        %v4472 = vadd.f32 %v3989, %v4389
        %v4473 = vadd.f32 %v3990, %v4393
        %v4474 = vadd.f32 %v3991, %v4395
        %v4475 = vadd.f32 %v3992, %v4397
        %v4476 = vadd.f32 %v3993, %v4399
        %v4477 = vadd.f32 %v3994, %v4403
        %v4478 = vadd.f32 %v3995, %v4405
        %v4479 = vadd.f32 %v3996, %v4407
        %v4480 = vadd.f32 %v3997, %v4409
        %v4481 = vadd.f32 %v3998, %v4413
        %v4482 = vadd.f32 %v3999, %v4415
        %v4483 = vadd.f32 %v4000, %v4417
        %v4484 = vadd.f32 %v4001, %v4419
        %v4485 = vld [vmem:[%s4002] sm:$0xf]
        %v4486 = vld [vmem:[%s4002 + $0x4] sm:$0xf]
        %v4487 = vld [vmem:[%s4002 + $0x8] sm:$0x1]
        %v4488 = vld [vmem:[%s4002 + $0xc] sm:$0xf]
        %v4489 = vld [vmem:[%s4002 + $0x10] sm:$0xf]
        %v4490 = vld [vmem:[%s4002 + $0x14] sm:$0x1]
        %v4491 = vld [vmem:[%s4002 + $0x18] sm:$0xf]
        %v4492 = vld [vmem:[%s4002 + $0x1c] sm:$0xf]
        %v4493 = vld [vmem:[%s4002 + $0x20] sm:$0x1]
        %v4494 = vld [vmem:[%s4002 + $0x24] sm:$0xf]
        %v4495 = vld [vmem:[%s4002 + $0x28] sm:$0xf]
        %v4496 = vld [vmem:[%s4002 + $0x2c] sm:$0x1]
        %v4497 = vld [vmem:[%s4002 + $0x30] sm:$0xf]
        %v4498 = vld [vmem:[%s4002 + $0x34] sm:$0xf]
        %v4499 = vld [vmem:[%s4002 + $0x38] sm:$0x1]
        %v4500 = vld [vmem:[%s4002 + $0x3c] sm:$0xf]
        %v4501 = vld [vmem:[%s4002 + $0x40] sm:$0xf]
        %v4502 = vld [vmem:[%s4002 + $0x44] sm:$0x1]
        %v4503 = vld [vmem:[%s4002 + $0x48] sm:$0xf]
        %v4504 = vld [vmem:[%s4002 + $0x4c] sm:$0xf]
        %v4505 = vld [vmem:[%s4002 + $0x50] sm:$0x1]
        %v4506 = vld [vmem:[%s4002 + $0x54] sm:$0xf]
        %v4507 = vld [vmem:[%s4002 + $0x58] sm:$0xf]
        %v4508 = vld [vmem:[%s4002 + $0x5c] sm:$0x1]
        %v4509 = vld [vmem:[%s4002 + $0x60] sm:$0xf]
        %v4510 = vld [vmem:[%s4002 + $0x64] sm:$0xf]
        %v4511 = vld [vmem:[%s4002 + $0x68] sm:$0x1]
        %v4512 = vld [vmem:[%s4002 + $0x6c] sm:$0xf]
        %v4513 = vld [vmem:[%s4002 + $0x70] sm:$0xf]
        %v4514 = vld [vmem:[%s4002 + $0x74] sm:$0x1]
        %v4515 = vld [vmem:[%s4002 + $0x78] sm:$0xf]
        %v4516 = vld [vmem:[%s4002 + $0x7c] sm:$0xf]
        %v4517 = vld [vmem:[%s4002 + $0x80] sm:$0x1]
        %v4518 = vld [vmem:[%s4002 + $0x84] sm:$0xf]
        %v4519 = vld [vmem:[%s4002 + $0x88] sm:$0xf]
        %v4520 = vld [vmem:[%s4002 + $0x8c] sm:$0x1]
        %v4521 = vld [vmem:[%s4002 + $0x90] sm:$0xf]
        %v4522 = vld [vmem:[%s4002 + $0x94] sm:$0xf]
        %v4523 = vld [vmem:[%s4002 + $0x98] sm:$0x1]
        %v4524 = vld [vmem:[%s4002 + $0x9c] sm:$0xf]
        %v4525 = vld [vmem:[%s4002 + $0xa0] sm:$0xf]
        %v4526 = vld [vmem:[%s4002 + $0xa4] sm:$0x1]
        %v4527 = vld [vmem:[%s4002 + $0xa8] sm:$0xf]
        %v4528 = vld [vmem:[%s4002 + $0xac] sm:$0xf]
        %v4529 = vld [vmem:[%s4002 + $0xb0] sm:$0x1]
        %v4530 = vld [vmem:[%s4002 + $0xb4] sm:$0xf]
        %v4531 = vld [vmem:[%s4002 + $0xb8] sm:$0xf]
        %v4532 = vld [vmem:[%s4002 + $0xbc] sm:$0x1]
        %v4534 = vshrl.u32 %v4485, 16
        %v4536 = vrot.slane %v4534, 4
        %v4537 = vshll.u32 %v4485, 16
        %v4539 = vrot.slane %v4537, 5
        %v4540 = vor.u32 %v4536, %v4539
        %v4541 = vrot.slane %v4540, 4
        %v4543 = vshll.u32 %v4486, 16
        %v4545 = vrot.slane %v4543, 5
        %v4546 = vsel %vm386, %v4541, %v4545
        %v4547 = vshrl.u32 %v4486, 16
        %v4549 = vrot.slane %v4547, 4
        %v4550 = vor.u32 %v4549, %v4545
        %v4551 = vrot.slane %v4550, 4
        %v4553 = vshll.u32 %v4487, 16
        %v4555 = vrot.slane %v4553, 5
        %v4556 = vsel %vm386, %v4551, %v4555
        %v4558 = vshrl.u32 %v4488, 16
        %v4560 = vrot.slane %v4558, 4
        %v4561 = vshll.u32 %v4488, 16
        %v4563 = vrot.slane %v4561, 5
        %v4564 = vor.u32 %v4560, %v4563
        %v4565 = vrot.slane %v4564, 4
        %v4567 = vshll.u32 %v4489, 16
        %v4569 = vrot.slane %v4567, 5
        %v4570 = vsel %vm386, %v4565, %v4569
        %v4571 = vshrl.u32 %v4489, 16
        %v4573 = vrot.slane %v4571, 4
        %v4574 = vor.u32 %v4573, %v4569
        %v4575 = vrot.slane %v4574, 4
        %v4577 = vshll.u32 %v4490, 16
        %v4579 = vrot.slane %v4577, 5
        %v4580 = vsel %vm386, %v4575, %v4579
        %v4582 = vshrl.u32 %v4491, 16
        %v4584 = vrot.slane %v4582, 4
        %v4585 = vshll.u32 %v4491, 16
        %v4587 = vrot.slane %v4585, 5
        %v4588 = vor.u32 %v4584, %v4587
        %v4589 = vrot.slane %v4588, 4
        %v4591 = vshll.u32 %v4492, 16
        %v4593 = vrot.slane %v4591, 5
        %v4594 = vsel %vm386, %v4589, %v4593
        %v4595 = vshrl.u32 %v4492, 16
        %v4597 = vrot.slane %v4595, 4
        %v4598 = vor.u32 %v4597, %v4593
        %v4599 = vrot.slane %v4598, 4
        %v4601 = vshll.u32 %v4493, 16
        %v4603 = vrot.slane %v4601, 5
        %v4604 = vsel %vm386, %v4599, %v4603
        %v4606 = vshrl.u32 %v4494, 16
        %v4608 = vrot.slane %v4606, 4
        %v4609 = vshll.u32 %v4494, 16
        %v4611 = vrot.slane %v4609, 5
        %v4612 = vor.u32 %v4608, %v4611
        %v4613 = vrot.slane %v4612, 4
        %v4615 = vshll.u32 %v4495, 16
        %v4617 = vrot.slane %v4615, 5
        %v4618 = vsel %vm386, %v4613, %v4617
        %v4619 = vshrl.u32 %v4495, 16
        %v4621 = vrot.slane %v4619, 4
        %v4622 = vor.u32 %v4621, %v4617
        %v4623 = vrot.slane %v4622, 4
        %v4625 = vshll.u32 %v4496, 16
        %v4627 = vrot.slane %v4625, 5
        %v4628 = vsel %vm386, %v4623, %v4627
        %v4630 = vshrl.u32 %v4497, 16
        %v4632 = vrot.slane %v4630, 4
        %v4633 = vshll.u32 %v4497, 16
        %v4635 = vrot.slane %v4633, 5
        %v4636 = vor.u32 %v4632, %v4635
        %v4637 = vrot.slane %v4636, 4
        %v4639 = vshll.u32 %v4498, 16
        %v4641 = vrot.slane %v4639, 5
        %v4642 = vsel %vm386, %v4637, %v4641
        %v4643 = vshrl.u32 %v4498, 16
        %v4645 = vrot.slane %v4643, 4
        %v4646 = vor.u32 %v4645, %v4641
        %v4647 = vrot.slane %v4646, 4
        %v4649 = vshll.u32 %v4499, 16
        %v4651 = vrot.slane %v4649, 5
        %v4652 = vsel %vm386, %v4647, %v4651
        %v4654 = vshrl.u32 %v4500, 16
        %v4656 = vrot.slane %v4654, 4
        %v4657 = vshll.u32 %v4500, 16
        %v4659 = vrot.slane %v4657, 5
        %v4660 = vor.u32 %v4656, %v4659
        %v4661 = vrot.slane %v4660, 4
        %v4663 = vshll.u32 %v4501, 16
        %v4665 = vrot.slane %v4663, 5
        %v4666 = vsel %vm386, %v4661, %v4665
        %v4667 = vshrl.u32 %v4501, 16
        %v4669 = vrot.slane %v4667, 4
        %v4670 = vor.u32 %v4669, %v4665
        %v4671 = vrot.slane %v4670, 4
        %v4673 = vshll.u32 %v4502, 16
        %v4675 = vrot.slane %v4673, 5
        %v4676 = vsel %vm386, %v4671, %v4675
        %v4678 = vshrl.u32 %v4503, 16
        %v4680 = vrot.slane %v4678, 4
        %v4681 = vshll.u32 %v4503, 16
        %v4683 = vrot.slane %v4681, 5
        %v4684 = vor.u32 %v4680, %v4683
        %v4685 = vrot.slane %v4684, 4
        %v4687 = vshll.u32 %v4504, 16
        %v4689 = vrot.slane %v4687, 5
        %v4690 = vsel %vm386, %v4685, %v4689
        %v4691 = vshrl.u32 %v4504, 16
        %v4693 = vrot.slane %v4691, 4
        %v4694 = vor.u32 %v4693, %v4689
        %v4695 = vrot.slane %v4694, 4
        %v4697 = vshll.u32 %v4505, 16
        %v4699 = vrot.slane %v4697, 5
        %v4700 = vsel %vm386, %v4695, %v4699
        %v4702 = vshrl.u32 %v4506, 16
        %v4704 = vrot.slane %v4702, 4
        %v4705 = vshll.u32 %v4506, 16
        %v4707 = vrot.slane %v4705, 5
        %v4708 = vor.u32 %v4704, %v4707
        %v4709 = vrot.slane %v4708, 4
        %v4711 = vshll.u32 %v4507, 16
        %v4713 = vrot.slane %v4711, 5
        %v4714 = vsel %vm386, %v4709, %v4713
        %v4715 = vshrl.u32 %v4507, 16
        %v4717 = vrot.slane %v4715, 4
        %v4718 = vor.u32 %v4717, %v4713
        %v4719 = vrot.slane %v4718, 4
        %v4721 = vshll.u32 %v4508, 16
        %v4723 = vrot.slane %v4721, 5
        %v4724 = vsel %vm386, %v4719, %v4723
        %v4726 = vshrl.u32 %v4509, 16
        %v4728 = vrot.slane %v4726, 4
        %v4729 = vshll.u32 %v4509, 16
        %v4731 = vrot.slane %v4729, 5
        %v4732 = vor.u32 %v4728, %v4731
        %v4733 = vrot.slane %v4732, 4
        %v4735 = vshll.u32 %v4510, 16
        %v4737 = vrot.slane %v4735, 5
        %v4738 = vsel %vm386, %v4733, %v4737
        %v4739 = vshrl.u32 %v4510, 16
        %v4741 = vrot.slane %v4739, 4
        %v4742 = vor.u32 %v4741, %v4737
        %v4743 = vrot.slane %v4742, 4
        %v4745 = vshll.u32 %v4511, 16
        %v4747 = vrot.slane %v4745, 5
        %v4748 = vsel %vm386, %v4743, %v4747
        %v4750 = vshrl.u32 %v4512, 16
        %v4752 = vrot.slane %v4750, 4
        %v4753 = vshll.u32 %v4512, 16
        %v4755 = vrot.slane %v4753, 5
        %v4756 = vor.u32 %v4752, %v4755
        %v4757 = vrot.slane %v4756, 4
        %v4759 = vshll.u32 %v4513, 16
        %v4761 = vrot.slane %v4759, 5
        %v4762 = vsel %vm386, %v4757, %v4761
        %v4763 = vshrl.u32 %v4513, 16
        %v4765 = vrot.slane %v4763, 4
        %v4766 = vor.u32 %v4765, %v4761
        %v4767 = vrot.slane %v4766, 4
        %v4769 = vshll.u32 %v4514, 16
        %v4771 = vrot.slane %v4769, 5
        %v4772 = vsel %vm386, %v4767, %v4771
        %v4774 = vshrl.u32 %v4515, 16
        %v4776 = vrot.slane %v4774, 4
        %v4777 = vshll.u32 %v4515, 16
        %v4779 = vrot.slane %v4777, 5
        %v4780 = vor.u32 %v4776, %v4779
        %v4781 = vrot.slane %v4780, 4
        %v4783 = vshll.u32 %v4516, 16
        %v4785 = vrot.slane %v4783, 5
        %v4786 = vsel %vm386, %v4781, %v4785
        %v4787 = vshrl.u32 %v4516, 16
        %v4789 = vrot.slane %v4787, 4
        %v4790 = vor.u32 %v4789, %v4785
        %v4791 = vrot.slane %v4790, 4
        %v4793 = vshll.u32 %v4517, 16
        %v4795 = vrot.slane %v4793, 5
        %v4796 = vsel %vm386, %v4791, %v4795
        %v4798 = vshrl.u32 %v4518, 16
        %v4800 = vrot.slane %v4798, 4
        %v4801 = vshll.u32 %v4518, 16
        %v4803 = vrot.slane %v4801, 5
        %v4804 = vor.u32 %v4800, %v4803
        %v4805 = vrot.slane %v4804, 4
        %v4807 = vshll.u32 %v4519, 16
        %v4809 = vrot.slane %v4807, 5
        %v4810 = vsel %vm386, %v4805, %v4809
        %v4811 = vshrl.u32 %v4519, 16
        %v4813 = vrot.slane %v4811, 4
        %v4814 = vor.u32 %v4813, %v4809
        %v4815 = vrot.slane %v4814, 4
        %v4817 = vshll.u32 %v4520, 16
        %v4819 = vrot.slane %v4817, 5
        %v4820 = vsel %vm386, %v4815, %v4819
        %v4822 = vshrl.u32 %v4521, 16
        %v4824 = vrot.slane %v4822, 4
        %v4825 = vshll.u32 %v4521, 16
        %v4827 = vrot.slane %v4825, 5
        %v4828 = vor.u32 %v4824, %v4827
        %v4829 = vrot.slane %v4828, 4
        %v4831 = vshll.u32 %v4522, 16
        %v4833 = vrot.slane %v4831, 5
        %v4834 = vsel %vm386, %v4829, %v4833
        %v4835 = vshrl.u32 %v4522, 16
        %v4837 = vrot.slane %v4835, 4
        %v4838 = vor.u32 %v4837, %v4833
        %v4839 = vrot.slane %v4838, 4
        %v4841 = vshll.u32 %v4523, 16
        %v4843 = vrot.slane %v4841, 5
        %v4844 = vsel %vm386, %v4839, %v4843
        %v4846 = vshrl.u32 %v4524, 16
        %v4848 = vrot.slane %v4846, 4
        %v4849 = vshll.u32 %v4524, 16
        %v4851 = vrot.slane %v4849, 5
        %v4852 = vor.u32 %v4848, %v4851
        %v4853 = vrot.slane %v4852, 4
        %v4855 = vshll.u32 %v4525, 16
        %v4857 = vrot.slane %v4855, 5
        %v4858 = vsel %vm386, %v4853, %v4857
        %v4859 = vshrl.u32 %v4525, 16
        %v4861 = vrot.slane %v4859, 4
        %v4862 = vor.u32 %v4861, %v4857
        %v4863 = vrot.slane %v4862, 4
        %v4865 = vshll.u32 %v4526, 16
        %v4867 = vrot.slane %v4865, 5
        %v4868 = vsel %vm386, %v4863, %v4867
        %v4870 = vshrl.u32 %v4527, 16
        %v4872 = vrot.slane %v4870, 4
        %v4873 = vshll.u32 %v4527, 16
        %v4875 = vrot.slane %v4873, 5
        %v4876 = vor.u32 %v4872, %v4875
        %v4877 = vrot.slane %v4876, 4
        %v4879 = vshll.u32 %v4528, 16
        %v4881 = vrot.slane %v4879, 5
        %v4882 = vsel %vm386, %v4877, %v4881
        %v4883 = vshrl.u32 %v4528, 16
        %v4885 = vrot.slane %v4883, 4
        %v4886 = vor.u32 %v4885, %v4881
        %v4887 = vrot.slane %v4886, 4
        %v4889 = vshll.u32 %v4529, 16
        %v4891 = vrot.slane %v4889, 5
        %v4892 = vsel %vm386, %v4887, %v4891
        %v4894 = vshrl.u32 %v4530, 16
        %v4896 = vrot.slane %v4894, 4
        %v4897 = vshll.u32 %v4530, 16
        %v4899 = vrot.slane %v4897, 5
        %v4900 = vor.u32 %v4896, %v4899
        %v4901 = vrot.slane %v4900, 4
        %v4903 = vshll.u32 %v4531, 16
        %v4905 = vrot.slane %v4903, 5
        %v4906 = vsel %vm386, %v4901, %v4905
        %v4907 = vshrl.u32 %v4531, 16
        %v4909 = vrot.slane %v4907, 4
        %v4910 = vor.u32 %v4909, %v4905
        %v4911 = vrot.slane %v4910, 4
        %v4913 = vshll.u32 %v4532, 16
        %v4915 = vrot.slane %v4913, 5
        %v4916 = vsel %vm386, %v4911, %v4915
        %s4917 = scalar_lea.vmem [#allocation2], 896
        %v4918 = vld [vmem:[%s4917] sm:$0xff]
        %v4919 = vld [vmem:[%s4917 + $0x8] sm:$0xff]
        %v4920 = vld [vmem:[%s4917 + $0x10] sm:$0xff]
        %v4921 = vld [vmem:[%s4917 + $0x18] sm:$0xff]
        %v4922 = vld [vmem:[%s4917 + $0x20] sm:$0xff]
        %v4923 = vld [vmem:[%s4917 + $0x28] sm:$0xff]
        %v4924 = vld [vmem:[%s4917 + $0x30] sm:$0xff]
        %v4925 = vld [vmem:[%s4917 + $0x38] sm:$0xff]
        %v4926 = vld [vmem:[%s4917 + $0x40] sm:$0xff]
        %v4927 = vld [vmem:[%s4917 + $0x48] sm:$0xff]
        %v4928 = vld [vmem:[%s4917 + $0x50] sm:$0xff]
        %v4929 = vld [vmem:[%s4917 + $0x58] sm:$0xff]
        %v4930 = vld [vmem:[%s4917 + $0x60] sm:$0xff]
        %v4931 = vld [vmem:[%s4917 + $0x68] sm:$0xff]
        %v4932 = vld [vmem:[%s4917 + $0x70] sm:$0xff]
        %v4933 = vld [vmem:[%s4917 + $0x78] sm:$0xff]
        %v4934 = vunpack.c.l.b16 %v4546
        %v4935 = vunpack.c.l.b16 %v4556
        %v4936 = vunpack.c.l.b16 %v4570
        %v4937 = vunpack.c.l.b16 %v4580
        %v4938 = vunpack.c.l.b16 %v4594
        %v4939 = vunpack.c.l.b16 %v4604
        %v4940 = vunpack.c.l.b16 %v4618
        %v4941 = vunpack.c.l.b16 %v4628
        %v4942 = vunpack.c.l.b16 %v4642
        %v4943 = vunpack.c.l.b16 %v4652
        %v4944 = vunpack.c.l.b16 %v4666
        %v4945 = vunpack.c.l.b16 %v4676
        %v4946 = vunpack.c.l.b16 %v4690
        %v4947 = vunpack.c.l.b16 %v4700
        %v4948 = vunpack.c.l.b16 %v4714
        %v4949 = vunpack.c.l.b16 %v4724
        %v4950 = vunpack.c.l.b16 %v4738
        %v4951 = vunpack.c.l.b16 %v4748
        %v4952 = vunpack.c.l.b16 %v4762
        %v4953 = vunpack.c.l.b16 %v4772
        %v4954 = vunpack.c.l.b16 %v4786
        %v4955 = vunpack.c.l.b16 %v4796
        %v4956 = vunpack.c.l.b16 %v4810
        %v4957 = vunpack.c.l.b16 %v4820
        %v4958 = vunpack.c.l.b16 %v4834
        %v4959 = vunpack.c.l.b16 %v4844
        %v4960 = vunpack.c.l.b16 %v4858
        %v4961 = vunpack.c.l.b16 %v4868
        %v4962 = vunpack.c.l.b16 %v4882
        %v4963 = vunpack.c.l.b16 %v4892
        %v4964 = vunpack.c.l.b16 %v4906
        %v4965 = vunpack.c.l.b16 %v4916
        %v4966 = vpack.c.b16 %v4935, %v4934
        %v4967 = vpack.c.b16 %v4937, %v4936
        %v4968 = vpack.c.b16 %v4939, %v4938
        %v4969 = vpack.c.b16 %v4941, %v4940
        %v4970 = vpack.c.b16 %v4943, %v4942
        %v4971 = vpack.c.b16 %v4945, %v4944
        %v4972 = vpack.c.b16 %v4947, %v4946
        %v4973 = vpack.c.b16 %v4949, %v4948
        %v4974 = vpack.c.b16 %v4951, %v4950
        %v4975 = vpack.c.b16 %v4953, %v4952
        %v4976 = vpack.c.b16 %v4955, %v4954
        %v4977 = vpack.c.b16 %v4957, %v4956
        %v4978 = vpack.c.b16 %v4959, %v4958
        %v4979 = vpack.c.b16 %v4961, %v4960
        %v4980 = vpack.c.b16 %v4963, %v4962
        %v4981 = vpack.c.b16 %v4965, %v4964
        %v5014 = vunpack.c.l.b16 %v4918
        %v5015 = vunpack.c.h.b16 %v4918
        %v5016 = vunpack.c.l.b16 %v4919
        %v5017 = vunpack.c.h.b16 %v4919
        %v5018 = vunpack.c.l.b16 %v4920
        %v5019 = vunpack.c.h.b16 %v4920
        %v5020 = vunpack.c.l.b16 %v4921
        %v5021 = vunpack.c.h.b16 %v4921
        %v5022 = vunpack.c.l.b16 %v4922
        %v5023 = vunpack.c.h.b16 %v4922
        %v5024 = vunpack.c.l.b16 %v4923
        %v5025 = vunpack.c.h.b16 %v4923
        %v5026 = vunpack.c.l.b16 %v4924
        %v5027 = vunpack.c.h.b16 %v4924
        %v5028 = vunpack.c.l.b16 %v4925
        %v5029 = vunpack.c.h.b16 %v4925
        %v5030 = vunpack.c.l.b16 %v4926
        %v5031 = vunpack.c.h.b16 %v4926
        %v5032 = vunpack.c.l.b16 %v4927
        %v5033 = vunpack.c.h.b16 %v4927
        %v5034 = vunpack.c.l.b16 %v4928
        %v5035 = vunpack.c.h.b16 %v4928
        %v5036 = vunpack.c.l.b16 %v4929
        %v5037 = vunpack.c.h.b16 %v4929
        %v5038 = vunpack.c.l.b16 %v4930
        %v5039 = vunpack.c.h.b16 %v4930
        %v5040 = vunpack.c.l.b16 %v4931
        %v5041 = vunpack.c.h.b16 %v4931
        %v5042 = vunpack.c.l.b16 %v4932
        %v5043 = vunpack.c.h.b16 %v4932
        %v5044 = vunpack.c.l.b16 %v4933
        %v5045 = vunpack.c.h.b16 %v4933
        %v5046 = vpack.c.b16 %v5016, %v5014
        %v5047 = vpack.c.b16 %v5017, %v5015
        %v5048 = vpack.c.b16 %v5020, %v5018
        %v5049 = vpack.c.b16 %v5021, %v5019
        %v5050 = vpack.c.b16 %v5024, %v5022
        %v5051 = vpack.c.b16 %v5025, %v5023
        %v5052 = vpack.c.b16 %v5028, %v5026
        %v5053 = vpack.c.b16 %v5029, %v5027
        %v5054 = vpack.c.b16 %v5032, %v5030
        %v5055 = vpack.c.b16 %v5033, %v5031
        %v5056 = vpack.c.b16 %v5036, %v5034
        %v5057 = vpack.c.b16 %v5037, %v5035
        %v5058 = vpack.c.b16 %v5040, %v5038
        %v5059 = vpack.c.b16 %v5041, %v5039
        %v5060 = vpack.c.b16 %v5044, %v5042
        %v5061 = vpack.c.b16 %v5045, %v5043
        %5078 = vmatprep.subr.bf16.mxu0 %v5047
        %5079 = vmatpush1.bf16.msra.mxu0 %v5046
        %5080 = vmatprep.subr.bf16.mxu0 %v5049
        %5081 = vmatpush1.bf16.msra.mxu0 %v5048
        %5082 = vmatprep.subr.bf16.mxu0 %v5051
        %5083 = vmatpush1.bf16.msra.mxu0 %v5050
        %5084 = vmatprep.subr.bf16.mxu0 %v5053
        %5085 = vmatpush1.bf16.msra.mxu0 %v5052
        %5086 = vmatprep.subr.bf16.mxu0 %v5055
        %5087 = vmatpush1.bf16.msra.mxu0 %v5054
        %5088 = vmatprep.subr.bf16.mxu0 %v5057
        %5089 = vmatpush1.bf16.msra.mxu0 %v5056
        %5090 = vmatprep.subr.bf16.mxu0 %v5059
        %5091 = vmatpush1.bf16.msra.mxu0 %v5058
        %5092 = vmatprep.subr.bf16.mxu0 %v5061
        %5093 = vmatpush1.bf16.msra.mxu0 %v5060
        %5094 = vmatprep.subr.bf16.mxu0 0
        %5095 = vmatpush1.bf16.msra.mxu0 0
        %5096 = vmatprep.subr.bf16.mxu0 0
        %5097 = vmatpush1.bf16.msra.mxu0 0
        %5098 = vmatprep.subr.bf16.mxu0 0
        %5099 = vmatpush1.bf16.msra.mxu0 0
        %5100 = vmatprep.subr.bf16.mxu0 0
        %5101 = vmatpush1.bf16.msra.mxu0 0
        %5102 = vmatprep.subr.bf16.mxu0 0
        %5103 = vmatpush1.bf16.msra.mxu0 0
        %5104 = vmatprep.subr.bf16.mxu0 0
        %5105 = vmatpush1.bf16.msra.mxu0 0
        %5106 = vmatprep.subr.bf16.mxu0 0
        %5107 = vmatpush1.bf16.msra.mxu0 0
        %5108 = vmatprep.subr.bf16.mxu0 0
        %5109 = vmatpush1.bf16.msra.mxu0 0
        %5110 = vmatprep.mubr.bf16.mxu0 0
        %5111 = vmatmul.mubr.bf16.gmra.mrb[0].mxu0 %v4966
        %v5112 = vpop.f32.mrb[0].mxu0
        %v5113 = vadd.f32 0.0, %v5112
        %v5114 = vpop.f32.mrb[0].mxu0
        %v5115 = vadd.f32 0.0, %v5114
        %v5116 = vpop.f32.mrb[0].mxu0
        %v5117 = vadd.f32 0.0, %v5116
        %v5118 = vpop.f32.mrb[0].mxu0
        %v5119 = vadd.f32 0.0, %v5118
        %5120 = vmatprep.mubr.bf16.mxu0 0
        %5121 = vmatmul.mubr.bf16.gmra.mrb[0].mxu0 %v4967
        %v5122 = vpop.f32.mrb[0].mxu0
        %v5123 = vadd.f32 0.0, %v5122
        %v5124 = vpop.f32.mrb[0].mxu0
        %v5125 = vadd.f32 0.0, %v5124
        %v5126 = vpop.f32.mrb[0].mxu0
        %v5127 = vadd.f32 0.0, %v5126
        %v5128 = vpop.f32.mrb[0].mxu0
        %v5129 = vadd.f32 0.0, %v5128
        %5130 = vmatprep.mubr.bf16.mxu0 0
        %5131 = vmatmul.mubr.bf16.gmra.mrb[0].mxu0 %v4968
        %v5132 = vpop.f32.mrb[0].mxu0
        %v5133 = vadd.f32 0.0, %v5132
        %v5134 = vpop.f32.mrb[0].mxu0
        %v5135 = vadd.f32 0.0, %v5134
        %v5136 = vpop.f32.mrb[0].mxu0
        %v5137 = vadd.f32 0.0, %v5136
        %v5138 = vpop.f32.mrb[0].mxu0
        %v5139 = vadd.f32 0.0, %v5138
        %5140 = vmatprep.mubr.bf16.mxu0 0
        %5141 = vmatmul.mubr.bf16.gmra.mrb[0].mxu0 %v4969
        %v5142 = vpop.f32.mrb[0].mxu0
        %v5143 = vadd.f32 0.0, %v5142
        %v5144 = vpop.f32.mrb[0].mxu0
        %v5145 = vadd.f32 0.0, %v5144
        %v5146 = vpop.f32.mrb[0].mxu0
        %v5147 = vadd.f32 0.0, %v5146
        %v5148 = vpop.f32.mrb[0].mxu0
        %v5149 = vadd.f32 0.0, %v5148
        %5150 = vmatprep.mubr.bf16.mxu0 0
        %5151 = vmatmul.mubr.bf16.gmra.mrb[0].mxu0 %v4970
        %v5152 = vpop.f32.mrb[0].mxu0
        %v5153 = vadd.f32 0.0, %v5152
        %v5154 = vpop.f32.mrb[0].mxu0
        %v5155 = vadd.f32 0.0, %v5154
        %v5156 = vpop.f32.mrb[0].mxu0
        %v5157 = vadd.f32 0.0, %v5156
        %v5158 = vpop.f32.mrb[0].mxu0
        %v5159 = vadd.f32 0.0, %v5158
        %5160 = vmatprep.mubr.bf16.mxu0 0
        %5161 = vmatmul.mubr.bf16.gmra.mrb[0].mxu0 %v4971
        %v5162 = vpop.f32.mrb[0].mxu0
        %v5163 = vadd.f32 0.0, %v5162
        %v5164 = vpop.f32.mrb[0].mxu0
        %v5165 = vadd.f32 0.0, %v5164
        %v5166 = vpop.f32.mrb[0].mxu0
        %v5167 = vadd.f32 0.0, %v5166
        %v5168 = vpop.f32.mrb[0].mxu0
        %v5169 = vadd.f32 0.0, %v5168
        %5170 = vmatprep.mubr.bf16.mxu0 0
        %5171 = vmatmul.mubr.bf16.gmra.mrb[0].mxu0 %v4972
        %v5172 = vpop.f32.mrb[0].mxu0
        %v5173 = vadd.f32 0.0, %v5172
        %v5174 = vpop.f32.mrb[0].mxu0
        %v5175 = vadd.f32 0.0, %v5174
        %v5176 = vpop.f32.mrb[0].mxu0
        %v5177 = vadd.f32 0.0, %v5176
        %v5178 = vpop.f32.mrb[0].mxu0
        %v5179 = vadd.f32 0.0, %v5178
        %5180 = vmatprep.mubr.bf16.mxu0 0
        %5181 = vmatmul.mubr.bf16.gmra.mrb[0].mxu0 %v4973
        %v5182 = vpop.f32.mrb[0].mxu0
        %v5183 = vadd.f32 0.0, %v5182
        %v5184 = vpop.f32.mrb[0].mxu0
        %v5185 = vadd.f32 0.0, %v5184
        %v5186 = vpop.f32.mrb[0].mxu0
        %v5187 = vadd.f32 0.0, %v5186
        %v5188 = vpop.f32.mrb[0].mxu0
        %v5189 = vadd.f32 0.0, %v5188
        %5190 = vmatprep.mubr.bf16.mxu0 0
        %5191 = vmatmul.mubr.bf16.gmra.mrb[0].mxu0 %v4974
        %v5192 = vpop.f32.mrb[0].mxu0
        %v5193 = vadd.f32 0.0, %v5192
        %v5194 = vpop.f32.mrb[0].mxu0
        %v5195 = vadd.f32 0.0, %v5194
        %v5196 = vpop.f32.mrb[0].mxu0
        %v5197 = vadd.f32 0.0, %v5196
        %v5198 = vpop.f32.mrb[0].mxu0
        %v5199 = vadd.f32 0.0, %v5198
        %5200 = vmatprep.mubr.bf16.mxu0 0
        %5201 = vmatmul.mubr.bf16.gmra.mrb[0].mxu0 %v4975
        %v5202 = vpop.f32.mrb[0].mxu0
        %v5203 = vadd.f32 0.0, %v5202
        %v5204 = vpop.f32.mrb[0].mxu0
        %v5205 = vadd.f32 0.0, %v5204
        %v5206 = vpop.f32.mrb[0].mxu0
        %v5207 = vadd.f32 0.0, %v5206
        %v5208 = vpop.f32.mrb[0].mxu0
        %v5209 = vadd.f32 0.0, %v5208
        %5210 = vmatprep.mubr.bf16.mxu0 0
        %5211 = vmatmul.mubr.bf16.gmra.mrb[0].mxu0 %v4976
        %v5212 = vpop.f32.mrb[0].mxu0
        %v5213 = vadd.f32 0.0, %v5212
        %v5214 = vpop.f32.mrb[0].mxu0
        %v5215 = vadd.f32 0.0, %v5214
        %v5216 = vpop.f32.mrb[0].mxu0
        %v5217 = vadd.f32 0.0, %v5216
        %v5218 = vpop.f32.mrb[0].mxu0
        %v5219 = vadd.f32 0.0, %v5218
        %5220 = vmatprep.mubr.bf16.mxu0 0
        %5221 = vmatmul.mubr.bf16.gmra.mrb[0].mxu0 %v4977
        %v5222 = vpop.f32.mrb[0].mxu0
        %v5223 = vadd.f32 0.0, %v5222
        %v5224 = vpop.f32.mrb[0].mxu0
        %v5225 = vadd.f32 0.0, %v5224
        %v5226 = vpop.f32.mrb[0].mxu0
        %v5227 = vadd.f32 0.0, %v5226
        %v5228 = vpop.f32.mrb[0].mxu0
        %v5229 = vadd.f32 0.0, %v5228
        %5230 = vmatprep.mubr.bf16.mxu0 0
        %5231 = vmatmul.mubr.bf16.gmra.mrb[0].mxu0 %v4978
        %v5232 = vpop.f32.mrb[0].mxu0
        %v5233 = vadd.f32 0.0, %v5232
        %v5234 = vpop.f32.mrb[0].mxu0
        %v5235 = vadd.f32 0.0, %v5234
        %v5236 = vpop.f32.mrb[0].mxu0
        %v5237 = vadd.f32 0.0, %v5236
        %v5238 = vpop.f32.mrb[0].mxu0
        %v5239 = vadd.f32 0.0, %v5238
        %5240 = vmatprep.mubr.bf16.mxu0 0
        %5241 = vmatmul.mubr.bf16.gmra.mrb[0].mxu0 %v4979
        %v5242 = vpop.f32.mrb[0].mxu0
        %v5243 = vadd.f32 0.0, %v5242
        %v5244 = vpop.f32.mrb[0].mxu0
        %v5245 = vadd.f32 0.0, %v5244
        %v5246 = vpop.f32.mrb[0].mxu0
        %v5247 = vadd.f32 0.0, %v5246
        %v5248 = vpop.f32.mrb[0].mxu0
        %v5249 = vadd.f32 0.0, %v5248
        %5250 = vmatprep.mubr.bf16.mxu0 0
        %5251 = vmatmul.mubr.bf16.gmra.mrb[0].mxu0 %v4980
        %v5252 = vpop.f32.mrb[0].mxu0
        %v5253 = vadd.f32 0.0, %v5252
        %v5254 = vpop.f32.mrb[0].mxu0
        %v5255 = vadd.f32 0.0, %v5254
        %v5256 = vpop.f32.mrb[0].mxu0
        %v5257 = vadd.f32 0.0, %v5256
        %v5258 = vpop.f32.mrb[0].mxu0
        %v5259 = vadd.f32 0.0, %v5258
        %5260 = vmatprep.mubr.bf16.mxu0 0
        %5261 = vmatmul.mubr.bf16.gmra.mrb[0].mxu0 %v4981
        %v5262 = vpop.f32.mrb[0].mxu0
        %v5263 = vadd.f32 0.0, %v5262
        %v5264 = vpop.f32.mrb[0].mxu0
        %v5265 = vadd.f32 0.0, %v5264
        %v5266 = vpop.f32.mrb[0].mxu0
        %v5267 = vadd.f32 0.0, %v5266
        %v5268 = vpop.f32.mrb[0].mxu0
        %v5269 = vadd.f32 0.0, %v5268
        %5270 = vdwg.mxu0
        %v5271 = vadd.f32 %v4421, %v5113
        %v5272 = vadd.f32 %v4422, %v5115
        %v5273 = vadd.f32 %v4423, %v5117
        %v5274 = vadd.f32 %v4424, %v5119
        %v5275 = vadd.f32 %v4425, %v5123
        %v5276 = vadd.f32 %v4426, %v5125
        %v5277 = vadd.f32 %v4427, %v5127
        %v5278 = vadd.f32 %v4428, %v5129
        %v5279 = vadd.f32 %v4429, %v5133
        %v5280 = vadd.f32 %v4430, %v5135
        %v5281 = vadd.f32 %v4431, %v5137
        %v5282 = vadd.f32 %v4432, %v5139
        %v5283 = vadd.f32 %v4433, %v5143
        %v5284 = vadd.f32 %v4434, %v5145
        %v5285 = vadd.f32 %v4435, %v5147
        %v5286 = vadd.f32 %v4436, %v5149
        %v5287 = vadd.f32 %v4437, %v5153
        %v5288 = vadd.f32 %v4438, %v5155
        %v5289 = vadd.f32 %v4439, %v5157
        %v5290 = vadd.f32 %v4440, %v5159
        %v5291 = vadd.f32 %v4441, %v5163
        %v5292 = vadd.f32 %v4442, %v5165
        %v5293 = vadd.f32 %v4443, %v5167
        %v5294 = vadd.f32 %v4444, %v5169
        %v5295 = vadd.f32 %v4445, %v5173
        %v5296 = vadd.f32 %v4446, %v5175
        %v5297 = vadd.f32 %v4447, %v5177
        %v5298 = vadd.f32 %v4448, %v5179
        %v5299 = vadd.f32 %v4449, %v5183
        %v5300 = vadd.f32 %v4450, %v5185
        %v5301 = vadd.f32 %v4451, %v5187
        %v5302 = vadd.f32 %v4452, %v5189
        %v5303 = vadd.f32 %v4453, %v5193
        %v5304 = vadd.f32 %v4454, %v5195
        %v5305 = vadd.f32 %v4455, %v5197
        %v5306 = vadd.f32 %v4456, %v5199
        %v5307 = vadd.f32 %v4457, %v5203
        %v5308 = vadd.f32 %v4458, %v5205
        %v5309 = vadd.f32 %v4459, %v5207
        %v5310 = vadd.f32 %v4460, %v5209
        %v5311 = vadd.f32 %v4461, %v5213
        %v5312 = vadd.f32 %v4462, %v5215
        %v5313 = vadd.f32 %v4463, %v5217
        %v5314 = vadd.f32 %v4464, %v5219
        %v5315 = vadd.f32 %v4465, %v5223
        %v5316 = vadd.f32 %v4466, %v5225
        %v5317 = vadd.f32 %v4467, %v5227
        %v5318 = vadd.f32 %v4468, %v5229
        %v5319 = vadd.f32 %v4469, %v5233
        %v5320 = vadd.f32 %v4470, %v5235
        %v5321 = vadd.f32 %v4471, %v5237
        %v5322 = vadd.f32 %v4472, %v5239
        %v5323 = vadd.f32 %v4473, %v5243
        %v5324 = vadd.f32 %v4474, %v5245
        %v5325 = vadd.f32 %v4475, %v5247
        %v5326 = vadd.f32 %v4476, %v5249
        %v5327 = vadd.f32 %v4477, %v5253
        %v5328 = vadd.f32 %v4478, %v5255
        %v5329 = vadd.f32 %v4479, %v5257
        %v5330 = vadd.f32 %v4480, %v5259
        %v5331 = vadd.f32 %v4481, %v5263
        %v5332 = vadd.f32 %v4482, %v5265
        %v5333 = vadd.f32 %v4483, %v5267
        %v5334 = vadd.f32 %v4484, %v5269
        %v5335 = vld [vmem:[%s4002] sm:$0xe]
        %v5336 = vld [vmem:[%s4002 + $0xc] sm:$0xe]
        %v5337 = vld [vmem:[%s4002 + $0x18] sm:$0xe]
        %v5338 = vld [vmem:[%s4002 + $0x24] sm:$0xe]
        %v5339 = vld [vmem:[%s4002 + $0x30] sm:$0xe]
        %v5340 = vld [vmem:[%s4002 + $0x3c] sm:$0xe]
        %v5341 = vld [vmem:[%s4002 + $0x48] sm:$0xe]
        %v5342 = vld [vmem:[%s4002 + $0x54] sm:$0xe]
        %v5343 = vld [vmem:[%s4002 + $0x60] sm:$0xe]
        %v5344 = vld [vmem:[%s4002 + $0x6c] sm:$0xe]
        %v5345 = vld [vmem:[%s4002 + $0x78] sm:$0xe]
        %v5346 = vld [vmem:[%s4002 + $0x84] sm:$0xe]
        %v5347 = vld [vmem:[%s4002 + $0x90] sm:$0xe]
        %v5348 = vld [vmem:[%s4002 + $0x9c] sm:$0xe]
        %v5349 = vld [vmem:[%s4002 + $0xa8] sm:$0xe]
        %v5350 = vld [vmem:[%s4002 + $0xb4] sm:$0xe]
        %v5399 = vrot.slane %v5335, 5
        %v5400 = vrot.slane %v5399, 4
        %v5401 = vrot.slane %v4486, 5
        %v5402 = vsel %vm1544, %v5400, %v5401
        %v5403 = vrot.slane %v5401, 4
        %v5404 = vrot.slane %v4487, 5
        %v5405 = vsel %vm1544, %v5403, %v5404
        %v5406 = vrot.slane %v5336, 5
        %v5407 = vrot.slane %v5406, 4
        %v5408 = vrot.slane %v4489, 5
        %v5409 = vsel %vm1544, %v5407, %v5408
        %v5410 = vrot.slane %v5408, 4
        %v5411 = vrot.slane %v4490, 5
        %v5412 = vsel %vm1544, %v5410, %v5411
        %v5413 = vrot.slane %v5337, 5
        %v5414 = vrot.slane %v5413, 4
        %v5415 = vrot.slane %v4492, 5
        %v5416 = vsel %vm1544, %v5414, %v5415
        %v5417 = vrot.slane %v5415, 4
        %v5418 = vrot.slane %v4493, 5
        %v5419 = vsel %vm1544, %v5417, %v5418
        %v5420 = vrot.slane %v5338, 5
        %v5421 = vrot.slane %v5420, 4
        %v5422 = vrot.slane %v4495, 5
        %v5423 = vsel %vm1544, %v5421, %v5422
        %v5424 = vrot.slane %v5422, 4
        %v5425 = vrot.slane %v4496, 5
        %v5426 = vsel %vm1544, %v5424, %v5425
        %v5427 = vrot.slane %v5339, 5
        %v5428 = vrot.slane %v5427, 4
        %v5429 = vrot.slane %v4498, 5
        %v5430 = vsel %vm1544, %v5428, %v5429
        %v5431 = vrot.slane %v5429, 4
        %v5432 = vrot.slane %v4499, 5
        %v5433 = vsel %vm1544, %v5431, %v5432
        %v5434 = vrot.slane %v5340, 5
        %v5435 = vrot.slane %v5434, 4
        %v5436 = vrot.slane %v4501, 5
        %v5437 = vsel %vm1544, %v5435, %v5436
        %v5438 = vrot.slane %v5436, 4
        %v5439 = vrot.slane %v4502, 5
        %v5440 = vsel %vm1544, %v5438, %v5439
        %v5441 = vrot.slane %v5341, 5
        %v5442 = vrot.slane %v5441, 4
        %v5443 = vrot.slane %v4504, 5
        %v5444 = vsel %vm1544, %v5442, %v5443
        %v5445 = vrot.slane %v5443, 4
        %v5446 = vrot.slane %v4505, 5
        %v5447 = vsel %vm1544, %v5445, %v5446
        %v5448 = vrot.slane %v5342, 5
        %v5449 = vrot.slane %v5448, 4
        %v5450 = vrot.slane %v4507, 5
        %v5451 = vsel %vm1544, %v5449, %v5450
        %v5452 = vrot.slane %v5450, 4
        %v5453 = vrot.slane %v4508, 5
        %v5454 = vsel %vm1544, %v5452, %v5453
        %v5455 = vrot.slane %v5343, 5
        %v5456 = vrot.slane %v5455, 4
        %v5457 = vrot.slane %v4510, 5
        %v5458 = vsel %vm1544, %v5456, %v5457
        %v5459 = vrot.slane %v5457, 4
        %v5460 = vrot.slane %v4511, 5
        %v5461 = vsel %vm1544, %v5459, %v5460
        %v5462 = vrot.slane %v5344, 5
        %v5463 = vrot.slane %v5462, 4
        %v5464 = vrot.slane %v4513, 5
        %v5465 = vsel %vm1544, %v5463, %v5464
        %v5466 = vrot.slane %v5464, 4
        %v5467 = vrot.slane %v4514, 5
        %v5468 = vsel %vm1544, %v5466, %v5467
        %v5469 = vrot.slane %v5345, 5
        %v5470 = vrot.slane %v5469, 4
        %v5471 = vrot.slane %v4516, 5
        %v5472 = vsel %vm1544, %v5470, %v5471
        %v5473 = vrot.slane %v5471, 4
        %v5474 = vrot.slane %v4517, 5
        %v5475 = vsel %vm1544, %v5473, %v5474
        %v5476 = vrot.slane %v5346, 5
        %v5477 = vrot.slane %v5476, 4
        %v5478 = vrot.slane %v4519, 5
        %v5479 = vsel %vm1544, %v5477, %v5478
        %v5480 = vrot.slane %v5478, 4
        %v5481 = vrot.slane %v4520, 5
        %v5482 = vsel %vm1544, %v5480, %v5481
        %v5483 = vrot.slane %v5347, 5
        %v5484 = vrot.slane %v5483, 4
        %v5485 = vrot.slane %v4522, 5
        %v5486 = vsel %vm1544, %v5484, %v5485
        %v5487 = vrot.slane %v5485, 4
        %v5488 = vrot.slane %v4523, 5
        %v5489 = vsel %vm1544, %v5487, %v5488
        %v5490 = vrot.slane %v5348, 5
        %v5491 = vrot.slane %v5490, 4
        %v5492 = vrot.slane %v4525, 5
        %v5493 = vsel %vm1544, %v5491, %v5492
        %v5494 = vrot.slane %v5492, 4
        %v5495 = vrot.slane %v4526, 5
        %v5496 = vsel %vm1544, %v5494, %v5495
        %v5497 = vrot.slane %v5349, 5
        %v5498 = vrot.slane %v5497, 4
        %v5499 = vrot.slane %v4528, 5
        %v5500 = vsel %vm1544, %v5498, %v5499
        %v5501 = vrot.slane %v5499, 4
        %v5502 = vrot.slane %v4529, 5
        %v5503 = vsel %vm1544, %v5501, %v5502
        %v5504 = vrot.slane %v5350, 5
        %v5505 = vrot.slane %v5504, 4
        %v5506 = vrot.slane %v4531, 5
        %v5507 = vsel %vm1544, %v5505, %v5506
        %v5508 = vrot.slane %v5506, 4
        %v5509 = vrot.slane %v4532, 5
        %v5510 = vsel %vm1544, %v5508, %v5509
        %s5511 = scalar_lea.vmem [#allocation2], 1024
        %v5512 = vld [vmem:[%s5511] sm:$0xff]
        %v5513 = vld [vmem:[%s5511 + $0x8] sm:$0xff]
        %v5514 = vld [vmem:[%s5511 + $0x10] sm:$0xff]
        %v5515 = vld [vmem:[%s5511 + $0x18] sm:$0xff]
        %v5516 = vld [vmem:[%s5511 + $0x20] sm:$0xff]
        %v5517 = vld [vmem:[%s5511 + $0x28] sm:$0xff]
        %v5518 = vld [vmem:[%s5511 + $0x30] sm:$0xff]
        %v5519 = vld [vmem:[%s5511 + $0x38] sm:$0xff]
        %v5520 = vld [vmem:[%s5511 + $0x40] sm:$0xff]
        %v5521 = vld [vmem:[%s5511 + $0x48] sm:$0xff]
        %v5522 = vld [vmem:[%s5511 + $0x50] sm:$0xff]
        %v5523 = vld [vmem:[%s5511 + $0x58] sm:$0xff]
        %v5524 = vld [vmem:[%s5511 + $0x60] sm:$0xff]
        %v5525 = vld [vmem:[%s5511 + $0x68] sm:$0xff]
        %v5526 = vld [vmem:[%s5511 + $0x70] sm:$0xff]
        %v5527 = vld [vmem:[%s5511 + $0x78] sm:$0xff]
        %v5528 = vunpack.c.l.b16 %v5402
        %v5529 = vunpack.c.l.b16 %v5405
        %v5530 = vunpack.c.l.b16 %v5409
        %v5531 = vunpack.c.l.b16 %v5412
        %v5532 = vunpack.c.l.b16 %v5416
        %v5533 = vunpack.c.l.b16 %v5419
        %v5534 = vunpack.c.l.b16 %v5423
        %v5535 = vunpack.c.l.b16 %v5426
        %v5536 = vunpack.c.l.b16 %v5430
        %v5537 = vunpack.c.l.b16 %v5433
        %v5538 = vunpack.c.l.b16 %v5437
        %v5539 = vunpack.c.l.b16 %v5440
        %v5540 = vunpack.c.l.b16 %v5444
        %v5541 = vunpack.c.l.b16 %v5447
        %v5542 = vunpack.c.l.b16 %v5451
        %v5543 = vunpack.c.l.b16 %v5454
        %v5544 = vunpack.c.l.b16 %v5458
        %v5545 = vunpack.c.l.b16 %v5461
        %v5546 = vunpack.c.l.b16 %v5465
        %v5547 = vunpack.c.l.b16 %v5468
        %v5548 = vunpack.c.l.b16 %v5472
        %v5549 = vunpack.c.l.b16 %v5475
        %v5550 = vunpack.c.l.b16 %v5479
        %v5551 = vunpack.c.l.b16 %v5482
        %v5552 = vunpack.c.l.b16 %v5486
        %v5553 = vunpack.c.l.b16 %v5489
        %v5554 = vunpack.c.l.b16 %v5493
        %v5555 = vunpack.c.l.b16 %v5496
        %v5556 = vunpack.c.l.b16 %v5500
        %v5557 = vunpack.c.l.b16 %v5503
        %v5558 = vunpack.c.l.b16 %v5507
        %v5559 = vunpack.c.l.b16 %v5510
        %v5560 = vpack.c.b16 %v5529, %v5528
        %v5561 = vpack.c.b16 %v5531, %v5530
        %v5562 = vpack.c.b16 %v5533, %v5532
        %v5563 = vpack.c.b16 %v5535, %v5534
        %v5564 = vpack.c.b16 %v5537, %v5536
        %v5565 = vpack.c.b16 %v5539, %v5538
        %v5566 = vpack.c.b16 %v5541, %v5540
        %v5567 = vpack.c.b16 %v5543, %v5542
        %v5568 = vpack.c.b16 %v5545, %v5544
        %v5569 = vpack.c.b16 %v5547, %v5546
        %v5570 = vpack.c.b16 %v5549, %v5548
        %v5571 = vpack.c.b16 %v5551, %v5550
        %v5572 = vpack.c.b16 %v5553, %v5552
        %v5573 = vpack.c.b16 %v5555, %v5554
        %v5574 = vpack.c.b16 %v5557, %v5556
        %v5575 = vpack.c.b16 %v5559, %v5558
        %v5608 = vunpack.c.l.b16 %v5512
        %v5609 = vunpack.c.h.b16 %v5512
        %v5610 = vunpack.c.l.b16 %v5513
        %v5611 = vunpack.c.h.b16 %v5513
        %v5612 = vunpack.c.l.b16 %v5514
        %v5613 = vunpack.c.h.b16 %v5514
        %v5614 = vunpack.c.l.b16 %v5515
        %v5615 = vunpack.c.h.b16 %v5515
        %v5616 = vunpack.c.l.b16 %v5516
        %v5617 = vunpack.c.h.b16 %v5516
        %v5618 = vunpack.c.l.b16 %v5517
        %v5619 = vunpack.c.h.b16 %v5517
        %v5620 = vunpack.c.l.b16 %v5518
        %v5621 = vunpack.c.h.b16 %v5518
        %v5622 = vunpack.c.l.b16 %v5519
        %v5623 = vunpack.c.h.b16 %v5519
        %v5624 = vunpack.c.l.b16 %v5520
        %v5625 = vunpack.c.h.b16 %v5520
        %v5626 = vunpack.c.l.b16 %v5521
        %v5627 = vunpack.c.h.b16 %v5521
        %v5628 = vunpack.c.l.b16 %v5522
        %v5629 = vunpack.c.h.b16 %v5522
        %v5630 = vunpack.c.l.b16 %v5523
        %v5631 = vunpack.c.h.b16 %v5523
        %v5632 = vunpack.c.l.b16 %v5524
        %v5633 = vunpack.c.h.b16 %v5524
        %v5634 = vunpack.c.l.b16 %v5525
        %v5635 = vunpack.c.h.b16 %v5525
        %v5636 = vunpack.c.l.b16 %v5526
        %v5637 = vunpack.c.h.b16 %v5526
        %v5638 = vunpack.c.l.b16 %v5527
        %v5639 = vunpack.c.h.b16 %v5527
        %v5640 = vpack.c.b16 %v5610, %v5608
        %v5641 = vpack.c.b16 %v5611, %v5609
        %v5642 = vpack.c.b16 %v5614, %v5612
        %v5643 = vpack.c.b16 %v5615, %v5613
        %v5644 = vpack.c.b16 %v5618, %v5616
        %v5645 = vpack.c.b16 %v5619, %v5617
        %v5646 = vpack.c.b16 %v5622, %v5620
        %v5647 = vpack.c.b16 %v5623, %v5621
        %v5648 = vpack.c.b16 %v5626, %v5624
        %v5649 = vpack.c.b16 %v5627, %v5625
        %v5650 = vpack.c.b16 %v5630, %v5628
        %v5651 = vpack.c.b16 %v5631, %v5629
        %v5652 = vpack.c.b16 %v5634, %v5632
        %v5653 = vpack.c.b16 %v5635, %v5633
        %v5654 = vpack.c.b16 %v5638, %v5636
        %v5655 = vpack.c.b16 %v5639, %v5637
        %5672 = vmatprep.subr.bf16.mxu0 %v5641
        %5673 = vmatpush1.bf16.msra.mxu0 %v5640
        %5674 = vmatprep.subr.bf16.mxu0 %v5643
        %5675 = vmatpush1.bf16.msra.mxu0 %v5642
        %5676 = vmatprep.subr.bf16.mxu0 %v5645
        %5677 = vmatpush1.bf16.msra.mxu0 %v5644
        %5678 = vmatprep.subr.bf16.mxu0 %v5647
        %5679 = vmatpush1.bf16.msra.mxu0 %v5646
        %5680 = vmatprep.subr.bf16.mxu0 %v5649
        %5681 = vmatpush1.bf16.msra.mxu0 %v5648
        %5682 = vmatprep.subr.bf16.mxu0 %v5651
        %5683 = vmatpush1.bf16.msra.mxu0 %v5650
        %5684 = vmatprep.subr.bf16.mxu0 %v5653
        %5685 = vmatpush1.bf16.msra.mxu0 %v5652
        %5686 = vmatprep.subr.bf16.mxu0 %v5655
        %5687 = vmatpush1.bf16.msra.mxu0 %v5654
        %5688 = vmatprep.subr.bf16.mxu0 0
        %5689 = vmatpush1.bf16.msra.mxu0 0
        %5690 = vmatprep.subr.bf16.mxu0 0
        %5691 = vmatpush1.bf16.msra.mxu0 0
        %5692 = vmatprep.subr.bf16.mxu0 0
        %5693 = vmatpush1.bf16.msra.mxu0 0
        %5694 = vmatprep.subr.bf16.mxu0 0
        %5695 = vmatpush1.bf16.msra.mxu0 0
        %5696 = vmatprep.subr.bf16.mxu0 0
        %5697 = vmatpush1.bf16.msra.mxu0 0
        %5698 = vmatprep.subr.bf16.mxu0 0
        %5699 = vmatpush1.bf16.msra.mxu0 0
        %5700 = vmatprep.subr.bf16.mxu0 0
        %5701 = vmatpush1.bf16.msra.mxu0 0
        %5702 = vmatprep.subr.bf16.mxu0 0
        %5703 = vmatpush1.bf16.msra.mxu0 0
        %5704 = vmatprep.mubr.bf16.mxu0 0
        %5705 = vmatmul.mubr.bf16.gmra.mrb[0].mxu0 %v5560
        %v5706 = vpop.f32.mrb[0].mxu0
        %v5707 = vadd.f32 0.0, %v5706
        %v5708 = vpop.f32.mrb[0].mxu0
        %v5709 = vadd.f32 0.0, %v5708
        %v5710 = vpop.f32.mrb[0].mxu0
        %v5711 = vadd.f32 0.0, %v5710
        %v5712 = vpop.f32.mrb[0].mxu0
        %v5713 = vadd.f32 0.0, %v5712
        %5714 = vmatprep.mubr.bf16.mxu0 0
        %5715 = vmatmul.mubr.bf16.gmra.mrb[0].mxu0 %v5561
        %v5716 = vpop.f32.mrb[0].mxu0
        %v5717 = vadd.f32 0.0, %v5716
        %v5718 = vpop.f32.mrb[0].mxu0
        %v5719 = vadd.f32 0.0, %v5718
        %v5720 = vpop.f32.mrb[0].mxu0
        %v5721 = vadd.f32 0.0, %v5720
        %v5722 = vpop.f32.mrb[0].mxu0
        %v5723 = vadd.f32 0.0, %v5722
        %5724 = vmatprep.mubr.bf16.mxu0 0
        %5725 = vmatmul.mubr.bf16.gmra.mrb[0].mxu0 %v5562
        %v5726 = vpop.f32.mrb[0].mxu0
        %v5727 = vadd.f32 0.0, %v5726
        %v5728 = vpop.f32.mrb[0].mxu0
        %v5729 = vadd.f32 0.0, %v5728
        %v5730 = vpop.f32.mrb[0].mxu0
        %v5731 = vadd.f32 0.0, %v5730
        %v5732 = vpop.f32.mrb[0].mxu0
        %v5733 = vadd.f32 0.0, %v5732
        %5734 = vmatprep.mubr.bf16.mxu0 0
        %5735 = vmatmul.mubr.bf16.gmra.mrb[0].mxu0 %v5563
        %v5736 = vpop.f32.mrb[0].mxu0
        %v5737 = vadd.f32 0.0, %v5736
        %v5738 = vpop.f32.mrb[0].mxu0
        %v5739 = vadd.f32 0.0, %v5738
        %v5740 = vpop.f32.mrb[0].mxu0
        %v5741 = vadd.f32 0.0, %v5740
        %v5742 = vpop.f32.mrb[0].mxu0
        %v5743 = vadd.f32 0.0, %v5742
        %5744 = vmatprep.mubr.bf16.mxu0 0
        %5745 = vmatmul.mubr.bf16.gmra.mrb[0].mxu0 %v5564
        %v5746 = vpop.f32.mrb[0].mxu0
        %v5747 = vadd.f32 0.0, %v5746
        %v5748 = vpop.f32.mrb[0].mxu0
        %v5749 = vadd.f32 0.0, %v5748
        %v5750 = vpop.f32.mrb[0].mxu0
        %v5751 = vadd.f32 0.0, %v5750
        %v5752 = vpop.f32.mrb[0].mxu0
        %v5753 = vadd.f32 0.0, %v5752
        %5754 = vmatprep.mubr.bf16.mxu0 0
        %5755 = vmatmul.mubr.bf16.gmra.mrb[0].mxu0 %v5565
        %v5756 = vpop.f32.mrb[0].mxu0
        %v5757 = vadd.f32 0.0, %v5756
        %v5758 = vpop.f32.mrb[0].mxu0
        %v5759 = vadd.f32 0.0, %v5758
        %v5760 = vpop.f32.mrb[0].mxu0
        %v5761 = vadd.f32 0.0, %v5760
        %v5762 = vpop.f32.mrb[0].mxu0
        %v5763 = vadd.f32 0.0, %v5762
        %5764 = vmatprep.mubr.bf16.mxu0 0
        %5765 = vmatmul.mubr.bf16.gmra.mrb[0].mxu0 %v5566
        %v5766 = vpop.f32.mrb[0].mxu0
        %v5767 = vadd.f32 0.0, %v5766
        %v5768 = vpop.f32.mrb[0].mxu0
        %v5769 = vadd.f32 0.0, %v5768
        %v5770 = vpop.f32.mrb[0].mxu0
        %v5771 = vadd.f32 0.0, %v5770
        %v5772 = vpop.f32.mrb[0].mxu0
        %v5773 = vadd.f32 0.0, %v5772
        %5774 = vmatprep.mubr.bf16.mxu0 0
        %5775 = vmatmul.mubr.bf16.gmra.mrb[0].mxu0 %v5567
        %v5776 = vpop.f32.mrb[0].mxu0
        %v5777 = vadd.f32 0.0, %v5776
        %v5778 = vpop.f32.mrb[0].mxu0
        %v5779 = vadd.f32 0.0, %v5778
        %v5780 = vpop.f32.mrb[0].mxu0
        %v5781 = vadd.f32 0.0, %v5780
        %v5782 = vpop.f32.mrb[0].mxu0
        %v5783 = vadd.f32 0.0, %v5782
        %5784 = vmatprep.mubr.bf16.mxu0 0
        %5785 = vmatmul.mubr.bf16.gmra.mrb[0].mxu0 %v5568
        %v5786 = vpop.f32.mrb[0].mxu0
        %v5787 = vadd.f32 0.0, %v5786
        %v5788 = vpop.f32.mrb[0].mxu0
        %v5789 = vadd.f32 0.0, %v5788
        %v5790 = vpop.f32.mrb[0].mxu0
        %v5791 = vadd.f32 0.0, %v5790
        %v5792 = vpop.f32.mrb[0].mxu0
        %v5793 = vadd.f32 0.0, %v5792
        %5794 = vmatprep.mubr.bf16.mxu0 0
        %5795 = vmatmul.mubr.bf16.gmra.mrb[0].mxu0 %v5569
        %v5796 = vpop.f32.mrb[0].mxu0
        %v5797 = vadd.f32 0.0, %v5796
        %v5798 = vpop.f32.mrb[0].mxu0
        %v5799 = vadd.f32 0.0, %v5798
        %v5800 = vpop.f32.mrb[0].mxu0
        %v5801 = vadd.f32 0.0, %v5800
        %v5802 = vpop.f32.mrb[0].mxu0
        %v5803 = vadd.f32 0.0, %v5802
        %5804 = vmatprep.mubr.bf16.mxu0 0
        %5805 = vmatmul.mubr.bf16.gmra.mrb[0].mxu0 %v5570
        %v5806 = vpop.f32.mrb[0].mxu0
        %v5807 = vadd.f32 0.0, %v5806
        %v5808 = vpop.f32.mrb[0].mxu0
        %v5809 = vadd.f32 0.0, %v5808
        %v5810 = vpop.f32.mrb[0].mxu0
        %v5811 = vadd.f32 0.0, %v5810
        %v5812 = vpop.f32.mrb[0].mxu0
        %v5813 = vadd.f32 0.0, %v5812
        %5814 = vmatprep.mubr.bf16.mxu0 0
        %5815 = vmatmul.mubr.bf16.gmra.mrb[0].mxu0 %v5571
        %v5816 = vpop.f32.mrb[0].mxu0
        %v5817 = vadd.f32 0.0, %v5816
        %v5818 = vpop.f32.mrb[0].mxu0
        %v5819 = vadd.f32 0.0, %v5818
        %v5820 = vpop.f32.mrb[0].mxu0
        %v5821 = vadd.f32 0.0, %v5820
        %v5822 = vpop.f32.mrb[0].mxu0
        %v5823 = vadd.f32 0.0, %v5822
        %5824 = vmatprep.mubr.bf16.mxu0 0
        %5825 = vmatmul.mubr.bf16.gmra.mrb[0].mxu0 %v5572
        %v5826 = vpop.f32.mrb[0].mxu0
        %v5827 = vadd.f32 0.0, %v5826
        %v5828 = vpop.f32.mrb[0].mxu0
        %v5829 = vadd.f32 0.0, %v5828
        %v5830 = vpop.f32.mrb[0].mxu0
        %v5831 = vadd.f32 0.0, %v5830
        %v5832 = vpop.f32.mrb[0].mxu0
        %v5833 = vadd.f32 0.0, %v5832
        %5834 = vmatprep.mubr.bf16.mxu0 0
        %5835 = vmatmul.mubr.bf16.gmra.mrb[0].mxu0 %v5573
        %v5836 = vpop.f32.mrb[0].mxu0
        %v5837 = vadd.f32 0.0, %v5836
        %v5838 = vpop.f32.mrb[0].mxu0
        %v5839 = vadd.f32 0.0, %v5838
        %v5840 = vpop.f32.mrb[0].mxu0
        %v5841 = vadd.f32 0.0, %v5840
        %v5842 = vpop.f32.mrb[0].mxu0
        %v5843 = vadd.f32 0.0, %v5842
        %5844 = vmatprep.mubr.bf16.mxu0 0
        %5845 = vmatmul.mubr.bf16.gmra.mrb[0].mxu0 %v5574
        %v5846 = vpop.f32.mrb[0].mxu0
        %v5847 = vadd.f32 0.0, %v5846
        %v5848 = vpop.f32.mrb[0].mxu0
        %v5849 = vadd.f32 0.0, %v5848
        %v5850 = vpop.f32.mrb[0].mxu0
        %v5851 = vadd.f32 0.0, %v5850
        %v5852 = vpop.f32.mrb[0].mxu0
        %v5853 = vadd.f32 0.0, %v5852
        %5854 = vmatprep.mubr.bf16.mxu0 0
        %5855 = vmatmul.mubr.bf16.gmra.mrb[0].mxu0 %v5575
        %v5856 = vpop.f32.mrb[0].mxu0
        %v5857 = vadd.f32 0.0, %v5856
        %v5858 = vpop.f32.mrb[0].mxu0
        %v5859 = vadd.f32 0.0, %v5858
        %v5860 = vpop.f32.mrb[0].mxu0
        %v5861 = vadd.f32 0.0, %v5860
        %v5862 = vpop.f32.mrb[0].mxu0
        %v5863 = vadd.f32 0.0, %v5862
        %5864 = vdwg.mxu0
        %v5865 = vadd.f32 %v5271, %v5707
        %v5866 = vadd.f32 %v5272, %v5709
        %v5867 = vadd.f32 %v5273, %v5711
        %v5868 = vadd.f32 %v5274, %v5713
        %v5869 = vadd.f32 %v5275, %v5717
        %v5870 = vadd.f32 %v5276, %v5719
        %v5871 = vadd.f32 %v5277, %v5721
        %v5872 = vadd.f32 %v5278, %v5723
        %v5873 = vadd.f32 %v5279, %v5727
        %v5874 = vadd.f32 %v5280, %v5729
        %v5875 = vadd.f32 %v5281, %v5731
        %v5876 = vadd.f32 %v5282, %v5733
        %v5877 = vadd.f32 %v5283, %v5737
        %v5878 = vadd.f32 %v5284, %v5739
        %v5879 = vadd.f32 %v5285, %v5741
        %v5880 = vadd.f32 %v5286, %v5743
        %v5881 = vadd.f32 %v5287, %v5747
        %v5882 = vadd.f32 %v5288, %v5749
        %v5883 = vadd.f32 %v5289, %v5751
        %v5884 = vadd.f32 %v5290, %v5753
        %v5885 = vadd.f32 %v5291, %v5757
        %v5886 = vadd.f32 %v5292, %v5759
        %v5887 = vadd.f32 %v5293, %v5761
        %v5888 = vadd.f32 %v5294, %v5763
        %v5889 = vadd.f32 %v5295, %v5767
        %v5890 = vadd.f32 %v5296, %v5769
        %v5891 = vadd.f32 %v5297, %v5771
        %v5892 = vadd.f32 %v5298, %v5773
        %v5893 = vadd.f32 %v5299, %v5777
        %v5894 = vadd.f32 %v5300, %v5779
        %v5895 = vadd.f32 %v5301, %v5781
        %v5896 = vadd.f32 %v5302, %v5783
        %v5897 = vadd.f32 %v5303, %v5787
        %v5898 = vadd.f32 %v5304, %v5789
        %v5899 = vadd.f32 %v5305, %v5791
        %v5900 = vadd.f32 %v5306, %v5793
        %v5901 = vadd.f32 %v5307, %v5797
        %v5902 = vadd.f32 %v5308, %v5799
        %v5903 = vadd.f32 %v5309, %v5801
        %v5904 = vadd.f32 %v5310, %v5803
        %v5905 = vadd.f32 %v5311, %v5807
        %v5906 = vadd.f32 %v5312, %v5809
        %v5907 = vadd.f32 %v5313, %v5811
        %v5908 = vadd.f32 %v5314, %v5813
        %v5909 = vadd.f32 %v5315, %v5817
        %v5910 = vadd.f32 %v5316, %v5819
        %v5911 = vadd.f32 %v5317, %v5821
        %v5912 = vadd.f32 %v5318, %v5823
        %v5913 = vadd.f32 %v5319, %v5827
        %v5914 = vadd.f32 %v5320, %v5829
        %v5915 = vadd.f32 %v5321, %v5831
        %v5916 = vadd.f32 %v5322, %v5833
        %v5917 = vadd.f32 %v5323, %v5837
        %v5918 = vadd.f32 %v5324, %v5839
        %v5919 = vadd.f32 %v5325, %v5841
        %v5920 = vadd.f32 %v5326, %v5843
        %v5921 = vadd.f32 %v5327, %v5847
        %v5922 = vadd.f32 %v5328, %v5849
        %v5923 = vadd.f32 %v5329, %v5851
        %v5924 = vadd.f32 %v5330, %v5853
        %v5925 = vadd.f32 %v5331, %v5857
        %v5926 = vadd.f32 %v5332, %v5859
        %v5927 = vadd.f32 %v5333, %v5861
        %v5928 = vadd.f32 %v5334, %v5863
        %v5929 = vld [vmem:[%s234] sm:$0xff]
        %v5930 = vld [vmem:[%s234 + $0x8] sm:$0xff]
        %v5931 = vld [vmem:[%s234 + $0x10] sm:$0xff]
        %v5932 = vld [vmem:[%s234 + $0x18] sm:$0xff]
        %v5933 = vld [vmem:[%s234 + $0x20] sm:$0xff]
        %v5934 = vld [vmem:[%s234 + $0x28] sm:$0xff]
        %v5935 = vld [vmem:[%s234 + $0x30] sm:$0xff]
        %v5936 = vld [vmem:[%s234 + $0x38] sm:$0xff]
        %v5937 = vld [vmem:[%s234 + $0x40] sm:$0xff]
        %v5938 = vld [vmem:[%s234 + $0x48] sm:$0xff]
        %v5939 = vld [vmem:[%s234 + $0x50] sm:$0xff]
        %v5940 = vld [vmem:[%s234 + $0x58] sm:$0xff]
        %v5941 = vld [vmem:[%s234 + $0x60] sm:$0xff]
        %v5942 = vld [vmem:[%s234 + $0x68] sm:$0xff]
        %v5943 = vld [vmem:[%s234 + $0x70] sm:$0xff]
        %v5944 = vld [vmem:[%s234 + $0x78] sm:$0xff]
        %v5945 = vld [vmem:[%s234 + $0x80] sm:$0xff]
        %v5946 = vld [vmem:[%s234 + $0x88] sm:$0xff]
        %v5947 = vld [vmem:[%s234 + $0x90] sm:$0xff]
        %v5948 = vld [vmem:[%s234 + $0x98] sm:$0xff]
        %v5949 = vld [vmem:[%s234 + $0xa0] sm:$0xff]
        %v5950 = vld [vmem:[%s234 + $0xa8] sm:$0xff]
        %v5951 = vld [vmem:[%s234 + $0xb0] sm:$0xff]
        %v5952 = vld [vmem:[%s234 + $0xb8] sm:$0xff]
        %v5953 = vld [vmem:[%s234 + $0xc0] sm:$0xff]
        %v5954 = vld [vmem:[%s234 + $0xc8] sm:$0xff]
        %v5955 = vld [vmem:[%s234 + $0xd0] sm:$0xff]
        %v5956 = vld [vmem:[%s234 + $0xd8] sm:$0xff]
        %v5957 = vld [vmem:[%s234 + $0xe0] sm:$0xff]
        %v5958 = vld [vmem:[%s234 + $0xe8] sm:$0xff]
        %v5959 = vld [vmem:[%s234 + $0xf0] sm:$0xff]
        %v5960 = vld [vmem:[%s234 + $0xf8] sm:$0xff]
        %v5961 = vld [vmem:[%s234 + $0x100] sm:$0xff]
        %v5962 = vld [vmem:[%s234 + $0x108] sm:$0xff]
        %v5963 = vld [vmem:[%s234 + $0x110] sm:$0xff]
        %v5964 = vld [vmem:[%s234 + $0x118] sm:$0xff]
        %v5965 = vld [vmem:[%s234 + $0x120] sm:$0xff]
        %v5966 = vld [vmem:[%s234 + $0x128] sm:$0xff]
        %v5967 = vld [vmem:[%s234 + $0x130] sm:$0xff]
        %v5968 = vld [vmem:[%s234 + $0x138] sm:$0xff]
        %v5969 = vld [vmem:[%s234 + $0x140] sm:$0xff]
        %v5970 = vld [vmem:[%s234 + $0x148] sm:$0xff]
        %v5971 = vld [vmem:[%s234 + $0x150] sm:$0xff]
        %v5972 = vld [vmem:[%s234 + $0x158] sm:$0xff]
        %v5973 = vld [vmem:[%s234 + $0x160] sm:$0xff]
        %v5974 = vld [vmem:[%s234 + $0x168] sm:$0xff]
        %v5975 = vld [vmem:[%s234 + $0x170] sm:$0xff]
        %v5976 = vld [vmem:[%s234 + $0x178] sm:$0xff]
        %v5977 = vld [vmem:[%s234 + $0x180] sm:$0xff]
        %v5978 = vld [vmem:[%s234 + $0x188] sm:$0xff]
        %v5979 = vld [vmem:[%s234 + $0x190] sm:$0xff]
        %v5980 = vld [vmem:[%s234 + $0x198] sm:$0xff]
        %v5981 = vld [vmem:[%s234 + $0x1a0] sm:$0xff]
        %v5982 = vld [vmem:[%s234 + $0x1a8] sm:$0xff]
        %v5983 = vld [vmem:[%s234 + $0x1b0] sm:$0xff]
        %v5984 = vld [vmem:[%s234 + $0x1b8] sm:$0xff]
        %v5985 = vld [vmem:[%s234 + $0x1c0] sm:$0xff]
        %v5986 = vld [vmem:[%s234 + $0x1c8] sm:$0xff]
        %v5987 = vld [vmem:[%s234 + $0x1d0] sm:$0xff]
        %v5988 = vld [vmem:[%s234 + $0x1d8] sm:$0xff]
        %v5989 = vld [vmem:[%s234 + $0x1e0] sm:$0xff]
        %v5990 = vld [vmem:[%s234 + $0x1e8] sm:$0xff]
        %v5991 = vld [vmem:[%s234 + $0x1f0] sm:$0xff]
        %v5992 = vld [vmem:[%s234 + $0x1f8] sm:$0xff]
        %v5993 = vadd.f32 %v5929, %v5865
        %v5994 = vadd.f32 %v5930, %v5866
        %v5995 = vadd.f32 %v5931, %v5867
        %v5996 = vadd.f32 %v5932, %v5868
        %v5997 = vadd.f32 %v5933, %v5869
        %v5998 = vadd.f32 %v5934, %v5870
        %v5999 = vadd.f32 %v5935, %v5871
        %v6000 = vadd.f32 %v5936, %v5872
        %v6001 = vadd.f32 %v5937, %v5873
        %v6002 = vadd.f32 %v5938, %v5874
        %v6003 = vadd.f32 %v5939, %v5875
        %v6004 = vadd.f32 %v5940, %v5876
        %v6005 = vadd.f32 %v5941, %v5877
        %v6006 = vadd.f32 %v5942, %v5878
        %v6007 = vadd.f32 %v5943, %v5879
        %v6008 = vadd.f32 %v5944, %v5880
        %v6009 = vadd.f32 %v5945, %v5881
        %v6010 = vadd.f32 %v5946, %v5882
        %v6011 = vadd.f32 %v5947, %v5883
        %v6012 = vadd.f32 %v5948, %v5884
        %v6013 = vadd.f32 %v5949, %v5885
        %v6014 = vadd.f32 %v5950, %v5886
        %v6015 = vadd.f32 %v5951, %v5887
        %v6016 = vadd.f32 %v5952, %v5888
        %v6017 = vadd.f32 %v5953, %v5889
        %v6018 = vadd.f32 %v5954, %v5890
        %v6019 = vadd.f32 %v5955, %v5891
        %v6020 = vadd.f32 %v5956, %v5892
        %v6021 = vadd.f32 %v5957, %v5893
        %v6022 = vadd.f32 %v5958, %v5894
        %v6023 = vadd.f32 %v5959, %v5895
        %v6024 = vadd.f32 %v5960, %v5896
        %v6025 = vadd.f32 %v5961, %v5897
        %v6026 = vadd.f32 %v5962, %v5898
        %v6027 = vadd.f32 %v5963, %v5899
        %v6028 = vadd.f32 %v5964, %v5900
        %v6029 = vadd.f32 %v5965, %v5901
        %v6030 = vadd.f32 %v5966, %v5902
        %v6031 = vadd.f32 %v5967, %v5903
        %v6032 = vadd.f32 %v5968, %v5904
        %v6033 = vadd.f32 %v5969, %v5905
        %v6034 = vadd.f32 %v5970, %v5906
        %v6035 = vadd.f32 %v5971, %v5907
        %v6036 = vadd.f32 %v5972, %v5908
        %v6037 = vadd.f32 %v5973, %v5909
        %v6038 = vadd.f32 %v5974, %v5910
        %v6039 = vadd.f32 %v5975, %v5911
        %v6040 = vadd.f32 %v5976, %v5912
        %v6041 = vadd.f32 %v5977, %v5913
        %v6042 = vadd.f32 %v5978, %v5914
        %v6043 = vadd.f32 %v5979, %v5915
        %v6044 = vadd.f32 %v5980, %v5916
        %v6045 = vadd.f32 %v5981, %v5917
        %v6046 = vadd.f32 %v5982, %v5918
        %v6047 = vadd.f32 %v5983, %v5919
        %v6048 = vadd.f32 %v5984, %v5920
        %v6049 = vadd.f32 %v5985, %v5921
        %v6050 = vadd.f32 %v5986, %v5922
        %v6051 = vadd.f32 %v5987, %v5923
        %v6052 = vadd.f32 %v5988, %v5924
        %v6053 = vadd.f32 %v5989, %v5925
        %v6054 = vadd.f32 %v5990, %v5926
        %v6055 = vadd.f32 %v5991, %v5927
        %v6056 = vadd.f32 %v5992, %v5928
        %6057 = vst [vmem:[%s234] sm:$0xff] %v5993
        %6058 = vst [vmem:[%s234 + $0x8] sm:$0xff] %v5994
        %6059 = vst [vmem:[%s234 + $0x10] sm:$0xff] %v5995
        %6060 = vst [vmem:[%s234 + $0x18] sm:$0xff] %v5996
        %6061 = vst [vmem:[%s234 + $0x20] sm:$0xff] %v5997
        %6062 = vst [vmem:[%s234 + $0x28] sm:$0xff] %v5998
        %6063 = vst [vmem:[%s234 + $0x30] sm:$0xff] %v5999
        %6064 = vst [vmem:[%s234 + $0x38] sm:$0xff] %v6000
        %6065 = vst [vmem:[%s234 + $0x40] sm:$0xff] %v6001
        %6066 = vst [vmem:[%s234 + $0x48] sm:$0xff] %v6002
        %6067 = vst [vmem:[%s234 + $0x50] sm:$0xff] %v6003
        %6068 = vst [vmem:[%s234 + $0x58] sm:$0xff] %v6004
        %6069 = vst [vmem:[%s234 + $0x60] sm:$0xff] %v6005
        %6070 = vst [vmem:[%s234 + $0x68] sm:$0xff] %v6006
        %6071 = vst [vmem:[%s234 + $0x70] sm:$0xff] %v6007
        %6072 = vst [vmem:[%s234 + $0x78] sm:$0xff] %v6008
        %6073 = vst [vmem:[%s234 + $0x80] sm:$0xff] %v6009
        %6074 = vst [vmem:[%s234 + $0x88] sm:$0xff] %v6010
        %6075 = vst [vmem:[%s234 + $0x90] sm:$0xff] %v6011
        %6076 = vst [vmem:[%s234 + $0x98] sm:$0xff] %v6012
        %6077 = vst [vmem:[%s234 + $0xa0] sm:$0xff] %v6013
        %6078 = vst [vmem:[%s234 + $0xa8] sm:$0xff] %v6014
        %6079 = vst [vmem:[%s234 + $0xb0] sm:$0xff] %v6015
        %6080 = vst [vmem:[%s234 + $0xb8] sm:$0xff] %v6016
        %6081 = vst [vmem:[%s234 + $0xc0] sm:$0xff] %v6017
        %6082 = vst [vmem:[%s234 + $0xc8] sm:$0xff] %v6018
        %6083 = vst [vmem:[%s234 + $0xd0] sm:$0xff] %v6019
        %6084 = vst [vmem:[%s234 + $0xd8] sm:$0xff] %v6020
        %6085 = vst [vmem:[%s234 + $0xe0] sm:$0xff] %v6021
        %6086 = vst [vmem:[%s234 + $0xe8] sm:$0xff] %v6022
        %6087 = vst [vmem:[%s234 + $0xf0] sm:$0xff] %v6023
        %6088 = vst [vmem:[%s234 + $0xf8] sm:$0xff] %v6024
        %6089 = vst [vmem:[%s234 + $0x100] sm:$0xff] %v6025
        %6090 = vst [vmem:[%s234 + $0x108] sm:$0xff] %v6026
        %6091 = vst [vmem:[%s234 + $0x110] sm:$0xff] %v6027
        %6092 = vst [vmem:[%s234 + $0x118] sm:$0xff] %v6028
        %6093 = vst [vmem:[%s234 + $0x120] sm:$0xff] %v6029
        %6094 = vst [vmem:[%s234 + $0x128] sm:$0xff] %v6030
        %6095 = vst [vmem:[%s234 + $0x130] sm:$0xff] %v6031
        %6096 = vst [vmem:[%s234 + $0x138] sm:$0xff] %v6032
        %6097 = vst [vmem:[%s234 + $0x140] sm:$0xff] %v6033
        %6098 = vst [vmem:[%s234 + $0x148] sm:$0xff] %v6034
        %6099 = vst [vmem:[%s234 + $0x150] sm:$0xff] %v6035
        %6100 = vst [vmem:[%s234 + $0x158] sm:$0xff] %v6036
        %6101 = vst [vmem:[%s234 + $0x160] sm:$0xff] %v6037
        %6102 = vst [vmem:[%s234 + $0x168] sm:$0xff] %v6038
        %6103 = vst [vmem:[%s234 + $0x170] sm:$0xff] %v6039
        %6104 = vst [vmem:[%s234 + $0x178] sm:$0xff] %v6040
        %6105 = vst [vmem:[%s234 + $0x180] sm:$0xff] %v6041
        %6106 = vst [vmem:[%s234 + $0x188] sm:$0xff] %v6042
        %6107 = vst [vmem:[%s234 + $0x190] sm:$0xff] %v6043
        %6108 = vst [vmem:[%s234 + $0x198] sm:$0xff] %v6044
        %6109 = vst [vmem:[%s234 + $0x1a0] sm:$0xff] %v6045
        %6110 = vst [vmem:[%s234 + $0x1a8] sm:$0xff] %v6046
        %6111 = vst [vmem:[%s234 + $0x1b0] sm:$0xff] %v6047
        %6112 = vst [vmem:[%s234 + $0x1b8] sm:$0xff] %v6048
        %6113 = vst [vmem:[%s234 + $0x1c0] sm:$0xff] %v6049
        %6114 = vst [vmem:[%s234 + $0x1c8] sm:$0xff] %v6050
        %6115 = vst [vmem:[%s234 + $0x1d0] sm:$0xff] %v6051
        %6116 = vst [vmem:[%s234 + $0x1d8] sm:$0xff] %v6052
        %6117 = vst [vmem:[%s234 + $0x1e0] sm:$0xff] %v6053
        %6118 = vst [vmem:[%s234 + $0x1e8] sm:$0xff] %v6054
        %6119 = vst [vmem:[%s234 + $0x1f0] sm:$0xff] %v6055
        %6120 = vst [vmem:[%s234 + $0x1f8] sm:$0xff] %v6056
        // Predicated region
        $region41: #{tpu_custom_call.1} parent=31 // pred_check
          %p6121 = pneg %p252
        $region42: #{tpu_custom_call.1} parent=31 // pred_check_branch
          %6123 = sbr.rel (%p6121) target = $region44
        $region43: #{tpu_custom_call.1} parent=31 // pred_region
          %v6124 = vld [vmem:[%s234] sm:$0xff]
          %v6125 = vld [vmem:[%s234 + $0x8] sm:$0xff]
          %v6126 = vld [vmem:[%s234 + $0x10] sm:$0xff]
          %v6127 = vld [vmem:[%s234 + $0x18] sm:$0xff]
          %v6128 = vld [vmem:[%s234 + $0x20] sm:$0xff]
          %v6129 = vld [vmem:[%s234 + $0x28] sm:$0xff]
          %v6130 = vld [vmem:[%s234 + $0x30] sm:$0xff]
          %v6131 = vld [vmem:[%s234 + $0x38] sm:$0xff]
          %v6132 = vld [vmem:[%s234 + $0x40] sm:$0xff]
          %v6133 = vld [vmem:[%s234 + $0x48] sm:$0xff]
          %v6134 = vld [vmem:[%s234 + $0x50] sm:$0xff]
          %v6135 = vld [vmem:[%s234 + $0x58] sm:$0xff]
          %v6136 = vld [vmem:[%s234 + $0x60] sm:$0xff]
          %v6137 = vld [vmem:[%s234 + $0x68] sm:$0xff]
          %v6138 = vld [vmem:[%s234 + $0x70] sm:$0xff]
          %v6139 = vld [vmem:[%s234 + $0x78] sm:$0xff]
          %v6140 = vld [vmem:[%s234 + $0x80] sm:$0xff]
          %v6141 = vld [vmem:[%s234 + $0x88] sm:$0xff]
          %v6142 = vld [vmem:[%s234 + $0x90] sm:$0xff]
          %v6143 = vld [vmem:[%s234 + $0x98] sm:$0xff]
          %v6144 = vld [vmem:[%s234 + $0xa0] sm:$0xff]
          %v6145 = vld [vmem:[%s234 + $0xa8] sm:$0xff]
          %v6146 = vld [vmem:[%s234 + $0xb0] sm:$0xff]
          %v6147 = vld [vmem:[%s234 + $0xb8] sm:$0xff]
          %v6148 = vld [vmem:[%s234 + $0xc0] sm:$0xff]
          %v6149 = vld [vmem:[%s234 + $0xc8] sm:$0xff]
          %v6150 = vld [vmem:[%s234 + $0xd0] sm:$0xff]
          %v6151 = vld [vmem:[%s234 + $0xd8] sm:$0xff]
          %v6152 = vld [vmem:[%s234 + $0xe0] sm:$0xff]
          %v6153 = vld [vmem:[%s234 + $0xe8] sm:$0xff]
          %v6154 = vld [vmem:[%s234 + $0xf0] sm:$0xff]
          %v6155 = vld [vmem:[%s234 + $0xf8] sm:$0xff]
          %v6156 = vld [vmem:[%s234 + $0x100] sm:$0xff]
          %v6157 = vld [vmem:[%s234 + $0x108] sm:$0xff]
          %v6158 = vld [vmem:[%s234 + $0x110] sm:$0xff]
          %v6159 = vld [vmem:[%s234 + $0x118] sm:$0xff]
          %v6160 = vld [vmem:[%s234 + $0x120] sm:$0xff]
          %v6161 = vld [vmem:[%s234 + $0x128] sm:$0xff]
          %v6162 = vld [vmem:[%s234 + $0x130] sm:$0xff]
          %v6163 = vld [vmem:[%s234 + $0x138] sm:$0xff]
          %v6164 = vld [vmem:[%s234 + $0x140] sm:$0xff]
          %v6165 = vld [vmem:[%s234 + $0x148] sm:$0xff]
          %v6166 = vld [vmem:[%s234 + $0x150] sm:$0xff]
          %v6167 = vld [vmem:[%s234 + $0x158] sm:$0xff]
          %v6168 = vld [vmem:[%s234 + $0x160] sm:$0xff]
          %v6169 = vld [vmem:[%s234 + $0x168] sm:$0xff]
          %v6170 = vld [vmem:[%s234 + $0x170] sm:$0xff]
          %v6171 = vld [vmem:[%s234 + $0x178] sm:$0xff]
          %v6172 = vld [vmem:[%s234 + $0x180] sm:$0xff]
          %v6173 = vld [vmem:[%s234 + $0x188] sm:$0xff]
          %v6174 = vld [vmem:[%s234 + $0x190] sm:$0xff]
          %v6175 = vld [vmem:[%s234 + $0x198] sm:$0xff]
          %v6176 = vld [vmem:[%s234 + $0x1a0] sm:$0xff]
          %v6177 = vld [vmem:[%s234 + $0x1a8] sm:$0xff]
          %v6178 = vld [vmem:[%s234 + $0x1b0] sm:$0xff]
          %v6179 = vld [vmem:[%s234 + $0x1b8] sm:$0xff]
          %v6180 = vld [vmem:[%s234 + $0x1c0] sm:$0xff]
          %v6181 = vld [vmem:[%s234 + $0x1c8] sm:$0xff]
          %v6182 = vld [vmem:[%s234 + $0x1d0] sm:$0xff]
          %v6183 = vld [vmem:[%s234 + $0x1d8] sm:$0xff]
          %v6184 = vld [vmem:[%s234 + $0x1e0] sm:$0xff]
          %v6185 = vld [vmem:[%s234 + $0x1e8] sm:$0xff]
          %v6186 = vld [vmem:[%s234 + $0x1f0] sm:$0xff]
          %v6187 = vld [vmem:[%s234 + $0x1f8] sm:$0xff]
          %v6188 = vld [vmem:[%s248] sm:$0x3]
          %v6190 = vlaneseq
          %v6191 = vshrl.u32 %v6190, 7
          %v6192 = vsub.s32 0, %v6191
          %v6193 = vrot.slane %v6188, %v6192
          %v6194 = vlaneseq
          %v6195 = vshrl.u32 %v6194, 7
          %v6196 = vsub.s32 1, %v6195
          %v6197 = vrot.slane %v6188, %v6196
          %v6200 = vadd.f32 %v6124, %v6193
          %v6201 = vadd.f32 %v6125, %v6197
          %v6202 = vadd.f32 %v6126, %v6193
          %v6203 = vadd.f32 %v6127, %v6197
          %v6204 = vadd.f32 %v6128, %v6193
          %v6205 = vadd.f32 %v6129, %v6197
          %v6206 = vadd.f32 %v6130, %v6193
          %v6207 = vadd.f32 %v6131, %v6197
          %v6208 = vadd.f32 %v6132, %v6193
          %v6209 = vadd.f32 %v6133, %v6197
          %v6210 = vadd.f32 %v6134, %v6193
          %v6211 = vadd.f32 %v6135, %v6197
          %v6212 = vadd.f32 %v6136, %v6193
          %v6213 = vadd.f32 %v6137, %v6197
          %v6214 = vadd.f32 %v6138, %v6193
          %v6215 = vadd.f32 %v6139, %v6197
          %v6216 = vadd.f32 %v6140, %v6193
          %v6217 = vadd.f32 %v6141, %v6197
          %v6218 = vadd.f32 %v6142, %v6193
          %v6219 = vadd.f32 %v6143, %v6197
          %v6220 = vadd.f32 %v6144, %v6193
          %v6221 = vadd.f32 %v6145, %v6197
          %v6222 = vadd.f32 %v6146, %v6193
          %v6223 = vadd.f32 %v6147, %v6197
          %v6224 = vadd.f32 %v6148, %v6193
          %v6225 = vadd.f32 %v6149, %v6197
          %v6226 = vadd.f32 %v6150, %v6193
          %v6227 = vadd.f32 %v6151, %v6197
          %v6228 = vadd.f32 %v6152, %v6193
          %v6229 = vadd.f32 %v6153, %v6197
          %v6230 = vadd.f32 %v6154, %v6193
          %v6231 = vadd.f32 %v6155, %v6197
          %v6232 = vadd.f32 %v6156, %v6193
          %v6233 = vadd.f32 %v6157, %v6197
          %v6234 = vadd.f32 %v6158, %v6193
          %v6235 = vadd.f32 %v6159, %v6197
          %v6236 = vadd.f32 %v6160, %v6193
          %v6237 = vadd.f32 %v6161, %v6197
          %v6238 = vadd.f32 %v6162, %v6193
          %v6239 = vadd.f32 %v6163, %v6197
          %v6240 = vadd.f32 %v6164, %v6193
          %v6241 = vadd.f32 %v6165, %v6197
          %v6242 = vadd.f32 %v6166, %v6193
          %v6243 = vadd.f32 %v6167, %v6197
          %v6244 = vadd.f32 %v6168, %v6193
          %v6245 = vadd.f32 %v6169, %v6197
          %v6246 = vadd.f32 %v6170, %v6193
          %v6247 = vadd.f32 %v6171, %v6197
          %v6248 = vadd.f32 %v6172, %v6193
          %v6249 = vadd.f32 %v6173, %v6197
          %v6250 = vadd.f32 %v6174, %v6193
          %v6251 = vadd.f32 %v6175, %v6197
          %v6252 = vadd.f32 %v6176, %v6193
          %v6253 = vadd.f32 %v6177, %v6197
          %v6254 = vadd.f32 %v6178, %v6193
          %v6255 = vadd.f32 %v6179, %v6197
          %v6256 = vadd.f32 %v6180, %v6193
          %v6257 = vadd.f32 %v6181, %v6197
          %v6258 = vadd.f32 %v6182, %v6193
          %v6259 = vadd.f32 %v6183, %v6197
          %v6260 = vadd.f32 %v6184, %v6193
          %v6261 = vadd.f32 %v6185, %v6197
          %v6262 = vadd.f32 %v6186, %v6193
          %v6263 = vadd.f32 %v6187, %v6197
          %6264 = vst [vmem:[%s234] sm:$0xff] %v6200
          %6265 = vst [vmem:[%s234 + $0x8] sm:$0xff] %v6201
          %6266 = vst [vmem:[%s234 + $0x10] sm:$0xff] %v6202
          %6267 = vst [vmem:[%s234 + $0x18] sm:$0xff] %v6203
          %6268 = vst [vmem:[%s234 + $0x20] sm:$0xff] %v6204
          %6269 = vst [vmem:[%s234 + $0x28] sm:$0xff] %v6205
          %6270 = vst [vmem:[%s234 + $0x30] sm:$0xff] %v6206
          %6271 = vst [vmem:[%s234 + $0x38] sm:$0xff] %v6207
          %6272 = vst [vmem:[%s234 + $0x40] sm:$0xff] %v6208
          %6273 = vst [vmem:[%s234 + $0x48] sm:$0xff] %v6209
          %6274 = vst [vmem:[%s234 + $0x50] sm:$0xff] %v6210
          %6275 = vst [vmem:[%s234 + $0x58] sm:$0xff] %v6211
          %6276 = vst [vmem:[%s234 + $0x60] sm:$0xff] %v6212
          %6277 = vst [vmem:[%s234 + $0x68] sm:$0xff] %v6213
          %6278 = vst [vmem:[%s234 + $0x70] sm:$0xff] %v6214
          %6279 = vst [vmem:[%s234 + $0x78] sm:$0xff] %v6215
          %6280 = vst [vmem:[%s234 + $0x80] sm:$0xff] %v6216
          %6281 = vst [vmem:[%s234 + $0x88] sm:$0xff] %v6217
          %6282 = vst [vmem:[%s234 + $0x90] sm:$0xff] %v6218
          %6283 = vst [vmem:[%s234 + $0x98] sm:$0xff] %v6219
          %6284 = vst [vmem:[%s234 + $0xa0] sm:$0xff] %v6220
          %6285 = vst [vmem:[%s234 + $0xa8] sm:$0xff] %v6221
          %6286 = vst [vmem:[%s234 + $0xb0] sm:$0xff] %v6222
          %6287 = vst [vmem:[%s234 + $0xb8] sm:$0xff] %v6223
          %6288 = vst [vmem:[%s234 + $0xc0] sm:$0xff] %v6224
          %6289 = vst [vmem:[%s234 + $0xc8] sm:$0xff] %v6225
          %6290 = vst [vmem:[%s234 + $0xd0] sm:$0xff] %v6226
          %6291 = vst [vmem:[%s234 + $0xd8] sm:$0xff] %v6227
          %6292 = vst [vmem:[%s234 + $0xe0] sm:$0xff] %v6228
          %6293 = vst [vmem:[%s234 + $0xe8] sm:$0xff] %v6229
          %6294 = vst [vmem:[%s234 + $0xf0] sm:$0xff] %v6230
          %6295 = vst [vmem:[%s234 + $0xf8] sm:$0xff] %v6231
          %6296 = vst [vmem:[%s234 + $0x100] sm:$0xff] %v6232
          %6297 = vst [vmem:[%s234 + $0x108] sm:$0xff] %v6233
          %6298 = vst [vmem:[%s234 + $0x110] sm:$0xff] %v6234
          %6299 = vst [vmem:[%s234 + $0x118] sm:$0xff] %v6235
          %6300 = vst [vmem:[%s234 + $0x120] sm:$0xff] %v6236
          %6301 = vst [vmem:[%s234 + $0x128] sm:$0xff] %v6237
          %6302 = vst [vmem:[%s234 + $0x130] sm:$0xff] %v6238
          %6303 = vst [vmem:[%s234 + $0x138] sm:$0xff] %v6239
          %6304 = vst [vmem:[%s234 + $0x140] sm:$0xff] %v6240
          %6305 = vst [vmem:[%s234 + $0x148] sm:$0xff] %v6241
          %6306 = vst [vmem:[%s234 + $0x150] sm:$0xff] %v6242
          %6307 = vst [vmem:[%s234 + $0x158] sm:$0xff] %v6243
          %6308 = vst [vmem:[%s234 + $0x160] sm:$0xff] %v6244
          %6309 = vst [vmem:[%s234 + $0x168] sm:$0xff] %v6245
          %6310 = vst [vmem:[%s234 + $0x170] sm:$0xff] %v6246
          %6311 = vst [vmem:[%s234 + $0x178] sm:$0xff] %v6247
          %6312 = vst [vmem:[%s234 + $0x180] sm:$0xff] %v6248
          %6313 = vst [vmem:[%s234 + $0x188] sm:$0xff] %v6249
          %6314 = vst [vmem:[%s234 + $0x190] sm:$0xff] %v6250
          %6315 = vst [vmem:[%s234 + $0x198] sm:$0xff] %v6251
          %6316 = vst [vmem:[%s234 + $0x1a0] sm:$0xff] %v6252
          %6317 = vst [vmem:[%s234 + $0x1a8] sm:$0xff] %v6253
          %6318 = vst [vmem:[%s234 + $0x1b0] sm:$0xff] %v6254
          %6319 = vst [vmem:[%s234 + $0x1b8] sm:$0xff] %v6255
          %6320 = vst [vmem:[%s234 + $0x1c0] sm:$0xff] %v6256
          %6321 = vst [vmem:[%s234 + $0x1c8] sm:$0xff] %v6257
          %6322 = vst [vmem:[%s234 + $0x1d0] sm:$0xff] %v6258
          %6323 = vst [vmem:[%s234 + $0x1d8] sm:$0xff] %v6259
          %6324 = vst [vmem:[%s234 + $0x1e0] sm:$0xff] %v6260
          %6325 = vst [vmem:[%s234 + $0x1e8] sm:$0xff] %v6261
          %6326 = vst [vmem:[%s234 + $0x1f0] sm:$0xff] %v6262
          %6327 = vst [vmem:[%s234 + $0x1f8] sm:$0xff] %v6263
        $region44: #{tpu_custom_call.1} parent=31 // pred_fallthru
          _
        %s6328 = sand.u32 %s129, 1
        %s6329 = scalar_lea.sflag [#allocation4], %s6328
        %s6330 = sand.u32 %s129, 1
        %s6331 = smul.addr %s6330, 512
        %s6332 = scalar_lea.vmem [#allocation5], %s6331
        // Predicated region
        $region45: #{tpu_custom_call.1} parent=31 // pred_check
          %p6333 = pneg %p139
        $region46: #{tpu_custom_call.1} parent=31 // pred_check_branch
          %6335 = sbr.rel (%p6333) target = $region48
        $region47: #{tpu_custom_call.1} parent=31 // pred_region
          %s6336 = smul.u32 2, %s24
          %s6338 = ssub.s32 8192, 8192
          %6339 = vsyncadd %s6329, %s6338
          %s6340 = smul.addr %s23, 64
          %s6341 = sadd.s32 %s6336, %s6340
          %s6342 = smul.addr %s6341, 128
          %s6343 = scalar_lea.hbm %s3, %s6342
          %s6344 = sshll.u32 %s6332, 4
          %s6345 = int_to_ptr.vmem [resolvable:$true] %s6344
          %6350 = dma.vmem_to_hbm [thread:$0]  %s6345, 8192, %s6343, %s6329, 256, 256, 16
        $region48: #{tpu_custom_call.1} parent=31 // pred_fallthru
          _
      $region32: #{tpu_custom_call.1} parent=5 // pred_fallthru
        _
      %p6351 = scmp.le.s32.totalorder 2, %s13
      // Predicated region
      $region49: #{tpu_custom_call.1} parent=5 // pred_check
        %p6352 = pneg %p6351
      $region50: #{tpu_custom_call.1} parent=5 // pred_check_branch
        %6354 = sbr.rel (%p6352) target = $region52
      $region51: #{tpu_custom_call.1} parent=5 // pred_region
        %s6355 = ssub.s32 %s13, 2
        // Predicated region
        $region53: #{tpu_custom_call.1} parent=51 // pred_check
          %p6356 = pneg %p145
        $region54: #{tpu_custom_call.1} parent=51 // pred_check_branch
          %6358 = sbr.rel (%p6356) target = $region56
        $region55: #{tpu_custom_call.1} parent=51 // pred_region
          %s6359 = sand.u32 %s130, 1
          %s6360 = scalar_lea.sflag [#allocation4], %s6359
          %s6361 = sand.u32 %s130, 1
          %s6362 = smul.addr %s6361, 512
          %s6363 = scalar_lea.vmem [#allocation5], %s6362
          %6364 = dma.done %s6360, 8192
        $region56: #{tpu_custom_call.1} parent=51 // pred_fallthru
          _
      $region52: #{tpu_custom_call.1} parent=5 // pred_fallthru
        _
    $region6: #{tpu_custom_call.1} parent=1 // loop_footer
      %s17 = sadd.s32 1, %s13
    $region7: #{tpu_custom_call.1} parent=1 // loop_footer_branch
      %12 = sbr.rel target = $region3
    $region8: #{tpu_custom_call.1} parent=1 // loop_exit
      _
    %6365 = vsyncpa [#allocation3], 1
    %s6366 = scalar_lea.sflag [#allocation3], 1
    %6367 = vsyncpa %s6366, 1
    %6368 = vsyncpa [#allocation4], 1
    %s6369 = scalar_lea.sflag [#allocation4], 1
    %6370 = vsyncpa %s6369, 1

// kernel: tpu_custom_call.1
$region0: #{tpu_custom_call.1}
  #allocation0 [shape = 'u32[]', space=smem, size = 0x4, offset = 0x4, fixed_abs, tag = 'smem constant byte address 0x4 - core index']
  #allocation1 [shape = 'u32[144,128]{1,0:T(1,128)}', space=vmem, size = 0x12000, scoped, tag = 'internal scratch']
  %s0 = inlined_call_operand.hbm [shape: bf16[256,512], index: 0, kind: input, shape index: {}]
  %s1 = inlined_call_operand.hbm [shape: bf16[512,256], index: 1, kind: input, shape index: {}]
  %s2 = inlined_call_operand.vmem [shape: f32[1,256], index: 2, kind: input, shape index: {}]
  %s3 = inlined_call_operand.hbm [shape: f32[256,256], index: 3, kind: output, shape index: {}]
  %s4 = sld [smem:[#allocation0]]
  $region38: #{tpu_custom_call.1} parent=0
    _
  %s6 = ssub.s32 1, %s4
  %s7 = scalar_select 0, %s6, %s4
  $region1: #{tpu_custom_call.1} parent=0
    #allocation2 [shape = 'u8[262144]{0}', space=vmem, size = 0x40000, scoped, tag = 'input window, operand 0, single buffered']
    #allocation3 [shape = 's32[1]{0}', space=sflag, size = 0x4, scoped, tag = 'scoped memory for tpu_custom_call.1']
    #allocation4 [shape = 's32[1]{0}', space=sflag, size = 0x4, scoped, tag = 'scoped memory for tpu_custom_call.1']
    #allocation5 [shape = 'u8[262144]{0}', space=vmem, size = 0x40000, scoped, tag = 'input window, operand 1, single buffered']
    #allocation6 [shape = 's32[1]{0}', space=sflag, size = 0x4, scoped, tag = 'scoped memory for tpu_custom_call.1']
    #allocation7 [shape = 'u8[262144]{0}', space=vmem, size = 0x40000, scoped, tag = 'output window, operand 0, single buffered']
    %8 = vsyncpa [#allocation3], 0
    %9 = vsyncpa [#allocation6], 0
    %10 = vsyncpa [#allocation4], 0
    // Predicated region
    $region2: #{tpu_custom_call.1} parent=1 // pred_check
      _
    $region3: #{tpu_custom_call.1} parent=1 // pred_check_branch
      %12 = sbr.rel (0) target = $region5
    $region4: #{tpu_custom_call.1} parent=1 // pred_region
      %s14 = ssub.s32 8192, 8192
      %15 = vsyncadd [#allocation3], %s14
      %s16 = sshll.u32 [#allocation2], 4
      %s17 = int_to_ptr.vmem [resolvable:$true] %s16
      %22 = dma.hbm_to_vmem [thread:$0]  %s0, 8192, %s17, [#allocation3], 256, 256, 16
    $region5: #{tpu_custom_call.1} parent=1 // pred_fallthru
      _
    // Predicated region
    $region6: #{tpu_custom_call.1} parent=1 // pred_check
      _
    $region7: #{tpu_custom_call.1} parent=1 // pred_check_branch
      %24 = sbr.rel (0) target = $region9
    $region8: #{tpu_custom_call.1} parent=1 // pred_region
      %s26 = ssub.s32 8192, 8192
      %27 = vsyncadd [#allocation6], %s26
      %s28 = sshll.u32 [#allocation5], 4
      %s29 = int_to_ptr.vmem [resolvable:$true] %s28
      %34 = dma.hbm_to_vmem [thread:$0]  %s1, 8192, %s29, [#allocation6], 128, 128, 8
    $region9: #{tpu_custom_call.1} parent=1 // pred_fallthru
      _
    // Predicated region
    $region10: #{tpu_custom_call.1} parent=1 // pred_check
      _
    $region11: #{tpu_custom_call.1} parent=1 // pred_check_branch
      %36 = sbr.rel (0) target = $region13
    $region12: #{tpu_custom_call.1} parent=1 // pred_region
      _
    $region13: #{tpu_custom_call.1} parent=1 // pred_fallthru
      _
    // Predicated region
    $region14: #{tpu_custom_call.1} parent=1 // pred_check
      _
    $region15: #{tpu_custom_call.1} parent=1 // pred_check_branch
      %38 = sbr.rel (0) target = $region17
    $region16: #{tpu_custom_call.1} parent=1 // pred_region
      %39 = dma.done [#allocation3], 8192
    $region17: #{tpu_custom_call.1} parent=1 // pred_fallthru
      _
    // Predicated region
    $region18: #{tpu_custom_call.1} parent=1 // pred_check
      _
    $region19: #{tpu_custom_call.1} parent=1 // pred_check_branch
      %41 = sbr.rel (0) target = $region21
    $region20: #{tpu_custom_call.1} parent=1 // pred_region
      %42 = dma.done [#allocation6], 8192
    $region21: #{tpu_custom_call.1} parent=1 // pred_fallthru
      _
    %p43 = scmp.eq.s32.totalorder 0, 0
    // Predicated region
    $region22: #{tpu_custom_call.1} parent=1 // pred_check
      %p44 = pneg %p43
    $region23: #{tpu_custom_call.1} parent=1 // pred_check_branch
      %46 = sbr.rel (%p44) target = $region25
    $region24: #{tpu_custom_call.1} parent=1 // pred_region
      %47 = vst [vmem:[#allocation7] sm:$0xff] 0.0
      %48 = vst [vmem:[#allocation7 + $0x8] sm:$0xff] 0.0
      %49 = vst [vmem:[#allocation7 + $0x10] sm:$0xff] 0.0
      %50 = vst [vmem:[#allocation7 + $0x18] sm:$0xff] 0.0
      %51 = vst [vmem:[#allocation7 + $0x20] sm:$0xff] 0.0
      %52 = vst [vmem:[#allocation7 + $0x28] sm:$0xff] 0.0
      %53 = vst [vmem:[#allocation7 + $0x30] sm:$0xff] 0.0
      %54 = vst [vmem:[#allocation7 + $0x38] sm:$0xff] 0.0
      %55 = vst [vmem:[#allocation7 + $0x40] sm:$0xff] 0.0
      %56 = vst [vmem:[#allocation7 + $0x48] sm:$0xff] 0.0
      %57 = vst [vmem:[#allocation7 + $0x50] sm:$0xff] 0.0
      %58 = vst [vmem:[#allocation7 + $0x58] sm:$0xff] 0.0
      %59 = vst [vmem:[#allocation7 + $0x60] sm:$0xff] 0.0
      %60 = vst [vmem:[#allocation7 + $0x68] sm:$0xff] 0.0
      %61 = vst [vmem:[#allocation7 + $0x70] sm:$0xff] 0.0
      %62 = vst [vmem:[#allocation7 + $0x78] sm:$0xff] 0.0
      %63 = vst [vmem:[#allocation7 + $0x80] sm:$0xff] 0.0
      %64 = vst [vmem:[#allocation7 + $0x88] sm:$0xff] 0.0
      %65 = vst [vmem:[#allocation7 + $0x90] sm:$0xff] 0.0
      %66 = vst [vmem:[#allocation7 + $0x98] sm:$0xff] 0.0
      %67 = vst [vmem:[#allocation7 + $0xa0] sm:$0xff] 0.0
      %68 = vst [vmem:[#allocation7 + $0xa8] sm:$0xff] 0.0
      %69 = vst [vmem:[#allocation7 + $0xb0] sm:$0xff] 0.0
      %70 = vst [vmem:[#allocation7 + $0xb8] sm:$0xff] 0.0
      %71 = vst [vmem:[#allocation7 + $0xc0] sm:$0xff] 0.0
      %72 = vst [vmem:[#allocation7 + $0xc8] sm:$0xff] 0.0
      %73 = vst [vmem:[#allocation7 + $0xd0] sm:$0xff] 0.0
      %74 = vst [vmem:[#allocation7 + $0xd8] sm:$0xff] 0.0
      %75 = vst [vmem:[#allocation7 + $0xe0] sm:$0xff] 0.0
      %76 = vst [vmem:[#allocation7 + $0xe8] sm:$0xff] 0.0
      %77 = vst [vmem:[#allocation7 + $0xf0] sm:$0xff] 0.0
      %78 = vst [vmem:[#allocation7 + $0xf8] sm:$0xff] 0.0
      %79 = vst [vmem:[#allocation7 + $0x100] sm:$0xff] 0.0
      %80 = vst [vmem:[#allocation7 + $0x108] sm:$0xff] 0.0
      %81 = vst [vmem:[#allocation7 + $0x110] sm:$0xff] 0.0
      %82 = vst [vmem:[#allocation7 + $0x118] sm:$0xff] 0.0
      %83 = vst [vmem:[#allocation7 + $0x120] sm:$0xff] 0.0
      %84 = vst [vmem:[#allocation7 + $0x128] sm:$0xff] 0.0
      %85 = vst [vmem:[#allocation7 + $0x130] sm:$0xff] 0.0
      %86 = vst [vmem:[#allocation7 + $0x138] sm:$0xff] 0.0
      %87 = vst [vmem:[#allocation7 + $0x140] sm:$0xff] 0.0
      %88 = vst [vmem:[#allocation7 + $0x148] sm:$0xff] 0.0
      %89 = vst [vmem:[#allocation7 + $0x150] sm:$0xff] 0.0
      %90 = vst [vmem:[#allocation7 + $0x158] sm:$0xff] 0.0
      %91 = vst [vmem:[#allocation7 + $0x160] sm:$0xff] 0.0
      %92 = vst [vmem:[#allocation7 + $0x168] sm:$0xff] 0.0
      %93 = vst [vmem:[#allocation7 + $0x170] sm:$0xff] 0.0
      %94 = vst [vmem:[#allocation7 + $0x178] sm:$0xff] 0.0
      %95 = vst [vmem:[#allocation7 + $0x180] sm:$0xff] 0.0
      %96 = vst [vmem:[#allocation7 + $0x188] sm:$0xff] 0.0
      %97 = vst [vmem:[#allocation7 + $0x190] sm:$0xff] 0.0
      %98 = vst [vmem:[#allocation7 + $0x198] sm:$0xff] 0.0
      %99 = vst [vmem:[#allocation7 + $0x1a0] sm:$0xff] 0.0
      %100 = vst [vmem:[#allocation7 + $0x1a8] sm:$0xff] 0.0
      %101 = vst [vmem:[#allocation7 + $0x1b0] sm:$0xff] 0.0
      %102 = vst [vmem:[#allocation7 + $0x1b8] sm:$0xff] 0.0
      %103 = vst [vmem:[#allocation7 + $0x1c0] sm:$0xff] 0.0
      %104 = vst [vmem:[#allocation7 + $0x1c8] sm:$0xff] 0.0
      %105 = vst [vmem:[#allocation7 + $0x1d0] sm:$0xff] 0.0
      %106 = vst [vmem:[#allocation7 + $0x1d8] sm:$0xff] 0.0
      %107 = vst [vmem:[#allocation7 + $0x1e0] sm:$0xff] 0.0
      %108 = vst [vmem:[#allocation7 + $0x1e8] sm:$0xff] 0.0
      %109 = vst [vmem:[#allocation7 + $0x1f0] sm:$0xff] 0.0
      %110 = vst [vmem:[#allocation7 + $0x1f8] sm:$0xff] 0.0
    $region25: #{tpu_custom_call.1} parent=1 // pred_fallthru
      _
    %v111 = vld [vmem:[#allocation7] sm:$0xff]
    %v112 = vld [vmem:[#allocation7 + $0x8] sm:$0xff]
    %v113 = vld [vmem:[#allocation7 + $0x10] sm:$0xff]
    %v114 = vld [vmem:[#allocation7 + $0x18] sm:$0xff]
    %v115 = vld [vmem:[#allocation7 + $0x20] sm:$0xff]
    %v116 = vld [vmem:[#allocation7 + $0x28] sm:$0xff]
    %v117 = vld [vmem:[#allocation7 + $0x30] sm:$0xff]
    %v118 = vld [vmem:[#allocation7 + $0x38] sm:$0xff]
    %v119 = vld [vmem:[#allocation7 + $0x40] sm:$0xff]
    %v120 = vld [vmem:[#allocation7 + $0x48] sm:$0xff]
    %v121 = vld [vmem:[#allocation7 + $0x50] sm:$0xff]
    %v122 = vld [vmem:[#allocation7 + $0x58] sm:$0xff]
    %v123 = vld [vmem:[#allocation7 + $0x60] sm:$0xff]
    %v124 = vld [vmem:[#allocation7 + $0x68] sm:$0xff]
    %v125 = vld [vmem:[#allocation7 + $0x70] sm:$0xff]
    %v126 = vld [vmem:[#allocation7 + $0x78] sm:$0xff]
    %v127 = vld [vmem:[#allocation7 + $0x80] sm:$0xff]
    %v128 = vld [vmem:[#allocation7 + $0x88] sm:$0xff]
    %v129 = vld [vmem:[#allocation7 + $0x90] sm:$0xff]
    %v130 = vld [vmem:[#allocation7 + $0x98] sm:$0xff]
    %v131 = vld [vmem:[#allocation7 + $0xa0] sm:$0xff]
    %v132 = vld [vmem:[#allocation7 + $0xa8] sm:$0xff]
    %v133 = vld [vmem:[#allocation7 + $0xb0] sm:$0xff]
    %v134 = vld [vmem:[#allocation7 + $0xb8] sm:$0xff]
    %v135 = vld [vmem:[#allocation7 + $0xc0] sm:$0xff]
    %v136 = vld [vmem:[#allocation7 + $0xc8] sm:$0xff]
    %v137 = vld [vmem:[#allocation7 + $0xd0] sm:$0xff]
    %v138 = vld [vmem:[#allocation7 + $0xd8] sm:$0xff]
    %v139 = vld [vmem:[#allocation7 + $0xe0] sm:$0xff]
    %v140 = vld [vmem:[#allocation7 + $0xe8] sm:$0xff]
    %v141 = vld [vmem:[#allocation7 + $0xf0] sm:$0xff]
    %v142 = vld [vmem:[#allocation7 + $0xf8] sm:$0xff]
    %v143 = vld [vmem:[#allocation7 + $0x100] sm:$0xff]
    %v144 = vld [vmem:[#allocation7 + $0x108] sm:$0xff]
    %v145 = vld [vmem:[#allocation7 + $0x110] sm:$0xff]
    %v146 = vld [vmem:[#allocation7 + $0x118] sm:$0xff]
    %v147 = vld [vmem:[#allocation7 + $0x120] sm:$0xff]
    %v148 = vld [vmem:[#allocation7 + $0x128] sm:$0xff]
    %v149 = vld [vmem:[#allocation7 + $0x130] sm:$0xff]
    %v150 = vld [vmem:[#allocation7 + $0x138] sm:$0xff]
    %v151 = vld [vmem:[#allocation7 + $0x140] sm:$0xff]
    %v152 = vld [vmem:[#allocation7 + $0x148] sm:$0xff]
    %v153 = vld [vmem:[#allocation7 + $0x150] sm:$0xff]
    %v154 = vld [vmem:[#allocation7 + $0x158] sm:$0xff]
    %v155 = vld [vmem:[#allocation7 + $0x160] sm:$0xff]
    %v156 = vld [vmem:[#allocation7 + $0x168] sm:$0xff]
    %v157 = vld [vmem:[#allocation7 + $0x170] sm:$0xff]
    %v158 = vld [vmem:[#allocation7 + $0x178] sm:$0xff]
    %v159 = vld [vmem:[#allocation7 + $0x180] sm:$0xff]
    %v160 = vld [vmem:[#allocation7 + $0x188] sm:$0xff]
    %v161 = vld [vmem:[#allocation7 + $0x190] sm:$0xff]
    %v162 = vld [vmem:[#allocation7 + $0x198] sm:$0xff]
    %v163 = vld [vmem:[#allocation7 + $0x1a0] sm:$0xff]
    %v164 = vld [vmem:[#allocation7 + $0x1a8] sm:$0xff]
    %v165 = vld [vmem:[#allocation7 + $0x1b0] sm:$0xff]
    %v166 = vld [vmem:[#allocation7 + $0x1b8] sm:$0xff]
    %v167 = vld [vmem:[#allocation7 + $0x1c0] sm:$0xff]
    %v168 = vld [vmem:[#allocation7 + $0x1c8] sm:$0xff]
    %v169 = vld [vmem:[#allocation7 + $0x1d0] sm:$0xff]
    %v170 = vld [vmem:[#allocation7 + $0x1d8] sm:$0xff]
    %v171 = vld [vmem:[#allocation7 + $0x1e0] sm:$0xff]
    %v172 = vld [vmem:[#allocation7 + $0x1e8] sm:$0xff]
    %v173 = vld [vmem:[#allocation7 + $0x1f0] sm:$0xff]
    %v174 = vld [vmem:[#allocation7 + $0x1f8] sm:$0xff]
    %v175 = vld [vmem:[#allocation2] sm:$0xff]
    %v176 = vld [vmem:[#allocation2 + $0x8] sm:$0xff]
    %v177 = vld [vmem:[#allocation2 + $0x10] sm:$0xff]
    %v178 = vld [vmem:[#allocation2 + $0x18] sm:$0xff]
    %v179 = vld [vmem:[#allocation2 + $0x20] sm:$0xff]
    %v180 = vld [vmem:[#allocation2 + $0x28] sm:$0xff]
    %v181 = vld [vmem:[#allocation2 + $0x30] sm:$0xff]
    %v182 = vld [vmem:[#allocation2 + $0x38] sm:$0xff]
    %v183 = vld [vmem:[#allocation2 + $0x40] sm:$0xff]
    %v184 = vld [vmem:[#allocation2 + $0x48] sm:$0xff]
    %v185 = vld [vmem:[#allocation2 + $0x50] sm:$0xff]
    %v186 = vld [vmem:[#allocation2 + $0x58] sm:$0xff]
    %v187 = vld [vmem:[#allocation2 + $0x60] sm:$0xff]
    %v188 = vld [vmem:[#allocation2 + $0x68] sm:$0xff]
    %v189 = vld [vmem:[#allocation2 + $0x70] sm:$0xff]
    %v190 = vld [vmem:[#allocation2 + $0x78] sm:$0xff]
    %v191 = vld [vmem:[#allocation2 + $0x80] sm:$0xff]
    %v192 = vld [vmem:[#allocation2 + $0x88] sm:$0xff]
    %v193 = vld [vmem:[#allocation2 + $0x90] sm:$0xff]
    %v194 = vld [vmem:[#allocation2 + $0x98] sm:$0xff]
    %v195 = vld [vmem:[#allocation2 + $0xa0] sm:$0xff]
    %v196 = vld [vmem:[#allocation2 + $0xa8] sm:$0xff]
    %v197 = vld [vmem:[#allocation2 + $0xb0] sm:$0xff]
    %v198 = vld [vmem:[#allocation2 + $0xb8] sm:$0xff]
    %v199 = vld [vmem:[#allocation2 + $0xc0] sm:$0xff]
    %v200 = vld [vmem:[#allocation2 + $0xc8] sm:$0xff]
    %v201 = vld [vmem:[#allocation2 + $0xd0] sm:$0xff]
    %v202 = vld [vmem:[#allocation2 + $0xd8] sm:$0xff]
    %v203 = vld [vmem:[#allocation2 + $0xe0] sm:$0xff]
    %v204 = vld [vmem:[#allocation2 + $0xe8] sm:$0xff]
    %v205 = vld [vmem:[#allocation2 + $0xf0] sm:$0xff]
    %v206 = vld [vmem:[#allocation2 + $0xf8] sm:$0xff]
    %v207 = vld [vmem:[#allocation2 + $0x100] sm:$0xff]
    %v208 = vld [vmem:[#allocation2 + $0x108] sm:$0xff]
    %v209 = vld [vmem:[#allocation2 + $0x110] sm:$0xff]
    %v210 = vld [vmem:[#allocation2 + $0x118] sm:$0xff]
    %v211 = vld [vmem:[#allocation2 + $0x120] sm:$0xff]
    %v212 = vld [vmem:[#allocation2 + $0x128] sm:$0xff]
    %v213 = vld [vmem:[#allocation2 + $0x130] sm:$0xff]
    %v214 = vld [vmem:[#allocation2 + $0x138] sm:$0xff]
    %v215 = vld [vmem:[#allocation2 + $0x140] sm:$0xff]
    %v216 = vld [vmem:[#allocation2 + $0x148] sm:$0xff]
    %v217 = vld [vmem:[#allocation2 + $0x150] sm:$0xff]
    %v218 = vld [vmem:[#allocation2 + $0x158] sm:$0xff]
    %v219 = vld [vmem:[#allocation2 + $0x160] sm:$0xff]
    %v220 = vld [vmem:[#allocation2 + $0x168] sm:$0xff]
    %v221 = vld [vmem:[#allocation2 + $0x170] sm:$0xff]
    %v222 = vld [vmem:[#allocation2 + $0x178] sm:$0xff]
    %v223 = vld [vmem:[#allocation2 + $0x180] sm:$0xff]
    %v224 = vld [vmem:[#allocation2 + $0x188] sm:$0xff]
    %v225 = vld [vmem:[#allocation2 + $0x190] sm:$0xff]
    %v226 = vld [vmem:[#allocation2 + $0x198] sm:$0xff]
    %v227 = vld [vmem:[#allocation2 + $0x1a0] sm:$0xff]
    %v228 = vld [vmem:[#allocation2 + $0x1a8] sm:$0xff]
    %v229 = vld [vmem:[#allocation2 + $0x1b0] sm:$0xff]
    %v230 = vld [vmem:[#allocation2 + $0x1b8] sm:$0xff]
    %v231 = vld [vmem:[#allocation2 + $0x1c0] sm:$0xff]
    %v232 = vld [vmem:[#allocation2 + $0x1c8] sm:$0xff]
    %v233 = vld [vmem:[#allocation2 + $0x1d0] sm:$0xff]
    %v234 = vld [vmem:[#allocation2 + $0x1d8] sm:$0xff]
    %v235 = vld [vmem:[#allocation2 + $0x1e0] sm:$0xff]
    %v236 = vld [vmem:[#allocation2 + $0x1e8] sm:$0xff]
    %v237 = vld [vmem:[#allocation2 + $0x1f0] sm:$0xff]
    %v238 = vld [vmem:[#allocation2 + $0x1f8] sm:$0xff]
    %v239 = vld [vmem:[#allocation5] sm:$0xff]
    %v240 = vld [vmem:[#allocation5 + $0x8] sm:$0xff]
    %v241 = vld [vmem:[#allocation5 + $0x10] sm:$0xff]
    %v242 = vld [vmem:[#allocation5 + $0x18] sm:$0xff]
    %v243 = vld [vmem:[#allocation5 + $0x20] sm:$0xff]
    %v244 = vld [vmem:[#allocation5 + $0x28] sm:$0xff]
    %v245 = vld [vmem:[#allocation5 + $0x30] sm:$0xff]
    %v246 = vld [vmem:[#allocation5 + $0x38] sm:$0xff]
    %v247 = vld [vmem:[#allocation5 + $0x40] sm:$0xff]
    %v248 = vld [vmem:[#allocation5 + $0x48] sm:$0xff]
    %v249 = vld [vmem:[#allocation5 + $0x50] sm:$0xff]
    %v250 = vld [vmem:[#allocation5 + $0x58] sm:$0xff]
    %v251 = vld [vmem:[#allocation5 + $0x60] sm:$0xff]
    %v252 = vld [vmem:[#allocation5 + $0x68] sm:$0xff]
    %v253 = vld [vmem:[#allocation5 + $0x70] sm:$0xff]
    %v254 = vld [vmem:[#allocation5 + $0x78] sm:$0xff]
    %v255 = vld [vmem:[#allocation5 + $0x80] sm:$0xff]
    %v256 = vld [vmem:[#allocation5 + $0x88] sm:$0xff]
    %v257 = vld [vmem:[#allocation5 + $0x90] sm:$0xff]
    %v258 = vld [vmem:[#allocation5 + $0x98] sm:$0xff]
    %v259 = vld [vmem:[#allocation5 + $0xa0] sm:$0xff]
    %v260 = vld [vmem:[#allocation5 + $0xa8] sm:$0xff]
    %v261 = vld [vmem:[#allocation5 + $0xb0] sm:$0xff]
    %v262 = vld [vmem:[#allocation5 + $0xb8] sm:$0xff]
    %v263 = vld [vmem:[#allocation5 + $0xc0] sm:$0xff]
    %v264 = vld [vmem:[#allocation5 + $0xc8] sm:$0xff]
    %v265 = vld [vmem:[#allocation5 + $0xd0] sm:$0xff]
    %v266 = vld [vmem:[#allocation5 + $0xd8] sm:$0xff]
    %v267 = vld [vmem:[#allocation5 + $0xe0] sm:$0xff]
    %v268 = vld [vmem:[#allocation5 + $0xe8] sm:$0xff]
    %v269 = vld [vmem:[#allocation5 + $0xf0] sm:$0xff]
    %v270 = vld [vmem:[#allocation5 + $0xf8] sm:$0xff]
    %v271 = vld [vmem:[#allocation5 + $0x100] sm:$0xff]
    %v272 = vld [vmem:[#allocation5 + $0x108] sm:$0xff]
    %v273 = vld [vmem:[#allocation5 + $0x110] sm:$0xff]
    %v274 = vld [vmem:[#allocation5 + $0x118] sm:$0xff]
    %v275 = vld [vmem:[#allocation5 + $0x120] sm:$0xff]
    %v276 = vld [vmem:[#allocation5 + $0x128] sm:$0xff]
    %v277 = vld [vmem:[#allocation5 + $0x130] sm:$0xff]
    %v278 = vld [vmem:[#allocation5 + $0x138] sm:$0xff]
    %v279 = vld [vmem:[#allocation5 + $0x140] sm:$0xff]
    %v280 = vld [vmem:[#allocation5 + $0x148] sm:$0xff]
    %v281 = vld [vmem:[#allocation5 + $0x150] sm:$0xff]
    %v282 = vld [vmem:[#allocation5 + $0x158] sm:$0xff]
    %v283 = vld [vmem:[#allocation5 + $0x160] sm:$0xff]
    %v284 = vld [vmem:[#allocation5 + $0x168] sm:$0xff]
    %v285 = vld [vmem:[#allocation5 + $0x170] sm:$0xff]
    %v286 = vld [vmem:[#allocation5 + $0x178] sm:$0xff]
    %v287 = vld [vmem:[#allocation5 + $0x180] sm:$0xff]
    %v288 = vld [vmem:[#allocation5 + $0x188] sm:$0xff]
    %v289 = vld [vmem:[#allocation5 + $0x190] sm:$0xff]
    %v290 = vld [vmem:[#allocation5 + $0x198] sm:$0xff]
    %v291 = vld [vmem:[#allocation5 + $0x1a0] sm:$0xff]
    %v292 = vld [vmem:[#allocation5 + $0x1a8] sm:$0xff]
    %v293 = vld [vmem:[#allocation5 + $0x1b0] sm:$0xff]
    %v294 = vld [vmem:[#allocation5 + $0x1b8] sm:$0xff]
    %v295 = vld [vmem:[#allocation5 + $0x1c0] sm:$0xff]
    %v296 = vld [vmem:[#allocation5 + $0x1c8] sm:$0xff]
    %v297 = vld [vmem:[#allocation5 + $0x1d0] sm:$0xff]
    %v298 = vld [vmem:[#allocation5 + $0x1d8] sm:$0xff]
    %v299 = vld [vmem:[#allocation5 + $0x1e0] sm:$0xff]
    %v300 = vld [vmem:[#allocation5 + $0x1e8] sm:$0xff]
    %v301 = vld [vmem:[#allocation5 + $0x1f0] sm:$0xff]
    %v302 = vld [vmem:[#allocation5 + $0x1f8] sm:$0xff]
    %v367 = vunpack.c.l.b16 %v175
    %v368 = vunpack.c.h.b16 %v175
    %v369 = vunpack.c.l.b16 %v176
    %v370 = vunpack.c.h.b16 %v176
    %v371 = vunpack.c.l.b16 %v177
    %v372 = vunpack.c.h.b16 %v177
    %v373 = vunpack.c.l.b16 %v178
    %v374 = vunpack.c.h.b16 %v178
    %v375 = vunpack.c.l.b16 %v179
    %v376 = vunpack.c.h.b16 %v179
    %v377 = vunpack.c.l.b16 %v180
    %v378 = vunpack.c.h.b16 %v180
    %v379 = vunpack.c.l.b16 %v181
    %v380 = vunpack.c.h.b16 %v181
    %v381 = vunpack.c.l.b16 %v182
    %v382 = vunpack.c.h.b16 %v182
    %v383 = vunpack.c.l.b16 %v183
    %v384 = vunpack.c.h.b16 %v183
    %v385 = vunpack.c.l.b16 %v184
    %v386 = vunpack.c.h.b16 %v184
    %v387 = vunpack.c.l.b16 %v185
    %v388 = vunpack.c.h.b16 %v185
    %v389 = vunpack.c.l.b16 %v186
    %v390 = vunpack.c.h.b16 %v186
    %v391 = vunpack.c.l.b16 %v187
    %v392 = vunpack.c.h.b16 %v187
    %v393 = vunpack.c.l.b16 %v188
    %v394 = vunpack.c.h.b16 %v188
    %v395 = vunpack.c.l.b16 %v189
    %v396 = vunpack.c.h.b16 %v189
    %v397 = vunpack.c.l.b16 %v190
    %v398 = vunpack.c.h.b16 %v190
    %v399 = vunpack.c.l.b16 %v191
    %v400 = vunpack.c.h.b16 %v191
    %v401 = vunpack.c.l.b16 %v192
    %v402 = vunpack.c.h.b16 %v192
    %v403 = vunpack.c.l.b16 %v193
    %v404 = vunpack.c.h.b16 %v193
    %v405 = vunpack.c.l.b16 %v194
    %v406 = vunpack.c.h.b16 %v194
    %v407 = vunpack.c.l.b16 %v195
    %v408 = vunpack.c.h.b16 %v195
    %v409 = vunpack.c.l.b16 %v196
    %v410 = vunpack.c.h.b16 %v196
    %v411 = vunpack.c.l.b16 %v197
    %v412 = vunpack.c.h.b16 %v197
    %v413 = vunpack.c.l.b16 %v198
    %v414 = vunpack.c.h.b16 %v198
    %v415 = vunpack.c.l.b16 %v199
    %v416 = vunpack.c.h.b16 %v199
    %v417 = vunpack.c.l.b16 %v200
    %v418 = vunpack.c.h.b16 %v200
    %v419 = vunpack.c.l.b16 %v201
    %v420 = vunpack.c.h.b16 %v201
    %v421 = vunpack.c.l.b16 %v202
    %v422 = vunpack.c.h.b16 %v202
    %v423 = vunpack.c.l.b16 %v203
    %v424 = vunpack.c.h.b16 %v203
    %v425 = vunpack.c.l.b16 %v204
    %v426 = vunpack.c.h.b16 %v204
    %v427 = vunpack.c.l.b16 %v205
    %v428 = vunpack.c.h.b16 %v205
    %v429 = vunpack.c.l.b16 %v206
    %v430 = vunpack.c.h.b16 %v206
    %v431 = vunpack.c.l.b16 %v207
    %v432 = vunpack.c.h.b16 %v207
    %v433 = vunpack.c.l.b16 %v208
    %v434 = vunpack.c.h.b16 %v208
    %v435 = vunpack.c.l.b16 %v209
    %v436 = vunpack.c.h.b16 %v209
    %v437 = vunpack.c.l.b16 %v210
    %v438 = vunpack.c.h.b16 %v210
    %v439 = vunpack.c.l.b16 %v211
    %v440 = vunpack.c.h.b16 %v211
    %v441 = vunpack.c.l.b16 %v212
    %v442 = vunpack.c.h.b16 %v212
    %v443 = vunpack.c.l.b16 %v213
    %v444 = vunpack.c.h.b16 %v213
    %v445 = vunpack.c.l.b16 %v214
    %v446 = vunpack.c.h.b16 %v214
    %v447 = vunpack.c.l.b16 %v215
    %v448 = vunpack.c.h.b16 %v215
    %v449 = vunpack.c.l.b16 %v216
    %v450 = vunpack.c.h.b16 %v216
    %v451 = vunpack.c.l.b16 %v217
    %v452 = vunpack.c.h.b16 %v217
    %v453 = vunpack.c.l.b16 %v218
    %v454 = vunpack.c.h.b16 %v218
    %v455 = vunpack.c.l.b16 %v219
    %v456 = vunpack.c.h.b16 %v219
    %v457 = vunpack.c.l.b16 %v220
    %v458 = vunpack.c.h.b16 %v220
    %v459 = vunpack.c.l.b16 %v221
    %v460 = vunpack.c.h.b16 %v221
    %v461 = vunpack.c.l.b16 %v222
    %v462 = vunpack.c.h.b16 %v222
    %v463 = vunpack.c.l.b16 %v223
    %v464 = vunpack.c.h.b16 %v223
    %v465 = vunpack.c.l.b16 %v224
    %v466 = vunpack.c.h.b16 %v224
    %v467 = vunpack.c.l.b16 %v225
    %v468 = vunpack.c.h.b16 %v225
    %v469 = vunpack.c.l.b16 %v226
    %v470 = vunpack.c.h.b16 %v226
    %v471 = vunpack.c.l.b16 %v227
    %v472 = vunpack.c.h.b16 %v227
    %v473 = vunpack.c.l.b16 %v228
    %v474 = vunpack.c.h.b16 %v228
    %v475 = vunpack.c.l.b16 %v229
    %v476 = vunpack.c.h.b16 %v229
    %v477 = vunpack.c.l.b16 %v230
    %v478 = vunpack.c.h.b16 %v230
    %v479 = vunpack.c.l.b16 %v231
    %v480 = vunpack.c.h.b16 %v231
    %v481 = vunpack.c.l.b16 %v232
    %v482 = vunpack.c.h.b16 %v232
    %v483 = vunpack.c.l.b16 %v233
    %v484 = vunpack.c.h.b16 %v233
    %v485 = vunpack.c.l.b16 %v234
    %v486 = vunpack.c.h.b16 %v234
    %v487 = vunpack.c.l.b16 %v235
    %v488 = vunpack.c.h.b16 %v235
    %v489 = vunpack.c.l.b16 %v236
    %v490 = vunpack.c.h.b16 %v236
    %v491 = vunpack.c.l.b16 %v237
    %v492 = vunpack.c.h.b16 %v237
    %v493 = vunpack.c.l.b16 %v238
    %v494 = vunpack.c.h.b16 %v238
    %v495 = vpack.c.b16 %v371, %v367
    %v496 = vpack.c.b16 %v372, %v368
    %v497 = vpack.c.b16 %v373, %v369
    %v498 = vpack.c.b16 %v374, %v370
    %v499 = vpack.c.b16 %v379, %v375
    %v500 = vpack.c.b16 %v380, %v376
    %v501 = vpack.c.b16 %v381, %v377
    %v502 = vpack.c.b16 %v382, %v378
    %v503 = vpack.c.b16 %v387, %v383
    %v504 = vpack.c.b16 %v388, %v384
    %v505 = vpack.c.b16 %v389, %v385
    %v506 = vpack.c.b16 %v390, %v386
    %v507 = vpack.c.b16 %v395, %v391
    %v508 = vpack.c.b16 %v396, %v392
    %v509 = vpack.c.b16 %v397, %v393
    %v510 = vpack.c.b16 %v398, %v394
    %v511 = vpack.c.b16 %v403, %v399
    %v512 = vpack.c.b16 %v404, %v400
    %v513 = vpack.c.b16 %v405, %v401
    %v514 = vpack.c.b16 %v406, %v402
    %v515 = vpack.c.b16 %v411, %v407
    %v516 = vpack.c.b16 %v412, %v408
    %v517 = vpack.c.b16 %v413, %v409
    %v518 = vpack.c.b16 %v414, %v410
    %v519 = vpack.c.b16 %v419, %v415
    %v520 = vpack.c.b16 %v420, %v416
    %v521 = vpack.c.b16 %v421, %v417
    %v522 = vpack.c.b16 %v422, %v418
    %v523 = vpack.c.b16 %v427, %v423
    %v524 = vpack.c.b16 %v428, %v424
    %v525 = vpack.c.b16 %v429, %v425
    %v526 = vpack.c.b16 %v430, %v426
    %v527 = vpack.c.b16 %v435, %v431
    %v528 = vpack.c.b16 %v436, %v432
    %v529 = vpack.c.b16 %v437, %v433
    %v530 = vpack.c.b16 %v438, %v434
    %v531 = vpack.c.b16 %v443, %v439
    %v532 = vpack.c.b16 %v444, %v440
    %v533 = vpack.c.b16 %v445, %v441
    %v534 = vpack.c.b16 %v446, %v442
    %v535 = vpack.c.b16 %v451, %v447
    %v536 = vpack.c.b16 %v452, %v448
    %v537 = vpack.c.b16 %v453, %v449
    %v538 = vpack.c.b16 %v454, %v450
    %v539 = vpack.c.b16 %v459, %v455
    %v540 = vpack.c.b16 %v460, %v456
    %v541 = vpack.c.b16 %v461, %v457
    %v542 = vpack.c.b16 %v462, %v458
    %v543 = vpack.c.b16 %v467, %v463
    %v544 = vpack.c.b16 %v468, %v464
    %v545 = vpack.c.b16 %v469, %v465
    %v546 = vpack.c.b16 %v470, %v466
    %v547 = vpack.c.b16 %v475, %v471
    %v548 = vpack.c.b16 %v476, %v472
    %v549 = vpack.c.b16 %v477, %v473
    %v550 = vpack.c.b16 %v478, %v474
    %v551 = vpack.c.b16 %v483, %v479
    %v552 = vpack.c.b16 %v484, %v480
    %v553 = vpack.c.b16 %v485, %v481
    %v554 = vpack.c.b16 %v486, %v482
    %v555 = vpack.c.b16 %v491, %v487
    %v556 = vpack.c.b16 %v492, %v488
    %v557 = vpack.c.b16 %v493, %v489
    %v558 = vpack.c.b16 %v494, %v490
    %v687 = vunpack.c.l.b16 %v239
    %v688 = vunpack.c.h.b16 %v239
    %v689 = vunpack.c.l.b16 %v240
    %v690 = vunpack.c.h.b16 %v240
    %v691 = vunpack.c.l.b16 %v241
    %v692 = vunpack.c.h.b16 %v241
    %v693 = vunpack.c.l.b16 %v242
    %v694 = vunpack.c.h.b16 %v242
    %v695 = vunpack.c.l.b16 %v243
    %v696 = vunpack.c.h.b16 %v243
    %v697 = vunpack.c.l.b16 %v244
    %v698 = vunpack.c.h.b16 %v244
    %v699 = vunpack.c.l.b16 %v245
    %v700 = vunpack.c.h.b16 %v245
    %v701 = vunpack.c.l.b16 %v246
    %v702 = vunpack.c.h.b16 %v246
    %v703 = vunpack.c.l.b16 %v247
    %v704 = vunpack.c.h.b16 %v247
    %v705 = vunpack.c.l.b16 %v248
    %v706 = vunpack.c.h.b16 %v248
    %v707 = vunpack.c.l.b16 %v249
    %v708 = vunpack.c.h.b16 %v249
    %v709 = vunpack.c.l.b16 %v250
    %v710 = vunpack.c.h.b16 %v250
    %v711 = vunpack.c.l.b16 %v251
    %v712 = vunpack.c.h.b16 %v251
    %v713 = vunpack.c.l.b16 %v252
    %v714 = vunpack.c.h.b16 %v252
    %v715 = vunpack.c.l.b16 %v253
    %v716 = vunpack.c.h.b16 %v253
    %v717 = vunpack.c.l.b16 %v254
    %v718 = vunpack.c.h.b16 %v254
    %v719 = vunpack.c.l.b16 %v255
    %v720 = vunpack.c.h.b16 %v255
    %v721 = vunpack.c.l.b16 %v256
    %v722 = vunpack.c.h.b16 %v256
    %v723 = vunpack.c.l.b16 %v257
    %v724 = vunpack.c.h.b16 %v257
    %v725 = vunpack.c.l.b16 %v258
    %v726 = vunpack.c.h.b16 %v258
    %v727 = vunpack.c.l.b16 %v259
    %v728 = vunpack.c.h.b16 %v259
    %v729 = vunpack.c.l.b16 %v260
    %v730 = vunpack.c.h.b16 %v260
    %v731 = vunpack.c.l.b16 %v261
    %v732 = vunpack.c.h.b16 %v261
    %v733 = vunpack.c.l.b16 %v262
    %v734 = vunpack.c.h.b16 %v262
    %v735 = vunpack.c.l.b16 %v263
    %v736 = vunpack.c.h.b16 %v263
    %v737 = vunpack.c.l.b16 %v264
    %v738 = vunpack.c.h.b16 %v264
    %v739 = vunpack.c.l.b16 %v265
    %v740 = vunpack.c.h.b16 %v265
    %v741 = vunpack.c.l.b16 %v266
    %v742 = vunpack.c.h.b16 %v266
    %v743 = vunpack.c.l.b16 %v267
    %v744 = vunpack.c.h.b16 %v267
    %v745 = vunpack.c.l.b16 %v268
    %v746 = vunpack.c.h.b16 %v268
    %v747 = vunpack.c.l.b16 %v269
    %v748 = vunpack.c.h.b16 %v269
    %v749 = vunpack.c.l.b16 %v270
    %v750 = vunpack.c.h.b16 %v270
    %v751 = vunpack.c.l.b16 %v271
    %v752 = vunpack.c.h.b16 %v271
    %v753 = vunpack.c.l.b16 %v272
    %v754 = vunpack.c.h.b16 %v272
    %v755 = vunpack.c.l.b16 %v273
    %v756 = vunpack.c.h.b16 %v273
    %v757 = vunpack.c.l.b16 %v274
    %v758 = vunpack.c.h.b16 %v274
    %v759 = vunpack.c.l.b16 %v275
    %v760 = vunpack.c.h.b16 %v275
    %v761 = vunpack.c.l.b16 %v276
    %v762 = vunpack.c.h.b16 %v276
    %v763 = vunpack.c.l.b16 %v277
    %v764 = vunpack.c.h.b16 %v277
    %v765 = vunpack.c.l.b16 %v278
    %v766 = vunpack.c.h.b16 %v278
    %v767 = vunpack.c.l.b16 %v279
    %v768 = vunpack.c.h.b16 %v279
    %v769 = vunpack.c.l.b16 %v280
    %v770 = vunpack.c.h.b16 %v280
    %v771 = vunpack.c.l.b16 %v281
    %v772 = vunpack.c.h.b16 %v281
    %v773 = vunpack.c.l.b16 %v282
    %v774 = vunpack.c.h.b16 %v282
    %v775 = vunpack.c.l.b16 %v283
    %v776 = vunpack.c.h.b16 %v283
    %v777 = vunpack.c.l.b16 %v284
    %v778 = vunpack.c.h.b16 %v284
    %v779 = vunpack.c.l.b16 %v285
    %v780 = vunpack.c.h.b16 %v285
    %v781 = vunpack.c.l.b16 %v286
    %v782 = vunpack.c.h.b16 %v286
    %v783 = vunpack.c.l.b16 %v287
    %v784 = vunpack.c.h.b16 %v287
    %v785 = vunpack.c.l.b16 %v288
    %v786 = vunpack.c.h.b16 %v288
    %v787 = vunpack.c.l.b16 %v289
    %v788 = vunpack.c.h.b16 %v289
    %v789 = vunpack.c.l.b16 %v290
    %v790 = vunpack.c.h.b16 %v290
    %v791 = vunpack.c.l.b16 %v291
    %v792 = vunpack.c.h.b16 %v291
    %v793 = vunpack.c.l.b16 %v292
    %v794 = vunpack.c.h.b16 %v292
    %v795 = vunpack.c.l.b16 %v293
    %v796 = vunpack.c.h.b16 %v293
    %v797 = vunpack.c.l.b16 %v294
    %v798 = vunpack.c.h.b16 %v294
    %v799 = vunpack.c.l.b16 %v295
    %v800 = vunpack.c.h.b16 %v295
    %v801 = vunpack.c.l.b16 %v296
    %v802 = vunpack.c.h.b16 %v296
    %v803 = vunpack.c.l.b16 %v297
    %v804 = vunpack.c.h.b16 %v297
    %v805 = vunpack.c.l.b16 %v298
    %v806 = vunpack.c.h.b16 %v298
    %v807 = vunpack.c.l.b16 %v299
    %v808 = vunpack.c.h.b16 %v299
    %v809 = vunpack.c.l.b16 %v300
    %v810 = vunpack.c.h.b16 %v300
    %v811 = vunpack.c.l.b16 %v301
    %v812 = vunpack.c.h.b16 %v301
    %v813 = vunpack.c.l.b16 %v302
    %v814 = vunpack.c.h.b16 %v302
    %v815 = vpack.c.b16 %v689, %v687
    %v816 = vpack.c.b16 %v690, %v688
    %v817 = vpack.c.b16 %v693, %v691
    %v818 = vpack.c.b16 %v694, %v692
    %v819 = vpack.c.b16 %v697, %v695
    %v820 = vpack.c.b16 %v698, %v696
    %v821 = vpack.c.b16 %v701, %v699
    %v822 = vpack.c.b16 %v702, %v700
    %v823 = vpack.c.b16 %v705, %v703
    %v824 = vpack.c.b16 %v706, %v704
    %v825 = vpack.c.b16 %v709, %v707
    %v826 = vpack.c.b16 %v710, %v708
    %v827 = vpack.c.b16 %v713, %v711
    %v828 = vpack.c.b16 %v714, %v712
    %v829 = vpack.c.b16 %v717, %v715
    %v830 = vpack.c.b16 %v718, %v716
    %v831 = vpack.c.b16 %v721, %v719
    %v832 = vpack.c.b16 %v722, %v720
    %v833 = vpack.c.b16 %v725, %v723
    %v834 = vpack.c.b16 %v726, %v724
    %v835 = vpack.c.b16 %v729, %v727
    %v836 = vpack.c.b16 %v730, %v728
    %v837 = vpack.c.b16 %v733, %v731
    %v838 = vpack.c.b16 %v734, %v732
    %v839 = vpack.c.b16 %v737, %v735
    %v840 = vpack.c.b16 %v738, %v736
    %v841 = vpack.c.b16 %v741, %v739
    %v842 = vpack.c.b16 %v742, %v740
    %v843 = vpack.c.b16 %v745, %v743
    %v844 = vpack.c.b16 %v746, %v744
    %v845 = vpack.c.b16 %v749, %v747
    %v846 = vpack.c.b16 %v750, %v748
    %v847 = vpack.c.b16 %v753, %v751
    %v848 = vpack.c.b16 %v754, %v752
    %v849 = vpack.c.b16 %v757, %v755
    %v850 = vpack.c.b16 %v758, %v756
    %v851 = vpack.c.b16 %v761, %v759
    %v852 = vpack.c.b16 %v762, %v760
    %v853 = vpack.c.b16 %v765, %v763
    %v854 = vpack.c.b16 %v766, %v764
    %v855 = vpack.c.b16 %v769, %v767
    %v856 = vpack.c.b16 %v770, %v768
    %v857 = vpack.c.b16 %v773, %v771
    %v858 = vpack.c.b16 %v774, %v772
    %v859 = vpack.c.b16 %v777, %v775
    %v860 = vpack.c.b16 %v778, %v776
    %v861 = vpack.c.b16 %v781, %v779
    %v862 = vpack.c.b16 %v782, %v780
    %v863 = vpack.c.b16 %v785, %v783
    %v864 = vpack.c.b16 %v786, %v784
    %v865 = vpack.c.b16 %v789, %v787
    %v866 = vpack.c.b16 %v790, %v788
    %v867 = vpack.c.b16 %v793, %v791
    %v868 = vpack.c.b16 %v794, %v792
    %v869 = vpack.c.b16 %v797, %v795
    %v870 = vpack.c.b16 %v798, %v796
    %v871 = vpack.c.b16 %v801, %v799
    %v872 = vpack.c.b16 %v802, %v800
    %v873 = vpack.c.b16 %v805, %v803
    %v874 = vpack.c.b16 %v806, %v804
    %v875 = vpack.c.b16 %v809, %v807
    %v876 = vpack.c.b16 %v810, %v808
    %v877 = vpack.c.b16 %v813, %v811
    %v878 = vpack.c.b16 %v814, %v812
    %943 = vmatprep.subr.bf16.mxu0 %v816
    %944 = vmatpush1.bf16.msra.mxu0 %v815
    %945 = vmatprep.subr.bf16.mxu0 %v818
    %946 = vmatpush1.bf16.msra.mxu0 %v817
    %947 = vmatprep.subr.bf16.mxu0 %v820
    %948 = vmatpush1.bf16.msra.mxu0 %v819
    %949 = vmatprep.subr.bf16.mxu0 %v822
    %950 = vmatpush1.bf16.msra.mxu0 %v821
    %951 = vmatprep.subr.bf16.mxu0 %v824
    %952 = vmatpush1.bf16.msra.mxu0 %v823
    %953 = vmatprep.subr.bf16.mxu0 %v826
    %954 = vmatpush1.bf16.msra.mxu0 %v825
    %955 = vmatprep.subr.bf16.mxu0 %v828
    %956 = vmatpush1.bf16.msra.mxu0 %v827
    %957 = vmatprep.subr.bf16.mxu0 %v830
    %958 = vmatpush1.bf16.msra.mxu0 %v829
    %959 = vmatprep.subr.bf16.mxu0 %v832
    %960 = vmatpush1.bf16.msra.mxu0 %v831
    %961 = vmatprep.subr.bf16.mxu0 %v834
    %962 = vmatpush1.bf16.msra.mxu0 %v833
    %963 = vmatprep.subr.bf16.mxu0 %v836
    %964 = vmatpush1.bf16.msra.mxu0 %v835
    %965 = vmatprep.subr.bf16.mxu0 %v838
    %966 = vmatpush1.bf16.msra.mxu0 %v837
    %967 = vmatprep.subr.bf16.mxu0 %v840
    %968 = vmatpush1.bf16.msra.mxu0 %v839
    %969 = vmatprep.subr.bf16.mxu0 %v842
    %970 = vmatpush1.bf16.msra.mxu0 %v841
    %971 = vmatprep.subr.bf16.mxu0 %v844
    %972 = vmatpush1.bf16.msra.mxu0 %v843
    %973 = vmatprep.subr.bf16.mxu0 %v846
    %974 = vmatpush1.bf16.msra.mxu0 %v845
    %975 = vmatprep.mubr.bf16.mxu0 %v496
    %976 = vmatmul.mubr.bf16.gmra.mrb[0].mxu0 %v495
    %v977 = vpop.f32.mrb[0].mxu0
    %v978 = vadd.f32 0.0, %v977
    %v979 = vpop.f32.mrb[0].mxu0
    %v980 = vadd.f32 0.0, %v979
    %v981 = vpop.f32.mrb[0].mxu0
    %v982 = vadd.f32 0.0, %v981
    %v983 = vpop.f32.mrb[0].mxu0
    %v984 = vadd.f32 0.0, %v983
    %985 = vmatprep.mubr.bf16.mxu0 %v500
    %986 = vmatmul.mubr.bf16.gmra.mrb[0].mxu0 %v499
    %v987 = vpop.f32.mrb[0].mxu0
    %v988 = vadd.f32 0.0, %v987
    %v989 = vpop.f32.mrb[0].mxu0
    %v990 = vadd.f32 0.0, %v989
    %v991 = vpop.f32.mrb[0].mxu0
    %v992 = vadd.f32 0.0, %v991
    %v993 = vpop.f32.mrb[0].mxu0
    %v994 = vadd.f32 0.0, %v993
    %995 = vmatprep.mubr.bf16.mxu0 %v504
    %996 = vmatmul.mubr.bf16.gmra.mrb[0].mxu0 %v503
    %v997 = vpop.f32.mrb[0].mxu0
    %v998 = vadd.f32 0.0, %v997
    %v999 = vpop.f32.mrb[0].mxu0
    %v1000 = vadd.f32 0.0, %v999
    %v1001 = vpop.f32.mrb[0].mxu0
    %v1002 = vadd.f32 0.0, %v1001
    %v1003 = vpop.f32.mrb[0].mxu0
    %v1004 = vadd.f32 0.0, %v1003
    %1005 = vmatprep.mubr.bf16.mxu0 %v508
    %1006 = vmatmul.mubr.bf16.gmra.mrb[0].mxu0 %v507
    %v1007 = vpop.f32.mrb[0].mxu0
    %v1008 = vadd.f32 0.0, %v1007
    %v1009 = vpop.f32.mrb[0].mxu0
    %v1010 = vadd.f32 0.0, %v1009
    %v1011 = vpop.f32.mrb[0].mxu0
    %v1012 = vadd.f32 0.0, %v1011
    %v1013 = vpop.f32.mrb[0].mxu0
    %v1014 = vadd.f32 0.0, %v1013
    %1015 = vmatprep.mubr.bf16.mxu0 %v512
    %1016 = vmatmul.mubr.bf16.gmra.mrb[0].mxu0 %v511
    %v1017 = vpop.f32.mrb[0].mxu0
    %v1018 = vadd.f32 0.0, %v1017
    %v1019 = vpop.f32.mrb[0].mxu0
    %v1020 = vadd.f32 0.0, %v1019
    %v1021 = vpop.f32.mrb[0].mxu0
    %v1022 = vadd.f32 0.0, %v1021
    %v1023 = vpop.f32.mrb[0].mxu0
    %v1024 = vadd.f32 0.0, %v1023
    %1025 = vmatprep.mubr.bf16.mxu0 %v516
    %1026 = vmatmul.mubr.bf16.gmra.mrb[0].mxu0 %v515
    %v1027 = vpop.f32.mrb[0].mxu0
    %v1028 = vadd.f32 0.0, %v1027
    %v1029 = vpop.f32.mrb[0].mxu0
    %v1030 = vadd.f32 0.0, %v1029
    %v1031 = vpop.f32.mrb[0].mxu0
    %v1032 = vadd.f32 0.0, %v1031
    %v1033 = vpop.f32.mrb[0].mxu0
    %v1034 = vadd.f32 0.0, %v1033
    %1035 = vmatprep.mubr.bf16.mxu0 %v520
    %1036 = vmatmul.mubr.bf16.gmra.mrb[0].mxu0 %v519
    %v1037 = vpop.f32.mrb[0].mxu0
    %v1038 = vadd.f32 0.0, %v1037
    %v1039 = vpop.f32.mrb[0].mxu0
    %v1040 = vadd.f32 0.0, %v1039
    %v1041 = vpop.f32.mrb[0].mxu0
    %v1042 = vadd.f32 0.0, %v1041
    %v1043 = vpop.f32.mrb[0].mxu0
    %v1044 = vadd.f32 0.0, %v1043
    %1045 = vmatprep.mubr.bf16.mxu0 %v524
    %1046 = vmatmul.mubr.bf16.gmra.mrb[0].mxu0 %v523
    %v1047 = vpop.f32.mrb[0].mxu0
    %v1048 = vadd.f32 0.0, %v1047
    %v1049 = vpop.f32.mrb[0].mxu0
    %v1050 = vadd.f32 0.0, %v1049
    %v1051 = vpop.f32.mrb[0].mxu0
    %v1052 = vadd.f32 0.0, %v1051
    %v1053 = vpop.f32.mrb[0].mxu0
    %v1054 = vadd.f32 0.0, %v1053
    %1055 = vmatprep.mubr.bf16.mxu0 %v528
    %1056 = vmatmul.mubr.bf16.gmra.mrb[0].mxu0 %v527
    %v1057 = vpop.f32.mrb[0].mxu0
    %v1058 = vadd.f32 0.0, %v1057
    %v1059 = vpop.f32.mrb[0].mxu0
    %v1060 = vadd.f32 0.0, %v1059
    %v1061 = vpop.f32.mrb[0].mxu0
    %v1062 = vadd.f32 0.0, %v1061
    %v1063 = vpop.f32.mrb[0].mxu0
    %v1064 = vadd.f32 0.0, %v1063
    %1065 = vmatprep.mubr.bf16.mxu0 %v532
    %1066 = vmatmul.mubr.bf16.gmra.mrb[0].mxu0 %v531
    %v1067 = vpop.f32.mrb[0].mxu0
    %v1068 = vadd.f32 0.0, %v1067
    %v1069 = vpop.f32.mrb[0].mxu0
    %v1070 = vadd.f32 0.0, %v1069
    %v1071 = vpop.f32.mrb[0].mxu0
    %v1072 = vadd.f32 0.0, %v1071
    %v1073 = vpop.f32.mrb[0].mxu0
    %v1074 = vadd.f32 0.0, %v1073
    %1075 = vmatprep.mubr.bf16.mxu0 %v536
    %1076 = vmatmul.mubr.bf16.gmra.mrb[0].mxu0 %v535
    %v1077 = vpop.f32.mrb[0].mxu0
    %v1078 = vadd.f32 0.0, %v1077
    %v1079 = vpop.f32.mrb[0].mxu0
    %v1080 = vadd.f32 0.0, %v1079
    %v1081 = vpop.f32.mrb[0].mxu0
    %v1082 = vadd.f32 0.0, %v1081
    %v1083 = vpop.f32.mrb[0].mxu0
    %v1084 = vadd.f32 0.0, %v1083
    %1085 = vmatprep.mubr.bf16.mxu0 %v540
    %1086 = vmatmul.mubr.bf16.gmra.mrb[0].mxu0 %v539
    %v1087 = vpop.f32.mrb[0].mxu0
    %v1088 = vadd.f32 0.0, %v1087
    %v1089 = vpop.f32.mrb[0].mxu0
    %v1090 = vadd.f32 0.0, %v1089
    %v1091 = vpop.f32.mrb[0].mxu0
    %v1092 = vadd.f32 0.0, %v1091
    %v1093 = vpop.f32.mrb[0].mxu0
    %v1094 = vadd.f32 0.0, %v1093
    %1095 = vmatprep.mubr.bf16.mxu0 %v544
    %1096 = vmatmul.mubr.bf16.gmra.mrb[0].mxu0 %v543
    %v1097 = vpop.f32.mrb[0].mxu0
    %v1098 = vadd.f32 0.0, %v1097
    %v1099 = vpop.f32.mrb[0].mxu0
    %v1100 = vadd.f32 0.0, %v1099
    %v1101 = vpop.f32.mrb[0].mxu0
    %v1102 = vadd.f32 0.0, %v1101
    %v1103 = vpop.f32.mrb[0].mxu0
    %v1104 = vadd.f32 0.0, %v1103
    %1105 = vmatprep.mubr.bf16.mxu0 %v548
    %1106 = vmatmul.mubr.bf16.gmra.mrb[0].mxu0 %v547
    %v1107 = vpop.f32.mrb[0].mxu0
    %v1108 = vadd.f32 0.0, %v1107
    %v1109 = vpop.f32.mrb[0].mxu0
    %v1110 = vadd.f32 0.0, %v1109
    %v1111 = vpop.f32.mrb[0].mxu0
    %v1112 = vadd.f32 0.0, %v1111
    %v1113 = vpop.f32.mrb[0].mxu0
    %v1114 = vadd.f32 0.0, %v1113
    %1115 = vmatprep.mubr.bf16.mxu0 %v552
    %1116 = vmatmul.mubr.bf16.gmra.mrb[0].mxu0 %v551
    %v1117 = vpop.f32.mrb[0].mxu0
    %v1118 = vadd.f32 0.0, %v1117
    %v1119 = vpop.f32.mrb[0].mxu0
    %v1120 = vadd.f32 0.0, %v1119
    %v1121 = vpop.f32.mrb[0].mxu0
    %v1122 = vadd.f32 0.0, %v1121
    %v1123 = vpop.f32.mrb[0].mxu0
    %v1124 = vadd.f32 0.0, %v1123
    %1125 = vmatprep.mubr.bf16.mxu0 %v556
    %1126 = vmatmul.mubr.bf16.gmra.mrb[0].mxu0 %v555
    %v1127 = vpop.f32.mrb[0].mxu0
    %v1128 = vadd.f32 0.0, %v1127
    %v1129 = vpop.f32.mrb[0].mxu0
    %v1130 = vadd.f32 0.0, %v1129
    %v1131 = vpop.f32.mrb[0].mxu0
    %v1132 = vadd.f32 0.0, %v1131
    %v1133 = vpop.f32.mrb[0].mxu0
    %v1134 = vadd.f32 0.0, %v1133
    %1135 = vdwg.mxu0
    %1136 = vmatprep.subr.bf16.mxu0 %v848
    %1137 = vmatpush1.bf16.msra.mxu0 %v847
    %1138 = vmatprep.subr.bf16.mxu0 %v850
    %1139 = vmatpush1.bf16.msra.mxu0 %v849
    %1140 = vmatprep.subr.bf16.mxu0 %v852
    %1141 = vmatpush1.bf16.msra.mxu0 %v851
    %1142 = vmatprep.subr.bf16.mxu0 %v854
    %1143 = vmatpush1.bf16.msra.mxu0 %v853
    %1144 = vmatprep.subr.bf16.mxu0 %v856
    %1145 = vmatpush1.bf16.msra.mxu0 %v855
    %1146 = vmatprep.subr.bf16.mxu0 %v858
    %1147 = vmatpush1.bf16.msra.mxu0 %v857
    %1148 = vmatprep.subr.bf16.mxu0 %v860
    %1149 = vmatpush1.bf16.msra.mxu0 %v859
    %1150 = vmatprep.subr.bf16.mxu0 %v862
    %1151 = vmatpush1.bf16.msra.mxu0 %v861
    %1152 = vmatprep.subr.bf16.mxu0 %v864
    %1153 = vmatpush1.bf16.msra.mxu0 %v863
    %1154 = vmatprep.subr.bf16.mxu0 %v866
    %1155 = vmatpush1.bf16.msra.mxu0 %v865
    %1156 = vmatprep.subr.bf16.mxu0 %v868
    %1157 = vmatpush1.bf16.msra.mxu0 %v867
    %1158 = vmatprep.subr.bf16.mxu0 %v870
    %1159 = vmatpush1.bf16.msra.mxu0 %v869
    %1160 = vmatprep.subr.bf16.mxu0 %v872
    %1161 = vmatpush1.bf16.msra.mxu0 %v871
    %1162 = vmatprep.subr.bf16.mxu0 %v874
    %1163 = vmatpush1.bf16.msra.mxu0 %v873
    %1164 = vmatprep.subr.bf16.mxu0 %v876
    %1165 = vmatpush1.bf16.msra.mxu0 %v875
    %1166 = vmatprep.subr.bf16.mxu0 %v878
    %1167 = vmatpush1.bf16.msra.mxu0 %v877
    %1168 = vmatprep.mubr.bf16.mxu0 %v498
    %1169 = vmatmul.mubr.bf16.gmra.mrb[0].mxu0 %v497
    %v1170 = vpop.f32.mrb[0].mxu0
    %v1171 = vadd.f32 %v978, %v1170
    %v1172 = vpop.f32.mrb[0].mxu0
    %v1173 = vadd.f32 %v980, %v1172
    %v1174 = vpop.f32.mrb[0].mxu0
    %v1175 = vadd.f32 %v982, %v1174
    %v1176 = vpop.f32.mrb[0].mxu0
    %v1177 = vadd.f32 %v984, %v1176
    %1178 = vmatprep.mubr.bf16.mxu0 %v502
    %1179 = vmatmul.mubr.bf16.gmra.mrb[0].mxu0 %v501
    %v1180 = vpop.f32.mrb[0].mxu0
    %v1181 = vadd.f32 %v988, %v1180
    %v1182 = vpop.f32.mrb[0].mxu0
    %v1183 = vadd.f32 %v990, %v1182
    %v1184 = vpop.f32.mrb[0].mxu0
    %v1185 = vadd.f32 %v992, %v1184
    %v1186 = vpop.f32.mrb[0].mxu0
    %v1187 = vadd.f32 %v994, %v1186
    %1188 = vmatprep.mubr.bf16.mxu0 %v506
    %1189 = vmatmul.mubr.bf16.gmra.mrb[0].mxu0 %v505
    %v1190 = vpop.f32.mrb[0].mxu0
    %v1191 = vadd.f32 %v998, %v1190
    %v1192 = vpop.f32.mrb[0].mxu0
    %v1193 = vadd.f32 %v1000, %v1192
    %v1194 = vpop.f32.mrb[0].mxu0
    %v1195 = vadd.f32 %v1002, %v1194
    %v1196 = vpop.f32.mrb[0].mxu0
    %v1197 = vadd.f32 %v1004, %v1196
    %1198 = vmatprep.mubr.bf16.mxu0 %v510
    %1199 = vmatmul.mubr.bf16.gmra.mrb[0].mxu0 %v509
    %v1200 = vpop.f32.mrb[0].mxu0
    %v1201 = vadd.f32 %v1008, %v1200
    %v1202 = vpop.f32.mrb[0].mxu0
    %v1203 = vadd.f32 %v1010, %v1202
    %v1204 = vpop.f32.mrb[0].mxu0
    %v1205 = vadd.f32 %v1012, %v1204
    %v1206 = vpop.f32.mrb[0].mxu0
    %v1207 = vadd.f32 %v1014, %v1206
    %1208 = vmatprep.mubr.bf16.mxu0 %v514
    %1209 = vmatmul.mubr.bf16.gmra.mrb[0].mxu0 %v513
    %v1210 = vpop.f32.mrb[0].mxu0
    %v1211 = vadd.f32 %v1018, %v1210
    %v1212 = vpop.f32.mrb[0].mxu0
    %v1213 = vadd.f32 %v1020, %v1212
    %v1214 = vpop.f32.mrb[0].mxu0
    %v1215 = vadd.f32 %v1022, %v1214
    %v1216 = vpop.f32.mrb[0].mxu0
    %v1217 = vadd.f32 %v1024, %v1216
    %1218 = vmatprep.mubr.bf16.mxu0 %v518
    %1219 = vmatmul.mubr.bf16.gmra.mrb[0].mxu0 %v517
    %v1220 = vpop.f32.mrb[0].mxu0
    %v1221 = vadd.f32 %v1028, %v1220
    %v1222 = vpop.f32.mrb[0].mxu0
    %v1223 = vadd.f32 %v1030, %v1222
    %v1224 = vpop.f32.mrb[0].mxu0
    %v1225 = vadd.f32 %v1032, %v1224
    %v1226 = vpop.f32.mrb[0].mxu0
    %v1227 = vadd.f32 %v1034, %v1226
    %1228 = vmatprep.mubr.bf16.mxu0 %v522
    %1229 = vmatmul.mubr.bf16.gmra.mrb[0].mxu0 %v521
    %v1230 = vpop.f32.mrb[0].mxu0
    %v1231 = vadd.f32 %v1038, %v1230
    %v1232 = vpop.f32.mrb[0].mxu0
    %v1233 = vadd.f32 %v1040, %v1232
    %v1234 = vpop.f32.mrb[0].mxu0
    %v1235 = vadd.f32 %v1042, %v1234
    %v1236 = vpop.f32.mrb[0].mxu0
    %v1237 = vadd.f32 %v1044, %v1236
    %1238 = vmatprep.mubr.bf16.mxu0 %v526
    %1239 = vmatmul.mubr.bf16.gmra.mrb[0].mxu0 %v525
    %v1240 = vpop.f32.mrb[0].mxu0
    %v1241 = vadd.f32 %v1048, %v1240
    %v1242 = vpop.f32.mrb[0].mxu0
    %v1243 = vadd.f32 %v1050, %v1242
    %v1244 = vpop.f32.mrb[0].mxu0
    %v1245 = vadd.f32 %v1052, %v1244
    %v1246 = vpop.f32.mrb[0].mxu0
    %v1247 = vadd.f32 %v1054, %v1246
    %1248 = vmatprep.mubr.bf16.mxu0 %v530
    %1249 = vmatmul.mubr.bf16.gmra.mrb[0].mxu0 %v529
    %v1250 = vpop.f32.mrb[0].mxu0
    %v1251 = vadd.f32 %v1058, %v1250
    %v1252 = vpop.f32.mrb[0].mxu0
    %v1253 = vadd.f32 %v1060, %v1252
    %v1254 = vpop.f32.mrb[0].mxu0
    %v1255 = vadd.f32 %v1062, %v1254
    %v1256 = vpop.f32.mrb[0].mxu0
    %v1257 = vadd.f32 %v1064, %v1256
    %1258 = vmatprep.mubr.bf16.mxu0 %v534
    %1259 = vmatmul.mubr.bf16.gmra.mrb[0].mxu0 %v533
    %v1260 = vpop.f32.mrb[0].mxu0
    %v1261 = vadd.f32 %v1068, %v1260
    %v1262 = vpop.f32.mrb[0].mxu0
    %v1263 = vadd.f32 %v1070, %v1262
    %v1264 = vpop.f32.mrb[0].mxu0
    %v1265 = vadd.f32 %v1072, %v1264
    %v1266 = vpop.f32.mrb[0].mxu0
    %v1267 = vadd.f32 %v1074, %v1266
    %1268 = vmatprep.mubr.bf16.mxu0 %v538
    %1269 = vmatmul.mubr.bf16.gmra.mrb[0].mxu0 %v537
    %v1270 = vpop.f32.mrb[0].mxu0
    %v1271 = vadd.f32 %v1078, %v1270
    %v1272 = vpop.f32.mrb[0].mxu0
    %v1273 = vadd.f32 %v1080, %v1272
    %v1274 = vpop.f32.mrb[0].mxu0
    %v1275 = vadd.f32 %v1082, %v1274
    %v1276 = vpop.f32.mrb[0].mxu0
    %v1277 = vadd.f32 %v1084, %v1276
    %1278 = vmatprep.mubr.bf16.mxu0 %v542
    %1279 = vmatmul.mubr.bf16.gmra.mrb[0].mxu0 %v541
    %v1280 = vpop.f32.mrb[0].mxu0
    %v1281 = vadd.f32 %v1088, %v1280
    %v1282 = vpop.f32.mrb[0].mxu0
    %v1283 = vadd.f32 %v1090, %v1282
    %v1284 = vpop.f32.mrb[0].mxu0
    %v1285 = vadd.f32 %v1092, %v1284
    %v1286 = vpop.f32.mrb[0].mxu0
    %v1287 = vadd.f32 %v1094, %v1286
    %1288 = vmatprep.mubr.bf16.mxu0 %v546
    %1289 = vmatmul.mubr.bf16.gmra.mrb[0].mxu0 %v545
    %v1290 = vpop.f32.mrb[0].mxu0
    %v1291 = vadd.f32 %v1098, %v1290
    %v1292 = vpop.f32.mrb[0].mxu0
    %v1293 = vadd.f32 %v1100, %v1292
    %v1294 = vpop.f32.mrb[0].mxu0
    %v1295 = vadd.f32 %v1102, %v1294
    %v1296 = vpop.f32.mrb[0].mxu0
    %v1297 = vadd.f32 %v1104, %v1296
    %1298 = vmatprep.mubr.bf16.mxu0 %v550
    %1299 = vmatmul.mubr.bf16.gmra.mrb[0].mxu0 %v549
    %v1300 = vpop.f32.mrb[0].mxu0
    %v1301 = vadd.f32 %v1108, %v1300
    %v1302 = vpop.f32.mrb[0].mxu0
    %v1303 = vadd.f32 %v1110, %v1302
    %v1304 = vpop.f32.mrb[0].mxu0
    %v1305 = vadd.f32 %v1112, %v1304
    %v1306 = vpop.f32.mrb[0].mxu0
    %v1307 = vadd.f32 %v1114, %v1306
    %1308 = vmatprep.mubr.bf16.mxu0 %v554
    %1309 = vmatmul.mubr.bf16.gmra.mrb[0].mxu0 %v553
    %v1310 = vpop.f32.mrb[0].mxu0
    %v1311 = vadd.f32 %v1118, %v1310
    %v1312 = vpop.f32.mrb[0].mxu0
    %v1313 = vadd.f32 %v1120, %v1312
    %v1314 = vpop.f32.mrb[0].mxu0
    %v1315 = vadd.f32 %v1122, %v1314
    %v1316 = vpop.f32.mrb[0].mxu0
    %v1317 = vadd.f32 %v1124, %v1316
    %1318 = vmatprep.mubr.bf16.mxu0 %v558
    %1319 = vmatmul.mubr.bf16.gmra.mrb[0].mxu0 %v557
    %v1320 = vpop.f32.mrb[0].mxu0
    %v1321 = vadd.f32 %v1128, %v1320
    %v1322 = vpop.f32.mrb[0].mxu0
    %v1323 = vadd.f32 %v1130, %v1322
    %v1324 = vpop.f32.mrb[0].mxu0
    %v1325 = vadd.f32 %v1132, %v1324
    %v1326 = vpop.f32.mrb[0].mxu0
    %v1327 = vadd.f32 %v1134, %v1326
    %1328 = vdwg.mxu0
    %v1329 = vadd.f32 %v111, %v1171
    %v1330 = vadd.f32 %v112, %v1173
    %v1331 = vadd.f32 %v113, %v1175
    %v1332 = vadd.f32 %v114, %v1177
    %v1333 = vadd.f32 %v115, %v1181
    %v1334 = vadd.f32 %v116, %v1183
    %v1335 = vadd.f32 %v117, %v1185
    %v1336 = vadd.f32 %v118, %v1187
    %v1337 = vadd.f32 %v119, %v1191
    %v1338 = vadd.f32 %v120, %v1193
    %v1339 = vadd.f32 %v121, %v1195
    %v1340 = vadd.f32 %v122, %v1197
    %v1341 = vadd.f32 %v123, %v1201
    %v1342 = vadd.f32 %v124, %v1203
    %v1343 = vadd.f32 %v125, %v1205
    %v1344 = vadd.f32 %v126, %v1207
    %v1345 = vadd.f32 %v127, %v1211
    %v1346 = vadd.f32 %v128, %v1213
    %v1347 = vadd.f32 %v129, %v1215
    %v1348 = vadd.f32 %v130, %v1217
    %v1349 = vadd.f32 %v131, %v1221
    %v1350 = vadd.f32 %v132, %v1223
    %v1351 = vadd.f32 %v133, %v1225
    %v1352 = vadd.f32 %v134, %v1227
    %v1353 = vadd.f32 %v135, %v1231
    %v1354 = vadd.f32 %v136, %v1233
    %v1355 = vadd.f32 %v137, %v1235
    %v1356 = vadd.f32 %v138, %v1237
    %v1357 = vadd.f32 %v139, %v1241
    %v1358 = vadd.f32 %v140, %v1243
    %v1359 = vadd.f32 %v141, %v1245
    %v1360 = vadd.f32 %v142, %v1247
    %v1361 = vadd.f32 %v143, %v1251
    %v1362 = vadd.f32 %v144, %v1253
    %v1363 = vadd.f32 %v145, %v1255
    %v1364 = vadd.f32 %v146, %v1257
    %v1365 = vadd.f32 %v147, %v1261
    %v1366 = vadd.f32 %v148, %v1263
    %v1367 = vadd.f32 %v149, %v1265
    %v1368 = vadd.f32 %v150, %v1267
    %v1369 = vadd.f32 %v151, %v1271
    %v1370 = vadd.f32 %v152, %v1273
    %v1371 = vadd.f32 %v153, %v1275
    %v1372 = vadd.f32 %v154, %v1277
    %v1373 = vadd.f32 %v155, %v1281
    %v1374 = vadd.f32 %v156, %v1283
    %v1375 = vadd.f32 %v157, %v1285
    %v1376 = vadd.f32 %v158, %v1287
    %v1377 = vadd.f32 %v159, %v1291
    %v1378 = vadd.f32 %v160, %v1293
    %v1379 = vadd.f32 %v161, %v1295
    %v1380 = vadd.f32 %v162, %v1297
    %v1381 = vadd.f32 %v163, %v1301
    %v1382 = vadd.f32 %v164, %v1303
    %v1383 = vadd.f32 %v165, %v1305
    %v1384 = vadd.f32 %v166, %v1307
    %v1385 = vadd.f32 %v167, %v1311
    %v1386 = vadd.f32 %v168, %v1313
    %v1387 = vadd.f32 %v169, %v1315
    %v1388 = vadd.f32 %v170, %v1317
    %v1389 = vadd.f32 %v171, %v1321
    %v1390 = vadd.f32 %v172, %v1323
    %v1391 = vadd.f32 %v173, %v1325
    %v1392 = vadd.f32 %v174, %v1327
    %1393 = vst [vmem:[#allocation7] sm:$0xff] %v1329
    %1394 = vst [vmem:[#allocation7 + $0x8] sm:$0xff] %v1330
    %1395 = vst [vmem:[#allocation7 + $0x10] sm:$0xff] %v1331
    %1396 = vst [vmem:[#allocation7 + $0x18] sm:$0xff] %v1332
    %1397 = vst [vmem:[#allocation7 + $0x20] sm:$0xff] %v1333
    %1398 = vst [vmem:[#allocation7 + $0x28] sm:$0xff] %v1334
    %1399 = vst [vmem:[#allocation7 + $0x30] sm:$0xff] %v1335
    %1400 = vst [vmem:[#allocation7 + $0x38] sm:$0xff] %v1336
    %1401 = vst [vmem:[#allocation7 + $0x40] sm:$0xff] %v1337
    %1402 = vst [vmem:[#allocation7 + $0x48] sm:$0xff] %v1338
    %1403 = vst [vmem:[#allocation7 + $0x50] sm:$0xff] %v1339
    %1404 = vst [vmem:[#allocation7 + $0x58] sm:$0xff] %v1340
    %1405 = vst [vmem:[#allocation7 + $0x60] sm:$0xff] %v1341
    %1406 = vst [vmem:[#allocation7 + $0x68] sm:$0xff] %v1342
    %1407 = vst [vmem:[#allocation7 + $0x70] sm:$0xff] %v1343
    %1408 = vst [vmem:[#allocation7 + $0x78] sm:$0xff] %v1344
    %1409 = vst [vmem:[#allocation7 + $0x80] sm:$0xff] %v1345
    %1410 = vst [vmem:[#allocation7 + $0x88] sm:$0xff] %v1346
    %1411 = vst [vmem:[#allocation7 + $0x90] sm:$0xff] %v1347
    %1412 = vst [vmem:[#allocation7 + $0x98] sm:$0xff] %v1348
    %1413 = vst [vmem:[#allocation7 + $0xa0] sm:$0xff] %v1349
    %1414 = vst [vmem:[#allocation7 + $0xa8] sm:$0xff] %v1350
    %1415 = vst [vmem:[#allocation7 + $0xb0] sm:$0xff] %v1351
    %1416 = vst [vmem:[#allocation7 + $0xb8] sm:$0xff] %v1352
    %1417 = vst [vmem:[#allocation7 + $0xc0] sm:$0xff] %v1353
    %1418 = vst [vmem:[#allocation7 + $0xc8] sm:$0xff] %v1354
    %1419 = vst [vmem:[#allocation7 + $0xd0] sm:$0xff] %v1355
    %1420 = vst [vmem:[#allocation7 + $0xd8] sm:$0xff] %v1356
    %1421 = vst [vmem:[#allocation7 + $0xe0] sm:$0xff] %v1357
    %1422 = vst [vmem:[#allocation7 + $0xe8] sm:$0xff] %v1358
    %1423 = vst [vmem:[#allocation7 + $0xf0] sm:$0xff] %v1359
    %1424 = vst [vmem:[#allocation7 + $0xf8] sm:$0xff] %v1360
    %1425 = vst [vmem:[#allocation7 + $0x100] sm:$0xff] %v1361
    %1426 = vst [vmem:[#allocation7 + $0x108] sm:$0xff] %v1362
    %1427 = vst [vmem:[#allocation7 + $0x110] sm:$0xff] %v1363
    %1428 = vst [vmem:[#allocation7 + $0x118] sm:$0xff] %v1364
    %1429 = vst [vmem:[#allocation7 + $0x120] sm:$0xff] %v1365
    %1430 = vst [vmem:[#allocation7 + $0x128] sm:$0xff] %v1366
    %1431 = vst [vmem:[#allocation7 + $0x130] sm:$0xff] %v1367
    %1432 = vst [vmem:[#allocation7 + $0x138] sm:$0xff] %v1368
    %1433 = vst [vmem:[#allocation7 + $0x140] sm:$0xff] %v1369
    %1434 = vst [vmem:[#allocation7 + $0x148] sm:$0xff] %v1370
    %1435 = vst [vmem:[#allocation7 + $0x150] sm:$0xff] %v1371
    %1436 = vst [vmem:[#allocation7 + $0x158] sm:$0xff] %v1372
    %1437 = vst [vmem:[#allocation7 + $0x160] sm:$0xff] %v1373
    %1438 = vst [vmem:[#allocation7 + $0x168] sm:$0xff] %v1374
    %1439 = vst [vmem:[#allocation7 + $0x170] sm:$0xff] %v1375
    %1440 = vst [vmem:[#allocation7 + $0x178] sm:$0xff] %v1376
    %1441 = vst [vmem:[#allocation7 + $0x180] sm:$0xff] %v1377
    %1442 = vst [vmem:[#allocation7 + $0x188] sm:$0xff] %v1378
    %1443 = vst [vmem:[#allocation7 + $0x190] sm:$0xff] %v1379
    %1444 = vst [vmem:[#allocation7 + $0x198] sm:$0xff] %v1380
    %1445 = vst [vmem:[#allocation7 + $0x1a0] sm:$0xff] %v1381
    %1446 = vst [vmem:[#allocation7 + $0x1a8] sm:$0xff] %v1382
    %1447 = vst [vmem:[#allocation7 + $0x1b0] sm:$0xff] %v1383
    %1448 = vst [vmem:[#allocation7 + $0x1b8] sm:$0xff] %v1384
    %1449 = vst [vmem:[#allocation7 + $0x1c0] sm:$0xff] %v1385
    %1450 = vst [vmem:[#allocation7 + $0x1c8] sm:$0xff] %v1386
    %1451 = vst [vmem:[#allocation7 + $0x1d0] sm:$0xff] %v1387
    %1452 = vst [vmem:[#allocation7 + $0x1d8] sm:$0xff] %v1388
    %1453 = vst [vmem:[#allocation7 + $0x1e0] sm:$0xff] %v1389
    %1454 = vst [vmem:[#allocation7 + $0x1e8] sm:$0xff] %v1390
    %1455 = vst [vmem:[#allocation7 + $0x1f0] sm:$0xff] %v1391
    %1456 = vst [vmem:[#allocation7 + $0x1f8] sm:$0xff] %v1392
    // Predicated region
    $region26: #{tpu_custom_call.1} parent=1 // pred_check
      %p1457 = pneg %p43
    $region27: #{tpu_custom_call.1} parent=1 // pred_check_branch
      %1459 = sbr.rel (%p1457) target = $region29
    $region28: #{tpu_custom_call.1} parent=1 // pred_region
      %v1460 = vld [vmem:[#allocation7] sm:$0xff]
      %v1461 = vld [vmem:[#allocation7 + $0x8] sm:$0xff]
      %v1462 = vld [vmem:[#allocation7 + $0x10] sm:$0xff]
      %v1463 = vld [vmem:[#allocation7 + $0x18] sm:$0xff]
      %v1464 = vld [vmem:[#allocation7 + $0x20] sm:$0xff]
      %v1465 = vld [vmem:[#allocation7 + $0x28] sm:$0xff]
      %v1466 = vld [vmem:[#allocation7 + $0x30] sm:$0xff]
      %v1467 = vld [vmem:[#allocation7 + $0x38] sm:$0xff]
      %v1468 = vld [vmem:[#allocation7 + $0x40] sm:$0xff]
      %v1469 = vld [vmem:[#allocation7 + $0x48] sm:$0xff]
      %v1470 = vld [vmem:[#allocation7 + $0x50] sm:$0xff]
      %v1471 = vld [vmem:[#allocation7 + $0x58] sm:$0xff]
      %v1472 = vld [vmem:[#allocation7 + $0x60] sm:$0xff]
      %v1473 = vld [vmem:[#allocation7 + $0x68] sm:$0xff]
      %v1474 = vld [vmem:[#allocation7 + $0x70] sm:$0xff]
      %v1475 = vld [vmem:[#allocation7 + $0x78] sm:$0xff]
      %v1476 = vld [vmem:[#allocation7 + $0x80] sm:$0xff]
      %v1477 = vld [vmem:[#allocation7 + $0x88] sm:$0xff]
      %v1478 = vld [vmem:[#allocation7 + $0x90] sm:$0xff]
      %v1479 = vld [vmem:[#allocation7 + $0x98] sm:$0xff]
      %v1480 = vld [vmem:[#allocation7 + $0xa0] sm:$0xff]
      %v1481 = vld [vmem:[#allocation7 + $0xa8] sm:$0xff]
      %v1482 = vld [vmem:[#allocation7 + $0xb0] sm:$0xff]
      %v1483 = vld [vmem:[#allocation7 + $0xb8] sm:$0xff]
      %v1484 = vld [vmem:[#allocation7 + $0xc0] sm:$0xff]
      %v1485 = vld [vmem:[#allocation7 + $0xc8] sm:$0xff]
      %v1486 = vld [vmem:[#allocation7 + $0xd0] sm:$0xff]
      %v1487 = vld [vmem:[#allocation7 + $0xd8] sm:$0xff]
      %v1488 = vld [vmem:[#allocation7 + $0xe0] sm:$0xff]
      %v1489 = vld [vmem:[#allocation7 + $0xe8] sm:$0xff]
      %v1490 = vld [vmem:[#allocation7 + $0xf0] sm:$0xff]
      %v1491 = vld [vmem:[#allocation7 + $0xf8] sm:$0xff]
      %v1492 = vld [vmem:[#allocation7 + $0x100] sm:$0xff]
      %v1493 = vld [vmem:[#allocation7 + $0x108] sm:$0xff]
      %v1494 = vld [vmem:[#allocation7 + $0x110] sm:$0xff]
      %v1495 = vld [vmem:[#allocation7 + $0x118] sm:$0xff]
      %v1496 = vld [vmem:[#allocation7 + $0x120] sm:$0xff]
      %v1497 = vld [vmem:[#allocation7 + $0x128] sm:$0xff]
      %v1498 = vld [vmem:[#allocation7 + $0x130] sm:$0xff]
      %v1499 = vld [vmem:[#allocation7 + $0x138] sm:$0xff]
      %v1500 = vld [vmem:[#allocation7 + $0x140] sm:$0xff]
      %v1501 = vld [vmem:[#allocation7 + $0x148] sm:$0xff]
      %v1502 = vld [vmem:[#allocation7 + $0x150] sm:$0xff]
      %v1503 = vld [vmem:[#allocation7 + $0x158] sm:$0xff]
      %v1504 = vld [vmem:[#allocation7 + $0x160] sm:$0xff]
      %v1505 = vld [vmem:[#allocation7 + $0x168] sm:$0xff]
      %v1506 = vld [vmem:[#allocation7 + $0x170] sm:$0xff]
      %v1507 = vld [vmem:[#allocation7 + $0x178] sm:$0xff]
      %v1508 = vld [vmem:[#allocation7 + $0x180] sm:$0xff]
      %v1509 = vld [vmem:[#allocation7 + $0x188] sm:$0xff]
      %v1510 = vld [vmem:[#allocation7 + $0x190] sm:$0xff]
      %v1511 = vld [vmem:[#allocation7 + $0x198] sm:$0xff]
      %v1512 = vld [vmem:[#allocation7 + $0x1a0] sm:$0xff]
      %v1513 = vld [vmem:[#allocation7 + $0x1a8] sm:$0xff]
      %v1514 = vld [vmem:[#allocation7 + $0x1b0] sm:$0xff]
      %v1515 = vld [vmem:[#allocation7 + $0x1b8] sm:$0xff]
      %v1516 = vld [vmem:[#allocation7 + $0x1c0] sm:$0xff]
      %v1517 = vld [vmem:[#allocation7 + $0x1c8] sm:$0xff]
      %v1518 = vld [vmem:[#allocation7 + $0x1d0] sm:$0xff]
      %v1519 = vld [vmem:[#allocation7 + $0x1d8] sm:$0xff]
      %v1520 = vld [vmem:[#allocation7 + $0x1e0] sm:$0xff]
      %v1521 = vld [vmem:[#allocation7 + $0x1e8] sm:$0xff]
      %v1522 = vld [vmem:[#allocation7 + $0x1f0] sm:$0xff]
      %v1523 = vld [vmem:[#allocation7 + $0x1f8] sm:$0xff]
      %v1524 = vld [vmem:[%s2] sm:$0x3]
      %v1526 = vlaneseq
      %v1527 = vshrl.u32 %v1526, 7
      %v1528 = vsub.s32 0, %v1527
      %v1529 = vrot.slane %v1524, %v1528
      %v1530 = vlaneseq
      %v1531 = vshrl.u32 %v1530, 7
      %v1532 = vsub.s32 1, %v1531
      %v1533 = vrot.slane %v1524, %v1532
      %v1536 = vadd.f32 %v1460, %v1529
      %v1537 = vadd.f32 %v1461, %v1533
      %v1538 = vadd.f32 %v1462, %v1529
      %v1539 = vadd.f32 %v1463, %v1533
      %v1540 = vadd.f32 %v1464, %v1529
      %v1541 = vadd.f32 %v1465, %v1533
      %v1542 = vadd.f32 %v1466, %v1529
      %v1543 = vadd.f32 %v1467, %v1533
      %v1544 = vadd.f32 %v1468, %v1529
      %v1545 = vadd.f32 %v1469, %v1533
      %v1546 = vadd.f32 %v1470, %v1529
      %v1547 = vadd.f32 %v1471, %v1533
      %v1548 = vadd.f32 %v1472, %v1529
      %v1549 = vadd.f32 %v1473, %v1533
      %v1550 = vadd.f32 %v1474, %v1529
      %v1551 = vadd.f32 %v1475, %v1533
      %v1552 = vadd.f32 %v1476, %v1529
      %v1553 = vadd.f32 %v1477, %v1533
      %v1554 = vadd.f32 %v1478, %v1529
      %v1555 = vadd.f32 %v1479, %v1533
      %v1556 = vadd.f32 %v1480, %v1529
      %v1557 = vadd.f32 %v1481, %v1533
      %v1558 = vadd.f32 %v1482, %v1529
      %v1559 = vadd.f32 %v1483, %v1533
      %v1560 = vadd.f32 %v1484, %v1529
      %v1561 = vadd.f32 %v1485, %v1533
      %v1562 = vadd.f32 %v1486, %v1529
      %v1563 = vadd.f32 %v1487, %v1533
      %v1564 = vadd.f32 %v1488, %v1529
      %v1565 = vadd.f32 %v1489, %v1533
      %v1566 = vadd.f32 %v1490, %v1529
      %v1567 = vadd.f32 %v1491, %v1533
      %v1568 = vadd.f32 %v1492, %v1529
      %v1569 = vadd.f32 %v1493, %v1533
      %v1570 = vadd.f32 %v1494, %v1529
      %v1571 = vadd.f32 %v1495, %v1533
      %v1572 = vadd.f32 %v1496, %v1529
      %v1573 = vadd.f32 %v1497, %v1533
      %v1574 = vadd.f32 %v1498, %v1529
      %v1575 = vadd.f32 %v1499, %v1533
      %v1576 = vadd.f32 %v1500, %v1529
      %v1577 = vadd.f32 %v1501, %v1533
      %v1578 = vadd.f32 %v1502, %v1529
      %v1579 = vadd.f32 %v1503, %v1533
      %v1580 = vadd.f32 %v1504, %v1529
      %v1581 = vadd.f32 %v1505, %v1533
      %v1582 = vadd.f32 %v1506, %v1529
      %v1583 = vadd.f32 %v1507, %v1533
      %v1584 = vadd.f32 %v1508, %v1529
      %v1585 = vadd.f32 %v1509, %v1533
      %v1586 = vadd.f32 %v1510, %v1529
      %v1587 = vadd.f32 %v1511, %v1533
      %v1588 = vadd.f32 %v1512, %v1529
      %v1589 = vadd.f32 %v1513, %v1533
      %v1590 = vadd.f32 %v1514, %v1529
      %v1591 = vadd.f32 %v1515, %v1533
      %v1592 = vadd.f32 %v1516, %v1529
      %v1593 = vadd.f32 %v1517, %v1533
      %v1594 = vadd.f32 %v1518, %v1529
      %v1595 = vadd.f32 %v1519, %v1533
      %v1596 = vadd.f32 %v1520, %v1529
      %v1597 = vadd.f32 %v1521, %v1533
      %v1598 = vadd.f32 %v1522, %v1529
      %v1599 = vadd.f32 %v1523, %v1533
      %1600 = vst [vmem:[#allocation7] sm:$0xff] %v1536
      %1601 = vst [vmem:[#allocation7 + $0x8] sm:$0xff] %v1537
      %1602 = vst [vmem:[#allocation7 + $0x10] sm:$0xff] %v1538
      %1603 = vst [vmem:[#allocation7 + $0x18] sm:$0xff] %v1539
      %1604 = vst [vmem:[#allocation7 + $0x20] sm:$0xff] %v1540
      %1605 = vst [vmem:[#allocation7 + $0x28] sm:$0xff] %v1541
      %1606 = vst [vmem:[#allocation7 + $0x30] sm:$0xff] %v1542
      %1607 = vst [vmem:[#allocation7 + $0x38] sm:$0xff] %v1543
      %1608 = vst [vmem:[#allocation7 + $0x40] sm:$0xff] %v1544
      %1609 = vst [vmem:[#allocation7 + $0x48] sm:$0xff] %v1545
      %1610 = vst [vmem:[#allocation7 + $0x50] sm:$0xff] %v1546
      %1611 = vst [vmem:[#allocation7 + $0x58] sm:$0xff] %v1547
      %1612 = vst [vmem:[#allocation7 + $0x60] sm:$0xff] %v1548
      %1613 = vst [vmem:[#allocation7 + $0x68] sm:$0xff] %v1549
      %1614 = vst [vmem:[#allocation7 + $0x70] sm:$0xff] %v1550
      %1615 = vst [vmem:[#allocation7 + $0x78] sm:$0xff] %v1551
      %1616 = vst [vmem:[#allocation7 + $0x80] sm:$0xff] %v1552
      %1617 = vst [vmem:[#allocation7 + $0x88] sm:$0xff] %v1553
      %1618 = vst [vmem:[#allocation7 + $0x90] sm:$0xff] %v1554
      %1619 = vst [vmem:[#allocation7 + $0x98] sm:$0xff] %v1555
      %1620 = vst [vmem:[#allocation7 + $0xa0] sm:$0xff] %v1556
      %1621 = vst [vmem:[#allocation7 + $0xa8] sm:$0xff] %v1557
      %1622 = vst [vmem:[#allocation7 + $0xb0] sm:$0xff] %v1558
      %1623 = vst [vmem:[#allocation7 + $0xb8] sm:$0xff] %v1559
      %1624 = vst [vmem:[#allocation7 + $0xc0] sm:$0xff] %v1560
      %1625 = vst [vmem:[#allocation7 + $0xc8] sm:$0xff] %v1561
      %1626 = vst [vmem:[#allocation7 + $0xd0] sm:$0xff] %v1562
      %1627 = vst [vmem:[#allocation7 + $0xd8] sm:$0xff] %v1563
      %1628 = vst [vmem:[#allocation7 + $0xe0] sm:$0xff] %v1564
      %1629 = vst [vmem:[#allocation7 + $0xe8] sm:$0xff] %v1565
      %1630 = vst [vmem:[#allocation7 + $0xf0] sm:$0xff] %v1566
      %1631 = vst [vmem:[#allocation7 + $0xf8] sm:$0xff] %v1567
      %1632 = vst [vmem:[#allocation7 + $0x100] sm:$0xff] %v1568
      %1633 = vst [vmem:[#allocation7 + $0x108] sm:$0xff] %v1569
      %1634 = vst [vmem:[#allocation7 + $0x110] sm:$0xff] %v1570
      %1635 = vst [vmem:[#allocation7 + $0x118] sm:$0xff] %v1571
      %1636 = vst [vmem:[#allocation7 + $0x120] sm:$0xff] %v1572
      %1637 = vst [vmem:[#allocation7 + $0x128] sm:$0xff] %v1573
      %1638 = vst [vmem:[#allocation7 + $0x130] sm:$0xff] %v1574
      %1639 = vst [vmem:[#allocation7 + $0x138] sm:$0xff] %v1575
      %1640 = vst [vmem:[#allocation7 + $0x140] sm:$0xff] %v1576
      %1641 = vst [vmem:[#allocation7 + $0x148] sm:$0xff] %v1577
      %1642 = vst [vmem:[#allocation7 + $0x150] sm:$0xff] %v1578
      %1643 = vst [vmem:[#allocation7 + $0x158] sm:$0xff] %v1579
      %1644 = vst [vmem:[#allocation7 + $0x160] sm:$0xff] %v1580
      %1645 = vst [vmem:[#allocation7 + $0x168] sm:$0xff] %v1581
      %1646 = vst [vmem:[#allocation7 + $0x170] sm:$0xff] %v1582
      %1647 = vst [vmem:[#allocation7 + $0x178] sm:$0xff] %v1583
      %1648 = vst [vmem:[#allocation7 + $0x180] sm:$0xff] %v1584
      %1649 = vst [vmem:[#allocation7 + $0x188] sm:$0xff] %v1585
      %1650 = vst [vmem:[#allocation7 + $0x190] sm:$0xff] %v1586
      %1651 = vst [vmem:[#allocation7 + $0x198] sm:$0xff] %v1587
      %1652 = vst [vmem:[#allocation7 + $0x1a0] sm:$0xff] %v1588
      %1653 = vst [vmem:[#allocation7 + $0x1a8] sm:$0xff] %v1589
      %1654 = vst [vmem:[#allocation7 + $0x1b0] sm:$0xff] %v1590
      %1655 = vst [vmem:[#allocation7 + $0x1b8] sm:$0xff] %v1591
      %1656 = vst [vmem:[#allocation7 + $0x1c0] sm:$0xff] %v1592
      %1657 = vst [vmem:[#allocation7 + $0x1c8] sm:$0xff] %v1593
      %1658 = vst [vmem:[#allocation7 + $0x1d0] sm:$0xff] %v1594
      %1659 = vst [vmem:[#allocation7 + $0x1d8] sm:$0xff] %v1595
      %1660 = vst [vmem:[#allocation7 + $0x1e0] sm:$0xff] %v1596
      %1661 = vst [vmem:[#allocation7 + $0x1e8] sm:$0xff] %v1597
      %1662 = vst [vmem:[#allocation7 + $0x1f0] sm:$0xff] %v1598
      %1663 = vst [vmem:[#allocation7 + $0x1f8] sm:$0xff] %v1599
    $region29: #{tpu_custom_call.1} parent=1 // pred_fallthru
      _
    // Predicated region
    $region30: #{tpu_custom_call.1} parent=1 // pred_check
      _
    $region31: #{tpu_custom_call.1} parent=1 // pred_check_branch
      %1665 = sbr.rel (0) target = $region33
    $region32: #{tpu_custom_call.1} parent=1 // pred_region
      %s1667 = ssub.s32 8192, 8192
      %1668 = vsyncadd [#allocation4], %s1667
      %s1669 = sshll.u32 [#allocation7], 4
      %s1670 = int_to_ptr.vmem [resolvable:$true] %s1669
      %1675 = dma.vmem_to_hbm [thread:$0]  %s1670, 8192, %s3, [#allocation4], 256, 256, 16
    $region33: #{tpu_custom_call.1} parent=1 // pred_fallthru
      _
    // Predicated region
    $region34: #{tpu_custom_call.1} parent=1 // pred_check
      _
    $region35: #{tpu_custom_call.1} parent=1 // pred_check_branch
      %1677 = sbr.rel (0) target = $region37
    $region36: #{tpu_custom_call.1} parent=1 // pred_region
      %1678 = dma.done [#allocation4], 8192
    $region37: #{tpu_custom_call.1} parent=1 // pred_fallthru
      _
    %1679 = vsyncpa [#allocation3], 1
    %1680 = vsyncpa [#allocation6], 1
    %1681 = vsyncpa [#allocation4], 1

// kernel: tile.38
$region0: #{tile.38}
  #allocation0 [shape = 's32[1]{0}', space=sflag, size = 0x4, scoped, tag = 'scoped memory for tile.38']
  %s0 = inlined_call_operand.vmem [shape: f32[64], index: 0, kind: input, shape index: {}]
  %s1 = inlined_call_operand.vmem [shape: f32[4,64], index: 1, kind: output, shape index: {}]
  // Predicated region
  $region2: #{tile.38} parent=0 // pred_check
    _
  $region3: #{tile.38} parent=0 // pred_check_branch
    %3 = sbr.rel (0) target = $region5
  $region4: #{tile.38} parent=0 // pred_region
    _
  $region5: #{tile.38} parent=0 // pred_fallthru
    _
  %v4 = vld [vmem:[%s0] ss:$0 sm:$0xff]
  %5 = vst [vmem:[%s1] sm:$0xf] %v4

</llo_original>
